<compile_context>
chip_gen: v7x
topology: tpu7x:2x2x1
jax: 0.10.0
libtpu: 0.0.40
codegen_flags: <defaults>
</compile_context>

<pallas_src>
import functools

import jax
import jax.numpy as jnp
from jax.experimental import pallas as pl
from jax.experimental.pallas import tpu as pltpu

F32 = jnp.float32
BF16 = jnp.bfloat16
BN_EPS = 1e-5

_VMEM_SPEC = pl.BlockSpec(memory_space=pltpu.MemorySpace.VMEM)


def _sigmoid(z):
    # explicit form (exp + reciprocal) -> EUP, robust Mosaic lowering
    return 1.0 / (1.0 + jnp.exp(-z))


# ----------------------------- Pallas kernel bodies -----------------------------

def _gemm_act_kernel(x_ref, w_ref, b_ref, o_ref, *, act):
    """act(x @ w + b): conv(+BN folded) or linear, f32 MXU accumulation."""
    y = jnp.dot(x_ref[...], w_ref[...], preferred_element_type=jnp.float32) + b_ref[...]
    if act == "relu":
        y = jnp.maximum(y, 0.0)
    elif act == "sigmoid":
        y = _sigmoid(y)
    o_ref[...] = y.astype(o_ref.dtype)


def _gemm_res_kernel(x_ref, w_ref, b_ref, r_ref, o_ref):
    """relu(x @ w + b + residual): conv2+BN2 + identity add of a basic block."""
    y = (jnp.dot(x_ref[...], w_ref[...], preferred_element_type=jnp.float32)
         + b_ref[...] + r_ref[...])
    o_ref[...] = jnp.maximum(y, 0.0).astype(o_ref.dtype)


def _gemm_ds_res_kernel(x_ref, w_ref, b_ref, xds_ref, wds_ref, bds_ref, o_ref):
    """relu(x @ w + b + (xds @ wds + bds)): conv2 + downsample residual in one call."""
    idn = (jnp.dot(xds_ref[...], wds_ref[...], preferred_element_type=jnp.float32)
           + bds_ref[...])
    y = (jnp.dot(x_ref[...], w_ref[...], preferred_element_type=jnp.float32)
         + b_ref[...] + idn)
    o_ref[...] = jnp.maximum(y, 0.0).astype(o_ref.dtype)


def _fused_ds_block_kernel(p1_ref, xds_ref, w1_ref, b1_ref, wds_ref, bds_ref,
                           w2_ref, b2_ref, o_ref):
    """Whole downsample basic block at 1x1 output spatial: a 3-GEMM chain in VMEM."""
    h = jnp.dot(p1_ref[...], w1_ref[...], preferred_element_type=jnp.float32) + b1_ref[...]
    h = jnp.maximum(h, 0.0)
    idn = (jnp.dot(xds_ref[...], wds_ref[...], preferred_element_type=jnp.float32)
           + bds_ref[...])
    y = (jnp.dot(h.astype(BF16), w2_ref[...], preferred_element_type=jnp.float32)
         + b2_ref[...] + idn)
    o_ref[...] = jnp.maximum(y, 0.0).astype(o_ref.dtype)


def _fused_id_block_kernel(x_ref, w1_ref, b1_ref, w2_ref, b2_ref, o_ref):
    """Whole identity basic block at 1x1 spatial: conv1 -> relu -> conv2 + x -> relu."""
    x = x_ref[...]                                    # f32 residual path
    xb = x.astype(BF16)
    h = jnp.maximum(
        jnp.dot(xb, w1_ref[...], preferred_element_type=jnp.float32) + b1_ref[...], 0.0)
    y = (jnp.dot(h.astype(BF16), w2_ref[...], preferred_element_type=jnp.float32)
         + b2_ref[...] + x)
    o_ref[...] = jnp.maximum(y, 0.0).astype(o_ref.dtype)


def _maxpool_kernel(p_ref, o_ref):
    """p_ref: [9, M, C] window taps (-inf padded) -> max over the leading window axis."""
    o_ref[...] = jnp.max(p_ref[...], axis=0)


def _head_kernel(x_ref, w1_ref, b1_ref, w2_ref, b2_ref, w3_ref, b3_ref, o_ref):
    """Global avg-pool + fc1/ReLU + fc2/ReLU + fc3/Sigmoid fused in one kernel.
    x_ref: [HW, N, 512] f32; fc3 zero-padded to 128 lanes, caller slices [:, :3]."""
    feats = jnp.mean(x_ref[...], axis=0)              # [N, 512]
    h = jnp.maximum(
        jnp.dot(feats.astype(BF16), w1_ref[...], preferred_element_type=jnp.float32)
        + b1_ref[...], 0.0)
    h = jnp.maximum(
        jnp.dot(h.astype(BF16), w2_ref[...], preferred_element_type=jnp.float32)
        + b2_ref[...], 0.0)
    z = (jnp.dot(h.astype(BF16), w3_ref[...], preferred_element_type=jnp.float32)
         + b3_ref[...])
    o_ref[...] = _sigmoid(z).astype(o_ref.dtype)


# ----------------------------- pallas_call helpers -----------------------------

def _call(kernel, n_in, out_shape):
    """Single-step whole-array pallas_call (all operands resident in VMEM)."""
    return pl.pallas_call(
        kernel,
        in_specs=[_VMEM_SPEC] * n_in,
        out_specs=_VMEM_SPEC,
        out_shape=out_shape,
    )


# ----------------------------- XLA-side glue (im2col, pooling windows) -----------------------------

def _im2col(x, kh, kw, stride, pad):
    """x: [N, H, W, C] -> zero-padded patches [N, OH, OW, KH*KW, C].
    # TODO(synk): move im2col into the Pallas kernels (strided VMEM reads) if spatial
    # size / batch ever grows; at 16x16 the XLA-side stack is negligible."""
    N, H, W, C = x.shape
    xp = jnp.pad(x, ((0, 0), (pad, pad), (pad, pad), (0, 0)))
    OH = (H + 2 * pad - kh) // stride + 1
    OW = (W + 2 * pad - kw) // stride + 1
    cols = []
    for i in range(kh):
        for j in range(kw):
            cols.append(xp[:, i:i + stride * OH:stride, j:j + stride * OW:stride, :])
    return jnp.stack(cols, axis=3), OH, OW


def conv_gemm(x, cp, kh, kw, stride, pad, act="relu"):
    """Conv + folded BN (+act) as an im2col GEMM (single pallas_call)."""
    N, _, _, C = x.shape
    patches, OH, OW = _im2col(x, kh, kw, stride, pad)
    pmat = patches.reshape(N * OH * OW, kh * kw * C).astype(BF16)
    OC = cp["w"].shape[1]
    y = _call(functools.partial(_gemm_act_kernel, act=act), 3,
              jax.ShapeDtypeStruct((N * OH * OW, OC), F32))(pmat, cp["w"], cp["b"])
    return y.reshape(N, OH, OW, OC)


def conv_gemm_residual(x, cp, kh, kw, stride, pad, residual):
    """conv2 + folded BN2 + identity residual + ReLU fused in one GEMM epilogue."""
    N, _, _, C = x.shape
    patches, OH, OW = _im2col(x, kh, kw, stride, pad)
    pmat = patches.reshape(N * OH * OW, kh * kw * C).astype(BF16)
    OC = cp["w"].shape[1]
    r = residual.reshape(N * OH * OW, OC).astype(F32)
    y = _call(_gemm_res_kernel, 4,
              jax.ShapeDtypeStruct((N * OH * OW, OC), F32))(pmat, cp["w"], cp["b"], r)
    return y.reshape(N, OH, OW, OC)


def conv_gemm_ds_residual(x, cp, kh, kw, stride, pad, xds, dsp):
    """conv2 + BN2 + (1x1 stride-2 downsample conv+BN of the block input) + ReLU."""
    N, _, _, C = x.shape
    patches, OH, OW = _im2col(x, kh, kw, stride, pad)
    pmat = patches.reshape(N * OH * OW, kh * kw * C).astype(BF16)
    OC = cp["w"].shape[1]
    xds_flat = xds.reshape(N * OH * OW, xds.shape[-1]).astype(BF16)
    y = _call(_gemm_ds_res_kernel, 6,
              jax.ShapeDtypeStruct((N * OH * OW, OC), F32))(
                  pmat, cp["w"], cp["b"], xds_flat, dsp["w"], dsp["b"])
    return y.reshape(N, OH, OW, OC)


def maxpool_3x3_s2_p1(x):
    """MaxPool2d(3, stride=2, padding=1): window taps stacked on the leading axis,
    reduced with a single Pallas max kernel."""
    N, H, W, C = x.shape
    xp = jnp.pad(x, ((0, 0), (1, 1), (1, 1), (0, 0)), constant_values=-jnp.inf)
    OH = (H - 1) // 2 + 1
    OW = (W - 1) // 2 + 1
    cols = [xp[:, i:i + 2 * OH:2, j:j + 2 * OW:2, :] for i in range(3) for j in range(3)]
    p = jnp.stack(cols, axis=0).reshape(9, N * OH * OW, C)
    y = _call(_maxpool_kernel, 1, jax.ShapeDtypeStruct((N * OH * OW, C), F32))(p)
    return y.reshape(N, OH, OW, C)


# ----------------------------- fused blocks (layer3 / layer4) & head -----------------------------

def fused_ds_block(x, bp, stride=2):
    """Downsample basic block fused into one pallas_call (needs 1x1 conv1 output)."""
    N, H, W, Cin = x.shape
    OH = (H + 2 - 3) // stride + 1
    OW = (W + 2 - 3) // stride + 1
    assert OH == 1 and OW == 1, "fused block path requires 1x1 conv1 output spatial"
    Cout = bp["b2"].shape[1]
    if H == 1 and W == 1:
        # a 3x3 pad-1 conv on a 1x1 input only sees its centre tap
        p1 = x[:, 0, 0, :].astype(BF16)
        w1 = bp["w1c"]
    else:
        patches, _, _ = _im2col(x, 3, 3, stride, 1)
        p1 = patches.reshape(N, 9 * Cin).astype(BF16)
        w1 = bp["w1"]
    xds = x[:, 0, 0, :].astype(BF16)   # 1x1 stride-s conv with 1x1 output reads (0, 0)
    y = _call(_fused_ds_block_kernel, 8,
              jax.ShapeDtypeStruct((N, Cout), F32))(
                  p1, xds, w1, bp["b1"], bp["wds"], bp["bds"], bp["w2c"], bp["b2"])
    return y.reshape(N, 1, 1, Cout)


def fused_id_block(x, bp):
    """Identity basic block at 1x1 spatial: both 3x3 convs collapse to centre-tap GEMMs."""
    N, H, W, C = x.shape
    assert H == 1 and W == 1, "fused identity block requires 1x1 spatial"
    x2 = x.reshape(N, C)
    y = _call(_fused_id_block_kernel, 5,
              jax.ShapeDtypeStruct((N, C), F32))(
                  x2, bp["w1c"], bp["b1"], bp["w2c"], bp["b2"])
    return y.reshape(N, 1, 1, C)


def mlp_head_fused(x, hp):
    """Global avg-pool + MLP head (Dropout = identity in eval) in one pallas_call."""
    N, H, W, C = x.shape
    xh = jnp.transpose(x.reshape(N, H * W, C), (1, 0, 2))   # [HW, N, C]
    padded = _call(_head_kernel, 7,
                   jax.ShapeDtypeStruct((N, hp["w3"].shape[1]), F32))(
                       xh, hp["w1"], hp["b1"], hp["w2"], hp["b2"], hp["w3"], hp["b3"])
    return padded[:, :3]


# ----------------------------- ResNet18 + MLP forward -----------------------------

@jax.jit
def resnet18_with_mlp(x_nchw, p):
    x = jnp.transpose(x_nchw, (0, 2, 3, 1)).astype(F32)     # NCHW -> NHWC (channels on lanes)

    # --- stem: conv1 7x7/2 + BN + ReLU, maxpool 3x3/2 ---
    x = conv_gemm(x, p["conv1"], 7, 7, 2, 3)                 # [N, 8, 8, 64]
    x = maxpool_3x3_s2_p1(x)                                 # [N, 4, 4, 64]

    # --- layer1: two identity blocks (64 ch, stride 1) ---
    for blk in p["layer1"]:
        out = conv_gemm(x, blk["conv1"], 3, 3, 1, 1)
        x = conv_gemm_residual(out, blk["conv2"], 3, 3, 1, 1, residual=x)

    # --- layer2: downsample block (stride 2, 64->128) + identity block ---
    blk = p["layer2"][0]
    out = conv_gemm(x, blk["conv1"], 3, 3, 2, 1)
    x = conv_gemm_ds_residual(out, blk["conv2"], 3, 3, 1, 1,
                              xds=x[:, ::2, ::2, :], dsp=blk["ds"])
    blk = p["layer2"][1]
    out = conv_gemm(x, blk["conv1"], 3, 3, 1, 1)
    x = conv_gemm_residual(out, blk["conv2"], 3, 3, 1, 1, residual=x)

    # --- layer3 / layer4: spatial is 1x1 -> each whole block is ONE fused pallas_call ---
    x = fused_ds_block(x, p["layer3"][0], stride=2)          # [N, 1, 1, 256]
    x = fused_id_block(x, p["layer3"][1])
    x = fused_ds_block(x, p["layer4"][0], stride=2)          # [N, 1, 1, 512]
    x = fused_id_block(x, p["layer4"][1])

    # --- global avg-pool + MLP head (features.fc is Identity) ---
    return mlp_head_fused(x, p["head"])                      # [N, 3]


# ----------------------------- parameter init (PyTorch-like) -----------------------------

def _conv_w(key, oc, ic, kh, kw):
    fan_in = ic * kh * kw
    return jax.random.normal(key, (oc, ic, kh, kw), F32) * (2.0 / fan_in) ** 0.5


def _bn_params(key, c):
    k1, k2, k3, k4 = jax.random.split(key, 4)
    return {
        "gamma": 1.0 + 0.1 * jax.random.normal(k1, (c,), F32),
        "beta": 0.1 * jax.random.normal(k2, (c,), F32),
        "mean": 0.1 * jax.random.normal(k3, (c,), F32),
        "var": 1.0 + 0.1 * jnp.abs(jax.random.normal(k4, (c,), F32)),
    }


def _linear_params(key, fi, fo):
    k1, k2 = jax.random.split(key)
    bound = 1.0 / (fi ** 0.5)
    w = jax.random.uniform(k1, (fi, fo), F32, -bound, bound)   # stored [in, out]
    b = jax.random.uniform(k2, (fo,), F32, -bound, bound)
    return w, b


def _block_params(key, in_c, out_c, downsample):
    ks = jax.random.split(key, 6)
    p = {
        "conv1_w": _conv_w(ks[0], out_c, in_c, 3, 3),
        "bn1": _bn_params(ks[1], out_c),
        "conv2_w": _conv_w(ks[2], out_c, out_c, 3, 3),
        "bn2": _bn_params(ks[3], out_c),
    }
    if downsample:
        p["ds_conv_w"] = _conv_w(ks[4], out_c, in_c, 1, 1)
        p["ds_bn"] = _bn_params(ks[5], out_c)
    return p


def make_params(key):
    keys = jax.random.split(key, 16)
    p = {"conv1_w": _conv_w(keys[0], 64, 3, 7, 7), "bn1": _bn_params(keys[1], 64)}
    cfg = [("layer1", 64, 64), ("layer2", 64, 128),
           ("layer3", 128, 256), ("layer4", 256, 512)]
    ki = 2
    for name, in_c, out_c in cfg:
        blocks = []
        for bi in range(2):
            downsample = (bi == 0 and in_c != out_c)
            block_in = in_c if bi == 0 else out_c
            blocks.append(_block_params(keys[ki], block_in, out_c, downsample))
            ki += 1
        p[name] = blocks
    p["fc1_w"], p["fc1_b"] = _linear_params(keys[10], 512, 512)
    p["fc2_w"], p["fc2_b"] = _linear_params(keys[11], 512, 256)
    p["fc3_w"], p["fc3_b"] = _linear_params(keys[12], 256, 3)
    return p


# ----------------------------- inference-time parameter prep -----------------------------

def prepare_inference_params(p):
    """One-time, outside jit: fold BN into the conv GEMM weights (scale -> weights,
    shift -> GEMM bias), pre-transpose to [KH*KW*IC, OC] GEMM layout, cast weights to
    bf16, slice the centre-tap weights used by the fused 1x1-spatial layer3/layer4
    blocks, and zero-pad fc3 to 128 output lanes for a lane-dense store.
    # TODO(synk): 8-bit weight quantization (int8 on v5e/v6e, fp8 on v7x) would halve the
    # remaining ~5 MB weight stream; kept bf16 here for numerical fidelity."""
    def fold(w_oihw, bn):
        OC, IC, KH, KW = w_oihw.shape
        scale = bn["gamma"] / jnp.sqrt(bn["var"] + BN_EPS)
        shift = bn["beta"] - bn["mean"] * scale
        wmat = (jnp.transpose(w_oihw, (2, 3, 1, 0)).reshape(KH * KW * IC, OC)
                * scale[None, :])
        return wmat.astype(BF16), shift.reshape(1, OC).astype(F32)

    def center(wmat, ic):
        # centre tap (1, 1) of a 3x3 conv in [KH*KW*IC, OC] layout -> rows [4*ic, 5*ic)
        return wmat[4 * ic:5 * ic]

    q = {}
    w, b = fold(p["conv1_w"], p["bn1"])
    q["conv1"] = {"w": w, "b": b}

    for name in ("layer1", "layer2"):
        blocks = []
        for blk in p[name]:
            nb = {}
            w, b = fold(blk["conv1_w"], blk["bn1"]); nb["conv1"] = {"w": w, "b": b}
            w, b = fold(blk["conv2_w"], blk["bn2"]); nb["conv2"] = {"w": w, "b": b}
            if "ds_conv_w" in blk:
                w, b = fold(blk["ds_conv_w"], blk["ds_bn"]); nb["ds"] = {"w": w, "b": b}
            blocks.append(nb)
        q[name] = blocks

    for name in ("layer3", "layer4"):
        blk0, blk1 = p[name]
        ic0 = blk0["conv1_w"].shape[1]
        oc = blk0["conv1_w"].shape[0]
        w1, b1 = fold(blk0["conv1_w"], blk0["bn1"])
        wds, bds = fold(blk0["ds_conv_w"], blk0["ds_bn"])
        w2, b2 = fold(blk0["conv2_w"], blk0["bn2"])
        q0 = {"w1": w1, "w1c": center(w1, ic0), "b1": b1,
              "wds": wds, "bds": bds, "w2c": center(w2, oc), "b2": b2}
        w1b, b1b = fold(blk1["conv1_w"], blk1["bn1"])
        w2b, b2b = fold(blk1["conv2_w"], blk1["bn2"])
        q1 = {"w1c": center(w1b, oc), "b1": b1b, "w2c": center(w2b, oc), "b2": b2b}
        q[name] = [q0, q1]

    # MLP head; fc3 zero-padded to 128 output lanes (sliced back to 3 outside the kernel)
    w3p = jnp.zeros((p["fc3_w"].shape[0], 128), F32).at[:, :3].set(p["fc3_w"])
    b3p = jnp.zeros((128,), F32).at[:3].set(p["fc3_b"])
    q["head"] = {
        "w1": p["fc1_w"].astype(BF16), "b1": p["fc1_b"].reshape(1, -1).astype(F32),
        "w2": p["fc2_w"].astype(BF16), "b2": p["fc2_b"].reshape(1, -1).astype(F32),
        "w3": w3p.astype(BF16), "b3": b3p.reshape(1, -1).astype(F32),
    }
    return q


if __name__ == "__main__":
    key = jax.random.PRNGKey(0)
    pkey, xkey = jax.random.split(key)
    params = prepare_inference_params(make_params(pkey))
    x = jax.random.normal(xkey, (2, 3, 16, 16), F32)   # NCHW, batch=2, 3-channel 16x16
    out = resnet18_with_mlp(x, params)
    out = jax.block_until_ready(out)
    assert out.shape == (2, 3)
    assert bool(jnp.all(jnp.isfinite(out)))
    assert bool(jnp.all((out >= 0.0) & (out <= 1.0)))  # sigmoid range
    print("KERNEL_OK")
</pallas_src>

<mosaic_0001>
module attributes {stable_mosaic.version = 11 : i64} {
  func.func @_gemm_act_kernel(%arg0: memref<128x147xbf16, #tpu.memory_space<vmem>>, %arg1: memref<147x64xbf16, #tpu.memory_space<vmem>>, %arg2: memref<1x64xf32, #tpu.memory_space<vmem>>, %arg3: memref<128x64xf32, #tpu.memory_space<vmem>>) attributes {dimension_semantics = [], scalar_prefetch = 0 : i64, scratch_operands = 0 : i64, tpu.core_type = #tpu.core_type<tc>} {
    %c0 = arith.constant 0 : index
    %c0_0 = arith.constant 0 : index
    %0 = vector.load %arg0[%c0, %c0_0] : memref<128x147xbf16, #tpu.memory_space<vmem>>, vector<128x147xbf16>
    %c0_1 = arith.constant 0 : index
    %c0_2 = arith.constant 0 : index
    %1 = vector.load %arg1[%c0_1, %c0_2] : memref<147x64xbf16, #tpu.memory_space<vmem>>, vector<147x64xbf16>
    %cst = arith.constant dense<0.000000e+00> : vector<128x64xf32>
    %2 = tpu.matmul %0, %1, %cst {dimension_numbers = #tpu.dot_dimension_numbers<[1], [0], [0], [1], [0, 0, 1, 1], [], []>} : vector<128x147xbf16>, vector<147x64xbf16>, vector<128x64xf32> -> vector<128x64xf32>
    %c0_3 = arith.constant 0 : index
    %c0_4 = arith.constant 0 : index
    %3 = vector.load %arg2[%c0_3, %c0_4] : memref<1x64xf32, #tpu.memory_space<vmem>>, vector<1x64xf32>
    %4 = vector.broadcast %3 : vector<1x64xf32> to vector<128x64xf32>
    %5 = arith.addf %2, %4 : vector<128x64xf32>
    %cst_5 = arith.constant 0.000000e+00 : f32
    %6 = vector.broadcast %cst_5 : f32 to vector<128x64xf32>
    %7 = arith.maximumf %5, %6 : vector<128x64xf32>
    %c0_6 = arith.constant 0 : index
    %c0_7 = arith.constant 0 : index
    %8 = vector.load %arg3[%c0_6, %c0_7] : memref<128x64xf32, #tpu.memory_space<vmem>>, vector<128x64xf32>
    tpu.vector_store %arg3[%c0_6, %c0_7], %7 {strides = array<i32>} : memref<128x64xf32, #tpu.memory_space<vmem>>, vector<128x64xf32>,
    return
  }
}

module attributes {stable_mosaic.version = 11 : i64} {
  func.func @_maxpool_kernel(%arg0: memref<9x32x64xf32, #tpu.memory_space<vmem>>, %arg1: memref<32x64xf32, #tpu.memory_space<vmem>>) attributes {dimension_semantics = [], scalar_prefetch = 0 : i64, scratch_operands = 0 : i64, tpu.core_type = #tpu.core_type<tc>} {
    %c0 = arith.constant 0 : index
    %c0_0 = arith.constant 0 : index
    %c0_1 = arith.constant 0 : index
    %0 = vector.load %arg0[%c0, %c0_0, %c0_1] : memref<9x32x64xf32, #tpu.memory_space<vmem>>, vector<9x32x64xf32>
    %cst = arith.constant dense<0xFF800000> : vector<32x64xf32>
    %1 = vector.multi_reduction <maximumf>, %0, %cst [0] : vector<9x32x64xf32> to vector<32x64xf32>
    %c0_2 = arith.constant 0 : index
    %c0_3 = arith.constant 0 : index
    %2 = vector.load %arg1[%c0_2, %c0_3] : memref<32x64xf32, #tpu.memory_space<vmem>>, vector<32x64xf32>
    tpu.vector_store %arg1[%c0_2, %c0_3], %1 {strides = array<i32>} : memref<32x64xf32, #tpu.memory_space<vmem>>, vector<32x64xf32>,
    return
  }
}

module attributes {stable_mosaic.version = 11 : i64} {
  func.func @_gemm_act_kernel(%arg0: memref<32x576xbf16, #tpu.memory_space<vmem>>, %arg1: memref<576x64xbf16, #tpu.memory_space<vmem>>, %arg2: memref<1x64xf32, #tpu.memory_space<vmem>>, %arg3: memref<32x64xf32, #tpu.memory_space<vmem>>) attributes {dimension_semantics = [], scalar_prefetch = 0 : i64, scratch_operands = 0 : i64, tpu.core_type = #tpu.core_type<tc>} {
    %c0 = arith.constant 0 : index
    %c0_0 = arith.constant 0 : index
    %0 = vector.load %arg0[%c0, %c0_0] : memref<32x576xbf16, #tpu.memory_space<vmem>>, vector<32x576xbf16>
    %c0_1 = arith.constant 0 : index
    %c0_2 = arith.constant 0 : index
    %1 = vector.load %arg1[%c0_1, %c0_2] : memref<576x64xbf16, #tpu.memory_space<vmem>>, vector<576x64xbf16>
    %cst = arith.constant dense<0.000000e+00> : vector<32x64xf32>
    %2 = tpu.matmul %0, %1, %cst {dimension_numbers = #tpu.dot_dimension_numbers<[1], [0], [0], [1], [0, 0, 1, 1], [], []>} : vector<32x576xbf16>, vector<576x64xbf16>, vector<32x64xf32> -> vector<32x64xf32>
    %c0_3 = arith.constant 0 : index
    %c0_4 = arith.constant 0 : index
    %3 = vector.load %arg2[%c0_3, %c0_4] : memref<1x64xf32, #tpu.memory_space<vmem>>, vector<1x64xf32>
    %4 = vector.broadcast %3 : vector<1x64xf32> to vector<32x64xf32>
    %5 = arith.addf %2, %4 : vector<32x64xf32>
    %cst_5 = arith.constant 0.000000e+00 : f32
    %6 = vector.broadcast %cst_5 : f32 to vector<32x64xf32>
    %7 = arith.maximumf %5, %6 : vector<32x64xf32>
    %c0_6 = arith.constant 0 : index
    %c0_7 = arith.constant 0 : index
    %8 = vector.load %arg3[%c0_6, %c0_7] : memref<32x64xf32, #tpu.memory_space<vmem>>, vector<32x64xf32>
    tpu.vector_store %arg3[%c0_6, %c0_7], %7 {strides = array<i32>} : memref<32x64xf32, #tpu.memory_space<vmem>>, vector<32x64xf32>,
    return
  }
}

module attributes {stable_mosaic.version = 11 : i64} {
  func.func @_gemm_res_kernel(%arg0: memref<32x576xbf16, #tpu.memory_space<vmem>>, %arg1: memref<576x64xbf16, #tpu.memory_space<vmem>>, %arg2: memref<1x64xf32, #tpu.memory_space<vmem>>, %arg3: memref<32x64xf32, #tpu.memory_space<vmem>>, %arg4: memref<32x64xf32, #tpu.memory_space<vmem>>) attributes {dimension_semantics = [], scalar_prefetch = 0 : i64, scratch_operands = 0 : i64, tpu.core_type = #tpu.core_type<tc>} {
    %c0 = arith.constant 0 : index
    %c0_0 = arith.constant 0 : index
    %0 = vector.load %arg0[%c0, %c0_0] : memref<32x576xbf16, #tpu.memory_space<vmem>>, vector<32x576xbf16>
    %c0_1 = arith.constant 0 : index
    %c0_2 = arith.constant 0 : index
    %1 = vector.load %arg1[%c0_1, %c0_2] : memref<576x64xbf16, #tpu.memory_space<vmem>>, vector<576x64xbf16>
    %cst = arith.constant dense<0.000000e+00> : vector<32x64xf32>
    %2 = tpu.matmul %0, %1, %cst {dimension_numbers = #tpu.dot_dimension_numbers<[1], [0], [0], [1], [0, 0, 1, 1], [], []>} : vector<32x576xbf16>, vector<576x64xbf16>, vector<32x64xf32> -> vector<32x64xf32>
    %c0_3 = arith.constant 0 : index
    %c0_4 = arith.constant 0 : index
    %3 = vector.load %arg2[%c0_3, %c0_4] : memref<1x64xf32, #tpu.memory_space<vmem>>, vector<1x64xf32>
    %4 = vector.broadcast %3 : vector<1x64xf32> to vector<32x64xf32>
    %5 = arith.addf %2, %4 : vector<32x64xf32>
    %c0_5 = arith.constant 0 : index
    %c0_6 = arith.constant 0 : index
    %6 = vector.load %arg3[%c0_5, %c0_6] : memref<32x64xf32, #tpu.memory_space<vmem>>, vector<32x64xf32>
    %7 = arith.addf %5, %6 : vector<32x64xf32>
    %cst_7 = arith.constant 0.000000e+00 : f32
    %8 = vector.broadcast %cst_7 : f32 to vector<32x64xf32>
    %9 = arith.maximumf %7, %8 : vector<32x64xf32>
    %c0_8 = arith.constant 0 : index
    %c0_9 = arith.constant 0 : index
    %10 = vector.load %arg4[%c0_8, %c0_9] : memref<32x64xf32, #tpu.memory_space<vmem>>, vector<32x64xf32>
    tpu.vector_store %arg4[%c0_8, %c0_9], %9 {strides = array<i32>} : memref<32x64xf32, #tpu.memory_space<vmem>>, vector<32x64xf32>,
    return
  }
}

module attributes {stable_mosaic.version = 11 : i64} {
  func.func @_gemm_act_kernel(%arg0: memref<8x576xbf16, #tpu.memory_space<vmem>>, %arg1: memref<576x128xbf16, #tpu.memory_space<vmem>>, %arg2: memref<1x128xf32, #tpu.memory_space<vmem>>, %arg3: memref<8x128xf32, #tpu.memory_space<vmem>>) attributes {dimension_semantics = [], scalar_prefetch = 0 : i64, scratch_operands = 0 : i64, tpu.core_type = #tpu.core_type<tc>} {
    %c0 = arith.constant 0 : index
    %c0_0 = arith.constant 0 : index
    %0 = vector.load %arg0[%c0, %c0_0] : memref<8x576xbf16, #tpu.memory_space<vmem>>, vector<8x576xbf16>
    %c0_1 = arith.constant 0 : index
    %c0_2 = arith.constant 0 : index
    %1 = vector.load %arg1[%c0_1, %c0_2] : memref<576x128xbf16, #tpu.memory_space<vmem>>, vector<576x128xbf16>
    %cst = arith.constant dense<0.000000e+00> : vector<8x128xf32>
    %2 = tpu.matmul %0, %1, %cst {dimension_numbers = #tpu.dot_dimension_numbers<[1], [0], [0], [1], [0, 0, 1, 1], [], []>} : vector<8x576xbf16>, vector<576x128xbf16>, vector<8x128xf32> -> vector<8x128xf32>
    %c0_3 = arith.constant 0 : index
    %c0_4 = arith.constant 0 : index
    %3 = vector.load %arg2[%c0_3, %c0_4] : memref<1x128xf32, #tpu.memory_space<vmem>>, vector<1x128xf32>
    %4 = vector.broadcast %3 : vector<1x128xf32> to vector<8x128xf32>
    %5 = arith.addf %2, %4 : vector<8x128xf32>
    %cst_5 = arith.constant 0.000000e+00 : f32
    %6 = vector.broadcast %cst_5 : f32 to vector<8x128xf32>
    %7 = arith.maximumf %5, %6 : vector<8x128xf32>
    %c0_6 = arith.constant 0 : index
    %c0_7 = arith.constant 0 : index
    %8 = vector.load %arg3[%c0_6, %c0_7] : memref<8x128xf32, #tpu.memory_space<vmem>>, vector<8x128xf32>
    tpu.vector_store %arg3[%c0_6, %c0_7], %7 {strides = array<i32>} : memref<8x128xf32, #tpu.memory_space<vmem>>, vector<8x128xf32>,
    return
  }
}

module attributes {stable_mosaic.version = 11 : i64} {
  func.func @_gemm_act_kernel(%arg0: memref<8x1152xbf16, #tpu.memory_space<vmem>>, %arg1: memref<1152x128xbf16, #tpu.memory_space<vmem>>, %arg2: memref<1x128xf32, #tpu.memory_space<vmem>>, %arg3: memref<8x128xf32, #tpu.memory_space<vmem>>) attributes {dimension_semantics = [], scalar_prefetch = 0 : i64, scratch_operands = 0 : i64, tpu.core_type = #tpu.core_type<tc>} {
    %c0 = arith.constant 0 : index
    %c0_0 = arith.constant 0 : index
    %0 = vector.load %arg0[%c0, %c0_0] : memref<8x1152xbf16, #tpu.memory_space<vmem>>, vector<8x1152xbf16>
    %c0_1 = arith.constant 0 : index
    %c0_2 = arith.constant 0 : index
    %1 = vector.load %arg1[%c0_1, %c0_2] : memref<1152x128xbf16, #tpu.memory_space<vmem>>, vector<1152x128xbf16>
    %cst = arith.constant dense<0.000000e+00> : vector<8x128xf32>
    %2 = tpu.matmul %0, %1, %cst {dimension_numbers = #tpu.dot_dimension_numbers<[1], [0], [0], [1], [0, 0, 1, 1], [], []>} : vector<8x1152xbf16>, vector<1152x128xbf16>, vector<8x128xf32> -> vector<8x128xf32>
    %c0_3 = arith.constant 0 : index
    %c0_4 = arith.constant 0 : index
    %3 = vector.load %arg2[%c0_3, %c0_4] : memref<1x128xf32, #tpu.memory_space<vmem>>, vector<1x128xf32>
    %4 = vector.broadcast %3 : vector<1x128xf32> to vector<8x128xf32>
    %5 = arith.addf %2, %4 : vector<8x128xf32>
    %cst_5 = arith.constant 0.000000e+00 : f32
    %6 = vector.broadcast %cst_5 : f32 to vector<8x128xf32>
    %7 = arith.maximumf %5, %6 : vector<8x128xf32>
    %c0_6 = arith.constant 0 : index
    %c0_7 = arith.constant 0 : index
    %8 = vector.load %arg3[%c0_6, %c0_7] : memref<8x128xf32, #tpu.memory_space<vmem>>, vector<8x128xf32>
    tpu.vector_store %arg3[%c0_6, %c0_7], %7 {strides = array<i32>} : memref<8x128xf32, #tpu.memory_space<vmem>>, vector<8x128xf32>,
    return
  }
}

module attributes {stable_mosaic.version = 11 : i64} {
  func.func @_gemm_ds_res_kernel(%arg0: memref<8x1152xbf16, #tpu.memory_space<vmem>>, %arg1: memref<1152x128xbf16, #tpu.memory_space<vmem>>, %arg2: memref<1x128xf32, #tpu.memory_space<vmem>>, %arg3: memref<8x64xbf16, #tpu.memory_space<vmem>>, %arg4: memref<64x128xbf16, #tpu.memory_space<vmem>>, %arg5: memref<1x128xf32, #tpu.memory_space<vmem>>, %arg6: memref<8x128xf32, #tpu.memory_space<vmem>>) attributes {dimension_semantics = [], scalar_prefetch = 0 : i64, scratch_operands = 0 : i64, tpu.core_type = #tpu.core_type<tc>} {
    %c0 = arith.constant 0 : index
    %c0_0 = arith.constant 0 : index
    %0 = vector.load %arg3[%c0, %c0_0] : memref<8x64xbf16, #tpu.memory_space<vmem>>, vector<8x64xbf16>
    %c0_1 = arith.constant 0 : index
    %c0_2 = arith.constant 0 : index
    %1 = vector.load %arg4[%c0_1, %c0_2] : memref<64x128xbf16, #tpu.memory_space<vmem>>, vector<64x128xbf16>
    %cst = arith.constant dense<0.000000e+00> : vector<8x128xf32>
    %2 = tpu.matmul %0, %1, %cst {dimension_numbers = #tpu.dot_dimension_numbers<[1], [0], [0], [1], [0, 0, 1, 1], [], []>} : vector<8x64xbf16>, vector<64x128xbf16>, vector<8x128xf32> -> vector<8x128xf32>
    %c0_3 = arith.constant 0 : index
    %c0_4 = arith.constant 0 : index
    %3 = vector.load %arg5[%c0_3, %c0_4] : memref<1x128xf32, #tpu.memory_space<vmem>>, vector<1x128xf32>
    %4 = vector.broadcast %3 : vector<1x128xf32> to vector<8x128xf32>
    %5 = arith.addf %2, %4 : vector<8x128xf32>
    %c0_5 = arith.constant 0 : index
    %c0_6 = arith.constant 0 : index
    %6 = vector.load %arg0[%c0_5, %c0_6] : memref<8x1152xbf16, #tpu.memory_space<vmem>>, vector<8x1152xbf16>
    %c0_7 = arith.constant 0 : index
    %c0_8 = arith.constant 0 : index
    %7 = vector.load %arg1[%c0_7, %c0_8] : memref<1152x128xbf16, #tpu.memory_space<vmem>>, vector<1152x128xbf16>
    %cst_9 = arith.constant dense<0.000000e+00> : vector<8x128xf32>
    %8 = tpu.matmul %6, %7, %cst_9 {dimension_numbers = #tpu.dot_dimension_numbers<[1], [0], [0], [1], [0, 0, 1, 1], [], []>} : vector<8x1152xbf16>, vector<1152x128xbf16>, vector<8x128xf32> -> vector<8x128xf32>
    %c0_10 = arith.constant 0 : index
    %c0_11 = arith.constant 0 : index
    %9 = vector.load %arg2[%c0_10, %c0_11] : memref<1x128xf32, #tpu.memory_space<vmem>>, vector<1x128xf32>
    %10 = vector.broadcast %9 : vector<1x128xf32> to vector<8x128xf32>
    %11 = arith.addf %8, %10 : vector<8x128xf32>
    %12 = arith.addf %11, %5 : vector<8x128xf32>
    %cst_12 = arith.constant 0.000000e+00 : f32
    %13 = vector.broadcast %cst_12 : f32 to vector<8x128xf32>
    %14 = arith.maximumf %12, %13 : vector<8x128xf32>
    %c0_13 = arith.constant 0 : index
    %c0_14 = arith.constant 0 : index
    %15 = vector.load %arg6[%c0_13, %c0_14] : memref<8x128xf32, #tpu.memory_space<vmem>>, vector<8x128xf32>
    tpu.vector_store %arg6[%c0_13, %c0_14], %14 {strides = array<i32>} : memref<8x128xf32, #tpu.memory_space<vmem>>, vector<8x128xf32>,
    return
  }
}

module attributes {stable_mosaic.version = 11 : i64} {
  func.func @_gemm_res_kernel(%arg0: memref<8x1152xbf16, #tpu.memory_space<vmem>>, %arg1: memref<1152x128xbf16, #tpu.memory_space<vmem>>, %arg2: memref<1x128xf32, #tpu.memory_space<vmem>>, %arg3: memref<8x128xf32, #tpu.memory_space<vmem>>, %arg4: memref<8x128xf32, #tpu.memory_space<vmem>>) attributes {dimension_semantics = [], scalar_prefetch = 0 : i64, scratch_operands = 0 : i64, tpu.core_type = #tpu.core_type<tc>} {
    %c0 = arith.constant 0 : index
    %c0_0 = arith.constant 0 : index
    %0 = vector.load %arg0[%c0, %c0_0] : memref<8x1152xbf16, #tpu.memory_space<vmem>>, vector<8x1152xbf16>
    %c0_1 = arith.constant 0 : index
    %c0_2 = arith.constant 0 : index
    %1 = vector.load %arg1[%c0_1, %c0_2] : memref<1152x128xbf16, #tpu.memory_space<vmem>>, vector<1152x128xbf16>
    %cst = arith.constant dense<0.000000e+00> : vector<8x128xf32>
    %2 = tpu.matmul %0, %1, %cst {dimension_numbers = #tpu.dot_dimension_numbers<[1], [0], [0], [1], [0, 0, 1, 1], [], []>} : vector<8x1152xbf16>, vector<1152x128xbf16>, vector<8x128xf32> -> vector<8x128xf32>
    %c0_3 = arith.constant 0 : index
    %c0_4 = arith.constant 0 : index
    %3 = vector.load %arg2[%c0_3, %c0_4] : memref<1x128xf32, #tpu.memory_space<vmem>>, vector<1x128xf32>
    %4 = vector.broadcast %3 : vector<1x128xf32> to vector<8x128xf32>
    %5 = arith.addf %2, %4 : vector<8x128xf32>
    %c0_5 = arith.constant 0 : index
    %c0_6 = arith.constant 0 : index
    %6 = vector.load %arg3[%c0_5, %c0_6] : memref<8x128xf32, #tpu.memory_space<vmem>>, vector<8x128xf32>
    %7 = arith.addf %5, %6 : vector<8x128xf32>
    %cst_7 = arith.constant 0.000000e+00 : f32
    %8 = vector.broadcast %cst_7 : f32 to vector<8x128xf32>
    %9 = arith.maximumf %7, %8 : vector<8x128xf32>
    %c0_8 = arith.constant 0 : index
    %c0_9 = arith.constant 0 : index
    %10 = vector.load %arg4[%c0_8, %c0_9] : memref<8x128xf32, #tpu.memory_space<vmem>>, vector<8x128xf32>
    tpu.vector_store %arg4[%c0_8, %c0_9], %9 {strides = array<i32>} : memref<8x128xf32, #tpu.memory_space<vmem>>, vector<8x128xf32>,
    return
  }
}

module attributes {stable_mosaic.version = 11 : i64} {
  func.func @_fused_ds_block_kernel(%arg0: memref<2x1152xbf16, #tpu.memory_space<vmem>>, %arg1: memref<2x128xbf16, #tpu.memory_space<vmem>>, %arg2: memref<1152x256xbf16, #tpu.memory_space<vmem>>, %arg3: memref<1x256xf32, #tpu.memory_space<vmem>>, %arg4: memref<128x256xbf16, #tpu.memory_space<vmem>>, %arg5: memref<1x256xf32, #tpu.memory_space<vmem>>, %arg6: memref<256x256xbf16, #tpu.memory_space<vmem>>, %arg7: memref<1x256xf32, #tpu.memory_space<vmem>>, %arg8: memref<2x256xf32, #tpu.memory_space<vmem>>) attributes {dimension_semantics = [], scalar_prefetch = 0 : i64, scratch_operands = 0 : i64, tpu.core_type = #tpu.core_type<tc>} {
    %c0 = arith.constant 0 : index
    %c0_0 = arith.constant 0 : index
    %0 = vector.load %arg0[%c0, %c0_0] : memref<2x1152xbf16, #tpu.memory_space<vmem>>, vector<2x1152xbf16>
    %c0_1 = arith.constant 0 : index
    %c0_2 = arith.constant 0 : index
    %1 = vector.load %arg2[%c0_1, %c0_2] : memref<1152x256xbf16, #tpu.memory_space<vmem>>, vector<1152x256xbf16>
    %cst = arith.constant dense<0.000000e+00> : vector<2x256xf32>
    %2 = tpu.matmul %0, %1, %cst {dimension_numbers = #tpu.dot_dimension_numbers<[1], [0], [0], [1], [0, 0, 1, 1], [], []>} : vector<2x1152xbf16>, vector<1152x256xbf16>, vector<2x256xf32> -> vector<2x256xf32>
    %c0_3 = arith.constant 0 : index
    %c0_4 = arith.constant 0 : index
    %3 = vector.load %arg3[%c0_3, %c0_4] : memref<1x256xf32, #tpu.memory_space<vmem>>, vector<1x256xf32>
    %4 = vector.broadcast %3 : vector<1x256xf32> to vector<2x256xf32>
    %5 = arith.addf %2, %4 : vector<2x256xf32>
    %cst_5 = arith.constant 0.000000e+00 : f32
    %6 = vector.broadcast %cst_5 : f32 to vector<2x256xf32>
    %7 = arith.maximumf %5, %6 : vector<2x256xf32>
    %c0_6 = arith.constant 0 : index
    %c0_7 = arith.constant 0 : index
    %8 = vector.load %arg1[%c0_6, %c0_7] : memref<2x128xbf16, #tpu.memory_space<vmem>>, vector<2x128xbf16>
    %c0_8 = arith.constant 0 : index
    %c0_9 = arith.constant 0 : index
    %9 = vector.load %arg4[%c0_8, %c0_9] : memref<128x256xbf16, #tpu.memory_space<vmem>>, vector<128x256xbf16>
    %cst_10 = arith.constant dense<0.000000e+00> : vector<2x256xf32>
    %10 = tpu.matmul %8, %9, %cst_10 {dimension_numbers = #tpu.dot_dimension_numbers<[1], [0], [0], [1], [0, 0, 1, 1], [], []>} : vector<2x128xbf16>, vector<128x256xbf16>, vector<2x256xf32> -> vector<2x256xf32>
    %c0_11 = arith.constant 0 : index
    %c0_12 = arith.constant 0 : index
    %11 = vector.load %arg5[%c0_11, %c0_12] : memref<1x256xf32, #tpu.memory_space<vmem>>, vector<1x256xf32>
    %12 = vector.broadcast %11 : vector<1x256xf32> to vector<2x256xf32>
    %13 = arith.addf %10, %12 : vector<2x256xf32>
    %14 = arith.truncf %7 : vector<2x256xf32> to vector<2x256xbf16>
    %c0_13 = arith.constant 0 : index
    %c0_14 = arith.constant 0 : index
    %15 = vector.load %arg6[%c0_13, %c0_14] : memref<256x256xbf16, #tpu.memory_space<vmem>>, vector<256x256xbf16>
    %cst_15 = arith.constant dense<0.000000e+00> : vector<2x256xf32>
    %16 = tpu.matmul %14, %15, %cst_15 {dimension_numbers = #tpu.dot_dimension_numbers<[1], [0], [0], [1], [0, 0, 1, 1], [], []>} : vector<2x256xbf16>, vector<256x256xbf16>, vector<2x256xf32> -> vector<2x256xf32>
    %c0_16 = arith.constant 0 : index
    %c0_17 = arith.constant 0 : index
    %17 = vector.load %arg7[%c0_16, %c0_17] : memref<1x256xf32, #tpu.memory_space<vmem>>, vector<1x256xf32>
    %18 = vector.broadcast %17 : vector<1x256xf32> to vector<2x256xf32>
    %19 = arith.addf %16, %18 : vector<2x256xf32>
    %20 = arith.addf %19, %13 : vector<2x256xf32>
    %cst_18 = arith.constant 0.000000e+00 : f32
    %21 = vector.broadcast %cst_18 : f32 to vector<2x256xf32>
    %22 = arith.maximumf %20, %21 : vector<2x256xf32>
    %c0_19 = arith.constant 0 : index
    %c0_20 = arith.constant 0 : index
    %23 = vector.load %arg8[%c0_19, %c0_20] : memref<2x256xf32, #tpu.memory_space<vmem>>, vector<2x256xf32>
    tpu.vector_store %arg8[%c0_19, %c0_20], %22 {strides = array<i32>} : memref<2x256xf32, #tpu.memory_space<vmem>>, vector<2x256xf32>,
    return
  }
}

module attributes {stable_mosaic.version = 11 : i64} {
  func.func @_fused_ds_block_kernel(%arg0: memref<2x256xbf16, #tpu.memory_space<vmem>>, %arg1: memref<2x256xbf16, #tpu.memory_space<vmem>>, %arg2: memref<256x512xbf16, #tpu.memory_space<vmem>>, %arg3: memref<1x512xf32, #tpu.memory_space<vmem>>, %arg4: memref<256x512xbf16, #tpu.memory_space<vmem>>, %arg5: memref<1x512xf32, #tpu.memory_space<vmem>>, %arg6: memref<512x512xbf16, #tpu.memory_space<vmem>>, %arg7: memref<1x512xf32, #tpu.memory_space<vmem>>, %arg8: memref<2x512xf32, #tpu.memory_space<vmem>>) attributes {dimension_semantics = [], scalar_prefetch = 0 : i64, scratch_operands = 0 : i64, tpu.core_type = #tpu.core_type<tc>} {
    %c0 = arith.constant 0 : index
    %c0_0 = arith.constant 0 : index
    %0 = vector.load %arg0[%c0, %c0_0] : memref<2x256xbf16, #tpu.memory_space<vmem>>, vector<2x256xbf16>
    %c0_1 = arith.constant 0 : index
    %c0_2 = arith.constant 0 : index
    %1 = vector.load %arg2[%c0_1, %c0_2] : memref<256x512xbf16, #tpu.memory_space<vmem>>, vector<256x512xbf16>
    %cst = arith.constant dense<0.000000e+00> : vector<2x512xf32>
    %2 = tpu.matmul %0, %1, %cst {dimension_numbers = #tpu.dot_dimension_numbers<[1], [0], [0], [1], [0, 0, 1, 1], [], []>} : vector<2x256xbf16>, vector<256x512xbf16>, vector<2x512xf32> -> vector<2x512xf32>
    %c0_3 = arith.constant 0 : index
    %c0_4 = arith.constant 0 : index
    %3 = vector.load %arg3[%c0_3, %c0_4] : memref<1x512xf32, #tpu.memory_space<vmem>>, vector<1x512xf32>
    %4 = vector.broadcast %3 : vector<1x512xf32> to vector<2x512xf32>
    %5 = arith.addf %2, %4 : vector<2x512xf32>
    %cst_5 = arith.constant 0.000000e+00 : f32
    %6 = vector.broadcast %cst_5 : f32 to vector<2x512xf32>
    %7 = arith.maximumf %5, %6 : vector<2x512xf32>
    %c0_6 = arith.constant 0 : index
    %c0_7 = arith.constant 0 : index
    %8 = vector.load %arg1[%c0_6, %c0_7] : memref<2x256xbf16, #tpu.memory_space<vmem>>, vector<2x256xbf16>
    %c0_8 = arith.constant 0 : index
    %c0_9 = arith.constant 0 : index
    %9 = vector.load %arg4[%c0_8, %c0_9] : memref<256x512xbf16, #tpu.memory_space<vmem>>, vector<256x512xbf16>
    %cst_10 = arith.constant dense<0.000000e+00> : vector<2x512xf32>
    %10 = tpu.matmul %8, %9, %cst_10 {dimension_numbers = #tpu.dot_dimension_numbers<[1], [0], [0], [1], [0, 0, 1, 1], [], []>} : vector<2x256xbf16>, vector<256x512xbf16>, vector<2x512xf32> -> vector<2x512xf32>
    %c0_11 = arith.constant 0 : index
    %c0_12 = arith.constant 0 : index
    %11 = vector.load %arg5[%c0_11, %c0_12] : memref<1x512xf32, #tpu.memory_space<vmem>>, vector<1x512xf32>
    %12 = vector.broadcast %11 : vector<1x512xf32> to vector<2x512xf32>
    %13 = arith.addf %10, %12 : vector<2x512xf32>
    %14 = arith.truncf %7 : vector<2x512xf32> to vector<2x512xbf16>
    %c0_13 = arith.constant 0 : index
    %c0_14 = arith.constant 0 : index
    %15 = vector.load %arg6[%c0_13, %c0_14] : memref<512x512xbf16, #tpu.memory_space<vmem>>, vector<512x512xbf16>
    %cst_15 = arith.constant dense<0.000000e+00> : vector<2x512xf32>
    %16 = tpu.matmul %14, %15, %cst_15 {dimension_numbers = #tpu.dot_dimension_numbers<[1], [0], [0], [1], [0, 0, 1, 1], [], []>} : vector<2x512xbf16>, vector<512x512xbf16>, vector<2x512xf32> -> vector<2x512xf32>
    %c0_16 = arith.constant 0 : index
    %c0_17 = arith.constant 0 : index
    %17 = vector.load %arg7[%c0_16, %c0_17] : memref<1x512xf32, #tpu.memory_space<vmem>>, vector<1x512xf32>
    %18 = vector.broadcast %17 : vector<1x512xf32> to vector<2x512xf32>
    %19 = arith.addf %16, %18 : vector<2x512xf32>
    %20 = arith.addf %19, %13 : vector<2x512xf32>
    %cst_18 = arith.constant 0.000000e+00 : f32
    %21 = vector.broadcast %cst_18 : f32 to vector<2x512xf32>
    %22 = arith.maximumf %20, %21 : vector<2x512xf32>
    %c0_19 = arith.constant 0 : index
    %c0_20 = arith.constant 0 : index
    %23 = vector.load %arg8[%c0_19, %c0_20] : memref<2x512xf32, #tpu.memory_space<vmem>>, vector<2x512xf32>
    tpu.vector_store %arg8[%c0_19, %c0_20], %22 {strides = array<i32>} : memref<2x512xf32, #tpu.memory_space<vmem>>, vector<2x512xf32>,
    return
  }
}

module attributes {stable_mosaic.version = 11 : i64} {
  func.func @_fused_id_block_kernel(%arg0: memref<2x256xf32, #tpu.memory_space<vmem>>, %arg1: memref<256x256xbf16, #tpu.memory_space<vmem>>, %arg2: memref<1x256xf32, #tpu.memory_space<vmem>>, %arg3: memref<256x256xbf16, #tpu.memory_space<vmem>>, %arg4: memref<1x256xf32, #tpu.memory_space<vmem>>, %arg5: memref<2x256xf32, #tpu.memory_space<vmem>>) attributes {dimension_semantics = [], scalar_prefetch = 0 : i64, scratch_operands = 0 : i64, tpu.core_type = #tpu.core_type<tc>} {
    %c0 = arith.constant 0 : index
    %c0_0 = arith.constant 0 : index
    %0 = vector.load %arg0[%c0, %c0_0] : memref<2x256xf32, #tpu.memory_space<vmem>>, vector<2x256xf32>
    %1 = arith.truncf %0 : vector<2x256xf32> to vector<2x256xbf16>
    %c0_1 = arith.constant 0 : index
    %c0_2 = arith.constant 0 : index
    %2 = vector.load %arg1[%c0_1, %c0_2] : memref<256x256xbf16, #tpu.memory_space<vmem>>, vector<256x256xbf16>
    %cst = arith.constant dense<0.000000e+00> : vector<2x256xf32>
    %3 = tpu.matmul %1, %2, %cst {dimension_numbers = #tpu.dot_dimension_numbers<[1], [0], [0], [1], [0, 0, 1, 1], [], []>} : vector<2x256xbf16>, vector<256x256xbf16>, vector<2x256xf32> -> vector<2x256xf32>
    %c0_3 = arith.constant 0 : index
    %c0_4 = arith.constant 0 : index
    %4 = vector.load %arg2[%c0_3, %c0_4] : memref<1x256xf32, #tpu.memory_space<vmem>>, vector<1x256xf32>
    %5 = vector.broadcast %4 : vector<1x256xf32> to vector<2x256xf32>
    %6 = arith.addf %3, %5 : vector<2x256xf32>
    %cst_5 = arith.constant 0.000000e+00 : f32
    %7 = vector.broadcast %cst_5 : f32 to vector<2x256xf32>
    %8 = arith.maximumf %6, %7 : vector<2x256xf32>
    %9 = arith.truncf %8 : vector<2x256xf32> to vector<2x256xbf16>
    %c0_6 = arith.constant 0 : index
    %c0_7 = arith.constant 0 : index
    %10 = vector.load %arg3[%c0_6, %c0_7] : memref<256x256xbf16, #tpu.memory_space<vmem>>, vector<256x256xbf16>
    %cst_8 = arith.constant dense<0.000000e+00> : vector<2x256xf32>
    %11 = tpu.matmul %9, %10, %cst_8 {dimension_numbers = #tpu.dot_dimension_numbers<[1], [0], [0], [1], [0, 0, 1, 1], [], []>} : vector<2x256xbf16>, vector<256x256xbf16>, vector<2x256xf32> -> vector<2x256xf32>
    %c0_9 = arith.constant 0 : index
    %c0_10 = arith.constant 0 : index
    %12 = vector.load %arg4[%c0_9, %c0_10] : memref<1x256xf32, #tpu.memory_space<vmem>>, vector<1x256xf32>
    %13 = vector.broadcast %12 : vector<1x256xf32> to vector<2x256xf32>
    %14 = arith.addf %11, %13 : vector<2x256xf32>
    %15 = arith.addf %14, %0 : vector<2x256xf32>
    %cst_11 = arith.constant 0.000000e+00 : f32
    %16 = vector.broadcast %cst_11 : f32 to vector<2x256xf32>
    %17 = arith.maximumf %15, %16 : vector<2x256xf32>
    %c0_12 = arith.constant 0 : index
    %c0_13 = arith.constant 0 : index
    %18 = vector.load %arg5[%c0_12, %c0_13] : memref<2x256xf32, #tpu.memory_space<vmem>>, vector<2x256xf32>
    tpu.vector_store %arg5[%c0_12, %c0_13], %17 {strides = array<i32>} : memref<2x256xf32, #tpu.memory_space<vmem>>, vector<2x256xf32>,
    return
  }
}

module attributes {stable_mosaic.version = 11 : i64} {
  func.func @_fused_id_block_kernel(%arg0: memref<2x512xf32, #tpu.memory_space<vmem>>, %arg1: memref<512x512xbf16, #tpu.memory_space<vmem>>, %arg2: memref<1x512xf32, #tpu.memory_space<vmem>>, %arg3: memref<512x512xbf16, #tpu.memory_space<vmem>>, %arg4: memref<1x512xf32, #tpu.memory_space<vmem>>, %arg5: memref<2x512xf32, #tpu.memory_space<vmem>>) attributes {dimension_semantics = [], scalar_prefetch = 0 : i64, scratch_operands = 0 : i64, tpu.core_type = #tpu.core_type<tc>} {
    %c0 = arith.constant 0 : index
    %c0_0 = arith.constant 0 : index
    %0 = vector.load %arg0[%c0, %c0_0] : memref<2x512xf32, #tpu.memory_space<vmem>>, vector<2x512xf32>
    %1 = arith.truncf %0 : vector<2x512xf32> to vector<2x512xbf16>
    %c0_1 = arith.constant 0 : index
    %c0_2 = arith.constant 0 : index
    %2 = vector.load %arg1[%c0_1, %c0_2] : memref<512x512xbf16, #tpu.memory_space<vmem>>, vector<512x512xbf16>
    %cst = arith.constant dense<0.000000e+00> : vector<2x512xf32>
    %3 = tpu.matmul %1, %2, %cst {dimension_numbers = #tpu.dot_dimension_numbers<[1], [0], [0], [1], [0, 0, 1, 1], [], []>} : vector<2x512xbf16>, vector<512x512xbf16>, vector<2x512xf32> -> vector<2x512xf32>
    %c0_3 = arith.constant 0 : index
    %c0_4 = arith.constant 0 : index
    %4 = vector.load %arg2[%c0_3, %c0_4] : memref<1x512xf32, #tpu.memory_space<vmem>>, vector<1x512xf32>
    %5 = vector.broadcast %4 : vector<1x512xf32> to vector<2x512xf32>
    %6 = arith.addf %3, %5 : vector<2x512xf32>
    %cst_5 = arith.constant 0.000000e+00 : f32
    %7 = vector.broadcast %cst_5 : f32 to vector<2x512xf32>
    %8 = arith.maximumf %6, %7 : vector<2x512xf32>
    %9 = arith.truncf %8 : vector<2x512xf32> to vector<2x512xbf16>
    %c0_6 = arith.constant 0 : index
    %c0_7 = arith.constant 0 : index
    %10 = vector.load %arg3[%c0_6, %c0_7] : memref<512x512xbf16, #tpu.memory_space<vmem>>, vector<512x512xbf16>
    %cst_8 = arith.constant dense<0.000000e+00> : vector<2x512xf32>
    %11 = tpu.matmul %9, %10, %cst_8 {dimension_numbers = #tpu.dot_dimension_numbers<[1], [0], [0], [1], [0, 0, 1, 1], [], []>} : vector<2x512xbf16>, vector<512x512xbf16>, vector<2x512xf32> -> vector<2x512xf32>
    %c0_9 = arith.constant 0 : index
    %c0_10 = arith.constant 0 : index
    %12 = vector.load %arg4[%c0_9, %c0_10] : memref<1x512xf32, #tpu.memory_space<vmem>>, vector<1x512xf32>
    %13 = vector.broadcast %12 : vector<1x512xf32> to vector<2x512xf32>
    %14 = arith.addf %11, %13 : vector<2x512xf32>
    %15 = arith.addf %14, %0 : vector<2x512xf32>
    %cst_11 = arith.constant 0.000000e+00 : f32
    %16 = vector.broadcast %cst_11 : f32 to vector<2x512xf32>
    %17 = arith.maximumf %15, %16 : vector<2x512xf32>
    %c0_12 = arith.constant 0 : index
    %c0_13 = arith.constant 0 : index
    %18 = vector.load %arg5[%c0_12, %c0_13] : memref<2x512xf32, #tpu.memory_space<vmem>>, vector<2x512xf32>
    tpu.vector_store %arg5[%c0_12, %c0_13], %17 {strides = array<i32>} : memref<2x512xf32, #tpu.memory_space<vmem>>, vector<2x512xf32>,
    return
  }
}

module attributes {stable_mosaic.version = 11 : i64} {
  func.func @_head_kernel(%arg0: memref<1x2x512xf32, #tpu.memory_space<vmem>>, %arg1: memref<512x512xbf16, #tpu.memory_space<vmem>>, %arg2: memref<1x512xf32, #tpu.memory_space<vmem>>, %arg3: memref<512x256xbf16, #tpu.memory_space<vmem>>, %arg4: memref<1x256xf32, #tpu.memory_space<vmem>>, %arg5: memref<256x128xbf16, #tpu.memory_space<vmem>>, %arg6: memref<1x128xf32, #tpu.memory_space<vmem>>, %arg7: memref<2x128xf32, #tpu.memory_space<vmem>>) attributes {dimension_semantics = [], scalar_prefetch = 0 : i64, scratch_operands = 0 : i64, tpu.core_type = #tpu.core_type<tc>} {
    %c0 = arith.constant 0 : index
    %c0_0 = arith.constant 0 : index
    %c0_1 = arith.constant 0 : index
    %0 = vector.load %arg0[%c0, %c0_0, %c0_1] : memref<1x2x512xf32, #tpu.memory_space<vmem>>, vector<1x2x512xf32>
    %cst = arith.constant dense<0.000000e+00> : vector<2x512xf32>
    %1 = vector.multi_reduction <add>, %0, %cst [0] : vector<1x2x512xf32> to vector<2x512xf32>
    %cst_2 = arith.constant 1.000000e+00 : f32
    %2 = vector.broadcast %cst_2 : f32 to vector<2x512xf32>
    %3 = arith.divf %1, %2 : vector<2x512xf32>
    %4 = arith.truncf %3 : vector<2x512xf32> to vector<2x512xbf16>
    %c0_3 = arith.constant 0 : index
    %c0_4 = arith.constant 0 : index
    %5 = vector.load %arg1[%c0_3, %c0_4] : memref<512x512xbf16, #tpu.memory_space<vmem>>, vector<512x512xbf16>
    %cst_5 = arith.constant dense<0.000000e+00> : vector<2x512xf32>
    %6 = tpu.matmul %4, %5, %cst_5 {dimension_numbers = #tpu.dot_dimension_numbers<[1], [0], [0], [1], [0, 0, 1, 1], [], []>} : vector<2x512xbf16>, vector<512x512xbf16>, vector<2x512xf32> -> vector<2x512xf32>
    %c0_6 = arith.constant 0 : index
    %c0_7 = arith.constant 0 : index
    %7 = vector.load %arg2[%c0_6, %c0_7] : memref<1x512xf32, #tpu.memory_space<vmem>>, vector<1x512xf32>
    %8 = vector.broadcast %7 : vector<1x512xf32> to vector<2x512xf32>
    %9 = arith.addf %6, %8 : vector<2x512xf32>
    %cst_8 = arith.constant 0.000000e+00 : f32
    %10 = vector.broadcast %cst_8 : f32 to vector<2x512xf32>
    %11 = arith.maximumf %9, %10 : vector<2x512xf32>
    %12 = arith.truncf %11 : vector<2x512xf32> to vector<2x512xbf16>
    %c0_9 = arith.constant 0 : index
    %c0_10 = arith.constant 0 : index
    %13 = vector.load %arg3[%c0_9, %c0_10] : memref<512x256xbf16, #tpu.memory_space<vmem>>, vector<512x256xbf16>
    %cst_11 = arith.constant dense<0.000000e+00> : vector<2x256xf32>
    %14 = tpu.matmul %12, %13, %cst_11 {dimension_numbers = #tpu.dot_dimension_numbers<[1], [0], [0], [1], [0, 0, 1, 1], [], []>} : vector<2x512xbf16>, vector<512x256xbf16>, vector<2x256xf32> -> vector<2x256xf32>
    %c0_12 = arith.constant 0 : index
    %c0_13 = arith.constant 0 : index
    %15 = vector.load %arg4[%c0_12, %c0_13] : memref<1x256xf32, #tpu.memory_space<vmem>>, vector<1x256xf32>
    %16 = vector.broadcast %15 : vector<1x256xf32> to vector<2x256xf32>
    %17 = arith.addf %14, %16 : vector<2x256xf32>
    %cst_14 = arith.constant 0.000000e+00 : f32
    %18 = vector.broadcast %cst_14 : f32 to vector<2x256xf32>
    %19 = arith.maximumf %17, %18 : vector<2x256xf32>
    %20 = arith.truncf %19 : vector<2x256xf32> to vector<2x256xbf16>
    %c0_15 = arith.constant 0 : index
    %c0_16 = arith.constant 0 : index
    %21 = vector.load %arg5[%c0_15, %c0_16] : memref<256x128xbf16, #tpu.memory_space<vmem>>, vector<256x128xbf16>
    %cst_17 = arith.constant dense<0.000000e+00> : vector<2x128xf32>
    %22 = tpu.matmul %20, %21, %cst_17 {dimension_numbers = #tpu.dot_dimension_numbers<[1], [0], [0], [1], [0, 0, 1, 1], [], []>} : vector<2x256xbf16>, vector<256x128xbf16>, vector<2x128xf32> -> vector<2x128xf32>
    %c0_18 = arith.constant 0 : index
    %c0_19 = arith.constant 0 : index
    %23 = vector.load %arg6[%c0_18, %c0_19] : memref<1x128xf32, #tpu.memory_space<vmem>>, vector<1x128xf32>
    %24 = vector.broadcast %23 : vector<1x128xf32> to vector<2x128xf32>
    %25 = arith.addf %22, %24 : vector<2x128xf32>
    %cst_20 = arith.constant 0.000000e+00 : f32
    %26 = vector.broadcast %cst_20 : f32 to vector<2x128xf32>
    %27 = arith.subf %26, %25 : vector<2x128xf32>
    %28 = math.exp %27 : vector<2x128xf32>
    %cst_21 = arith.constant 1.000000e+00 : f32
    %29 = vector.broadcast %cst_21 : f32 to vector<2x128xf32>
    %30 = arith.addf %29, %28 : vector<2x128xf32>
    %cst_22 = arith.constant 1.000000e+00 : f32
    %31 = vector.broadcast %cst_22 : f32 to vector<2x128xf32>
    %32 = arith.divf %31, %30 : vector<2x128xf32>
    %c0_23 = arith.constant 0 : index
    %c0_24 = arith.constant 0 : index
    %33 = vector.load %arg7[%c0_23, %c0_24] : memref<2x128xf32, #tpu.memory_space<vmem>>, vector<2x128xf32>
    tpu.vector_store %arg7[%c0_23, %c0_24], %32 {strides = array<i32>} : memref<2x128xf32, #tpu.memory_space<vmem>>, vector<2x128xf32>,
    return
  }
}

</mosaic_0001>

<llo_original>
// kernel: resnet18_with_mlp.15
$region0: #{resnet18_with_mlp.15}
  #allocation0 [shape = 'u32[]', space=smem, size = 0x4, offset = 0x4, fixed_abs, tag = 'smem constant byte address 0x4 - core index']
  #allocation1 [shape = 'u32[144,128]{1,0:T(1,128)}', space=vmem, size = 0x12000, scoped, tag = 'internal scratch']
  %s0 = inlined_call_operand.vmem [shape: bf16[128,147], index: 0, kind: input, shape index: {}]
  %s1 = inlined_call_operand.vmem [shape: bf16[147,64], index: 1, kind: input, shape index: {}]
  %s2 = inlined_call_operand.vmem [shape: f32[1,64], index: 2, kind: input, shape index: {}]
  %s3 = inlined_call_operand.vmem [shape: f32[128,64], index: 3, kind: output, shape index: {}]
  %s4 = sld [smem:[#allocation0]]
  $region22: #{resnet18_with_mlp.15} parent=0
    _
  %s6 = ssub.s32 1, %s4
  %s7 = scalar_select 0, %s6, %s4
  // Predicated region
  $region2: #{resnet18_with_mlp.15} parent=0 // pred_check
    _
  $region3: #{resnet18_with_mlp.15} parent=0 // pred_check_branch
    %9 = sbr.rel (0) target = $region5
  $region4: #{resnet18_with_mlp.15} parent=0 // pred_region
    _
  $region5: #{resnet18_with_mlp.15} parent=0 // pred_fallthru
    _
  // Predicated region
  $region6: #{resnet18_with_mlp.15} parent=0 // pred_check
    _
  $region7: #{resnet18_with_mlp.15} parent=0 // pred_check_branch
    %11 = sbr.rel (0) target = $region9
  $region8: #{resnet18_with_mlp.15} parent=0 // pred_region
    _
  $region9: #{resnet18_with_mlp.15} parent=0 // pred_fallthru
    _
  // Predicated region
  $region10: #{resnet18_with_mlp.15} parent=0 // pred_check
    _
  $region11: #{resnet18_with_mlp.15} parent=0 // pred_check_branch
    %13 = sbr.rel (0) target = $region13
  $region12: #{resnet18_with_mlp.15} parent=0 // pred_region
    _
  $region13: #{resnet18_with_mlp.15} parent=0 // pred_fallthru
    _
  %v15 = vld [vmem:[%s0] sm:$0xff]
  %v16 = vld [vmem:[%s0 + $0x8] sm:$0xff]
  %v17 = vld [vmem:[%s0 + $0x10] sm:$0xff]
  %v18 = vld [vmem:[%s0 + $0x18] sm:$0xff]
  %v19 = vld [vmem:[%s0 + $0x20] sm:$0xff]
  %v20 = vld [vmem:[%s0 + $0x28] sm:$0xff]
  %v21 = vld [vmem:[%s0 + $0x30] sm:$0xff]
  %v22 = vld [vmem:[%s0 + $0x38] sm:$0xff]
  %v23 = vld [vmem:[%s0 + $0x40] sm:$0xff]
  %v24 = vld [vmem:[%s0 + $0x48] sm:$0xff]
  %v25 = vld [vmem:[%s0 + $0x50] sm:$0xff]
  %v26 = vld [vmem:[%s0 + $0x58] sm:$0xff]
  %v27 = vld [vmem:[%s0 + $0x60] sm:$0xff]
  %v28 = vld [vmem:[%s0 + $0x68] sm:$0xff]
  %v29 = vld [vmem:[%s0 + $0x70] sm:$0xff]
  %v30 = vld [vmem:[%s0 + $0x78] sm:$0xff]
  %v31 = vld [vmem:[%s1] sm:$0xf]
  %v32 = vld [vmem:[%s1 + $0x4] sm:$0xf]
  %v33 = vld [vmem:[%s1 + $0x8] sm:$0xf]
  %v34 = vld [vmem:[%s1 + $0xc] sm:$0xf]
  %v35 = vld [vmem:[%s1 + $0x10] sm:$0xf]
  %v36 = vld [vmem:[%s1 + $0x14] sm:$0xf]
  %v37 = vld [vmem:[%s1 + $0x18] sm:$0xf]
  %v38 = vld [vmem:[%s1 + $0x1c] sm:$0xf]
  %v39 = vld [vmem:[%s1 + $0x20] sm:$0xf]
  %v40 = vld [vmem:[%s1 + $0x24] sm:$0xf]
  %v41 = vld [vmem:[%s1 + $0x28] sm:$0xf]
  %v42 = vld [vmem:[%s1 + $0x2c] sm:$0xf]
  %v43 = vld [vmem:[%s1 + $0x30] sm:$0xf]
  %v44 = vld [vmem:[%s1 + $0x34] sm:$0xf]
  %v45 = vld [vmem:[%s1 + $0x38] sm:$0xf]
  %v46 = vld [vmem:[%s1 + $0x3c] sm:$0xf]
  %v47 = vld [vmem:[%s1 + $0x40] sm:$0xf]
  %v48 = vld [vmem:[%s1 + $0x44] sm:$0xf]
  %v49 = vld [vmem:[%s1 + $0x48] sm:$0x3]
  %v50 = vld [vmem:[%s2] sm:$0x1]
  %v52 = vlaneseq
  %v53 = vshrl.u32 %v52, 7
  %v54 = vsub.s32 0, %v53
  %v55 = vrot.slane %v50, %v54
  %v73 = vunpack.c.l.b16 %v15
  %v74 = vunpack.c.h.b16 %v15
  %v75 = vunpack.c.l.b16 %v16
  %v76 = vunpack.c.h.b16 %v16
  %v77 = vunpack.c.l.b16 %v17
  %v78 = vunpack.c.h.b16 %v17
  %v79 = vunpack.c.l.b16 %v18
  %v80 = vunpack.c.h.b16 %v18
  %v81 = vunpack.c.l.b16 %v19
  %v82 = vunpack.c.h.b16 %v19
  %v83 = vunpack.c.l.b16 %v20
  %v84 = vunpack.c.h.b16 %v20
  %v85 = vunpack.c.l.b16 %v21
  %v86 = vunpack.c.h.b16 %v21
  %v87 = vunpack.c.l.b16 %v22
  %v88 = vunpack.c.h.b16 %v22
  %v89 = vunpack.c.l.b16 %v23
  %v90 = vunpack.c.h.b16 %v23
  %v91 = vunpack.c.l.b16 %v24
  %v92 = vunpack.c.h.b16 %v24
  %v93 = vunpack.c.l.b16 %v25
  %v94 = vunpack.c.h.b16 %v25
  %v95 = vunpack.c.l.b16 %v26
  %v96 = vunpack.c.h.b16 %v26
  %v97 = vunpack.c.l.b16 %v27
  %v98 = vunpack.c.h.b16 %v27
  %v99 = vunpack.c.l.b16 %v28
  %v100 = vunpack.c.h.b16 %v28
  %v101 = vunpack.c.l.b16 %v29
  %v102 = vunpack.c.h.b16 %v29
  %v103 = vunpack.c.l.b16 %v30
  %v104 = vunpack.c.h.b16 %v30
  %v105 = vpack.c.b16 %v75, %v73
  %v106 = vpack.c.b16 %v76, %v74
  %v107 = vpack.c.b16 %v79, %v77
  %v108 = vpack.c.b16 %v80, %v78
  %v109 = vpack.c.b16 %v83, %v81
  %v110 = vpack.c.b16 %v84, %v82
  %v111 = vpack.c.b16 %v87, %v85
  %v112 = vpack.c.b16 %v88, %v86
  %v113 = vpack.c.b16 %v91, %v89
  %v114 = vpack.c.b16 %v92, %v90
  %v115 = vpack.c.b16 %v95, %v93
  %v116 = vpack.c.b16 %v96, %v94
  %v117 = vpack.c.b16 %v99, %v97
  %v118 = vpack.c.b16 %v100, %v98
  %v119 = vpack.c.b16 %v103, %v101
  %v120 = vpack.c.b16 %v104, %v102
  %v148 = vunpack.c.l.b16 %v31
  %v149 = vunpack.c.l.b16 %v32
  %v150 = vunpack.c.l.b16 %v33
  %v151 = vunpack.c.l.b16 %v34
  %v152 = vunpack.c.l.b16 %v35
  %v153 = vunpack.c.l.b16 %v36
  %v154 = vunpack.c.l.b16 %v37
  %v155 = vunpack.c.l.b16 %v38
  %v156 = vunpack.c.l.b16 %v39
  %v157 = vunpack.c.l.b16 %v40
  %v158 = vunpack.c.l.b16 %v41
  %v159 = vunpack.c.l.b16 %v42
  %v160 = vunpack.c.l.b16 %v43
  %v161 = vunpack.c.l.b16 %v44
  %v162 = vunpack.c.l.b16 %v45
  %v163 = vunpack.c.l.b16 %v46
  %v164 = vunpack.c.l.b16 %v47
  %v165 = vunpack.c.l.b16 %v48
  %v166 = vunpack.c.l.b16 %v49
  %v167 = vpack.c.b16 %v149, %v148
  %v168 = vpack.c.b16 %v151, %v150
  %v169 = vpack.c.b16 %v153, %v152
  %v170 = vpack.c.b16 %v155, %v154
  %v171 = vpack.c.b16 %v157, %v156
  %v172 = vpack.c.b16 %v159, %v158
  %v173 = vpack.c.b16 %v161, %v160
  %v174 = vpack.c.b16 %v163, %v162
  %v175 = vpack.c.b16 %v165, %v164
  %v176 = vpack.c.b16 %v166, %v166
  %vm186 = vcmask 154624
  %v188 = vsel %vm186, %v106, 0
  %v191 = vsel %vm186, %v108, 0
  %v194 = vsel %vm186, %v110, 0
  %v197 = vsel %vm186, %v112, 0
  %v200 = vsel %vm186, %v114, 0
  %v203 = vsel %vm186, %v116, 0
  %v206 = vsel %vm186, %v118, 0
  %v209 = vsel %vm186, %v120, 0
  %vm211 = vcmask 1040384
  %vm212 = vcmask 1041408
  %v213 = vsel %vm211, 4294967295, 65535
  %v214 = vsel %vm212, %v213, 0
  %v216 = vand.u32 %v176, %v214
  %218 = vmatprep.subr.bf16.mxu0 0
  %219 = vmatpush1.bf16.msra.mxu0 %v167
  %220 = vmatprep.subr.bf16.mxu0 0
  %221 = vmatpush1.bf16.msra.mxu0 %v168
  %222 = vmatprep.subr.bf16.mxu0 0
  %223 = vmatpush1.bf16.msra.mxu0 %v169
  %224 = vmatprep.subr.bf16.mxu0 0
  %225 = vmatpush1.bf16.msra.mxu0 %v170
  %226 = vmatprep.subr.bf16.mxu0 0
  %227 = vmatpush1.bf16.msra.mxu0 %v171
  %228 = vmatprep.subr.bf16.mxu0 0
  %229 = vmatpush1.bf16.msra.mxu0 %v172
  %230 = vmatprep.subr.bf16.mxu0 0
  %231 = vmatpush1.bf16.msra.mxu0 %v173
  %232 = vmatprep.subr.bf16.mxu0 0
  %233 = vmatpush1.bf16.msra.mxu0 %v174
  %234 = vmatprep.subr.bf16.mxu0 0
  %235 = vmatpush1.bf16.msra.mxu0 %v175
  %236 = vmatprep.subr.bf16.mxu0 0
  %237 = vmatpush1.bf16.msra.mxu0 %v216
  %238 = vmatprep.subr.bf16.mxu0 0
  %239 = vmatpush1.bf16.msra.mxu0 0
  %240 = vmatprep.subr.bf16.mxu0 0
  %241 = vmatpush1.bf16.msra.mxu0 0
  %242 = vmatprep.subr.bf16.mxu0 0
  %243 = vmatpush1.bf16.msra.mxu0 0
  %244 = vmatprep.subr.bf16.mxu0 0
  %245 = vmatpush1.bf16.msra.mxu0 0
  %246 = vmatprep.subr.bf16.mxu0 0
  %247 = vmatpush1.bf16.msra.mxu0 0
  %248 = vmatprep.subr.bf16.mxu0 0
  %249 = vmatpush1.bf16.msra.mxu0 0
  %250 = vmatprep.mubr.bf16.mxu0 %v188
  %251 = vmatmul.mubr.bf16.gmra.mrb[0].mxu0 %v105
  %v252 = vpop.f32.mrb[0].mxu0
  %v253 = vadd.f32 %v55, %v252
  %v254 = vpop.f32.mrb[0].mxu0
  %v255 = vpop.f32.mrb[0].mxu0
  %v256 = vadd.f32 %v55, %v255
  %v257 = vpop.f32.mrb[0].mxu0
  %258 = vmatprep.mubr.bf16.mxu0 %v191
  %259 = vmatmul.mubr.bf16.gmra.mrb[0].mxu0 %v107
  %v260 = vpop.f32.mrb[0].mxu0
  %v261 = vadd.f32 %v55, %v260
  %v262 = vpop.f32.mrb[0].mxu0
  %v263 = vpop.f32.mrb[0].mxu0
  %v264 = vadd.f32 %v55, %v263
  %v265 = vpop.f32.mrb[0].mxu0
  %266 = vmatprep.mubr.bf16.mxu0 %v194
  %267 = vmatmul.mubr.bf16.gmra.mrb[0].mxu0 %v109
  %v268 = vpop.f32.mrb[0].mxu0
  %v269 = vadd.f32 %v55, %v268
  %v270 = vpop.f32.mrb[0].mxu0
  %v271 = vpop.f32.mrb[0].mxu0
  %v272 = vadd.f32 %v55, %v271
  %v273 = vpop.f32.mrb[0].mxu0
  %274 = vmatprep.mubr.bf16.mxu0 %v197
  %275 = vmatmul.mubr.bf16.gmra.mrb[0].mxu0 %v111
  %v276 = vpop.f32.mrb[0].mxu0
  %v277 = vadd.f32 %v55, %v276
  %v278 = vpop.f32.mrb[0].mxu0
  %v279 = vpop.f32.mrb[0].mxu0
  %v280 = vadd.f32 %v55, %v279
  %v281 = vpop.f32.mrb[0].mxu0
  %282 = vmatprep.mubr.bf16.mxu0 %v200
  %283 = vmatmul.mubr.bf16.gmra.mrb[0].mxu0 %v113
  %v284 = vpop.f32.mrb[0].mxu0
  %v285 = vadd.f32 %v55, %v284
  %v286 = vpop.f32.mrb[0].mxu0
  %v287 = vpop.f32.mrb[0].mxu0
  %v288 = vadd.f32 %v55, %v287
  %v289 = vpop.f32.mrb[0].mxu0
  %290 = vmatprep.mubr.bf16.mxu0 %v203
  %291 = vmatmul.mubr.bf16.gmra.mrb[0].mxu0 %v115
  %v292 = vpop.f32.mrb[0].mxu0
  %v293 = vadd.f32 %v55, %v292
  %v294 = vpop.f32.mrb[0].mxu0
  %v295 = vpop.f32.mrb[0].mxu0
  %v296 = vadd.f32 %v55, %v295
  %v297 = vpop.f32.mrb[0].mxu0
  %298 = vmatprep.mubr.bf16.mxu0 %v206
  %299 = vmatmul.mubr.bf16.gmra.mrb[0].mxu0 %v117
  %v300 = vpop.f32.mrb[0].mxu0
  %v301 = vadd.f32 %v55, %v300
  %v302 = vpop.f32.mrb[0].mxu0
  %v303 = vpop.f32.mrb[0].mxu0
  %v304 = vadd.f32 %v55, %v303
  %v305 = vpop.f32.mrb[0].mxu0
  %306 = vmatprep.mubr.bf16.mxu0 %v209
  %307 = vmatmul.mubr.bf16.gmra.mrb[0].mxu0 %v119
  %v308 = vpop.f32.mrb[0].mxu0
  %v309 = vadd.f32 %v55, %v308
  %v310 = vpop.f32.mrb[0].mxu0
  %v311 = vpop.f32.mrb[0].mxu0
  %v312 = vadd.f32 %v55, %v311
  %v313 = vpop.f32.mrb[0].mxu0
  %314 = vdwg.mxu0
  %v315 = vmax.f32 %v253, 0.0
  %v316 = vmax.f32 %v256, 0.0
  %v317 = vmax.f32 %v261, 0.0
  %v318 = vmax.f32 %v264, 0.0
  %v319 = vmax.f32 %v269, 0.0
  %v320 = vmax.f32 %v272, 0.0
  %v321 = vmax.f32 %v277, 0.0
  %v322 = vmax.f32 %v280, 0.0
  %v323 = vmax.f32 %v285, 0.0
  %v324 = vmax.f32 %v288, 0.0
  %v325 = vmax.f32 %v293, 0.0
  %v326 = vmax.f32 %v296, 0.0
  %v327 = vmax.f32 %v301, 0.0
  %v328 = vmax.f32 %v304, 0.0
  %v329 = vmax.f32 %v309, 0.0
  %v330 = vmax.f32 %v312, 0.0
  %vm331 = vcmask 523264
  %332 = vst.msk [vmem:[%s3] sm:$0xff] %vm331, %v315
  %333 = vst.msk [vmem:[%s3 + $0x8] sm:$0xff] %vm331, %v316
  %334 = vst.msk [vmem:[%s3 + $0x10] sm:$0xff] %vm331, %v317
  %335 = vst.msk [vmem:[%s3 + $0x18] sm:$0xff] %vm331, %v318
  %336 = vst.msk [vmem:[%s3 + $0x20] sm:$0xff] %vm331, %v319
  %337 = vst.msk [vmem:[%s3 + $0x28] sm:$0xff] %vm331, %v320
  %338 = vst.msk [vmem:[%s3 + $0x30] sm:$0xff] %vm331, %v321
  %339 = vst.msk [vmem:[%s3 + $0x38] sm:$0xff] %vm331, %v322
  %340 = vst.msk [vmem:[%s3 + $0x40] sm:$0xff] %vm331, %v323
  %341 = vst.msk [vmem:[%s3 + $0x48] sm:$0xff] %vm331, %v324
  %342 = vst.msk [vmem:[%s3 + $0x50] sm:$0xff] %vm331, %v325
  %343 = vst.msk [vmem:[%s3 + $0x58] sm:$0xff] %vm331, %v326
  %344 = vst.msk [vmem:[%s3 + $0x60] sm:$0xff] %vm331, %v327
  %345 = vst.msk [vmem:[%s3 + $0x68] sm:$0xff] %vm331, %v328
  %346 = vst.msk [vmem:[%s3 + $0x70] sm:$0xff] %vm331, %v329
  %347 = vst.msk [vmem:[%s3 + $0x78] sm:$0xff] %vm331, %v330
  // Predicated region
  $region14: #{resnet18_with_mlp.15} parent=0 // pred_check
    _
  $region15: #{resnet18_with_mlp.15} parent=0 // pred_check_branch
    %349 = sbr.rel (0) target = $region17
  $region16: #{resnet18_with_mlp.15} parent=0 // pred_region
    _
  $region17: #{resnet18_with_mlp.15} parent=0 // pred_fallthru
    _
  // Predicated region
  $region18: #{resnet18_with_mlp.15} parent=0 // pred_check
    _
  $region19: #{resnet18_with_mlp.15} parent=0 // pred_check_branch
    %351 = sbr.rel (0) target = $region21
  $region20: #{resnet18_with_mlp.15} parent=0 // pred_region
    _
  $region21: #{resnet18_with_mlp.15} parent=0 // pred_fallthru
    _

// kernel: resnet18_with_mlp.16
$region0: #{resnet18_with_mlp.16}
  #allocation0 [shape = 'u32[]', space=smem, size = 0x4, offset = 0x4, fixed_abs, tag = 'smem constant byte address 0x4 - core index']
  #allocation1 [shape = 'u32[144,128]{1,0:T(1,128)}', space=vmem, size = 0x12000, scoped, tag = 'internal scratch']
  %s0 = inlined_call_operand.vmem [shape: f32[9,32,64], index: 0, kind: input, shape index: {}]
  %s1 = inlined_call_operand.vmem [shape: f32[32,64], index: 1, kind: output, shape index: {}]
  %s2 = sld [smem:[#allocation0]]
  $region14: #{resnet18_with_mlp.16} parent=0
    _
  %s4 = ssub.s32 1, %s2
  %s5 = scalar_select 0, %s4, %s2
  // Predicated region
  $region2: #{resnet18_with_mlp.16} parent=0 // pred_check
    _
  $region3: #{resnet18_with_mlp.16} parent=0 // pred_check_branch
    %7 = sbr.rel (0) target = $region5
  $region4: #{resnet18_with_mlp.16} parent=0 // pred_region
    _
  $region5: #{resnet18_with_mlp.16} parent=0 // pred_fallthru
    _
  %v8 = vld [vmem:[%s0] sm:$0xff]
  %v9 = vld [vmem:[%s0 + $0x8] sm:$0xff]
  %v10 = vld [vmem:[%s0 + $0x10] sm:$0xff]
  %v11 = vld [vmem:[%s0 + $0x18] sm:$0xff]
  %v12 = vld [vmem:[%s0 + $0x20] sm:$0xff]
  %v13 = vld [vmem:[%s0 + $0x28] sm:$0xff]
  %v14 = vld [vmem:[%s0 + $0x30] sm:$0xff]
  %v15 = vld [vmem:[%s0 + $0x38] sm:$0xff]
  %v16 = vld [vmem:[%s0 + $0x40] sm:$0xff]
  %v17 = vld [vmem:[%s0 + $0x48] sm:$0xff]
  %v18 = vld [vmem:[%s0 + $0x50] sm:$0xff]
  %v19 = vld [vmem:[%s0 + $0x58] sm:$0xff]
  %v20 = vld [vmem:[%s0 + $0x60] sm:$0xff]
  %v21 = vld [vmem:[%s0 + $0x68] sm:$0xff]
  %v22 = vld [vmem:[%s0 + $0x70] sm:$0xff]
  %v23 = vld [vmem:[%s0 + $0x78] sm:$0xff]
  %v24 = vld [vmem:[%s0 + $0x80] sm:$0xff]
  %v25 = vld [vmem:[%s0 + $0x88] sm:$0xff]
  %v26 = vld [vmem:[%s0 + $0x90] sm:$0xff]
  %v27 = vld [vmem:[%s0 + $0x98] sm:$0xff]
  %v28 = vld [vmem:[%s0 + $0xa0] sm:$0xff]
  %v29 = vld [vmem:[%s0 + $0xa8] sm:$0xff]
  %v30 = vld [vmem:[%s0 + $0xb0] sm:$0xff]
  %v31 = vld [vmem:[%s0 + $0xb8] sm:$0xff]
  %v32 = vld [vmem:[%s0 + $0xc0] sm:$0xff]
  %v33 = vld [vmem:[%s0 + $0xc8] sm:$0xff]
  %v34 = vld [vmem:[%s0 + $0xd0] sm:$0xff]
  %v35 = vld [vmem:[%s0 + $0xd8] sm:$0xff]
  %v36 = vld [vmem:[%s0 + $0xe0] sm:$0xff]
  %v37 = vld [vmem:[%s0 + $0xe8] sm:$0xff]
  %v38 = vld [vmem:[%s0 + $0xf0] sm:$0xff]
  %v39 = vld [vmem:[%s0 + $0xf8] sm:$0xff]
  %v40 = vld [vmem:[%s0 + $0x100] sm:$0xff]
  %v41 = vld [vmem:[%s0 + $0x108] sm:$0xff]
  %v42 = vld [vmem:[%s0 + $0x110] sm:$0xff]
  %v43 = vld [vmem:[%s0 + $0x118] sm:$0xff]
  %vm44 = vcmask 523264
  %v45 = vsel %vm44, %v8, -inf
  %v46 = vsel %vm44, %v12, -inf
  %v47 = vmax.f32 %v45, %v46
  %v48 = vsel %vm44, %v16, -inf
  %v49 = vmax.f32 %v47, %v48
  %v50 = vsel %vm44, %v20, -inf
  %v51 = vmax.f32 %v49, %v50
  %v52 = vsel %vm44, %v24, -inf
  %v53 = vmax.f32 %v51, %v52
  %v54 = vsel %vm44, %v28, -inf
  %v55 = vmax.f32 %v53, %v54
  %v56 = vsel %vm44, %v32, -inf
  %v57 = vmax.f32 %v55, %v56
  %v58 = vsel %vm44, %v36, -inf
  %v59 = vmax.f32 %v57, %v58
  %v60 = vsel %vm44, %v40, -inf
  %v61 = vmax.f32 %v59, %v60
  %v62 = vsel %vm44, %v9, -inf
  %v63 = vsel %vm44, %v13, -inf
  %v64 = vmax.f32 %v62, %v63
  %v65 = vsel %vm44, %v17, -inf
  %v66 = vmax.f32 %v64, %v65
  %v67 = vsel %vm44, %v21, -inf
  %v68 = vmax.f32 %v66, %v67
  %v69 = vsel %vm44, %v25, -inf
  %v70 = vmax.f32 %v68, %v69
  %v71 = vsel %vm44, %v29, -inf
  %v72 = vmax.f32 %v70, %v71
  %v73 = vsel %vm44, %v33, -inf
  %v74 = vmax.f32 %v72, %v73
  %v75 = vsel %vm44, %v37, -inf
  %v76 = vmax.f32 %v74, %v75
  %v77 = vsel %vm44, %v41, -inf
  %v78 = vmax.f32 %v76, %v77
  %v79 = vsel %vm44, %v10, -inf
  %v80 = vsel %vm44, %v14, -inf
  %v81 = vmax.f32 %v79, %v80
  %v82 = vsel %vm44, %v18, -inf
  %v83 = vmax.f32 %v81, %v82
  %v84 = vsel %vm44, %v22, -inf
  %v85 = vmax.f32 %v83, %v84
  %v86 = vsel %vm44, %v26, -inf
  %v87 = vmax.f32 %v85, %v86
  %v88 = vsel %vm44, %v30, -inf
  %v89 = vmax.f32 %v87, %v88
  %v90 = vsel %vm44, %v34, -inf
  %v91 = vmax.f32 %v89, %v90
  %v92 = vsel %vm44, %v38, -inf
  %v93 = vmax.f32 %v91, %v92
  %v94 = vsel %vm44, %v42, -inf
  %v95 = vmax.f32 %v93, %v94
  %v96 = vsel %vm44, %v11, -inf
  %v97 = vsel %vm44, %v15, -inf
  %v98 = vmax.f32 %v96, %v97
  %v99 = vsel %vm44, %v19, -inf
  %v100 = vmax.f32 %v98, %v99
  %v101 = vsel %vm44, %v23, -inf
  %v102 = vmax.f32 %v100, %v101
  %v103 = vsel %vm44, %v27, -inf
  %v104 = vmax.f32 %v102, %v103
  %v105 = vsel %vm44, %v31, -inf
  %v106 = vmax.f32 %v104, %v105
  %v107 = vsel %vm44, %v35, -inf
  %v108 = vmax.f32 %v106, %v107
  %v109 = vsel %vm44, %v39, -inf
  %v110 = vmax.f32 %v108, %v109
  %v111 = vsel %vm44, %v43, -inf
  %v112 = vmax.f32 %v110, %v111
  %113 = vst.msk [vmem:[%s1] sm:$0xff] %vm44, %v61
  %114 = vst.msk [vmem:[%s1 + $0x8] sm:$0xff] %vm44, %v78
  %115 = vst.msk [vmem:[%s1 + $0x10] sm:$0xff] %vm44, %v95
  %116 = vst.msk [vmem:[%s1 + $0x18] sm:$0xff] %vm44, %v112
  // Predicated region
  $region6: #{resnet18_with_mlp.16} parent=0 // pred_check
    _
  $region7: #{resnet18_with_mlp.16} parent=0 // pred_check_branch
    %118 = sbr.rel (0) target = $region9
  $region8: #{resnet18_with_mlp.16} parent=0 // pred_region
    _
  $region9: #{resnet18_with_mlp.16} parent=0 // pred_fallthru
    _
  // Predicated region
  $region10: #{resnet18_with_mlp.16} parent=0 // pred_check
    _
  $region11: #{resnet18_with_mlp.16} parent=0 // pred_check_branch
    %120 = sbr.rel (0) target = $region13
  $region12: #{resnet18_with_mlp.16} parent=0 // pred_region
    _
  $region13: #{resnet18_with_mlp.16} parent=0 // pred_fallthru
    _

// kernel: resnet18_with_mlp.17
$region0: #{resnet18_with_mlp.17}
  #allocation0 [shape = 'u32[]', space=smem, size = 0x4, offset = 0x4, fixed_abs, tag = 'smem constant byte address 0x4 - core index']
  #allocation1 [shape = 'u32[144,128]{1,0:T(1,128)}', space=vmem, size = 0x12000, scoped, tag = 'internal scratch']
  %s0 = inlined_call_operand.vmem [shape: bf16[32,576], index: 0, kind: input, shape index: {}]
  %s1 = inlined_call_operand.vmem [shape: bf16[576,64], index: 1, kind: input, shape index: {}]
  %s2 = inlined_call_operand.vmem [shape: f32[1,64], index: 2, kind: input, shape index: {}]
  %s3 = inlined_call_operand.vmem [shape: f32[32,64], index: 3, kind: output, shape index: {}]
  %s4 = sld [smem:[#allocation0]]
  $region22: #{resnet18_with_mlp.17} parent=0
    _
  %s6 = ssub.s32 1, %s4
  %s7 = scalar_select 0, %s6, %s4
  // Predicated region
  $region2: #{resnet18_with_mlp.17} parent=0 // pred_check
    _
  $region3: #{resnet18_with_mlp.17} parent=0 // pred_check_branch
    %9 = sbr.rel (0) target = $region5
  $region4: #{resnet18_with_mlp.17} parent=0 // pred_region
    _
  $region5: #{resnet18_with_mlp.17} parent=0 // pred_fallthru
    _
  // Predicated region
  $region6: #{resnet18_with_mlp.17} parent=0 // pred_check
    _
  $region7: #{resnet18_with_mlp.17} parent=0 // pred_check_branch
    %11 = sbr.rel (0) target = $region9
  $region8: #{resnet18_with_mlp.17} parent=0 // pred_region
    _
  $region9: #{resnet18_with_mlp.17} parent=0 // pred_fallthru
    _
  // Predicated region
  $region10: #{resnet18_with_mlp.17} parent=0 // pred_check
    _
  $region11: #{resnet18_with_mlp.17} parent=0 // pred_check_branch
    %13 = sbr.rel (0) target = $region13
  $region12: #{resnet18_with_mlp.17} parent=0 // pred_region
    _
  $region13: #{resnet18_with_mlp.17} parent=0 // pred_fallthru
    _
  %v15 = vld [vmem:[%s0] sm:$0xff]
  %v16 = vld [vmem:[%s0 + $0x8] sm:$0xff]
  %v17 = vld [vmem:[%s0 + $0x10] sm:$0xf]
  %v18 = vld [vmem:[%s0 + $0x14] sm:$0xff]
  %v19 = vld [vmem:[%s0 + $0x1c] sm:$0xff]
  %v20 = vld [vmem:[%s0 + $0x24] sm:$0xf]
  %v21 = vld [vmem:[%s0 + $0x28] sm:$0xff]
  %v22 = vld [vmem:[%s0 + $0x30] sm:$0xff]
  %v23 = vld [vmem:[%s0 + $0x38] sm:$0xf]
  %v24 = vld [vmem:[%s0 + $0x3c] sm:$0xff]
  %v25 = vld [vmem:[%s0 + $0x44] sm:$0xff]
  %v26 = vld [vmem:[%s0 + $0x4c] sm:$0xf]
  %v27 = vld [vmem:[%s1] sm:$0xf]
  %v28 = vld [vmem:[%s1 + $0x4] sm:$0xf]
  %v29 = vld [vmem:[%s1 + $0x8] sm:$0xf]
  %v30 = vld [vmem:[%s1 + $0xc] sm:$0xf]
  %v31 = vld [vmem:[%s1 + $0x10] sm:$0xf]
  %v32 = vld [vmem:[%s1 + $0x14] sm:$0xf]
  %v33 = vld [vmem:[%s1 + $0x18] sm:$0xf]
  %v34 = vld [vmem:[%s1 + $0x1c] sm:$0xf]
  %v35 = vld [vmem:[%s1 + $0x20] sm:$0xf]
  %v36 = vld [vmem:[%s1 + $0x24] sm:$0xf]
  %v37 = vld [vmem:[%s1 + $0x28] sm:$0xf]
  %v38 = vld [vmem:[%s1 + $0x2c] sm:$0xf]
  %v39 = vld [vmem:[%s1 + $0x30] sm:$0xf]
  %v40 = vld [vmem:[%s1 + $0x34] sm:$0xf]
  %v41 = vld [vmem:[%s1 + $0x38] sm:$0xf]
  %v42 = vld [vmem:[%s1 + $0x3c] sm:$0xf]
  %v43 = vld [vmem:[%s1 + $0x40] sm:$0xf]
  %v44 = vld [vmem:[%s1 + $0x44] sm:$0xf]
  %v45 = vld [vmem:[%s1 + $0x48] sm:$0xf]
  %v46 = vld [vmem:[%s1 + $0x4c] sm:$0xf]
  %v47 = vld [vmem:[%s1 + $0x50] sm:$0xf]
  %v48 = vld [vmem:[%s1 + $0x54] sm:$0xf]
  %v49 = vld [vmem:[%s1 + $0x58] sm:$0xf]
  %v50 = vld [vmem:[%s1 + $0x5c] sm:$0xf]
  %v51 = vld [vmem:[%s1 + $0x60] sm:$0xf]
  %v52 = vld [vmem:[%s1 + $0x64] sm:$0xf]
  %v53 = vld [vmem:[%s1 + $0x68] sm:$0xf]
  %v54 = vld [vmem:[%s1 + $0x6c] sm:$0xf]
  %v55 = vld [vmem:[%s1 + $0x70] sm:$0xf]
  %v56 = vld [vmem:[%s1 + $0x74] sm:$0xf]
  %v57 = vld [vmem:[%s1 + $0x78] sm:$0xf]
  %v58 = vld [vmem:[%s1 + $0x7c] sm:$0xf]
  %v59 = vld [vmem:[%s1 + $0x80] sm:$0xf]
  %v60 = vld [vmem:[%s1 + $0x84] sm:$0xf]
  %v61 = vld [vmem:[%s1 + $0x88] sm:$0xf]
  %v62 = vld [vmem:[%s1 + $0x8c] sm:$0xf]
  %v63 = vld [vmem:[%s1 + $0x90] sm:$0xf]
  %v64 = vld [vmem:[%s1 + $0x94] sm:$0xf]
  %v65 = vld [vmem:[%s1 + $0x98] sm:$0xf]
  %v66 = vld [vmem:[%s1 + $0x9c] sm:$0xf]
  %v67 = vld [vmem:[%s1 + $0xa0] sm:$0xf]
  %v68 = vld [vmem:[%s1 + $0xa4] sm:$0xf]
  %v69 = vld [vmem:[%s1 + $0xa8] sm:$0xf]
  %v70 = vld [vmem:[%s1 + $0xac] sm:$0xf]
  %v71 = vld [vmem:[%s1 + $0xb0] sm:$0xf]
  %v72 = vld [vmem:[%s1 + $0xb4] sm:$0xf]
  %v73 = vld [vmem:[%s1 + $0xb8] sm:$0xf]
  %v74 = vld [vmem:[%s1 + $0xbc] sm:$0xf]
  %v75 = vld [vmem:[%s1 + $0xc0] sm:$0xf]
  %v76 = vld [vmem:[%s1 + $0xc4] sm:$0xf]
  %v77 = vld [vmem:[%s1 + $0xc8] sm:$0xf]
  %v78 = vld [vmem:[%s1 + $0xcc] sm:$0xf]
  %v79 = vld [vmem:[%s1 + $0xd0] sm:$0xf]
  %v80 = vld [vmem:[%s1 + $0xd4] sm:$0xf]
  %v81 = vld [vmem:[%s1 + $0xd8] sm:$0xf]
  %v82 = vld [vmem:[%s1 + $0xdc] sm:$0xf]
  %v83 = vld [vmem:[%s1 + $0xe0] sm:$0xf]
  %v84 = vld [vmem:[%s1 + $0xe4] sm:$0xf]
  %v85 = vld [vmem:[%s1 + $0xe8] sm:$0xf]
  %v86 = vld [vmem:[%s1 + $0xec] sm:$0xf]
  %v87 = vld [vmem:[%s1 + $0xf0] sm:$0xf]
  %v88 = vld [vmem:[%s1 + $0xf4] sm:$0xf]
  %v89 = vld [vmem:[%s1 + $0xf8] sm:$0xf]
  %v90 = vld [vmem:[%s1 + $0xfc] sm:$0xf]
  %v91 = vld [vmem:[%s1 + $0x100] sm:$0xf]
  %v92 = vld [vmem:[%s1 + $0x104] sm:$0xf]
  %v93 = vld [vmem:[%s1 + $0x108] sm:$0xf]
  %v94 = vld [vmem:[%s1 + $0x10c] sm:$0xf]
  %v95 = vld [vmem:[%s1 + $0x110] sm:$0xf]
  %v96 = vld [vmem:[%s1 + $0x114] sm:$0xf]
  %v97 = vld [vmem:[%s1 + $0x118] sm:$0xf]
  %v98 = vld [vmem:[%s1 + $0x11c] sm:$0xf]
  %v99 = vld [vmem:[%s2] sm:$0x1]
  %v101 = vlaneseq
  %v102 = vshrl.u32 %v101, 7
  %v103 = vsub.s32 0, %v102
  %v104 = vrot.slane %v99, %v103
  %v118 = vunpack.c.l.b16 %v15
  %v119 = vunpack.c.h.b16 %v15
  %v120 = vunpack.c.l.b16 %v16
  %v121 = vunpack.c.h.b16 %v16
  %v122 = vunpack.c.l.b16 %v17
  %v123 = vunpack.c.l.b16 %v18
  %v124 = vunpack.c.h.b16 %v18
  %v125 = vunpack.c.l.b16 %v19
  %v126 = vunpack.c.h.b16 %v19
  %v127 = vunpack.c.l.b16 %v20
  %v128 = vunpack.c.l.b16 %v21
  %v129 = vunpack.c.h.b16 %v21
  %v130 = vunpack.c.l.b16 %v22
  %v131 = vunpack.c.h.b16 %v22
  %v132 = vunpack.c.l.b16 %v23
  %v133 = vunpack.c.l.b16 %v24
  %v134 = vunpack.c.h.b16 %v24
  %v135 = vunpack.c.l.b16 %v25
  %v136 = vunpack.c.h.b16 %v25
  %v137 = vunpack.c.l.b16 %v26
  %v138 = vpack.c.b16 %v123, %v118
  %v139 = vpack.c.b16 %v124, %v119
  %v140 = vpack.c.b16 %v125, %v120
  %v141 = vpack.c.b16 %v126, %v121
  %v142 = vpack.c.b16 %v127, %v122
  %v143 = vpack.c.b16 %v133, %v128
  %v144 = vpack.c.b16 %v134, %v129
  %v145 = vpack.c.b16 %v135, %v130
  %v146 = vpack.c.b16 %v136, %v131
  %v147 = vpack.c.b16 %v137, %v132
  %v228 = vunpack.c.l.b16 %v27
  %v229 = vunpack.c.l.b16 %v28
  %v230 = vunpack.c.l.b16 %v29
  %v231 = vunpack.c.l.b16 %v30
  %v232 = vunpack.c.l.b16 %v31
  %v233 = vunpack.c.l.b16 %v32
  %v234 = vunpack.c.l.b16 %v33
  %v235 = vunpack.c.l.b16 %v34
  %v236 = vunpack.c.l.b16 %v35
  %v237 = vunpack.c.l.b16 %v36
  %v238 = vunpack.c.l.b16 %v37
  %v239 = vunpack.c.l.b16 %v38
  %v240 = vunpack.c.l.b16 %v39
  %v241 = vunpack.c.l.b16 %v40
  %v242 = vunpack.c.l.b16 %v41
  %v243 = vunpack.c.l.b16 %v42
  %v244 = vunpack.c.l.b16 %v43
  %v245 = vunpack.c.l.b16 %v44
  %v246 = vunpack.c.l.b16 %v45
  %v247 = vunpack.c.l.b16 %v46
  %v248 = vunpack.c.l.b16 %v47
  %v249 = vunpack.c.l.b16 %v48
  %v250 = vunpack.c.l.b16 %v49
  %v251 = vunpack.c.l.b16 %v50
  %v252 = vunpack.c.l.b16 %v51
  %v253 = vunpack.c.l.b16 %v52
  %v254 = vunpack.c.l.b16 %v53
  %v255 = vunpack.c.l.b16 %v54
  %v256 = vunpack.c.l.b16 %v55
  %v257 = vunpack.c.l.b16 %v56
  %v258 = vunpack.c.l.b16 %v57
  %v259 = vunpack.c.l.b16 %v58
  %v260 = vunpack.c.l.b16 %v59
  %v261 = vunpack.c.l.b16 %v60
  %v262 = vunpack.c.l.b16 %v61
  %v263 = vunpack.c.l.b16 %v62
  %v264 = vunpack.c.l.b16 %v63
  %v265 = vunpack.c.l.b16 %v64
  %v266 = vunpack.c.l.b16 %v65
  %v267 = vunpack.c.l.b16 %v66
  %v268 = vunpack.c.l.b16 %v67
  %v269 = vunpack.c.l.b16 %v68
  %v270 = vunpack.c.l.b16 %v69
  %v271 = vunpack.c.l.b16 %v70
  %v272 = vunpack.c.l.b16 %v71
  %v273 = vunpack.c.l.b16 %v72
  %v274 = vunpack.c.l.b16 %v73
  %v275 = vunpack.c.l.b16 %v74
  %v276 = vunpack.c.l.b16 %v75
  %v277 = vunpack.c.l.b16 %v76
  %v278 = vunpack.c.l.b16 %v77
  %v279 = vunpack.c.l.b16 %v78
  %v280 = vunpack.c.l.b16 %v79
  %v281 = vunpack.c.l.b16 %v80
  %v282 = vunpack.c.l.b16 %v81
  %v283 = vunpack.c.l.b16 %v82
  %v284 = vunpack.c.l.b16 %v83
  %v285 = vunpack.c.l.b16 %v84
  %v286 = vunpack.c.l.b16 %v85
  %v287 = vunpack.c.l.b16 %v86
  %v288 = vunpack.c.l.b16 %v87
  %v289 = vunpack.c.l.b16 %v88
  %v290 = vunpack.c.l.b16 %v89
  %v291 = vunpack.c.l.b16 %v90
  %v292 = vunpack.c.l.b16 %v91
  %v293 = vunpack.c.l.b16 %v92
  %v294 = vunpack.c.l.b16 %v93
  %v295 = vunpack.c.l.b16 %v94
  %v296 = vunpack.c.l.b16 %v95
  %v297 = vunpack.c.l.b16 %v96
  %v298 = vunpack.c.l.b16 %v97
  %v299 = vunpack.c.l.b16 %v98
  %v300 = vpack.c.b16 %v229, %v228
  %v301 = vpack.c.b16 %v231, %v230
  %v302 = vpack.c.b16 %v233, %v232
  %v303 = vpack.c.b16 %v235, %v234
  %v304 = vpack.c.b16 %v237, %v236
  %v305 = vpack.c.b16 %v239, %v238
  %v306 = vpack.c.b16 %v241, %v240
  %v307 = vpack.c.b16 %v243, %v242
  %v308 = vpack.c.b16 %v245, %v244
  %v309 = vpack.c.b16 %v247, %v246
  %v310 = vpack.c.b16 %v249, %v248
  %v311 = vpack.c.b16 %v251, %v250
  %v312 = vpack.c.b16 %v253, %v252
  %v313 = vpack.c.b16 %v255, %v254
  %v314 = vpack.c.b16 %v257, %v256
  %v315 = vpack.c.b16 %v259, %v258
  %v316 = vpack.c.b16 %v261, %v260
  %v317 = vpack.c.b16 %v263, %v262
  %v318 = vpack.c.b16 %v265, %v264
  %v319 = vpack.c.b16 %v267, %v266
  %v320 = vpack.c.b16 %v269, %v268
  %v321 = vpack.c.b16 %v271, %v270
  %v322 = vpack.c.b16 %v273, %v272
  %v323 = vpack.c.b16 %v275, %v274
  %v324 = vpack.c.b16 %v277, %v276
  %v325 = vpack.c.b16 %v279, %v278
  %v326 = vpack.c.b16 %v281, %v280
  %v327 = vpack.c.b16 %v283, %v282
  %v328 = vpack.c.b16 %v285, %v284
  %v329 = vpack.c.b16 %v287, %v286
  %v330 = vpack.c.b16 %v289, %v288
  %v331 = vpack.c.b16 %v291, %v290
  %v332 = vpack.c.b16 %v293, %v292
  %v333 = vpack.c.b16 %v295, %v294
  %v334 = vpack.c.b16 %v297, %v296
  %v335 = vpack.c.b16 %v299, %v298
  %vm372 = vcmask 523264
  %v374 = vsel %vm372, %v142, 0
  %v377 = vsel %vm372, %v147, 0
  %379 = vmatprep.subr.bf16.mxu0 0
  %380 = vmatpush1.bf16.msra.mxu0 %v300
  %381 = vmatprep.subr.bf16.mxu0 0
  %382 = vmatpush1.bf16.msra.mxu0 %v301
  %383 = vmatprep.subr.bf16.mxu0 0
  %384 = vmatpush1.bf16.msra.mxu0 %v302
  %385 = vmatprep.subr.bf16.mxu0 0
  %386 = vmatpush1.bf16.msra.mxu0 %v303
  %387 = vmatprep.subr.bf16.mxu0 0
  %388 = vmatpush1.bf16.msra.mxu0 %v304
  %389 = vmatprep.subr.bf16.mxu0 0
  %390 = vmatpush1.bf16.msra.mxu0 %v305
  %391 = vmatprep.subr.bf16.mxu0 0
  %392 = vmatpush1.bf16.msra.mxu0 %v306
  %393 = vmatprep.subr.bf16.mxu0 0
  %394 = vmatpush1.bf16.msra.mxu0 %v307
  %395 = vmatprep.subr.bf16.mxu0 0
  %396 = vmatpush1.bf16.msra.mxu0 %v308
  %397 = vmatprep.subr.bf16.mxu0 0
  %398 = vmatpush1.bf16.msra.mxu0 %v309
  %399 = vmatprep.subr.bf16.mxu0 0
  %400 = vmatpush1.bf16.msra.mxu0 %v310
  %401 = vmatprep.subr.bf16.mxu0 0
  %402 = vmatpush1.bf16.msra.mxu0 %v311
  %403 = vmatprep.subr.bf16.mxu0 0
  %404 = vmatpush1.bf16.msra.mxu0 %v312
  %405 = vmatprep.subr.bf16.mxu0 0
  %406 = vmatpush1.bf16.msra.mxu0 %v313
  %407 = vmatprep.subr.bf16.mxu0 0
  %408 = vmatpush1.bf16.msra.mxu0 %v314
  %409 = vmatprep.subr.bf16.mxu0 0
  %410 = vmatpush1.bf16.msra.mxu0 %v315
  %411 = vmatprep.mubr.bf16.mxu0 %v139
  %412 = vmatmul.mubr.bf16.gmra.mrb[0].mxu0 %v138
  %v413 = vpop.f32.mrb[0].mxu0
  %v414 = vadd.f32 %v104, %v413
  %v415 = vpop.f32.mrb[0].mxu0
  %v416 = vpop.f32.mrb[0].mxu0
  %v417 = vadd.f32 %v104, %v416
  %v418 = vpop.f32.mrb[0].mxu0
  %419 = vmatprep.mubr.bf16.mxu0 %v144
  %420 = vmatmul.mubr.bf16.gmra.mrb[0].mxu0 %v143
  %v421 = vpop.f32.mrb[0].mxu0
  %v422 = vadd.f32 %v104, %v421
  %v423 = vpop.f32.mrb[0].mxu0
  %v424 = vpop.f32.mrb[0].mxu0
  %v425 = vadd.f32 %v104, %v424
  %v426 = vpop.f32.mrb[0].mxu0
  %427 = vdwg.mxu0
  %428 = vmatprep.subr.bf16.mxu0 0
  %429 = vmatpush1.bf16.msra.mxu0 %v316
  %430 = vmatprep.subr.bf16.mxu0 0
  %431 = vmatpush1.bf16.msra.mxu0 %v317
  %432 = vmatprep.subr.bf16.mxu0 0
  %433 = vmatpush1.bf16.msra.mxu0 %v318
  %434 = vmatprep.subr.bf16.mxu0 0
  %435 = vmatpush1.bf16.msra.mxu0 %v319
  %436 = vmatprep.subr.bf16.mxu0 0
  %437 = vmatpush1.bf16.msra.mxu0 %v320
  %438 = vmatprep.subr.bf16.mxu0 0
  %439 = vmatpush1.bf16.msra.mxu0 %v321
  %440 = vmatprep.subr.bf16.mxu0 0
  %441 = vmatpush1.bf16.msra.mxu0 %v322
  %442 = vmatprep.subr.bf16.mxu0 0
  %443 = vmatpush1.bf16.msra.mxu0 %v323
  %444 = vmatprep.subr.bf16.mxu0 0
  %445 = vmatpush1.bf16.msra.mxu0 %v324
  %446 = vmatprep.subr.bf16.mxu0 0
  %447 = vmatpush1.bf16.msra.mxu0 %v325
  %448 = vmatprep.subr.bf16.mxu0 0
  %449 = vmatpush1.bf16.msra.mxu0 %v326
  %450 = vmatprep.subr.bf16.mxu0 0
  %451 = vmatpush1.bf16.msra.mxu0 %v327
  %452 = vmatprep.subr.bf16.mxu0 0
  %453 = vmatpush1.bf16.msra.mxu0 %v328
  %454 = vmatprep.subr.bf16.mxu0 0
  %455 = vmatpush1.bf16.msra.mxu0 %v329
  %456 = vmatprep.subr.bf16.mxu0 0
  %457 = vmatpush1.bf16.msra.mxu0 %v330
  %458 = vmatprep.subr.bf16.mxu0 0
  %459 = vmatpush1.bf16.msra.mxu0 %v331
  %460 = vmatprep.mubr.bf16.mxu0 %v141
  %461 = vmatmul.mubr.bf16.gmra.mrb[0].mxu0 %v140
  %v462 = vpop.f32.mrb[0].mxu0
  %v463 = vadd.f32 %v414, %v462
  %v464 = vpop.f32.mrb[0].mxu0
  %v465 = vpop.f32.mrb[0].mxu0
  %v466 = vadd.f32 %v417, %v465
  %v467 = vpop.f32.mrb[0].mxu0
  %468 = vmatprep.mubr.bf16.mxu0 %v146
  %469 = vmatmul.mubr.bf16.gmra.mrb[0].mxu0 %v145
  %v470 = vpop.f32.mrb[0].mxu0
  %v471 = vadd.f32 %v422, %v470
  %v472 = vpop.f32.mrb[0].mxu0
  %v473 = vpop.f32.mrb[0].mxu0
  %v474 = vadd.f32 %v425, %v473
  %v475 = vpop.f32.mrb[0].mxu0
  %476 = vdwg.mxu0
  %477 = vmatprep.subr.bf16.mxu0 0
  %478 = vmatpush1.bf16.msra.mxu0 %v332
  %479 = vmatprep.subr.bf16.mxu0 0
  %480 = vmatpush1.bf16.msra.mxu0 %v333
  %481 = vmatprep.subr.bf16.mxu0 0
  %482 = vmatpush1.bf16.msra.mxu0 %v334
  %483 = vmatprep.subr.bf16.mxu0 0
  %484 = vmatpush1.bf16.msra.mxu0 %v335
  %485 = vmatprep.subr.bf16.mxu0 0
  %486 = vmatpush1.bf16.msra.mxu0 0
  %487 = vmatprep.subr.bf16.mxu0 0
  %488 = vmatpush1.bf16.msra.mxu0 0
  %489 = vmatprep.subr.bf16.mxu0 0
  %490 = vmatpush1.bf16.msra.mxu0 0
  %491 = vmatprep.subr.bf16.mxu0 0
  %492 = vmatpush1.bf16.msra.mxu0 0
  %493 = vmatprep.subr.bf16.mxu0 0
  %494 = vmatpush1.bf16.msra.mxu0 0
  %495 = vmatprep.subr.bf16.mxu0 0
  %496 = vmatpush1.bf16.msra.mxu0 0
  %497 = vmatprep.subr.bf16.mxu0 0
  %498 = vmatpush1.bf16.msra.mxu0 0
  %499 = vmatprep.subr.bf16.mxu0 0
  %500 = vmatpush1.bf16.msra.mxu0 0
  %501 = vmatprep.subr.bf16.mxu0 0
  %502 = vmatpush1.bf16.msra.mxu0 0
  %503 = vmatprep.subr.bf16.mxu0 0
  %504 = vmatpush1.bf16.msra.mxu0 0
  %505 = vmatprep.subr.bf16.mxu0 0
  %506 = vmatpush1.bf16.msra.mxu0 0
  %507 = vmatprep.subr.bf16.mxu0 0
  %508 = vmatpush1.bf16.msra.mxu0 0
  %509 = vmatprep.mubr.bf16.mxu0 0
  %510 = vmatmul.mubr.bf16.gmra.mrb[0].mxu0 %v374
  %v511 = vpop.f32.mrb[0].mxu0
  %v512 = vadd.f32 %v463, %v511
  %v513 = vpop.f32.mrb[0].mxu0
  %v514 = vpop.f32.mrb[0].mxu0
  %v515 = vadd.f32 %v466, %v514
  %v516 = vpop.f32.mrb[0].mxu0
  %517 = vmatprep.mubr.bf16.mxu0 0
  %518 = vmatmul.mubr.bf16.gmra.mrb[0].mxu0 %v377
  %v519 = vpop.f32.mrb[0].mxu0
  %v520 = vadd.f32 %v471, %v519
  %v521 = vpop.f32.mrb[0].mxu0
  %v522 = vpop.f32.mrb[0].mxu0
  %v523 = vadd.f32 %v474, %v522
  %v524 = vpop.f32.mrb[0].mxu0
  %525 = vdwg.mxu0
  %v526 = vmax.f32 %v512, 0.0
  %v527 = vmax.f32 %v515, 0.0
  %v528 = vmax.f32 %v520, 0.0
  %v529 = vmax.f32 %v523, 0.0
  %530 = vst.msk [vmem:[%s3] sm:$0xff] %vm372, %v526
  %531 = vst.msk [vmem:[%s3 + $0x8] sm:$0xff] %vm372, %v527
  %532 = vst.msk [vmem:[%s3 + $0x10] sm:$0xff] %vm372, %v528
  %533 = vst.msk [vmem:[%s3 + $0x18] sm:$0xff] %vm372, %v529
  // Predicated region
  $region14: #{resnet18_with_mlp.17} parent=0 // pred_check
    _
  $region15: #{resnet18_with_mlp.17} parent=0 // pred_check_branch
    %535 = sbr.rel (0) target = $region17
  $region16: #{resnet18_with_mlp.17} parent=0 // pred_region
    _
  $region17: #{resnet18_with_mlp.17} parent=0 // pred_fallthru
    _
  // Predicated region
  $region18: #{resnet18_with_mlp.17} parent=0 // pred_check
    _
  $region19: #{resnet18_with_mlp.17} parent=0 // pred_check_branch
    %537 = sbr.rel (0) target = $region21
  $region20: #{resnet18_with_mlp.17} parent=0 // pred_region
    _
  $region21: #{resnet18_with_mlp.17} parent=0 // pred_fallthru
    _

// kernel: resnet18_with_mlp.18
$region0: #{resnet18_with_mlp.18}
  #allocation0 [shape = 'u32[]', space=smem, size = 0x4, offset = 0x4, fixed_abs, tag = 'smem constant byte address 0x4 - core index']
  #allocation1 [shape = 'u32[144,128]{1,0:T(1,128)}', space=vmem, size = 0x12000, scoped, tag = 'internal scratch']
  %s0 = inlined_call_operand.vmem [shape: bf16[32,576], index: 0, kind: input, shape index: {}]
  %s1 = inlined_call_operand.vmem [shape: bf16[576,64], index: 1, kind: input, shape index: {}]
  %s2 = inlined_call_operand.vmem [shape: f32[1,64], index: 2, kind: input, shape index: {}]
  %s3 = inlined_call_operand.vmem [shape: f32[32,64], index: 3, kind: input, shape index: {}]
  %s4 = inlined_call_operand.vmem [shape: f32[32,64], index: 4, kind: output, shape index: {}]
  %s5 = sld [smem:[#allocation0]]
  $region26: #{resnet18_with_mlp.18} parent=0
    _
  %s7 = ssub.s32 1, %s5
  %s8 = scalar_select 0, %s7, %s5
  // Predicated region
  $region2: #{resnet18_with_mlp.18} parent=0 // pred_check
    _
  $region3: #{resnet18_with_mlp.18} parent=0 // pred_check_branch
    %10 = sbr.rel (0) target = $region5
  $region4: #{resnet18_with_mlp.18} parent=0 // pred_region
    _
  $region5: #{resnet18_with_mlp.18} parent=0 // pred_fallthru
    _
  // Predicated region
  $region6: #{resnet18_with_mlp.18} parent=0 // pred_check
    _
  $region7: #{resnet18_with_mlp.18} parent=0 // pred_check_branch
    %12 = sbr.rel (0) target = $region9
  $region8: #{resnet18_with_mlp.18} parent=0 // pred_region
    _
  $region9: #{resnet18_with_mlp.18} parent=0 // pred_fallthru
    _
  // Predicated region
  $region10: #{resnet18_with_mlp.18} parent=0 // pred_check
    _
  $region11: #{resnet18_with_mlp.18} parent=0 // pred_check_branch
    %14 = sbr.rel (0) target = $region13
  $region12: #{resnet18_with_mlp.18} parent=0 // pred_region
    _
  $region13: #{resnet18_with_mlp.18} parent=0 // pred_fallthru
    _
  // Predicated region
  $region14: #{resnet18_with_mlp.18} parent=0 // pred_check
    _
  $region15: #{resnet18_with_mlp.18} parent=0 // pred_check_branch
    %16 = sbr.rel (0) target = $region17
  $region16: #{resnet18_with_mlp.18} parent=0 // pred_region
    _
  $region17: #{resnet18_with_mlp.18} parent=0 // pred_fallthru
    _
  %v18 = vld [vmem:[%s0] sm:$0xff]
  %v19 = vld [vmem:[%s0 + $0x8] sm:$0xff]
  %v20 = vld [vmem:[%s0 + $0x10] sm:$0xf]
  %v21 = vld [vmem:[%s0 + $0x14] sm:$0xff]
  %v22 = vld [vmem:[%s0 + $0x1c] sm:$0xff]
  %v23 = vld [vmem:[%s0 + $0x24] sm:$0xf]
  %v24 = vld [vmem:[%s0 + $0x28] sm:$0xff]
  %v25 = vld [vmem:[%s0 + $0x30] sm:$0xff]
  %v26 = vld [vmem:[%s0 + $0x38] sm:$0xf]
  %v27 = vld [vmem:[%s0 + $0x3c] sm:$0xff]
  %v28 = vld [vmem:[%s0 + $0x44] sm:$0xff]
  %v29 = vld [vmem:[%s0 + $0x4c] sm:$0xf]
  %v30 = vld [vmem:[%s1] sm:$0xf]
  %v31 = vld [vmem:[%s1 + $0x4] sm:$0xf]
  %v32 = vld [vmem:[%s1 + $0x8] sm:$0xf]
  %v33 = vld [vmem:[%s1 + $0xc] sm:$0xf]
  %v34 = vld [vmem:[%s1 + $0x10] sm:$0xf]
  %v35 = vld [vmem:[%s1 + $0x14] sm:$0xf]
  %v36 = vld [vmem:[%s1 + $0x18] sm:$0xf]
  %v37 = vld [vmem:[%s1 + $0x1c] sm:$0xf]
  %v38 = vld [vmem:[%s1 + $0x20] sm:$0xf]
  %v39 = vld [vmem:[%s1 + $0x24] sm:$0xf]
  %v40 = vld [vmem:[%s1 + $0x28] sm:$0xf]
  %v41 = vld [vmem:[%s1 + $0x2c] sm:$0xf]
  %v42 = vld [vmem:[%s1 + $0x30] sm:$0xf]
  %v43 = vld [vmem:[%s1 + $0x34] sm:$0xf]
  %v44 = vld [vmem:[%s1 + $0x38] sm:$0xf]
  %v45 = vld [vmem:[%s1 + $0x3c] sm:$0xf]
  %v46 = vld [vmem:[%s1 + $0x40] sm:$0xf]
  %v47 = vld [vmem:[%s1 + $0x44] sm:$0xf]
  %v48 = vld [vmem:[%s1 + $0x48] sm:$0xf]
  %v49 = vld [vmem:[%s1 + $0x4c] sm:$0xf]
  %v50 = vld [vmem:[%s1 + $0x50] sm:$0xf]
  %v51 = vld [vmem:[%s1 + $0x54] sm:$0xf]
  %v52 = vld [vmem:[%s1 + $0x58] sm:$0xf]
  %v53 = vld [vmem:[%s1 + $0x5c] sm:$0xf]
  %v54 = vld [vmem:[%s1 + $0x60] sm:$0xf]
  %v55 = vld [vmem:[%s1 + $0x64] sm:$0xf]
  %v56 = vld [vmem:[%s1 + $0x68] sm:$0xf]
  %v57 = vld [vmem:[%s1 + $0x6c] sm:$0xf]
  %v58 = vld [vmem:[%s1 + $0x70] sm:$0xf]
  %v59 = vld [vmem:[%s1 + $0x74] sm:$0xf]
  %v60 = vld [vmem:[%s1 + $0x78] sm:$0xf]
  %v61 = vld [vmem:[%s1 + $0x7c] sm:$0xf]
  %v62 = vld [vmem:[%s1 + $0x80] sm:$0xf]
  %v63 = vld [vmem:[%s1 + $0x84] sm:$0xf]
  %v64 = vld [vmem:[%s1 + $0x88] sm:$0xf]
  %v65 = vld [vmem:[%s1 + $0x8c] sm:$0xf]
  %v66 = vld [vmem:[%s1 + $0x90] sm:$0xf]
  %v67 = vld [vmem:[%s1 + $0x94] sm:$0xf]
  %v68 = vld [vmem:[%s1 + $0x98] sm:$0xf]
  %v69 = vld [vmem:[%s1 + $0x9c] sm:$0xf]
  %v70 = vld [vmem:[%s1 + $0xa0] sm:$0xf]
  %v71 = vld [vmem:[%s1 + $0xa4] sm:$0xf]
  %v72 = vld [vmem:[%s1 + $0xa8] sm:$0xf]
  %v73 = vld [vmem:[%s1 + $0xac] sm:$0xf]
  %v74 = vld [vmem:[%s1 + $0xb0] sm:$0xf]
  %v75 = vld [vmem:[%s1 + $0xb4] sm:$0xf]
  %v76 = vld [vmem:[%s1 + $0xb8] sm:$0xf]
  %v77 = vld [vmem:[%s1 + $0xbc] sm:$0xf]
  %v78 = vld [vmem:[%s1 + $0xc0] sm:$0xf]
  %v79 = vld [vmem:[%s1 + $0xc4] sm:$0xf]
  %v80 = vld [vmem:[%s1 + $0xc8] sm:$0xf]
  %v81 = vld [vmem:[%s1 + $0xcc] sm:$0xf]
  %v82 = vld [vmem:[%s1 + $0xd0] sm:$0xf]
  %v83 = vld [vmem:[%s1 + $0xd4] sm:$0xf]
  %v84 = vld [vmem:[%s1 + $0xd8] sm:$0xf]
  %v85 = vld [vmem:[%s1 + $0xdc] sm:$0xf]
  %v86 = vld [vmem:[%s1 + $0xe0] sm:$0xf]
  %v87 = vld [vmem:[%s1 + $0xe4] sm:$0xf]
  %v88 = vld [vmem:[%s1 + $0xe8] sm:$0xf]
  %v89 = vld [vmem:[%s1 + $0xec] sm:$0xf]
  %v90 = vld [vmem:[%s1 + $0xf0] sm:$0xf]
  %v91 = vld [vmem:[%s1 + $0xf4] sm:$0xf]
  %v92 = vld [vmem:[%s1 + $0xf8] sm:$0xf]
  %v93 = vld [vmem:[%s1 + $0xfc] sm:$0xf]
  %v94 = vld [vmem:[%s1 + $0x100] sm:$0xf]
  %v95 = vld [vmem:[%s1 + $0x104] sm:$0xf]
  %v96 = vld [vmem:[%s1 + $0x108] sm:$0xf]
  %v97 = vld [vmem:[%s1 + $0x10c] sm:$0xf]
  %v98 = vld [vmem:[%s1 + $0x110] sm:$0xf]
  %v99 = vld [vmem:[%s1 + $0x114] sm:$0xf]
  %v100 = vld [vmem:[%s1 + $0x118] sm:$0xf]
  %v101 = vld [vmem:[%s1 + $0x11c] sm:$0xf]
  %v102 = vld [vmem:[%s2] sm:$0x1]
  %v104 = vlaneseq
  %v105 = vshrl.u32 %v104, 7
  %v106 = vsub.s32 0, %v105
  %v107 = vrot.slane %v102, %v106
  %v121 = vunpack.c.l.b16 %v18
  %v122 = vunpack.c.h.b16 %v18
  %v123 = vunpack.c.l.b16 %v19
  %v124 = vunpack.c.h.b16 %v19
  %v125 = vunpack.c.l.b16 %v20
  %v126 = vunpack.c.l.b16 %v21
  %v127 = vunpack.c.h.b16 %v21
  %v128 = vunpack.c.l.b16 %v22
  %v129 = vunpack.c.h.b16 %v22
  %v130 = vunpack.c.l.b16 %v23
  %v131 = vunpack.c.l.b16 %v24
  %v132 = vunpack.c.h.b16 %v24
  %v133 = vunpack.c.l.b16 %v25
  %v134 = vunpack.c.h.b16 %v25
  %v135 = vunpack.c.l.b16 %v26
  %v136 = vunpack.c.l.b16 %v27
  %v137 = vunpack.c.h.b16 %v27
  %v138 = vunpack.c.l.b16 %v28
  %v139 = vunpack.c.h.b16 %v28
  %v140 = vunpack.c.l.b16 %v29
  %v141 = vpack.c.b16 %v126, %v121
  %v142 = vpack.c.b16 %v127, %v122
  %v143 = vpack.c.b16 %v128, %v123
  %v144 = vpack.c.b16 %v129, %v124
  %v145 = vpack.c.b16 %v130, %v125
  %v146 = vpack.c.b16 %v136, %v131
  %v147 = vpack.c.b16 %v137, %v132
  %v148 = vpack.c.b16 %v138, %v133
  %v149 = vpack.c.b16 %v139, %v134
  %v150 = vpack.c.b16 %v140, %v135
  %v231 = vunpack.c.l.b16 %v30
  %v232 = vunpack.c.l.b16 %v31
  %v233 = vunpack.c.l.b16 %v32
  %v234 = vunpack.c.l.b16 %v33
  %v235 = vunpack.c.l.b16 %v34
  %v236 = vunpack.c.l.b16 %v35
  %v237 = vunpack.c.l.b16 %v36
  %v238 = vunpack.c.l.b16 %v37
  %v239 = vunpack.c.l.b16 %v38
  %v240 = vunpack.c.l.b16 %v39
  %v241 = vunpack.c.l.b16 %v40
  %v242 = vunpack.c.l.b16 %v41
  %v243 = vunpack.c.l.b16 %v42
  %v244 = vunpack.c.l.b16 %v43
  %v245 = vunpack.c.l.b16 %v44
  %v246 = vunpack.c.l.b16 %v45
  %v247 = vunpack.c.l.b16 %v46
  %v248 = vunpack.c.l.b16 %v47
  %v249 = vunpack.c.l.b16 %v48
  %v250 = vunpack.c.l.b16 %v49
  %v251 = vunpack.c.l.b16 %v50
  %v252 = vunpack.c.l.b16 %v51
  %v253 = vunpack.c.l.b16 %v52
  %v254 = vunpack.c.l.b16 %v53
  %v255 = vunpack.c.l.b16 %v54
  %v256 = vunpack.c.l.b16 %v55
  %v257 = vunpack.c.l.b16 %v56
  %v258 = vunpack.c.l.b16 %v57
  %v259 = vunpack.c.l.b16 %v58
  %v260 = vunpack.c.l.b16 %v59
  %v261 = vunpack.c.l.b16 %v60
  %v262 = vunpack.c.l.b16 %v61
  %v263 = vunpack.c.l.b16 %v62
  %v264 = vunpack.c.l.b16 %v63
  %v265 = vunpack.c.l.b16 %v64
  %v266 = vunpack.c.l.b16 %v65
  %v267 = vunpack.c.l.b16 %v66
  %v268 = vunpack.c.l.b16 %v67
  %v269 = vunpack.c.l.b16 %v68
  %v270 = vunpack.c.l.b16 %v69
  %v271 = vunpack.c.l.b16 %v70
  %v272 = vunpack.c.l.b16 %v71
  %v273 = vunpack.c.l.b16 %v72
  %v274 = vunpack.c.l.b16 %v73
  %v275 = vunpack.c.l.b16 %v74
  %v276 = vunpack.c.l.b16 %v75
  %v277 = vunpack.c.l.b16 %v76
  %v278 = vunpack.c.l.b16 %v77
  %v279 = vunpack.c.l.b16 %v78
  %v280 = vunpack.c.l.b16 %v79
  %v281 = vunpack.c.l.b16 %v80
  %v282 = vunpack.c.l.b16 %v81
  %v283 = vunpack.c.l.b16 %v82
  %v284 = vunpack.c.l.b16 %v83
  %v285 = vunpack.c.l.b16 %v84
  %v286 = vunpack.c.l.b16 %v85
  %v287 = vunpack.c.l.b16 %v86
  %v288 = vunpack.c.l.b16 %v87
  %v289 = vunpack.c.l.b16 %v88
  %v290 = vunpack.c.l.b16 %v89
  %v291 = vunpack.c.l.b16 %v90
  %v292 = vunpack.c.l.b16 %v91
  %v293 = vunpack.c.l.b16 %v92
  %v294 = vunpack.c.l.b16 %v93
  %v295 = vunpack.c.l.b16 %v94
  %v296 = vunpack.c.l.b16 %v95
  %v297 = vunpack.c.l.b16 %v96
  %v298 = vunpack.c.l.b16 %v97
  %v299 = vunpack.c.l.b16 %v98
  %v300 = vunpack.c.l.b16 %v99
  %v301 = vunpack.c.l.b16 %v100
  %v302 = vunpack.c.l.b16 %v101
  %v303 = vpack.c.b16 %v232, %v231
  %v304 = vpack.c.b16 %v234, %v233
  %v305 = vpack.c.b16 %v236, %v235
  %v306 = vpack.c.b16 %v238, %v237
  %v307 = vpack.c.b16 %v240, %v239
  %v308 = vpack.c.b16 %v242, %v241
  %v309 = vpack.c.b16 %v244, %v243
  %v310 = vpack.c.b16 %v246, %v245
  %v311 = vpack.c.b16 %v248, %v247
  %v312 = vpack.c.b16 %v250, %v249
  %v313 = vpack.c.b16 %v252, %v251
  %v314 = vpack.c.b16 %v254, %v253
  %v315 = vpack.c.b16 %v256, %v255
  %v316 = vpack.c.b16 %v258, %v257
  %v317 = vpack.c.b16 %v260, %v259
  %v318 = vpack.c.b16 %v262, %v261
  %v319 = vpack.c.b16 %v264, %v263
  %v320 = vpack.c.b16 %v266, %v265
  %v321 = vpack.c.b16 %v268, %v267
  %v322 = vpack.c.b16 %v270, %v269
  %v323 = vpack.c.b16 %v272, %v271
  %v324 = vpack.c.b16 %v274, %v273
  %v325 = vpack.c.b16 %v276, %v275
  %v326 = vpack.c.b16 %v278, %v277
  %v327 = vpack.c.b16 %v280, %v279
  %v328 = vpack.c.b16 %v282, %v281
  %v329 = vpack.c.b16 %v284, %v283
  %v330 = vpack.c.b16 %v286, %v285
  %v331 = vpack.c.b16 %v288, %v287
  %v332 = vpack.c.b16 %v290, %v289
  %v333 = vpack.c.b16 %v292, %v291
  %v334 = vpack.c.b16 %v294, %v293
  %v335 = vpack.c.b16 %v296, %v295
  %v336 = vpack.c.b16 %v298, %v297
  %v337 = vpack.c.b16 %v300, %v299
  %v338 = vpack.c.b16 %v302, %v301
  %vm375 = vcmask 523264
  %v377 = vsel %vm375, %v145, 0
  %v380 = vsel %vm375, %v150, 0
  %382 = vmatprep.subr.bf16.mxu0 0
  %383 = vmatpush1.bf16.msra.mxu0 %v303
  %384 = vmatprep.subr.bf16.mxu0 0
  %385 = vmatpush1.bf16.msra.mxu0 %v304
  %386 = vmatprep.subr.bf16.mxu0 0
  %387 = vmatpush1.bf16.msra.mxu0 %v305
  %388 = vmatprep.subr.bf16.mxu0 0
  %389 = vmatpush1.bf16.msra.mxu0 %v306
  %390 = vmatprep.subr.bf16.mxu0 0
  %391 = vmatpush1.bf16.msra.mxu0 %v307
  %392 = vmatprep.subr.bf16.mxu0 0
  %393 = vmatpush1.bf16.msra.mxu0 %v308
  %394 = vmatprep.subr.bf16.mxu0 0
  %395 = vmatpush1.bf16.msra.mxu0 %v309
  %396 = vmatprep.subr.bf16.mxu0 0
  %397 = vmatpush1.bf16.msra.mxu0 %v310
  %398 = vmatprep.subr.bf16.mxu0 0
  %399 = vmatpush1.bf16.msra.mxu0 %v311
  %400 = vmatprep.subr.bf16.mxu0 0
  %401 = vmatpush1.bf16.msra.mxu0 %v312
  %402 = vmatprep.subr.bf16.mxu0 0
  %403 = vmatpush1.bf16.msra.mxu0 %v313
  %404 = vmatprep.subr.bf16.mxu0 0
  %405 = vmatpush1.bf16.msra.mxu0 %v314
  %406 = vmatprep.subr.bf16.mxu0 0
  %407 = vmatpush1.bf16.msra.mxu0 %v315
  %408 = vmatprep.subr.bf16.mxu0 0
  %409 = vmatpush1.bf16.msra.mxu0 %v316
  %410 = vmatprep.subr.bf16.mxu0 0
  %411 = vmatpush1.bf16.msra.mxu0 %v317
  %412 = vmatprep.subr.bf16.mxu0 0
  %413 = vmatpush1.bf16.msra.mxu0 %v318
  %414 = vmatprep.mubr.bf16.mxu0 %v142
  %415 = vmatmul.mubr.bf16.gmra.mrb[0].mxu0 %v141
  %v416 = vpop.f32.mrb[0].mxu0
  %v417 = vadd.f32 %v107, %v416
  %v418 = vpop.f32.mrb[0].mxu0
  %v419 = vpop.f32.mrb[0].mxu0
  %v420 = vadd.f32 %v107, %v419
  %v421 = vpop.f32.mrb[0].mxu0
  %422 = vmatprep.mubr.bf16.mxu0 %v147
  %423 = vmatmul.mubr.bf16.gmra.mrb[0].mxu0 %v146
  %v424 = vpop.f32.mrb[0].mxu0
  %v425 = vadd.f32 %v107, %v424
  %v426 = vpop.f32.mrb[0].mxu0
  %v427 = vpop.f32.mrb[0].mxu0
  %v428 = vadd.f32 %v107, %v427
  %v429 = vpop.f32.mrb[0].mxu0
  %430 = vdwg.mxu0
  %431 = vmatprep.subr.bf16.mxu0 0
  %432 = vmatpush1.bf16.msra.mxu0 %v319
  %433 = vmatprep.subr.bf16.mxu0 0
  %434 = vmatpush1.bf16.msra.mxu0 %v320
  %435 = vmatprep.subr.bf16.mxu0 0
  %436 = vmatpush1.bf16.msra.mxu0 %v321
  %437 = vmatprep.subr.bf16.mxu0 0
  %438 = vmatpush1.bf16.msra.mxu0 %v322
  %439 = vmatprep.subr.bf16.mxu0 0
  %440 = vmatpush1.bf16.msra.mxu0 %v323
  %441 = vmatprep.subr.bf16.mxu0 0
  %442 = vmatpush1.bf16.msra.mxu0 %v324
  %443 = vmatprep.subr.bf16.mxu0 0
  %444 = vmatpush1.bf16.msra.mxu0 %v325
  %445 = vmatprep.subr.bf16.mxu0 0
  %446 = vmatpush1.bf16.msra.mxu0 %v326
  %447 = vmatprep.subr.bf16.mxu0 0
  %448 = vmatpush1.bf16.msra.mxu0 %v327
  %449 = vmatprep.subr.bf16.mxu0 0
  %450 = vmatpush1.bf16.msra.mxu0 %v328
  %451 = vmatprep.subr.bf16.mxu0 0
  %452 = vmatpush1.bf16.msra.mxu0 %v329
  %453 = vmatprep.subr.bf16.mxu0 0
  %454 = vmatpush1.bf16.msra.mxu0 %v330
  %455 = vmatprep.subr.bf16.mxu0 0
  %456 = vmatpush1.bf16.msra.mxu0 %v331
  %457 = vmatprep.subr.bf16.mxu0 0
  %458 = vmatpush1.bf16.msra.mxu0 %v332
  %459 = vmatprep.subr.bf16.mxu0 0
  %460 = vmatpush1.bf16.msra.mxu0 %v333
  %461 = vmatprep.subr.bf16.mxu0 0
  %462 = vmatpush1.bf16.msra.mxu0 %v334
  %463 = vmatprep.mubr.bf16.mxu0 %v144
  %464 = vmatmul.mubr.bf16.gmra.mrb[0].mxu0 %v143
  %v465 = vpop.f32.mrb[0].mxu0
  %v466 = vadd.f32 %v417, %v465
  %v467 = vpop.f32.mrb[0].mxu0
  %v468 = vpop.f32.mrb[0].mxu0
  %v469 = vadd.f32 %v420, %v468
  %v470 = vpop.f32.mrb[0].mxu0
  %471 = vmatprep.mubr.bf16.mxu0 %v149
  %472 = vmatmul.mubr.bf16.gmra.mrb[0].mxu0 %v148
  %v473 = vpop.f32.mrb[0].mxu0
  %v474 = vadd.f32 %v425, %v473
  %v475 = vpop.f32.mrb[0].mxu0
  %v476 = vpop.f32.mrb[0].mxu0
  %v477 = vadd.f32 %v428, %v476
  %v478 = vpop.f32.mrb[0].mxu0
  %479 = vdwg.mxu0
  %480 = vmatprep.subr.bf16.mxu0 0
  %481 = vmatpush1.bf16.msra.mxu0 %v335
  %482 = vmatprep.subr.bf16.mxu0 0
  %483 = vmatpush1.bf16.msra.mxu0 %v336
  %484 = vmatprep.subr.bf16.mxu0 0
  %485 = vmatpush1.bf16.msra.mxu0 %v337
  %486 = vmatprep.subr.bf16.mxu0 0
  %487 = vmatpush1.bf16.msra.mxu0 %v338
  %488 = vmatprep.subr.bf16.mxu0 0
  %489 = vmatpush1.bf16.msra.mxu0 0
  %490 = vmatprep.subr.bf16.mxu0 0
  %491 = vmatpush1.bf16.msra.mxu0 0
  %492 = vmatprep.subr.bf16.mxu0 0
  %493 = vmatpush1.bf16.msra.mxu0 0
  %494 = vmatprep.subr.bf16.mxu0 0
  %495 = vmatpush1.bf16.msra.mxu0 0
  %496 = vmatprep.subr.bf16.mxu0 0
  %497 = vmatpush1.bf16.msra.mxu0 0
  %498 = vmatprep.subr.bf16.mxu0 0
  %499 = vmatpush1.bf16.msra.mxu0 0
  %500 = vmatprep.subr.bf16.mxu0 0
  %501 = vmatpush1.bf16.msra.mxu0 0
  %502 = vmatprep.subr.bf16.mxu0 0
  %503 = vmatpush1.bf16.msra.mxu0 0
  %504 = vmatprep.subr.bf16.mxu0 0
  %505 = vmatpush1.bf16.msra.mxu0 0
  %506 = vmatprep.subr.bf16.mxu0 0
  %507 = vmatpush1.bf16.msra.mxu0 0
  %508 = vmatprep.subr.bf16.mxu0 0
  %509 = vmatpush1.bf16.msra.mxu0 0
  %510 = vmatprep.subr.bf16.mxu0 0
  %511 = vmatpush1.bf16.msra.mxu0 0
  %512 = vmatprep.mubr.bf16.mxu0 0
  %513 = vmatmul.mubr.bf16.gmra.mrb[0].mxu0 %v377
  %v514 = vpop.f32.mrb[0].mxu0
  %v515 = vadd.f32 %v466, %v514
  %v516 = vpop.f32.mrb[0].mxu0
  %v517 = vpop.f32.mrb[0].mxu0
  %v518 = vadd.f32 %v469, %v517
  %v519 = vpop.f32.mrb[0].mxu0
  %520 = vmatprep.mubr.bf16.mxu0 0
  %521 = vmatmul.mubr.bf16.gmra.mrb[0].mxu0 %v380
  %v522 = vpop.f32.mrb[0].mxu0
  %v523 = vadd.f32 %v474, %v522
  %v524 = vpop.f32.mrb[0].mxu0
  %v525 = vpop.f32.mrb[0].mxu0
  %v526 = vadd.f32 %v477, %v525
  %v527 = vpop.f32.mrb[0].mxu0
  %528 = vdwg.mxu0
  %v529 = vld [vmem:[%s3] sm:$0xff]
  %v530 = vld [vmem:[%s3 + $0x8] sm:$0xff]
  %v531 = vld [vmem:[%s3 + $0x10] sm:$0xff]
  %v532 = vld [vmem:[%s3 + $0x18] sm:$0xff]
  %v533 = vadd.f32 %v515, %v529
  %v534 = vadd.f32 %v518, %v530
  %v535 = vadd.f32 %v523, %v531
  %v536 = vadd.f32 %v526, %v532
  %v537 = vmax.f32 %v533, 0.0
  %v538 = vmax.f32 %v534, 0.0
  %v539 = vmax.f32 %v535, 0.0
  %v540 = vmax.f32 %v536, 0.0
  %541 = vst.msk [vmem:[%s4] sm:$0xff] %vm375, %v537
  %542 = vst.msk [vmem:[%s4 + $0x8] sm:$0xff] %vm375, %v538
  %543 = vst.msk [vmem:[%s4 + $0x10] sm:$0xff] %vm375, %v539
  %544 = vst.msk [vmem:[%s4 + $0x18] sm:$0xff] %vm375, %v540
  // Predicated region
  $region18: #{resnet18_with_mlp.18} parent=0 // pred_check
    _
  $region19: #{resnet18_with_mlp.18} parent=0 // pred_check_branch
    %546 = sbr.rel (0) target = $region21
  $region20: #{resnet18_with_mlp.18} parent=0 // pred_region
    _
  $region21: #{resnet18_with_mlp.18} parent=0 // pred_fallthru
    _
  // Predicated region
  $region22: #{resnet18_with_mlp.18} parent=0 // pred_check
    _
  $region23: #{resnet18_with_mlp.18} parent=0 // pred_check_branch
    %548 = sbr.rel (0) target = $region25
  $region24: #{resnet18_with_mlp.18} parent=0 // pred_region
    _
  $region25: #{resnet18_with_mlp.18} parent=0 // pred_fallthru
    _

// kernel: resnet18_with_mlp.21
$region0: #{resnet18_with_mlp.21}
  #allocation0 [shape = 'u32[]', space=smem, size = 0x4, offset = 0x4, fixed_abs, tag = 'smem constant byte address 0x4 - core index']
  #allocation1 [shape = 'u32[144,128]{1,0:T(1,128)}', space=vmem, size = 0x12000, scoped, tag = 'internal scratch']
  %s0 = inlined_call_operand.vmem [shape: bf16[8,576], index: 0, kind: input, shape index: {}]
  %s1 = inlined_call_operand.vmem [shape: bf16[576,128], index: 1, kind: input, shape index: {}]
  %s2 = inlined_call_operand.vmem [shape: f32[1,128], index: 2, kind: input, shape index: {}]
  %s3 = inlined_call_operand.vmem [shape: f32[8,128], index: 3, kind: output, shape index: {}]
  %s4 = sld [smem:[#allocation0]]
  $region22: #{resnet18_with_mlp.21} parent=0
    _
  %s6 = ssub.s32 1, %s4
  %s7 = scalar_select 0, %s6, %s4
  // Predicated region
  $region2: #{resnet18_with_mlp.21} parent=0 // pred_check
    _
  $region3: #{resnet18_with_mlp.21} parent=0 // pred_check_branch
    %9 = sbr.rel (0) target = $region5
  $region4: #{resnet18_with_mlp.21} parent=0 // pred_region
    _
  $region5: #{resnet18_with_mlp.21} parent=0 // pred_fallthru
    _
  // Predicated region
  $region6: #{resnet18_with_mlp.21} parent=0 // pred_check
    _
  $region7: #{resnet18_with_mlp.21} parent=0 // pred_check_branch
    %11 = sbr.rel (0) target = $region9
  $region8: #{resnet18_with_mlp.21} parent=0 // pred_region
    _
  $region9: #{resnet18_with_mlp.21} parent=0 // pred_fallthru
    _
  // Predicated region
  $region10: #{resnet18_with_mlp.21} parent=0 // pred_check
    _
  $region11: #{resnet18_with_mlp.21} parent=0 // pred_check_branch
    %13 = sbr.rel (0) target = $region13
  $region12: #{resnet18_with_mlp.21} parent=0 // pred_region
    _
  $region13: #{resnet18_with_mlp.21} parent=0 // pred_fallthru
    _
  %v15 = vld [vmem:[%s0] sm:$0xff]
  %v16 = vld [vmem:[%s0 + $0x8] sm:$0xff]
  %v17 = vld [vmem:[%s0 + $0x10] sm:$0xf]
  %v18 = vld [vmem:[%s1] sm:$0xf]
  %v19 = vld [vmem:[%s1 + $0x4] sm:$0xf]
  %v20 = vld [vmem:[%s1 + $0x8] sm:$0xf]
  %v21 = vld [vmem:[%s1 + $0xc] sm:$0xf]
  %v22 = vld [vmem:[%s1 + $0x10] sm:$0xf]
  %v23 = vld [vmem:[%s1 + $0x14] sm:$0xf]
  %v24 = vld [vmem:[%s1 + $0x18] sm:$0xf]
  %v25 = vld [vmem:[%s1 + $0x1c] sm:$0xf]
  %v26 = vld [vmem:[%s1 + $0x20] sm:$0xf]
  %v27 = vld [vmem:[%s1 + $0x24] sm:$0xf]
  %v28 = vld [vmem:[%s1 + $0x28] sm:$0xf]
  %v29 = vld [vmem:[%s1 + $0x2c] sm:$0xf]
  %v30 = vld [vmem:[%s1 + $0x30] sm:$0xf]
  %v31 = vld [vmem:[%s1 + $0x34] sm:$0xf]
  %v32 = vld [vmem:[%s1 + $0x38] sm:$0xf]
  %v33 = vld [vmem:[%s1 + $0x3c] sm:$0xf]
  %v34 = vld [vmem:[%s1 + $0x40] sm:$0xf]
  %v35 = vld [vmem:[%s1 + $0x44] sm:$0xf]
  %v36 = vld [vmem:[%s1 + $0x48] sm:$0xf]
  %v37 = vld [vmem:[%s1 + $0x4c] sm:$0xf]
  %v38 = vld [vmem:[%s1 + $0x50] sm:$0xf]
  %v39 = vld [vmem:[%s1 + $0x54] sm:$0xf]
  %v40 = vld [vmem:[%s1 + $0x58] sm:$0xf]
  %v41 = vld [vmem:[%s1 + $0x5c] sm:$0xf]
  %v42 = vld [vmem:[%s1 + $0x60] sm:$0xf]
  %v43 = vld [vmem:[%s1 + $0x64] sm:$0xf]
  %v44 = vld [vmem:[%s1 + $0x68] sm:$0xf]
  %v45 = vld [vmem:[%s1 + $0x6c] sm:$0xf]
  %v46 = vld [vmem:[%s1 + $0x70] sm:$0xf]
  %v47 = vld [vmem:[%s1 + $0x74] sm:$0xf]
  %v48 = vld [vmem:[%s1 + $0x78] sm:$0xf]
  %v49 = vld [vmem:[%s1 + $0x7c] sm:$0xf]
  %v50 = vld [vmem:[%s1 + $0x80] sm:$0xf]
  %v51 = vld [vmem:[%s1 + $0x84] sm:$0xf]
  %v52 = vld [vmem:[%s1 + $0x88] sm:$0xf]
  %v53 = vld [vmem:[%s1 + $0x8c] sm:$0xf]
  %v54 = vld [vmem:[%s1 + $0x90] sm:$0xf]
  %v55 = vld [vmem:[%s1 + $0x94] sm:$0xf]
  %v56 = vld [vmem:[%s1 + $0x98] sm:$0xf]
  %v57 = vld [vmem:[%s1 + $0x9c] sm:$0xf]
  %v58 = vld [vmem:[%s1 + $0xa0] sm:$0xf]
  %v59 = vld [vmem:[%s1 + $0xa4] sm:$0xf]
  %v60 = vld [vmem:[%s1 + $0xa8] sm:$0xf]
  %v61 = vld [vmem:[%s1 + $0xac] sm:$0xf]
  %v62 = vld [vmem:[%s1 + $0xb0] sm:$0xf]
  %v63 = vld [vmem:[%s1 + $0xb4] sm:$0xf]
  %v64 = vld [vmem:[%s1 + $0xb8] sm:$0xf]
  %v65 = vld [vmem:[%s1 + $0xbc] sm:$0xf]
  %v66 = vld [vmem:[%s1 + $0xc0] sm:$0xf]
  %v67 = vld [vmem:[%s1 + $0xc4] sm:$0xf]
  %v68 = vld [vmem:[%s1 + $0xc8] sm:$0xf]
  %v69 = vld [vmem:[%s1 + $0xcc] sm:$0xf]
  %v70 = vld [vmem:[%s1 + $0xd0] sm:$0xf]
  %v71 = vld [vmem:[%s1 + $0xd4] sm:$0xf]
  %v72 = vld [vmem:[%s1 + $0xd8] sm:$0xf]
  %v73 = vld [vmem:[%s1 + $0xdc] sm:$0xf]
  %v74 = vld [vmem:[%s1 + $0xe0] sm:$0xf]
  %v75 = vld [vmem:[%s1 + $0xe4] sm:$0xf]
  %v76 = vld [vmem:[%s1 + $0xe8] sm:$0xf]
  %v77 = vld [vmem:[%s1 + $0xec] sm:$0xf]
  %v78 = vld [vmem:[%s1 + $0xf0] sm:$0xf]
  %v79 = vld [vmem:[%s1 + $0xf4] sm:$0xf]
  %v80 = vld [vmem:[%s1 + $0xf8] sm:$0xf]
  %v81 = vld [vmem:[%s1 + $0xfc] sm:$0xf]
  %v82 = vld [vmem:[%s1 + $0x100] sm:$0xf]
  %v83 = vld [vmem:[%s1 + $0x104] sm:$0xf]
  %v84 = vld [vmem:[%s1 + $0x108] sm:$0xf]
  %v85 = vld [vmem:[%s1 + $0x10c] sm:$0xf]
  %v86 = vld [vmem:[%s1 + $0x110] sm:$0xf]
  %v87 = vld [vmem:[%s1 + $0x114] sm:$0xf]
  %v88 = vld [vmem:[%s1 + $0x118] sm:$0xf]
  %v89 = vld [vmem:[%s1 + $0x11c] sm:$0xf]
  %v90 = vld [vmem:[%s2] sm:$0x1]
  %v92 = vlaneseq
  %v93 = vshrl.u32 %v92, 7
  %v94 = vsub.s32 0, %v93
  %v95 = vrot.slane %v90, %v94
  %v100 = vunpack.c.l.b16 %v15
  %v101 = vunpack.c.h.b16 %v15
  %v102 = vunpack.c.l.b16 %v16
  %v103 = vunpack.c.h.b16 %v16
  %v104 = vunpack.c.l.b16 %v17
  %v105 = vpack.c.b16 %v100, %v100
  %v106 = vpack.c.b16 %v101, %v101
  %v107 = vpack.c.b16 %v102, %v102
  %v108 = vpack.c.b16 %v103, %v103
  %v109 = vpack.c.b16 %v104, %v104
  %v186 = vunpack.c.l.b16 %v18
  %v187 = vunpack.c.l.b16 %v19
  %v188 = vunpack.c.l.b16 %v20
  %v189 = vunpack.c.l.b16 %v21
  %v190 = vunpack.c.l.b16 %v22
  %v191 = vunpack.c.l.b16 %v23
  %v192 = vunpack.c.l.b16 %v24
  %v193 = vunpack.c.l.b16 %v25
  %v194 = vunpack.c.l.b16 %v26
  %v195 = vunpack.c.l.b16 %v27
  %v196 = vunpack.c.l.b16 %v28
  %v197 = vunpack.c.l.b16 %v29
  %v198 = vunpack.c.l.b16 %v30
  %v199 = vunpack.c.l.b16 %v31
  %v200 = vunpack.c.l.b16 %v32
  %v201 = vunpack.c.l.b16 %v33
  %v202 = vunpack.c.l.b16 %v34
  %v203 = vunpack.c.l.b16 %v35
  %v204 = vunpack.c.l.b16 %v36
  %v205 = vunpack.c.l.b16 %v37
  %v206 = vunpack.c.l.b16 %v38
  %v207 = vunpack.c.l.b16 %v39
  %v208 = vunpack.c.l.b16 %v40
  %v209 = vunpack.c.l.b16 %v41
  %v210 = vunpack.c.l.b16 %v42
  %v211 = vunpack.c.l.b16 %v43
  %v212 = vunpack.c.l.b16 %v44
  %v213 = vunpack.c.l.b16 %v45
  %v214 = vunpack.c.l.b16 %v46
  %v215 = vunpack.c.l.b16 %v47
  %v216 = vunpack.c.l.b16 %v48
  %v217 = vunpack.c.l.b16 %v49
  %v218 = vunpack.c.l.b16 %v50
  %v219 = vunpack.c.l.b16 %v51
  %v220 = vunpack.c.l.b16 %v52
  %v221 = vunpack.c.l.b16 %v53
  %v222 = vunpack.c.l.b16 %v54
  %v223 = vunpack.c.l.b16 %v55
  %v224 = vunpack.c.l.b16 %v56
  %v225 = vunpack.c.l.b16 %v57
  %v226 = vunpack.c.l.b16 %v58
  %v227 = vunpack.c.l.b16 %v59
  %v228 = vunpack.c.l.b16 %v60
  %v229 = vunpack.c.l.b16 %v61
  %v230 = vunpack.c.l.b16 %v62
  %v231 = vunpack.c.l.b16 %v63
  %v232 = vunpack.c.l.b16 %v64
  %v233 = vunpack.c.l.b16 %v65
  %v234 = vunpack.c.l.b16 %v66
  %v235 = vunpack.c.l.b16 %v67
  %v236 = vunpack.c.l.b16 %v68
  %v237 = vunpack.c.l.b16 %v69
  %v238 = vunpack.c.l.b16 %v70
  %v239 = vunpack.c.l.b16 %v71
  %v240 = vunpack.c.l.b16 %v72
  %v241 = vunpack.c.l.b16 %v73
  %v242 = vunpack.c.l.b16 %v74
  %v243 = vunpack.c.l.b16 %v75
  %v244 = vunpack.c.l.b16 %v76
  %v245 = vunpack.c.l.b16 %v77
  %v246 = vunpack.c.l.b16 %v78
  %v247 = vunpack.c.l.b16 %v79
  %v248 = vunpack.c.l.b16 %v80
  %v249 = vunpack.c.l.b16 %v81
  %v250 = vunpack.c.l.b16 %v82
  %v251 = vunpack.c.l.b16 %v83
  %v252 = vunpack.c.l.b16 %v84
  %v253 = vunpack.c.l.b16 %v85
  %v254 = vunpack.c.l.b16 %v86
  %v255 = vunpack.c.l.b16 %v87
  %v256 = vunpack.c.l.b16 %v88
  %v257 = vunpack.c.l.b16 %v89
  %v258 = vpack.c.b16 %v187, %v186
  %v259 = vpack.c.b16 %v189, %v188
  %v260 = vpack.c.b16 %v191, %v190
  %v261 = vpack.c.b16 %v193, %v192
  %v262 = vpack.c.b16 %v195, %v194
  %v263 = vpack.c.b16 %v197, %v196
  %v264 = vpack.c.b16 %v199, %v198
  %v265 = vpack.c.b16 %v201, %v200
  %v266 = vpack.c.b16 %v203, %v202
  %v267 = vpack.c.b16 %v205, %v204
  %v268 = vpack.c.b16 %v207, %v206
  %v269 = vpack.c.b16 %v209, %v208
  %v270 = vpack.c.b16 %v211, %v210
  %v271 = vpack.c.b16 %v213, %v212
  %v272 = vpack.c.b16 %v215, %v214
  %v273 = vpack.c.b16 %v217, %v216
  %v274 = vpack.c.b16 %v219, %v218
  %v275 = vpack.c.b16 %v221, %v220
  %v276 = vpack.c.b16 %v223, %v222
  %v277 = vpack.c.b16 %v225, %v224
  %v278 = vpack.c.b16 %v227, %v226
  %v279 = vpack.c.b16 %v229, %v228
  %v280 = vpack.c.b16 %v231, %v230
  %v281 = vpack.c.b16 %v233, %v232
  %v282 = vpack.c.b16 %v235, %v234
  %v283 = vpack.c.b16 %v237, %v236
  %v284 = vpack.c.b16 %v239, %v238
  %v285 = vpack.c.b16 %v241, %v240
  %v286 = vpack.c.b16 %v243, %v242
  %v287 = vpack.c.b16 %v245, %v244
  %v288 = vpack.c.b16 %v247, %v246
  %v289 = vpack.c.b16 %v249, %v248
  %v290 = vpack.c.b16 %v251, %v250
  %v291 = vpack.c.b16 %v253, %v252
  %v292 = vpack.c.b16 %v255, %v254
  %v293 = vpack.c.b16 %v257, %v256
  %vm330 = vcmask 523264
  %v332 = vsel %vm330, %v109, 0
  %334 = vmatprep.subr.bf16.mxu0 0
  %335 = vmatpush1.bf16.msra.mxu0 %v258
  %336 = vmatprep.subr.bf16.mxu0 0
  %337 = vmatpush1.bf16.msra.mxu0 %v259
  %338 = vmatprep.subr.bf16.mxu0 0
  %339 = vmatpush1.bf16.msra.mxu0 %v260
  %340 = vmatprep.subr.bf16.mxu0 0
  %341 = vmatpush1.bf16.msra.mxu0 %v261
  %342 = vmatprep.subr.bf16.mxu0 0
  %343 = vmatpush1.bf16.msra.mxu0 %v262
  %344 = vmatprep.subr.bf16.mxu0 0
  %345 = vmatpush1.bf16.msra.mxu0 %v263
  %346 = vmatprep.subr.bf16.mxu0 0
  %347 = vmatpush1.bf16.msra.mxu0 %v264
  %348 = vmatprep.subr.bf16.mxu0 0
  %349 = vmatpush1.bf16.msra.mxu0 %v265
  %350 = vmatprep.subr.bf16.mxu0 0
  %351 = vmatpush1.bf16.msra.mxu0 %v266
  %352 = vmatprep.subr.bf16.mxu0 0
  %353 = vmatpush1.bf16.msra.mxu0 %v267
  %354 = vmatprep.subr.bf16.mxu0 0
  %355 = vmatpush1.bf16.msra.mxu0 %v268
  %356 = vmatprep.subr.bf16.mxu0 0
  %357 = vmatpush1.bf16.msra.mxu0 %v269
  %358 = vmatprep.subr.bf16.mxu0 0
  %359 = vmatpush1.bf16.msra.mxu0 %v270
  %360 = vmatprep.subr.bf16.mxu0 0
  %361 = vmatpush1.bf16.msra.mxu0 %v271
  %362 = vmatprep.subr.bf16.mxu0 0
  %363 = vmatpush1.bf16.msra.mxu0 %v272
  %364 = vmatprep.subr.bf16.mxu0 0
  %365 = vmatpush1.bf16.msra.mxu0 %v273
  %366 = vmatprep.mubr.bf16.mxu0 %v106
  %367 = vmatmul.mubr.bf16.gmra.mrb[0].mxu0 %v105
  %v368 = vpop.f32.mrb[0].mxu0
  %v369 = vadd.f32 %v95, %v368
  %v370 = vpop.f32.mrb[0].mxu0
  %v371 = vpop.f32.mrb[0].mxu0
  %v372 = vpop.f32.mrb[0].mxu0
  %373 = vdwg.mxu0
  %374 = vmatprep.subr.bf16.mxu0 0
  %375 = vmatpush1.bf16.msra.mxu0 %v274
  %376 = vmatprep.subr.bf16.mxu0 0
  %377 = vmatpush1.bf16.msra.mxu0 %v275
  %378 = vmatprep.subr.bf16.mxu0 0
  %379 = vmatpush1.bf16.msra.mxu0 %v276
  %380 = vmatprep.subr.bf16.mxu0 0
  %381 = vmatpush1.bf16.msra.mxu0 %v277
  %382 = vmatprep.subr.bf16.mxu0 0
  %383 = vmatpush1.bf16.msra.mxu0 %v278
  %384 = vmatprep.subr.bf16.mxu0 0
  %385 = vmatpush1.bf16.msra.mxu0 %v279
  %386 = vmatprep.subr.bf16.mxu0 0
  %387 = vmatpush1.bf16.msra.mxu0 %v280
  %388 = vmatprep.subr.bf16.mxu0 0
  %389 = vmatpush1.bf16.msra.mxu0 %v281
  %390 = vmatprep.subr.bf16.mxu0 0
  %391 = vmatpush1.bf16.msra.mxu0 %v282
  %392 = vmatprep.subr.bf16.mxu0 0
  %393 = vmatpush1.bf16.msra.mxu0 %v283
  %394 = vmatprep.subr.bf16.mxu0 0
  %395 = vmatpush1.bf16.msra.mxu0 %v284
  %396 = vmatprep.subr.bf16.mxu0 0
  %397 = vmatpush1.bf16.msra.mxu0 %v285
  %398 = vmatprep.subr.bf16.mxu0 0
  %399 = vmatpush1.bf16.msra.mxu0 %v286
  %400 = vmatprep.subr.bf16.mxu0 0
  %401 = vmatpush1.bf16.msra.mxu0 %v287
  %402 = vmatprep.subr.bf16.mxu0 0
  %403 = vmatpush1.bf16.msra.mxu0 %v288
  %404 = vmatprep.subr.bf16.mxu0 0
  %405 = vmatpush1.bf16.msra.mxu0 %v289
  %406 = vmatprep.mubr.bf16.mxu0 %v108
  %407 = vmatmul.mubr.bf16.gmra.mrb[0].mxu0 %v107
  %v408 = vpop.f32.mrb[0].mxu0
  %v409 = vadd.f32 %v369, %v408
  %v410 = vpop.f32.mrb[0].mxu0
  %v411 = vpop.f32.mrb[0].mxu0
  %v412 = vpop.f32.mrb[0].mxu0
  %413 = vdwg.mxu0
  %414 = vmatprep.subr.bf16.mxu0 0
  %415 = vmatpush1.bf16.msra.mxu0 %v290
  %416 = vmatprep.subr.bf16.mxu0 0
  %417 = vmatpush1.bf16.msra.mxu0 %v291
  %418 = vmatprep.subr.bf16.mxu0 0
  %419 = vmatpush1.bf16.msra.mxu0 %v292
  %420 = vmatprep.subr.bf16.mxu0 0
  %421 = vmatpush1.bf16.msra.mxu0 %v293
  %422 = vmatprep.subr.bf16.mxu0 0
  %423 = vmatpush1.bf16.msra.mxu0 0
  %424 = vmatprep.subr.bf16.mxu0 0
  %425 = vmatpush1.bf16.msra.mxu0 0
  %426 = vmatprep.subr.bf16.mxu0 0
  %427 = vmatpush1.bf16.msra.mxu0 0
  %428 = vmatprep.subr.bf16.mxu0 0
  %429 = vmatpush1.bf16.msra.mxu0 0
  %430 = vmatprep.subr.bf16.mxu0 0
  %431 = vmatpush1.bf16.msra.mxu0 0
  %432 = vmatprep.subr.bf16.mxu0 0
  %433 = vmatpush1.bf16.msra.mxu0 0
  %434 = vmatprep.subr.bf16.mxu0 0
  %435 = vmatpush1.bf16.msra.mxu0 0
  %436 = vmatprep.subr.bf16.mxu0 0
  %437 = vmatpush1.bf16.msra.mxu0 0
  %438 = vmatprep.subr.bf16.mxu0 0
  %439 = vmatpush1.bf16.msra.mxu0 0
  %440 = vmatprep.subr.bf16.mxu0 0
  %441 = vmatpush1.bf16.msra.mxu0 0
  %442 = vmatprep.subr.bf16.mxu0 0
  %443 = vmatpush1.bf16.msra.mxu0 0
  %444 = vmatprep.subr.bf16.mxu0 0
  %445 = vmatpush1.bf16.msra.mxu0 0
  %446 = vmatprep.mubr.bf16.mxu0 0
  %447 = vmatmul.mubr.bf16.gmra.mrb[0].mxu0 %v332
  %v448 = vpop.f32.mrb[0].mxu0
  %v449 = vadd.f32 %v409, %v448
  %v450 = vpop.f32.mrb[0].mxu0
  %v451 = vpop.f32.mrb[0].mxu0
  %v452 = vpop.f32.mrb[0].mxu0
  %453 = vdwg.mxu0
  %v454 = vmax.f32 %v449, 0.0
  %455 = vst [vmem:[%s3] sm:$0xff] %v454
  // Predicated region
  $region14: #{resnet18_with_mlp.21} parent=0 // pred_check
    _
  $region15: #{resnet18_with_mlp.21} parent=0 // pred_check_branch
    %457 = sbr.rel (0) target = $region17
  $region16: #{resnet18_with_mlp.21} parent=0 // pred_region
    _
  $region17: #{resnet18_with_mlp.21} parent=0 // pred_fallthru
    _
  // Predicated region
  $region18: #{resnet18_with_mlp.21} parent=0 // pred_check
    _
  $region19: #{resnet18_with_mlp.21} parent=0 // pred_check_branch
    %459 = sbr.rel (0) target = $region21
  $region20: #{resnet18_with_mlp.21} parent=0 // pred_region
    _
  $region21: #{resnet18_with_mlp.21} parent=0 // pred_fallthru
    _

// kernel: resnet18_with_mlp.23
$region0: #{resnet18_with_mlp.23}
  #allocation0 [shape = 'u32[]', space=smem, size = 0x4, offset = 0x4, fixed_abs, tag = 'smem constant byte address 0x4 - core index']
  #allocation1 [shape = 'u32[144,128]{1,0:T(1,128)}', space=vmem, size = 0x12000, scoped, tag = 'internal scratch']
  %s0 = inlined_call_operand.vmem [shape: bf16[8,1152], index: 0, kind: input, shape index: {}]
  %s1 = inlined_call_operand.vmem [shape: bf16[1152,128], index: 1, kind: input, shape index: {}]
  %s2 = inlined_call_operand.vmem [shape: f32[1,128], index: 2, kind: input, shape index: {}]
  %s3 = inlined_call_operand.vmem [shape: f32[8,128], index: 3, kind: output, shape index: {}]
  %s4 = sld [smem:[#allocation0]]
  $region22: #{resnet18_with_mlp.23} parent=0
    _
  %s6 = ssub.s32 1, %s4
  %s7 = scalar_select 0, %s6, %s4
  // Predicated region
  $region2: #{resnet18_with_mlp.23} parent=0 // pred_check
    _
  $region3: #{resnet18_with_mlp.23} parent=0 // pred_check_branch
    %9 = sbr.rel (0) target = $region5
  $region4: #{resnet18_with_mlp.23} parent=0 // pred_region
    _
  $region5: #{resnet18_with_mlp.23} parent=0 // pred_fallthru
    _
  // Predicated region
  $region6: #{resnet18_with_mlp.23} parent=0 // pred_check
    _
  $region7: #{resnet18_with_mlp.23} parent=0 // pred_check_branch
    %11 = sbr.rel (0) target = $region9
  $region8: #{resnet18_with_mlp.23} parent=0 // pred_region
    _
  $region9: #{resnet18_with_mlp.23} parent=0 // pred_fallthru
    _
  // Predicated region
  $region10: #{resnet18_with_mlp.23} parent=0 // pred_check
    _
  $region11: #{resnet18_with_mlp.23} parent=0 // pred_check_branch
    %13 = sbr.rel (0) target = $region13
  $region12: #{resnet18_with_mlp.23} parent=0 // pred_region
    _
  $region13: #{resnet18_with_mlp.23} parent=0 // pred_fallthru
    _
  %v15 = vld [vmem:[%s0] sm:$0xff]
  %v16 = vld [vmem:[%s0 + $0x8] sm:$0xff]
  %v17 = vld [vmem:[%s0 + $0x10] sm:$0xff]
  %v18 = vld [vmem:[%s0 + $0x18] sm:$0xff]
  %v19 = vld [vmem:[%s0 + $0x20] sm:$0xf]
  %v20 = vld [vmem:[%s1] sm:$0xf]
  %v21 = vld [vmem:[%s1 + $0x4] sm:$0xf]
  %v22 = vld [vmem:[%s1 + $0x8] sm:$0xf]
  %v23 = vld [vmem:[%s1 + $0xc] sm:$0xf]
  %v24 = vld [vmem:[%s1 + $0x10] sm:$0xf]
  %v25 = vld [vmem:[%s1 + $0x14] sm:$0xf]
  %v26 = vld [vmem:[%s1 + $0x18] sm:$0xf]
  %v27 = vld [vmem:[%s1 + $0x1c] sm:$0xf]
  %v28 = vld [vmem:[%s1 + $0x20] sm:$0xf]
  %v29 = vld [vmem:[%s1 + $0x24] sm:$0xf]
  %v30 = vld [vmem:[%s1 + $0x28] sm:$0xf]
  %v31 = vld [vmem:[%s1 + $0x2c] sm:$0xf]
  %v32 = vld [vmem:[%s1 + $0x30] sm:$0xf]
  %v33 = vld [vmem:[%s1 + $0x34] sm:$0xf]
  %v34 = vld [vmem:[%s1 + $0x38] sm:$0xf]
  %v35 = vld [vmem:[%s1 + $0x3c] sm:$0xf]
  %v36 = vld [vmem:[%s1 + $0x40] sm:$0xf]
  %v37 = vld [vmem:[%s1 + $0x44] sm:$0xf]
  %v38 = vld [vmem:[%s1 + $0x48] sm:$0xf]
  %v39 = vld [vmem:[%s1 + $0x4c] sm:$0xf]
  %v40 = vld [vmem:[%s1 + $0x50] sm:$0xf]
  %v41 = vld [vmem:[%s1 + $0x54] sm:$0xf]
  %v42 = vld [vmem:[%s1 + $0x58] sm:$0xf]
  %v43 = vld [vmem:[%s1 + $0x5c] sm:$0xf]
  %v44 = vld [vmem:[%s1 + $0x60] sm:$0xf]
  %v45 = vld [vmem:[%s1 + $0x64] sm:$0xf]
  %v46 = vld [vmem:[%s1 + $0x68] sm:$0xf]
  %v47 = vld [vmem:[%s1 + $0x6c] sm:$0xf]
  %v48 = vld [vmem:[%s1 + $0x70] sm:$0xf]
  %v49 = vld [vmem:[%s1 + $0x74] sm:$0xf]
  %v50 = vld [vmem:[%s1 + $0x78] sm:$0xf]
  %v51 = vld [vmem:[%s1 + $0x7c] sm:$0xf]
  %v52 = vld [vmem:[%s1 + $0x80] sm:$0xf]
  %v53 = vld [vmem:[%s1 + $0x84] sm:$0xf]
  %v54 = vld [vmem:[%s1 + $0x88] sm:$0xf]
  %v55 = vld [vmem:[%s1 + $0x8c] sm:$0xf]
  %v56 = vld [vmem:[%s1 + $0x90] sm:$0xf]
  %v57 = vld [vmem:[%s1 + $0x94] sm:$0xf]
  %v58 = vld [vmem:[%s1 + $0x98] sm:$0xf]
  %v59 = vld [vmem:[%s1 + $0x9c] sm:$0xf]
  %v60 = vld [vmem:[%s1 + $0xa0] sm:$0xf]
  %v61 = vld [vmem:[%s1 + $0xa4] sm:$0xf]
  %v62 = vld [vmem:[%s1 + $0xa8] sm:$0xf]
  %v63 = vld [vmem:[%s1 + $0xac] sm:$0xf]
  %v64 = vld [vmem:[%s1 + $0xb0] sm:$0xf]
  %v65 = vld [vmem:[%s1 + $0xb4] sm:$0xf]
  %v66 = vld [vmem:[%s1 + $0xb8] sm:$0xf]
  %v67 = vld [vmem:[%s1 + $0xbc] sm:$0xf]
  %v68 = vld [vmem:[%s1 + $0xc0] sm:$0xf]
  %v69 = vld [vmem:[%s1 + $0xc4] sm:$0xf]
  %v70 = vld [vmem:[%s1 + $0xc8] sm:$0xf]
  %v71 = vld [vmem:[%s1 + $0xcc] sm:$0xf]
  %v72 = vld [vmem:[%s1 + $0xd0] sm:$0xf]
  %v73 = vld [vmem:[%s1 + $0xd4] sm:$0xf]
  %v74 = vld [vmem:[%s1 + $0xd8] sm:$0xf]
  %v75 = vld [vmem:[%s1 + $0xdc] sm:$0xf]
  %v76 = vld [vmem:[%s1 + $0xe0] sm:$0xf]
  %v77 = vld [vmem:[%s1 + $0xe4] sm:$0xf]
  %v78 = vld [vmem:[%s1 + $0xe8] sm:$0xf]
  %v79 = vld [vmem:[%s1 + $0xec] sm:$0xf]
  %v80 = vld [vmem:[%s1 + $0xf0] sm:$0xf]
  %v81 = vld [vmem:[%s1 + $0xf4] sm:$0xf]
  %v82 = vld [vmem:[%s1 + $0xf8] sm:$0xf]
  %v83 = vld [vmem:[%s1 + $0xfc] sm:$0xf]
  %v84 = vld [vmem:[%s1 + $0x100] sm:$0xf]
  %v85 = vld [vmem:[%s1 + $0x104] sm:$0xf]
  %v86 = vld [vmem:[%s1 + $0x108] sm:$0xf]
  %v87 = vld [vmem:[%s1 + $0x10c] sm:$0xf]
  %v88 = vld [vmem:[%s1 + $0x110] sm:$0xf]
  %v89 = vld [vmem:[%s1 + $0x114] sm:$0xf]
  %v90 = vld [vmem:[%s1 + $0x118] sm:$0xf]
  %v91 = vld [vmem:[%s1 + $0x11c] sm:$0xf]
  %v92 = vld [vmem:[%s1 + $0x120] sm:$0xf]
  %v93 = vld [vmem:[%s1 + $0x124] sm:$0xf]
  %v94 = vld [vmem:[%s1 + $0x128] sm:$0xf]
  %v95 = vld [vmem:[%s1 + $0x12c] sm:$0xf]
  %v96 = vld [vmem:[%s1 + $0x130] sm:$0xf]
  %v97 = vld [vmem:[%s1 + $0x134] sm:$0xf]
  %v98 = vld [vmem:[%s1 + $0x138] sm:$0xf]
  %v99 = vld [vmem:[%s1 + $0x13c] sm:$0xf]
  %v100 = vld [vmem:[%s1 + $0x140] sm:$0xf]
  %v101 = vld [vmem:[%s1 + $0x144] sm:$0xf]
  %v102 = vld [vmem:[%s1 + $0x148] sm:$0xf]
  %v103 = vld [vmem:[%s1 + $0x14c] sm:$0xf]
  %v104 = vld [vmem:[%s1 + $0x150] sm:$0xf]
  %v105 = vld [vmem:[%s1 + $0x154] sm:$0xf]
  %v106 = vld [vmem:[%s1 + $0x158] sm:$0xf]
  %v107 = vld [vmem:[%s1 + $0x15c] sm:$0xf]
  %v108 = vld [vmem:[%s1 + $0x160] sm:$0xf]
  %v109 = vld [vmem:[%s1 + $0x164] sm:$0xf]
  %v110 = vld [vmem:[%s1 + $0x168] sm:$0xf]
  %v111 = vld [vmem:[%s1 + $0x16c] sm:$0xf]
  %v112 = vld [vmem:[%s1 + $0x170] sm:$0xf]
  %v113 = vld [vmem:[%s1 + $0x174] sm:$0xf]
  %v114 = vld [vmem:[%s1 + $0x178] sm:$0xf]
  %v115 = vld [vmem:[%s1 + $0x17c] sm:$0xf]
  %v116 = vld [vmem:[%s1 + $0x180] sm:$0xf]
  %v117 = vld [vmem:[%s1 + $0x184] sm:$0xf]
  %v118 = vld [vmem:[%s1 + $0x188] sm:$0xf]
  %v119 = vld [vmem:[%s1 + $0x18c] sm:$0xf]
  %v120 = vld [vmem:[%s1 + $0x190] sm:$0xf]
  %v121 = vld [vmem:[%s1 + $0x194] sm:$0xf]
  %v122 = vld [vmem:[%s1 + $0x198] sm:$0xf]
  %v123 = vld [vmem:[%s1 + $0x19c] sm:$0xf]
  %v124 = vld [vmem:[%s1 + $0x1a0] sm:$0xf]
  %v125 = vld [vmem:[%s1 + $0x1a4] sm:$0xf]
  %v126 = vld [vmem:[%s1 + $0x1a8] sm:$0xf]
  %v127 = vld [vmem:[%s1 + $0x1ac] sm:$0xf]
  %v128 = vld [vmem:[%s1 + $0x1b0] sm:$0xf]
  %v129 = vld [vmem:[%s1 + $0x1b4] sm:$0xf]
  %v130 = vld [vmem:[%s1 + $0x1b8] sm:$0xf]
  %v131 = vld [vmem:[%s1 + $0x1bc] sm:$0xf]
  %v132 = vld [vmem:[%s1 + $0x1c0] sm:$0xf]
  %v133 = vld [vmem:[%s1 + $0x1c4] sm:$0xf]
  %v134 = vld [vmem:[%s1 + $0x1c8] sm:$0xf]
  %v135 = vld [vmem:[%s1 + $0x1cc] sm:$0xf]
  %v136 = vld [vmem:[%s1 + $0x1d0] sm:$0xf]
  %v137 = vld [vmem:[%s1 + $0x1d4] sm:$0xf]
  %v138 = vld [vmem:[%s1 + $0x1d8] sm:$0xf]
  %v139 = vld [vmem:[%s1 + $0x1dc] sm:$0xf]
  %v140 = vld [vmem:[%s1 + $0x1e0] sm:$0xf]
  %v141 = vld [vmem:[%s1 + $0x1e4] sm:$0xf]
  %v142 = vld [vmem:[%s1 + $0x1e8] sm:$0xf]
  %v143 = vld [vmem:[%s1 + $0x1ec] sm:$0xf]
  %v144 = vld [vmem:[%s1 + $0x1f0] sm:$0xf]
  %v145 = vld [vmem:[%s1 + $0x1f4] sm:$0xf]
  %v146 = vld [vmem:[%s1 + $0x1f8] sm:$0xf]
  %v147 = vld [vmem:[%s1 + $0x1fc] sm:$0xf]
  %v148 = vld [vmem:[%s1 + $0x200] sm:$0xf]
  %v149 = vld [vmem:[%s1 + $0x204] sm:$0xf]
  %v150 = vld [vmem:[%s1 + $0x208] sm:$0xf]
  %v151 = vld [vmem:[%s1 + $0x20c] sm:$0xf]
  %v152 = vld [vmem:[%s1 + $0x210] sm:$0xf]
  %v153 = vld [vmem:[%s1 + $0x214] sm:$0xf]
  %v154 = vld [vmem:[%s1 + $0x218] sm:$0xf]
  %v155 = vld [vmem:[%s1 + $0x21c] sm:$0xf]
  %v156 = vld [vmem:[%s1 + $0x220] sm:$0xf]
  %v157 = vld [vmem:[%s1 + $0x224] sm:$0xf]
  %v158 = vld [vmem:[%s1 + $0x228] sm:$0xf]
  %v159 = vld [vmem:[%s1 + $0x22c] sm:$0xf]
  %v160 = vld [vmem:[%s1 + $0x230] sm:$0xf]
  %v161 = vld [vmem:[%s1 + $0x234] sm:$0xf]
  %v162 = vld [vmem:[%s1 + $0x238] sm:$0xf]
  %v163 = vld [vmem:[%s1 + $0x23c] sm:$0xf]
  %v164 = vld [vmem:[%s2] sm:$0x1]
  %v166 = vlaneseq
  %v167 = vshrl.u32 %v166, 7
  %v168 = vsub.s32 0, %v167
  %v169 = vrot.slane %v164, %v168
  %v176 = vunpack.c.l.b16 %v15
  %v177 = vunpack.c.h.b16 %v15
  %v178 = vunpack.c.l.b16 %v16
  %v179 = vunpack.c.h.b16 %v16
  %v180 = vunpack.c.l.b16 %v17
  %v181 = vunpack.c.h.b16 %v17
  %v182 = vunpack.c.l.b16 %v18
  %v183 = vunpack.c.h.b16 %v18
  %v184 = vunpack.c.l.b16 %v19
  %v185 = vpack.c.b16 %v176, %v176
  %v186 = vpack.c.b16 %v177, %v177
  %v187 = vpack.c.b16 %v178, %v178
  %v188 = vpack.c.b16 %v179, %v179
  %v189 = vpack.c.b16 %v180, %v180
  %v190 = vpack.c.b16 %v181, %v181
  %v191 = vpack.c.b16 %v182, %v182
  %v192 = vpack.c.b16 %v183, %v183
  %v193 = vpack.c.b16 %v184, %v184
  %v347 = vunpack.c.l.b16 %v20
  %v348 = vunpack.c.l.b16 %v21
  %v349 = vunpack.c.l.b16 %v22
  %v350 = vunpack.c.l.b16 %v23
  %v351 = vunpack.c.l.b16 %v24
  %v352 = vunpack.c.l.b16 %v25
  %v353 = vunpack.c.l.b16 %v26
  %v354 = vunpack.c.l.b16 %v27
  %v355 = vunpack.c.l.b16 %v28
  %v356 = vunpack.c.l.b16 %v29
  %v357 = vunpack.c.l.b16 %v30
  %v358 = vunpack.c.l.b16 %v31
  %v359 = vunpack.c.l.b16 %v32
  %v360 = vunpack.c.l.b16 %v33
  %v361 = vunpack.c.l.b16 %v34
  %v362 = vunpack.c.l.b16 %v35
  %v363 = vunpack.c.l.b16 %v36
  %v364 = vunpack.c.l.b16 %v37
  %v365 = vunpack.c.l.b16 %v38
  %v366 = vunpack.c.l.b16 %v39
  %v367 = vunpack.c.l.b16 %v40
  %v368 = vunpack.c.l.b16 %v41
  %v369 = vunpack.c.l.b16 %v42
  %v370 = vunpack.c.l.b16 %v43
  %v371 = vunpack.c.l.b16 %v44
  %v372 = vunpack.c.l.b16 %v45
  %v373 = vunpack.c.l.b16 %v46
  %v374 = vunpack.c.l.b16 %v47
  %v375 = vunpack.c.l.b16 %v48
  %v376 = vunpack.c.l.b16 %v49
  %v377 = vunpack.c.l.b16 %v50
  %v378 = vunpack.c.l.b16 %v51
  %v379 = vunpack.c.l.b16 %v52
  %v380 = vunpack.c.l.b16 %v53
  %v381 = vunpack.c.l.b16 %v54
  %v382 = vunpack.c.l.b16 %v55
  %v383 = vunpack.c.l.b16 %v56
  %v384 = vunpack.c.l.b16 %v57
  %v385 = vunpack.c.l.b16 %v58
  %v386 = vunpack.c.l.b16 %v59
  %v387 = vunpack.c.l.b16 %v60
  %v388 = vunpack.c.l.b16 %v61
  %v389 = vunpack.c.l.b16 %v62
  %v390 = vunpack.c.l.b16 %v63
  %v391 = vunpack.c.l.b16 %v64
  %v392 = vunpack.c.l.b16 %v65
  %v393 = vunpack.c.l.b16 %v66
  %v394 = vunpack.c.l.b16 %v67
  %v395 = vunpack.c.l.b16 %v68
  %v396 = vunpack.c.l.b16 %v69
  %v397 = vunpack.c.l.b16 %v70
  %v398 = vunpack.c.l.b16 %v71
  %v399 = vunpack.c.l.b16 %v72
  %v400 = vunpack.c.l.b16 %v73
  %v401 = vunpack.c.l.b16 %v74
  %v402 = vunpack.c.l.b16 %v75
  %v403 = vunpack.c.l.b16 %v76
  %v404 = vunpack.c.l.b16 %v77
  %v405 = vunpack.c.l.b16 %v78
  %v406 = vunpack.c.l.b16 %v79
  %v407 = vunpack.c.l.b16 %v80
  %v408 = vunpack.c.l.b16 %v81
  %v409 = vunpack.c.l.b16 %v82
  %v410 = vunpack.c.l.b16 %v83
  %v411 = vunpack.c.l.b16 %v84
  %v412 = vunpack.c.l.b16 %v85
  %v413 = vunpack.c.l.b16 %v86
  %v414 = vunpack.c.l.b16 %v87
  %v415 = vunpack.c.l.b16 %v88
  %v416 = vunpack.c.l.b16 %v89
  %v417 = vunpack.c.l.b16 %v90
  %v418 = vunpack.c.l.b16 %v91
  %v419 = vunpack.c.l.b16 %v92
  %v420 = vunpack.c.l.b16 %v93
  %v421 = vunpack.c.l.b16 %v94
  %v422 = vunpack.c.l.b16 %v95
  %v423 = vunpack.c.l.b16 %v96
  %v424 = vunpack.c.l.b16 %v97
  %v425 = vunpack.c.l.b16 %v98
  %v426 = vunpack.c.l.b16 %v99
  %v427 = vunpack.c.l.b16 %v100
  %v428 = vunpack.c.l.b16 %v101
  %v429 = vunpack.c.l.b16 %v102
  %v430 = vunpack.c.l.b16 %v103
  %v431 = vunpack.c.l.b16 %v104
  %v432 = vunpack.c.l.b16 %v105
  %v433 = vunpack.c.l.b16 %v106
  %v434 = vunpack.c.l.b16 %v107
  %v435 = vunpack.c.l.b16 %v108
  %v436 = vunpack.c.l.b16 %v109
  %v437 = vunpack.c.l.b16 %v110
  %v438 = vunpack.c.l.b16 %v111
  %v439 = vunpack.c.l.b16 %v112
  %v440 = vunpack.c.l.b16 %v113
  %v441 = vunpack.c.l.b16 %v114
  %v442 = vunpack.c.l.b16 %v115
  %v443 = vunpack.c.l.b16 %v116
  %v444 = vunpack.c.l.b16 %v117
  %v445 = vunpack.c.l.b16 %v118
  %v446 = vunpack.c.l.b16 %v119
  %v447 = vunpack.c.l.b16 %v120
  %v448 = vunpack.c.l.b16 %v121
  %v449 = vunpack.c.l.b16 %v122
  %v450 = vunpack.c.l.b16 %v123
  %v451 = vunpack.c.l.b16 %v124
  %v452 = vunpack.c.l.b16 %v125
  %v453 = vunpack.c.l.b16 %v126
  %v454 = vunpack.c.l.b16 %v127
  %v455 = vunpack.c.l.b16 %v128
  %v456 = vunpack.c.l.b16 %v129
  %v457 = vunpack.c.l.b16 %v130
  %v458 = vunpack.c.l.b16 %v131
  %v459 = vunpack.c.l.b16 %v132
  %v460 = vunpack.c.l.b16 %v133
  %v461 = vunpack.c.l.b16 %v134
  %v462 = vunpack.c.l.b16 %v135
  %v463 = vunpack.c.l.b16 %v136
  %v464 = vunpack.c.l.b16 %v137
  %v465 = vunpack.c.l.b16 %v138
  %v466 = vunpack.c.l.b16 %v139
  %v467 = vunpack.c.l.b16 %v140
  %v468 = vunpack.c.l.b16 %v141
  %v469 = vunpack.c.l.b16 %v142
  %v470 = vunpack.c.l.b16 %v143
  %v471 = vunpack.c.l.b16 %v144
  %v472 = vunpack.c.l.b16 %v145
  %v473 = vunpack.c.l.b16 %v146
  %v474 = vunpack.c.l.b16 %v147
  %v475 = vunpack.c.l.b16 %v148
  %v476 = vunpack.c.l.b16 %v149
  %v477 = vunpack.c.l.b16 %v150
  %v478 = vunpack.c.l.b16 %v151
  %v479 = vunpack.c.l.b16 %v152
  %v480 = vunpack.c.l.b16 %v153
  %v481 = vunpack.c.l.b16 %v154
  %v482 = vunpack.c.l.b16 %v155
  %v483 = vunpack.c.l.b16 %v156
  %v484 = vunpack.c.l.b16 %v157
  %v485 = vunpack.c.l.b16 %v158
  %v486 = vunpack.c.l.b16 %v159
  %v487 = vunpack.c.l.b16 %v160
  %v488 = vunpack.c.l.b16 %v161
  %v489 = vunpack.c.l.b16 %v162
  %v490 = vunpack.c.l.b16 %v163
  %v491 = vpack.c.b16 %v348, %v347
  %v492 = vpack.c.b16 %v350, %v349
  %v493 = vpack.c.b16 %v352, %v351
  %v494 = vpack.c.b16 %v354, %v353
  %v495 = vpack.c.b16 %v356, %v355
  %v496 = vpack.c.b16 %v358, %v357
  %v497 = vpack.c.b16 %v360, %v359
  %v498 = vpack.c.b16 %v362, %v361
  %v499 = vpack.c.b16 %v364, %v363
  %v500 = vpack.c.b16 %v366, %v365
  %v501 = vpack.c.b16 %v368, %v367
  %v502 = vpack.c.b16 %v370, %v369
  %v503 = vpack.c.b16 %v372, %v371
  %v504 = vpack.c.b16 %v374, %v373
  %v505 = vpack.c.b16 %v376, %v375
  %v506 = vpack.c.b16 %v378, %v377
  %v507 = vpack.c.b16 %v380, %v379
  %v508 = vpack.c.b16 %v382, %v381
  %v509 = vpack.c.b16 %v384, %v383
  %v510 = vpack.c.b16 %v386, %v385
  %v511 = vpack.c.b16 %v388, %v387
  %v512 = vpack.c.b16 %v390, %v389
  %v513 = vpack.c.b16 %v392, %v391
  %v514 = vpack.c.b16 %v394, %v393
  %v515 = vpack.c.b16 %v396, %v395
  %v516 = vpack.c.b16 %v398, %v397
  %v517 = vpack.c.b16 %v400, %v399
  %v518 = vpack.c.b16 %v402, %v401
  %v519 = vpack.c.b16 %v404, %v403
  %v520 = vpack.c.b16 %v406, %v405
  %v521 = vpack.c.b16 %v408, %v407
  %v522 = vpack.c.b16 %v410, %v409
  %v523 = vpack.c.b16 %v412, %v411
  %v524 = vpack.c.b16 %v414, %v413
  %v525 = vpack.c.b16 %v416, %v415
  %v526 = vpack.c.b16 %v418, %v417
  %v527 = vpack.c.b16 %v420, %v419
  %v528 = vpack.c.b16 %v422, %v421
  %v529 = vpack.c.b16 %v424, %v423
  %v530 = vpack.c.b16 %v426, %v425
  %v531 = vpack.c.b16 %v428, %v427
  %v532 = vpack.c.b16 %v430, %v429
  %v533 = vpack.c.b16 %v432, %v431
  %v534 = vpack.c.b16 %v434, %v433
  %v535 = vpack.c.b16 %v436, %v435
  %v536 = vpack.c.b16 %v438, %v437
  %v537 = vpack.c.b16 %v440, %v439
  %v538 = vpack.c.b16 %v442, %v441
  %v539 = vpack.c.b16 %v444, %v443
  %v540 = vpack.c.b16 %v446, %v445
  %v541 = vpack.c.b16 %v448, %v447
  %v542 = vpack.c.b16 %v450, %v449
  %v543 = vpack.c.b16 %v452, %v451
  %v544 = vpack.c.b16 %v454, %v453
  %v545 = vpack.c.b16 %v456, %v455
  %v546 = vpack.c.b16 %v458, %v457
  %v547 = vpack.c.b16 %v460, %v459
  %v548 = vpack.c.b16 %v462, %v461
  %v549 = vpack.c.b16 %v464, %v463
  %v550 = vpack.c.b16 %v466, %v465
  %v551 = vpack.c.b16 %v468, %v467
  %v552 = vpack.c.b16 %v470, %v469
  %v553 = vpack.c.b16 %v472, %v471
  %v554 = vpack.c.b16 %v474, %v473
  %v555 = vpack.c.b16 %v476, %v475
  %v556 = vpack.c.b16 %v478, %v477
  %v557 = vpack.c.b16 %v480, %v479
  %v558 = vpack.c.b16 %v482, %v481
  %v559 = vpack.c.b16 %v484, %v483
  %v560 = vpack.c.b16 %v486, %v485
  %v561 = vpack.c.b16 %v488, %v487
  %v562 = vpack.c.b16 %v490, %v489
  %635 = vmatprep.subr.bf16.mxu0 0
  %636 = vmatpush1.bf16.msra.mxu0 %v491
  %637 = vmatprep.subr.bf16.mxu0 0
  %638 = vmatpush1.bf16.msra.mxu0 %v492
  %639 = vmatprep.subr.bf16.mxu0 0
  %640 = vmatpush1.bf16.msra.mxu0 %v493
  %641 = vmatprep.subr.bf16.mxu0 0
  %642 = vmatpush1.bf16.msra.mxu0 %v494
  %643 = vmatprep.subr.bf16.mxu0 0
  %644 = vmatpush1.bf16.msra.mxu0 %v495
  %645 = vmatprep.subr.bf16.mxu0 0
  %646 = vmatpush1.bf16.msra.mxu0 %v496
  %647 = vmatprep.subr.bf16.mxu0 0
  %648 = vmatpush1.bf16.msra.mxu0 %v497
  %649 = vmatprep.subr.bf16.mxu0 0
  %650 = vmatpush1.bf16.msra.mxu0 %v498
  %651 = vmatprep.subr.bf16.mxu0 0
  %652 = vmatpush1.bf16.msra.mxu0 %v499
  %653 = vmatprep.subr.bf16.mxu0 0
  %654 = vmatpush1.bf16.msra.mxu0 %v500
  %655 = vmatprep.subr.bf16.mxu0 0
  %656 = vmatpush1.bf16.msra.mxu0 %v501
  %657 = vmatprep.subr.bf16.mxu0 0
  %658 = vmatpush1.bf16.msra.mxu0 %v502
  %659 = vmatprep.subr.bf16.mxu0 0
  %660 = vmatpush1.bf16.msra.mxu0 %v503
  %661 = vmatprep.subr.bf16.mxu0 0
  %662 = vmatpush1.bf16.msra.mxu0 %v504
  %663 = vmatprep.subr.bf16.mxu0 0
  %664 = vmatpush1.bf16.msra.mxu0 %v505
  %665 = vmatprep.subr.bf16.mxu0 0
  %666 = vmatpush1.bf16.msra.mxu0 %v506
  %667 = vmatprep.mubr.bf16.mxu0 %v186
  %668 = vmatmul.mubr.bf16.gmra.mrb[0].mxu0 %v185
  %v669 = vpop.f32.mrb[0].mxu0
  %v670 = vadd.f32 %v169, %v669
  %v671 = vpop.f32.mrb[0].mxu0
  %v672 = vpop.f32.mrb[0].mxu0
  %v673 = vpop.f32.mrb[0].mxu0
  %674 = vdwg.mxu0
  %675 = vmatprep.subr.bf16.mxu0 0
  %676 = vmatpush1.bf16.msra.mxu0 %v507
  %677 = vmatprep.subr.bf16.mxu0 0
  %678 = vmatpush1.bf16.msra.mxu0 %v508
  %679 = vmatprep.subr.bf16.mxu0 0
  %680 = vmatpush1.bf16.msra.mxu0 %v509
  %681 = vmatprep.subr.bf16.mxu0 0
  %682 = vmatpush1.bf16.msra.mxu0 %v510
  %683 = vmatprep.subr.bf16.mxu0 0
  %684 = vmatpush1.bf16.msra.mxu0 %v511
  %685 = vmatprep.subr.bf16.mxu0 0
  %686 = vmatpush1.bf16.msra.mxu0 %v512
  %687 = vmatprep.subr.bf16.mxu0 0
  %688 = vmatpush1.bf16.msra.mxu0 %v513
  %689 = vmatprep.subr.bf16.mxu0 0
  %690 = vmatpush1.bf16.msra.mxu0 %v514
  %691 = vmatprep.subr.bf16.mxu0 0
  %692 = vmatpush1.bf16.msra.mxu0 %v515
  %693 = vmatprep.subr.bf16.mxu0 0
  %694 = vmatpush1.bf16.msra.mxu0 %v516
  %695 = vmatprep.subr.bf16.mxu0 0
  %696 = vmatpush1.bf16.msra.mxu0 %v517
  %697 = vmatprep.subr.bf16.mxu0 0
  %698 = vmatpush1.bf16.msra.mxu0 %v518
  %699 = vmatprep.subr.bf16.mxu0 0
  %700 = vmatpush1.bf16.msra.mxu0 %v519
  %701 = vmatprep.subr.bf16.mxu0 0
  %702 = vmatpush1.bf16.msra.mxu0 %v520
  %703 = vmatprep.subr.bf16.mxu0 0
  %704 = vmatpush1.bf16.msra.mxu0 %v521
  %705 = vmatprep.subr.bf16.mxu0 0
  %706 = vmatpush1.bf16.msra.mxu0 %v522
  %707 = vmatprep.mubr.bf16.mxu0 %v188
  %708 = vmatmul.mubr.bf16.gmra.mrb[0].mxu0 %v187
  %v709 = vpop.f32.mrb[0].mxu0
  %v710 = vadd.f32 %v670, %v709
  %v711 = vpop.f32.mrb[0].mxu0
  %v712 = vpop.f32.mrb[0].mxu0
  %v713 = vpop.f32.mrb[0].mxu0
  %714 = vdwg.mxu0
  %715 = vmatprep.subr.bf16.mxu0 0
  %716 = vmatpush1.bf16.msra.mxu0 %v523
  %717 = vmatprep.subr.bf16.mxu0 0
  %718 = vmatpush1.bf16.msra.mxu0 %v524
  %719 = vmatprep.subr.bf16.mxu0 0
  %720 = vmatpush1.bf16.msra.mxu0 %v525
  %721 = vmatprep.subr.bf16.mxu0 0
  %722 = vmatpush1.bf16.msra.mxu0 %v526
  %723 = vmatprep.subr.bf16.mxu0 0
  %724 = vmatpush1.bf16.msra.mxu0 %v527
  %725 = vmatprep.subr.bf16.mxu0 0
  %726 = vmatpush1.bf16.msra.mxu0 %v528
  %727 = vmatprep.subr.bf16.mxu0 0
  %728 = vmatpush1.bf16.msra.mxu0 %v529
  %729 = vmatprep.subr.bf16.mxu0 0
  %730 = vmatpush1.bf16.msra.mxu0 %v530
  %731 = vmatprep.subr.bf16.mxu0 0
  %732 = vmatpush1.bf16.msra.mxu0 %v531
  %733 = vmatprep.subr.bf16.mxu0 0
  %734 = vmatpush1.bf16.msra.mxu0 %v532
  %735 = vmatprep.subr.bf16.mxu0 0
  %736 = vmatpush1.bf16.msra.mxu0 %v533
  %737 = vmatprep.subr.bf16.mxu0 0
  %738 = vmatpush1.bf16.msra.mxu0 %v534
  %739 = vmatprep.subr.bf16.mxu0 0
  %740 = vmatpush1.bf16.msra.mxu0 %v535
  %741 = vmatprep.subr.bf16.mxu0 0
  %742 = vmatpush1.bf16.msra.mxu0 %v536
  %743 = vmatprep.subr.bf16.mxu0 0
  %744 = vmatpush1.bf16.msra.mxu0 %v537
  %745 = vmatprep.subr.bf16.mxu0 0
  %746 = vmatpush1.bf16.msra.mxu0 %v538
  %747 = vmatprep.mubr.bf16.mxu0 %v190
  %748 = vmatmul.mubr.bf16.gmra.mrb[0].mxu0 %v189
  %v749 = vpop.f32.mrb[0].mxu0
  %v750 = vadd.f32 %v710, %v749
  %v751 = vpop.f32.mrb[0].mxu0
  %v752 = vpop.f32.mrb[0].mxu0
  %v753 = vpop.f32.mrb[0].mxu0
  %754 = vdwg.mxu0
  %755 = vmatprep.subr.bf16.mxu0 0
  %756 = vmatpush1.bf16.msra.mxu0 %v539
  %757 = vmatprep.subr.bf16.mxu0 0
  %758 = vmatpush1.bf16.msra.mxu0 %v540
  %759 = vmatprep.subr.bf16.mxu0 0
  %760 = vmatpush1.bf16.msra.mxu0 %v541
  %761 = vmatprep.subr.bf16.mxu0 0
  %762 = vmatpush1.bf16.msra.mxu0 %v542
  %763 = vmatprep.subr.bf16.mxu0 0
  %764 = vmatpush1.bf16.msra.mxu0 %v543
  %765 = vmatprep.subr.bf16.mxu0 0
  %766 = vmatpush1.bf16.msra.mxu0 %v544
  %767 = vmatprep.subr.bf16.mxu0 0
  %768 = vmatpush1.bf16.msra.mxu0 %v545
  %769 = vmatprep.subr.bf16.mxu0 0
  %770 = vmatpush1.bf16.msra.mxu0 %v546
  %771 = vmatprep.subr.bf16.mxu0 0
  %772 = vmatpush1.bf16.msra.mxu0 %v547
  %773 = vmatprep.subr.bf16.mxu0 0
  %774 = vmatpush1.bf16.msra.mxu0 %v548
  %775 = vmatprep.subr.bf16.mxu0 0
  %776 = vmatpush1.bf16.msra.mxu0 %v549
  %777 = vmatprep.subr.bf16.mxu0 0
  %778 = vmatpush1.bf16.msra.mxu0 %v550
  %779 = vmatprep.subr.bf16.mxu0 0
  %780 = vmatpush1.bf16.msra.mxu0 %v551
  %781 = vmatprep.subr.bf16.mxu0 0
  %782 = vmatpush1.bf16.msra.mxu0 %v552
  %783 = vmatprep.subr.bf16.mxu0 0
  %784 = vmatpush1.bf16.msra.mxu0 %v553
  %785 = vmatprep.subr.bf16.mxu0 0
  %786 = vmatpush1.bf16.msra.mxu0 %v554
  %787 = vmatprep.mubr.bf16.mxu0 %v192
  %788 = vmatmul.mubr.bf16.gmra.mrb[0].mxu0 %v191
  %v789 = vpop.f32.mrb[0].mxu0
  %v790 = vadd.f32 %v750, %v789
  %v791 = vpop.f32.mrb[0].mxu0
  %v792 = vpop.f32.mrb[0].mxu0
  %v793 = vpop.f32.mrb[0].mxu0
  %794 = vdwg.mxu0
  %795 = vmatprep.subr.bf16.mxu0 0
  %796 = vmatpush1.bf16.msra.mxu0 %v555
  %797 = vmatprep.subr.bf16.mxu0 0
  %798 = vmatpush1.bf16.msra.mxu0 %v556
  %799 = vmatprep.subr.bf16.mxu0 0
  %800 = vmatpush1.bf16.msra.mxu0 %v557
  %801 = vmatprep.subr.bf16.mxu0 0
  %802 = vmatpush1.bf16.msra.mxu0 %v558
  %803 = vmatprep.subr.bf16.mxu0 0
  %804 = vmatpush1.bf16.msra.mxu0 %v559
  %805 = vmatprep.subr.bf16.mxu0 0
  %806 = vmatpush1.bf16.msra.mxu0 %v560
  %807 = vmatprep.subr.bf16.mxu0 0
  %808 = vmatpush1.bf16.msra.mxu0 %v561
  %809 = vmatprep.subr.bf16.mxu0 0
  %810 = vmatpush1.bf16.msra.mxu0 %v562
  %811 = vmatprep.subr.bf16.mxu0 0
  %812 = vmatpush1.bf16.msra.mxu0 0
  %813 = vmatprep.subr.bf16.mxu0 0
  %814 = vmatpush1.bf16.msra.mxu0 0
  %815 = vmatprep.subr.bf16.mxu0 0
  %816 = vmatpush1.bf16.msra.mxu0 0
  %817 = vmatprep.subr.bf16.mxu0 0
  %818 = vmatpush1.bf16.msra.mxu0 0
  %819 = vmatprep.subr.bf16.mxu0 0
  %820 = vmatpush1.bf16.msra.mxu0 0
  %821 = vmatprep.subr.bf16.mxu0 0
  %822 = vmatpush1.bf16.msra.mxu0 0
  %823 = vmatprep.subr.bf16.mxu0 0
  %824 = vmatpush1.bf16.msra.mxu0 0
  %825 = vmatprep.subr.bf16.mxu0 0
  %826 = vmatpush1.bf16.msra.mxu0 0
  %827 = vmatprep.mubr.bf16.mxu0 0
  %828 = vmatmul.mubr.bf16.gmra.mrb[0].mxu0 %v193
  %v829 = vpop.f32.mrb[0].mxu0
  %v830 = vadd.f32 %v790, %v829
  %v831 = vpop.f32.mrb[0].mxu0
  %v832 = vpop.f32.mrb[0].mxu0
  %v833 = vpop.f32.mrb[0].mxu0
  %834 = vdwg.mxu0
  %v835 = vmax.f32 %v830, 0.0
  %836 = vst [vmem:[%s3] sm:$0xff] %v835
  // Predicated region
  $region14: #{resnet18_with_mlp.23} parent=0 // pred_check
    _
  $region15: #{resnet18_with_mlp.23} parent=0 // pred_check_branch
    %838 = sbr.rel (0) target = $region17
  $region16: #{resnet18_with_mlp.23} parent=0 // pred_region
    _
  $region17: #{resnet18_with_mlp.23} parent=0 // pred_fallthru
    _
  // Predicated region
  $region18: #{resnet18_with_mlp.23} parent=0 // pred_check
    _
  $region19: #{resnet18_with_mlp.23} parent=0 // pred_check_branch
    %840 = sbr.rel (0) target = $region21
  $region20: #{resnet18_with_mlp.23} parent=0 // pred_region
    _
  $region21: #{resnet18_with_mlp.23} parent=0 // pred_fallthru
    _

// kernel: resnet18_with_mlp.22
$region0: #{resnet18_with_mlp.22}
  #allocation0 [shape = 'u32[]', space=smem, size = 0x4, offset = 0x4, fixed_abs, tag = 'smem constant byte address 0x4 - core index']
  #allocation1 [shape = 'u32[144,128]{1,0:T(1,128)}', space=vmem, size = 0x12000, scoped, tag = 'internal scratch']
  %s0 = inlined_call_operand.vmem [shape: bf16[8,1152], index: 0, kind: input, shape index: {}]
  %s1 = inlined_call_operand.vmem [shape: bf16[1152,128], index: 1, kind: input, shape index: {}]
  %s2 = inlined_call_operand.vmem [shape: f32[1,128], index: 2, kind: input, shape index: {}]
  %s3 = inlined_call_operand.vmem [shape: bf16[8,64], index: 3, kind: input, shape index: {}]
  %s4 = inlined_call_operand.vmem [shape: bf16[64,128], index: 4, kind: input, shape index: {}]
  %s5 = inlined_call_operand.vmem [shape: f32[1,128], index: 5, kind: input, shape index: {}]
  %s6 = inlined_call_operand.vmem [shape: f32[8,128], index: 6, kind: output, shape index: {}]
  %s7 = sld [smem:[#allocation0]]
  $region34: #{resnet18_with_mlp.22} parent=0
    _
  %s9 = ssub.s32 1, %s7
  %s10 = scalar_select 0, %s9, %s7
  // Predicated region
  $region2: #{resnet18_with_mlp.22} parent=0 // pred_check
    _
  $region3: #{resnet18_with_mlp.22} parent=0 // pred_check_branch
    %12 = sbr.rel (0) target = $region5
  $region4: #{resnet18_with_mlp.22} parent=0 // pred_region
    _
  $region5: #{resnet18_with_mlp.22} parent=0 // pred_fallthru
    _
  // Predicated region
  $region6: #{resnet18_with_mlp.22} parent=0 // pred_check
    _
  $region7: #{resnet18_with_mlp.22} parent=0 // pred_check_branch
    %14 = sbr.rel (0) target = $region9
  $region8: #{resnet18_with_mlp.22} parent=0 // pred_region
    _
  $region9: #{resnet18_with_mlp.22} parent=0 // pred_fallthru
    _
  // Predicated region
  $region10: #{resnet18_with_mlp.22} parent=0 // pred_check
    _
  $region11: #{resnet18_with_mlp.22} parent=0 // pred_check_branch
    %16 = sbr.rel (0) target = $region13
  $region12: #{resnet18_with_mlp.22} parent=0 // pred_region
    _
  $region13: #{resnet18_with_mlp.22} parent=0 // pred_fallthru
    _
  // Predicated region
  $region14: #{resnet18_with_mlp.22} parent=0 // pred_check
    _
  $region15: #{resnet18_with_mlp.22} parent=0 // pred_check_branch
    %18 = sbr.rel (0) target = $region17
  $region16: #{resnet18_with_mlp.22} parent=0 // pred_region
    _
  $region17: #{resnet18_with_mlp.22} parent=0 // pred_fallthru
    _
  // Predicated region
  $region18: #{resnet18_with_mlp.22} parent=0 // pred_check
    _
  $region19: #{resnet18_with_mlp.22} parent=0 // pred_check_branch
    %20 = sbr.rel (0) target = $region21
  $region20: #{resnet18_with_mlp.22} parent=0 // pred_region
    _
  $region21: #{resnet18_with_mlp.22} parent=0 // pred_fallthru
    _
  // Predicated region
  $region22: #{resnet18_with_mlp.22} parent=0 // pred_check
    _
  $region23: #{resnet18_with_mlp.22} parent=0 // pred_check_branch
    %22 = sbr.rel (0) target = $region25
  $region24: #{resnet18_with_mlp.22} parent=0 // pred_region
    _
  $region25: #{resnet18_with_mlp.22} parent=0 // pred_fallthru
    _
  %v24 = vld [vmem:[%s3] sm:$0xf]
  %v25 = vld [vmem:[%s4] sm:$0xf]
  %v26 = vld [vmem:[%s4 + $0x4] sm:$0xf]
  %v27 = vld [vmem:[%s4 + $0x8] sm:$0xf]
  %v28 = vld [vmem:[%s4 + $0xc] sm:$0xf]
  %v29 = vld [vmem:[%s4 + $0x10] sm:$0xf]
  %v30 = vld [vmem:[%s4 + $0x14] sm:$0xf]
  %v31 = vld [vmem:[%s4 + $0x18] sm:$0xf]
  %v32 = vld [vmem:[%s4 + $0x1c] sm:$0xf]
  %v33 = vld [vmem:[%s5] sm:$0x1]
  %v35 = vlaneseq
  %v36 = vshrl.u32 %v35, 7
  %v37 = vsub.s32 0, %v36
  %v38 = vrot.slane %v33, %v37
  %v48 = vunpack.c.l.b16 %v25
  %v49 = vunpack.c.l.b16 %v26
  %v50 = vunpack.c.l.b16 %v27
  %v51 = vunpack.c.l.b16 %v28
  %v52 = vunpack.c.l.b16 %v29
  %v53 = vunpack.c.l.b16 %v30
  %v54 = vunpack.c.l.b16 %v31
  %v55 = vunpack.c.l.b16 %v32
  %v56 = vpack.c.b16 %v49, %v48
  %v57 = vpack.c.b16 %v51, %v50
  %v58 = vpack.c.b16 %v53, %v52
  %v59 = vpack.c.b16 %v55, %v54
  %vm64 = vcmask 523264
  %v66 = vsel %vm64, %v24, 0
  %68 = vmatprep.subr.bf16.mxu0 0
  %69 = vmatpush1.bf16.msra.mxu0 %v56
  %70 = vmatprep.subr.bf16.mxu0 0
  %71 = vmatpush1.bf16.msra.mxu0 %v57
  %72 = vmatprep.subr.bf16.mxu0 0
  %73 = vmatpush1.bf16.msra.mxu0 %v58
  %74 = vmatprep.subr.bf16.mxu0 0
  %75 = vmatpush1.bf16.msra.mxu0 %v59
  %76 = vmatprep.subr.bf16.mxu0 0
  %77 = vmatpush1.bf16.msra.mxu0 0
  %78 = vmatprep.subr.bf16.mxu0 0
  %79 = vmatpush1.bf16.msra.mxu0 0
  %80 = vmatprep.subr.bf16.mxu0 0
  %81 = vmatpush1.bf16.msra.mxu0 0
  %82 = vmatprep.subr.bf16.mxu0 0
  %83 = vmatpush1.bf16.msra.mxu0 0
  %84 = vmatprep.subr.bf16.mxu0 0
  %85 = vmatpush1.bf16.msra.mxu0 0
  %86 = vmatprep.subr.bf16.mxu0 0
  %87 = vmatpush1.bf16.msra.mxu0 0
  %88 = vmatprep.subr.bf16.mxu0 0
  %89 = vmatpush1.bf16.msra.mxu0 0
  %90 = vmatprep.subr.bf16.mxu0 0
  %91 = vmatpush1.bf16.msra.mxu0 0
  %92 = vmatprep.subr.bf16.mxu0 0
  %93 = vmatpush1.bf16.msra.mxu0 0
  %94 = vmatprep.subr.bf16.mxu0 0
  %95 = vmatpush1.bf16.msra.mxu0 0
  %96 = vmatprep.subr.bf16.mxu0 0
  %97 = vmatpush1.bf16.msra.mxu0 0
  %98 = vmatprep.subr.bf16.mxu0 0
  %99 = vmatpush1.bf16.msra.mxu0 0
  %100 = vmatprep.mubr.bf16.mxu0 0
  %101 = vmatmul.mubr.bf16.gmra.mrb[0].mxu0 %v66
  %v102 = vpop.f32.mrb[0].mxu0
  %v103 = vadd.f32 %v38, %v102
  %v104 = vpop.f32.mrb[0].mxu0
  %v105 = vpop.f32.mrb[0].mxu0
  %v106 = vpop.f32.mrb[0].mxu0
  %107 = vdwg.mxu0
  %v108 = vld [vmem:[%s0] sm:$0xff]
  %v109 = vld [vmem:[%s0 + $0x8] sm:$0xff]
  %v110 = vld [vmem:[%s0 + $0x10] sm:$0xff]
  %v111 = vld [vmem:[%s0 + $0x18] sm:$0xff]
  %v112 = vld [vmem:[%s0 + $0x20] sm:$0xf]
  %v113 = vld [vmem:[%s1] sm:$0xf]
  %v114 = vld [vmem:[%s1 + $0x4] sm:$0xf]
  %v115 = vld [vmem:[%s1 + $0x8] sm:$0xf]
  %v116 = vld [vmem:[%s1 + $0xc] sm:$0xf]
  %v117 = vld [vmem:[%s1 + $0x10] sm:$0xf]
  %v118 = vld [vmem:[%s1 + $0x14] sm:$0xf]
  %v119 = vld [vmem:[%s1 + $0x18] sm:$0xf]
  %v120 = vld [vmem:[%s1 + $0x1c] sm:$0xf]
  %v121 = vld [vmem:[%s1 + $0x20] sm:$0xf]
  %v122 = vld [vmem:[%s1 + $0x24] sm:$0xf]
  %v123 = vld [vmem:[%s1 + $0x28] sm:$0xf]
  %v124 = vld [vmem:[%s1 + $0x2c] sm:$0xf]
  %v125 = vld [vmem:[%s1 + $0x30] sm:$0xf]
  %v126 = vld [vmem:[%s1 + $0x34] sm:$0xf]
  %v127 = vld [vmem:[%s1 + $0x38] sm:$0xf]
  %v128 = vld [vmem:[%s1 + $0x3c] sm:$0xf]
  %v129 = vld [vmem:[%s1 + $0x40] sm:$0xf]
  %v130 = vld [vmem:[%s1 + $0x44] sm:$0xf]
  %v131 = vld [vmem:[%s1 + $0x48] sm:$0xf]
  %v132 = vld [vmem:[%s1 + $0x4c] sm:$0xf]
  %v133 = vld [vmem:[%s1 + $0x50] sm:$0xf]
  %v134 = vld [vmem:[%s1 + $0x54] sm:$0xf]
  %v135 = vld [vmem:[%s1 + $0x58] sm:$0xf]
  %v136 = vld [vmem:[%s1 + $0x5c] sm:$0xf]
  %v137 = vld [vmem:[%s1 + $0x60] sm:$0xf]
  %v138 = vld [vmem:[%s1 + $0x64] sm:$0xf]
  %v139 = vld [vmem:[%s1 + $0x68] sm:$0xf]
  %v140 = vld [vmem:[%s1 + $0x6c] sm:$0xf]
  %v141 = vld [vmem:[%s1 + $0x70] sm:$0xf]
  %v142 = vld [vmem:[%s1 + $0x74] sm:$0xf]
  %v143 = vld [vmem:[%s1 + $0x78] sm:$0xf]
  %v144 = vld [vmem:[%s1 + $0x7c] sm:$0xf]
  %v145 = vld [vmem:[%s1 + $0x80] sm:$0xf]
  %v146 = vld [vmem:[%s1 + $0x84] sm:$0xf]
  %v147 = vld [vmem:[%s1 + $0x88] sm:$0xf]
  %v148 = vld [vmem:[%s1 + $0x8c] sm:$0xf]
  %v149 = vld [vmem:[%s1 + $0x90] sm:$0xf]
  %v150 = vld [vmem:[%s1 + $0x94] sm:$0xf]
  %v151 = vld [vmem:[%s1 + $0x98] sm:$0xf]
  %v152 = vld [vmem:[%s1 + $0x9c] sm:$0xf]
  %v153 = vld [vmem:[%s1 + $0xa0] sm:$0xf]
  %v154 = vld [vmem:[%s1 + $0xa4] sm:$0xf]
  %v155 = vld [vmem:[%s1 + $0xa8] sm:$0xf]
  %v156 = vld [vmem:[%s1 + $0xac] sm:$0xf]
  %v157 = vld [vmem:[%s1 + $0xb0] sm:$0xf]
  %v158 = vld [vmem:[%s1 + $0xb4] sm:$0xf]
  %v159 = vld [vmem:[%s1 + $0xb8] sm:$0xf]
  %v160 = vld [vmem:[%s1 + $0xbc] sm:$0xf]
  %v161 = vld [vmem:[%s1 + $0xc0] sm:$0xf]
  %v162 = vld [vmem:[%s1 + $0xc4] sm:$0xf]
  %v163 = vld [vmem:[%s1 + $0xc8] sm:$0xf]
  %v164 = vld [vmem:[%s1 + $0xcc] sm:$0xf]
  %v165 = vld [vmem:[%s1 + $0xd0] sm:$0xf]
  %v166 = vld [vmem:[%s1 + $0xd4] sm:$0xf]
  %v167 = vld [vmem:[%s1 + $0xd8] sm:$0xf]
  %v168 = vld [vmem:[%s1 + $0xdc] sm:$0xf]
  %v169 = vld [vmem:[%s1 + $0xe0] sm:$0xf]
  %v170 = vld [vmem:[%s1 + $0xe4] sm:$0xf]
  %v171 = vld [vmem:[%s1 + $0xe8] sm:$0xf]
  %v172 = vld [vmem:[%s1 + $0xec] sm:$0xf]
  %v173 = vld [vmem:[%s1 + $0xf0] sm:$0xf]
  %v174 = vld [vmem:[%s1 + $0xf4] sm:$0xf]
  %v175 = vld [vmem:[%s1 + $0xf8] sm:$0xf]
  %v176 = vld [vmem:[%s1 + $0xfc] sm:$0xf]
  %v177 = vld [vmem:[%s1 + $0x100] sm:$0xf]
  %v178 = vld [vmem:[%s1 + $0x104] sm:$0xf]
  %v179 = vld [vmem:[%s1 + $0x108] sm:$0xf]
  %v180 = vld [vmem:[%s1 + $0x10c] sm:$0xf]
  %v181 = vld [vmem:[%s1 + $0x110] sm:$0xf]
  %v182 = vld [vmem:[%s1 + $0x114] sm:$0xf]
  %v183 = vld [vmem:[%s1 + $0x118] sm:$0xf]
  %v184 = vld [vmem:[%s1 + $0x11c] sm:$0xf]
  %v185 = vld [vmem:[%s1 + $0x120] sm:$0xf]
  %v186 = vld [vmem:[%s1 + $0x124] sm:$0xf]
  %v187 = vld [vmem:[%s1 + $0x128] sm:$0xf]
  %v188 = vld [vmem:[%s1 + $0x12c] sm:$0xf]
  %v189 = vld [vmem:[%s1 + $0x130] sm:$0xf]
  %v190 = vld [vmem:[%s1 + $0x134] sm:$0xf]
  %v191 = vld [vmem:[%s1 + $0x138] sm:$0xf]
  %v192 = vld [vmem:[%s1 + $0x13c] sm:$0xf]
  %v193 = vld [vmem:[%s1 + $0x140] sm:$0xf]
  %v194 = vld [vmem:[%s1 + $0x144] sm:$0xf]
  %v195 = vld [vmem:[%s1 + $0x148] sm:$0xf]
  %v196 = vld [vmem:[%s1 + $0x14c] sm:$0xf]
  %v197 = vld [vmem:[%s1 + $0x150] sm:$0xf]
  %v198 = vld [vmem:[%s1 + $0x154] sm:$0xf]
  %v199 = vld [vmem:[%s1 + $0x158] sm:$0xf]
  %v200 = vld [vmem:[%s1 + $0x15c] sm:$0xf]
  %v201 = vld [vmem:[%s1 + $0x160] sm:$0xf]
  %v202 = vld [vmem:[%s1 + $0x164] sm:$0xf]
  %v203 = vld [vmem:[%s1 + $0x168] sm:$0xf]
  %v204 = vld [vmem:[%s1 + $0x16c] sm:$0xf]
  %v205 = vld [vmem:[%s1 + $0x170] sm:$0xf]
  %v206 = vld [vmem:[%s1 + $0x174] sm:$0xf]
  %v207 = vld [vmem:[%s1 + $0x178] sm:$0xf]
  %v208 = vld [vmem:[%s1 + $0x17c] sm:$0xf]
  %v209 = vld [vmem:[%s1 + $0x180] sm:$0xf]
  %v210 = vld [vmem:[%s1 + $0x184] sm:$0xf]
  %v211 = vld [vmem:[%s1 + $0x188] sm:$0xf]
  %v212 = vld [vmem:[%s1 + $0x18c] sm:$0xf]
  %v213 = vld [vmem:[%s1 + $0x190] sm:$0xf]
  %v214 = vld [vmem:[%s1 + $0x194] sm:$0xf]
  %v215 = vld [vmem:[%s1 + $0x198] sm:$0xf]
  %v216 = vld [vmem:[%s1 + $0x19c] sm:$0xf]
  %v217 = vld [vmem:[%s1 + $0x1a0] sm:$0xf]
  %v218 = vld [vmem:[%s1 + $0x1a4] sm:$0xf]
  %v219 = vld [vmem:[%s1 + $0x1a8] sm:$0xf]
  %v220 = vld [vmem:[%s1 + $0x1ac] sm:$0xf]
  %v221 = vld [vmem:[%s1 + $0x1b0] sm:$0xf]
  %v222 = vld [vmem:[%s1 + $0x1b4] sm:$0xf]
  %v223 = vld [vmem:[%s1 + $0x1b8] sm:$0xf]
  %v224 = vld [vmem:[%s1 + $0x1bc] sm:$0xf]
  %v225 = vld [vmem:[%s1 + $0x1c0] sm:$0xf]
  %v226 = vld [vmem:[%s1 + $0x1c4] sm:$0xf]
  %v227 = vld [vmem:[%s1 + $0x1c8] sm:$0xf]
  %v228 = vld [vmem:[%s1 + $0x1cc] sm:$0xf]
  %v229 = vld [vmem:[%s1 + $0x1d0] sm:$0xf]
  %v230 = vld [vmem:[%s1 + $0x1d4] sm:$0xf]
  %v231 = vld [vmem:[%s1 + $0x1d8] sm:$0xf]
  %v232 = vld [vmem:[%s1 + $0x1dc] sm:$0xf]
  %v233 = vld [vmem:[%s1 + $0x1e0] sm:$0xf]
  %v234 = vld [vmem:[%s1 + $0x1e4] sm:$0xf]
  %v235 = vld [vmem:[%s1 + $0x1e8] sm:$0xf]
  %v236 = vld [vmem:[%s1 + $0x1ec] sm:$0xf]
  %v237 = vld [vmem:[%s1 + $0x1f0] sm:$0xf]
  %v238 = vld [vmem:[%s1 + $0x1f4] sm:$0xf]
  %v239 = vld [vmem:[%s1 + $0x1f8] sm:$0xf]
  %v240 = vld [vmem:[%s1 + $0x1fc] sm:$0xf]
  %v241 = vld [vmem:[%s1 + $0x200] sm:$0xf]
  %v242 = vld [vmem:[%s1 + $0x204] sm:$0xf]
  %v243 = vld [vmem:[%s1 + $0x208] sm:$0xf]
  %v244 = vld [vmem:[%s1 + $0x20c] sm:$0xf]
  %v245 = vld [vmem:[%s1 + $0x210] sm:$0xf]
  %v246 = vld [vmem:[%s1 + $0x214] sm:$0xf]
  %v247 = vld [vmem:[%s1 + $0x218] sm:$0xf]
  %v248 = vld [vmem:[%s1 + $0x21c] sm:$0xf]
  %v249 = vld [vmem:[%s1 + $0x220] sm:$0xf]
  %v250 = vld [vmem:[%s1 + $0x224] sm:$0xf]
  %v251 = vld [vmem:[%s1 + $0x228] sm:$0xf]
  %v252 = vld [vmem:[%s1 + $0x22c] sm:$0xf]
  %v253 = vld [vmem:[%s1 + $0x230] sm:$0xf]
  %v254 = vld [vmem:[%s1 + $0x234] sm:$0xf]
  %v255 = vld [vmem:[%s1 + $0x238] sm:$0xf]
  %v256 = vld [vmem:[%s1 + $0x23c] sm:$0xf]
  %v257 = vld [vmem:[%s2] sm:$0x1]
  %v259 = vlaneseq
  %v260 = vshrl.u32 %v259, 7
  %v261 = vsub.s32 0, %v260
  %v262 = vrot.slane %v257, %v261
  %v269 = vunpack.c.l.b16 %v108
  %v270 = vunpack.c.h.b16 %v108
  %v271 = vunpack.c.l.b16 %v109
  %v272 = vunpack.c.h.b16 %v109
  %v273 = vunpack.c.l.b16 %v110
  %v274 = vunpack.c.h.b16 %v110
  %v275 = vunpack.c.l.b16 %v111
  %v276 = vunpack.c.h.b16 %v111
  %v277 = vunpack.c.l.b16 %v112
  %v278 = vpack.c.b16 %v269, %v269
  %v279 = vpack.c.b16 %v270, %v270
  %v280 = vpack.c.b16 %v271, %v271
  %v281 = vpack.c.b16 %v272, %v272
  %v282 = vpack.c.b16 %v273, %v273
  %v283 = vpack.c.b16 %v274, %v274
  %v284 = vpack.c.b16 %v275, %v275
  %v285 = vpack.c.b16 %v276, %v276
  %v286 = vpack.c.b16 %v277, %v277
  %v440 = vunpack.c.l.b16 %v113
  %v441 = vunpack.c.l.b16 %v114
  %v442 = vunpack.c.l.b16 %v115
  %v443 = vunpack.c.l.b16 %v116
  %v444 = vunpack.c.l.b16 %v117
  %v445 = vunpack.c.l.b16 %v118
  %v446 = vunpack.c.l.b16 %v119
  %v447 = vunpack.c.l.b16 %v120
  %v448 = vunpack.c.l.b16 %v121
  %v449 = vunpack.c.l.b16 %v122
  %v450 = vunpack.c.l.b16 %v123
  %v451 = vunpack.c.l.b16 %v124
  %v452 = vunpack.c.l.b16 %v125
  %v453 = vunpack.c.l.b16 %v126
  %v454 = vunpack.c.l.b16 %v127
  %v455 = vunpack.c.l.b16 %v128
  %v456 = vunpack.c.l.b16 %v129
  %v457 = vunpack.c.l.b16 %v130
  %v458 = vunpack.c.l.b16 %v131
  %v459 = vunpack.c.l.b16 %v132
  %v460 = vunpack.c.l.b16 %v133
  %v461 = vunpack.c.l.b16 %v134
  %v462 = vunpack.c.l.b16 %v135
  %v463 = vunpack.c.l.b16 %v136
  %v464 = vunpack.c.l.b16 %v137
  %v465 = vunpack.c.l.b16 %v138
  %v466 = vunpack.c.l.b16 %v139
  %v467 = vunpack.c.l.b16 %v140
  %v468 = vunpack.c.l.b16 %v141
  %v469 = vunpack.c.l.b16 %v142
  %v470 = vunpack.c.l.b16 %v143
  %v471 = vunpack.c.l.b16 %v144
  %v472 = vunpack.c.l.b16 %v145
  %v473 = vunpack.c.l.b16 %v146
  %v474 = vunpack.c.l.b16 %v147
  %v475 = vunpack.c.l.b16 %v148
  %v476 = vunpack.c.l.b16 %v149
  %v477 = vunpack.c.l.b16 %v150
  %v478 = vunpack.c.l.b16 %v151
  %v479 = vunpack.c.l.b16 %v152
  %v480 = vunpack.c.l.b16 %v153
  %v481 = vunpack.c.l.b16 %v154
  %v482 = vunpack.c.l.b16 %v155
  %v483 = vunpack.c.l.b16 %v156
  %v484 = vunpack.c.l.b16 %v157
  %v485 = vunpack.c.l.b16 %v158
  %v486 = vunpack.c.l.b16 %v159
  %v487 = vunpack.c.l.b16 %v160
  %v488 = vunpack.c.l.b16 %v161
  %v489 = vunpack.c.l.b16 %v162
  %v490 = vunpack.c.l.b16 %v163
  %v491 = vunpack.c.l.b16 %v164
  %v492 = vunpack.c.l.b16 %v165
  %v493 = vunpack.c.l.b16 %v166
  %v494 = vunpack.c.l.b16 %v167
  %v495 = vunpack.c.l.b16 %v168
  %v496 = vunpack.c.l.b16 %v169
  %v497 = vunpack.c.l.b16 %v170
  %v498 = vunpack.c.l.b16 %v171
  %v499 = vunpack.c.l.b16 %v172
  %v500 = vunpack.c.l.b16 %v173
  %v501 = vunpack.c.l.b16 %v174
  %v502 = vunpack.c.l.b16 %v175
  %v503 = vunpack.c.l.b16 %v176
  %v504 = vunpack.c.l.b16 %v177
  %v505 = vunpack.c.l.b16 %v178
  %v506 = vunpack.c.l.b16 %v179
  %v507 = vunpack.c.l.b16 %v180
  %v508 = vunpack.c.l.b16 %v181
  %v509 = vunpack.c.l.b16 %v182
  %v510 = vunpack.c.l.b16 %v183
  %v511 = vunpack.c.l.b16 %v184
  %v512 = vunpack.c.l.b16 %v185
  %v513 = vunpack.c.l.b16 %v186
  %v514 = vunpack.c.l.b16 %v187
  %v515 = vunpack.c.l.b16 %v188
  %v516 = vunpack.c.l.b16 %v189
  %v517 = vunpack.c.l.b16 %v190
  %v518 = vunpack.c.l.b16 %v191
  %v519 = vunpack.c.l.b16 %v192
  %v520 = vunpack.c.l.b16 %v193
  %v521 = vunpack.c.l.b16 %v194
  %v522 = vunpack.c.l.b16 %v195
  %v523 = vunpack.c.l.b16 %v196
  %v524 = vunpack.c.l.b16 %v197
  %v525 = vunpack.c.l.b16 %v198
  %v526 = vunpack.c.l.b16 %v199
  %v527 = vunpack.c.l.b16 %v200
  %v528 = vunpack.c.l.b16 %v201
  %v529 = vunpack.c.l.b16 %v202
  %v530 = vunpack.c.l.b16 %v203
  %v531 = vunpack.c.l.b16 %v204
  %v532 = vunpack.c.l.b16 %v205
  %v533 = vunpack.c.l.b16 %v206
  %v534 = vunpack.c.l.b16 %v207
  %v535 = vunpack.c.l.b16 %v208
  %v536 = vunpack.c.l.b16 %v209
  %v537 = vunpack.c.l.b16 %v210
  %v538 = vunpack.c.l.b16 %v211
  %v539 = vunpack.c.l.b16 %v212
  %v540 = vunpack.c.l.b16 %v213
  %v541 = vunpack.c.l.b16 %v214
  %v542 = vunpack.c.l.b16 %v215
  %v543 = vunpack.c.l.b16 %v216
  %v544 = vunpack.c.l.b16 %v217
  %v545 = vunpack.c.l.b16 %v218
  %v546 = vunpack.c.l.b16 %v219
  %v547 = vunpack.c.l.b16 %v220
  %v548 = vunpack.c.l.b16 %v221
  %v549 = vunpack.c.l.b16 %v222
  %v550 = vunpack.c.l.b16 %v223
  %v551 = vunpack.c.l.b16 %v224
  %v552 = vunpack.c.l.b16 %v225
  %v553 = vunpack.c.l.b16 %v226
  %v554 = vunpack.c.l.b16 %v227
  %v555 = vunpack.c.l.b16 %v228
  %v556 = vunpack.c.l.b16 %v229
  %v557 = vunpack.c.l.b16 %v230
  %v558 = vunpack.c.l.b16 %v231
  %v559 = vunpack.c.l.b16 %v232
  %v560 = vunpack.c.l.b16 %v233
  %v561 = vunpack.c.l.b16 %v234
  %v562 = vunpack.c.l.b16 %v235
  %v563 = vunpack.c.l.b16 %v236
  %v564 = vunpack.c.l.b16 %v237
  %v565 = vunpack.c.l.b16 %v238
  %v566 = vunpack.c.l.b16 %v239
  %v567 = vunpack.c.l.b16 %v240
  %v568 = vunpack.c.l.b16 %v241
  %v569 = vunpack.c.l.b16 %v242
  %v570 = vunpack.c.l.b16 %v243
  %v571 = vunpack.c.l.b16 %v244
  %v572 = vunpack.c.l.b16 %v245
  %v573 = vunpack.c.l.b16 %v246
  %v574 = vunpack.c.l.b16 %v247
  %v575 = vunpack.c.l.b16 %v248
  %v576 = vunpack.c.l.b16 %v249
  %v577 = vunpack.c.l.b16 %v250
  %v578 = vunpack.c.l.b16 %v251
  %v579 = vunpack.c.l.b16 %v252
  %v580 = vunpack.c.l.b16 %v253
  %v581 = vunpack.c.l.b16 %v254
  %v582 = vunpack.c.l.b16 %v255
  %v583 = vunpack.c.l.b16 %v256
  %v584 = vpack.c.b16 %v441, %v440
  %v585 = vpack.c.b16 %v443, %v442
  %v586 = vpack.c.b16 %v445, %v444
  %v587 = vpack.c.b16 %v447, %v446
  %v588 = vpack.c.b16 %v449, %v448
  %v589 = vpack.c.b16 %v451, %v450
  %v590 = vpack.c.b16 %v453, %v452
  %v591 = vpack.c.b16 %v455, %v454
  %v592 = vpack.c.b16 %v457, %v456
  %v593 = vpack.c.b16 %v459, %v458
  %v594 = vpack.c.b16 %v461, %v460
  %v595 = vpack.c.b16 %v463, %v462
  %v596 = vpack.c.b16 %v465, %v464
  %v597 = vpack.c.b16 %v467, %v466
  %v598 = vpack.c.b16 %v469, %v468
  %v599 = vpack.c.b16 %v471, %v470
  %v600 = vpack.c.b16 %v473, %v472
  %v601 = vpack.c.b16 %v475, %v474
  %v602 = vpack.c.b16 %v477, %v476
  %v603 = vpack.c.b16 %v479, %v478
  %v604 = vpack.c.b16 %v481, %v480
  %v605 = vpack.c.b16 %v483, %v482
  %v606 = vpack.c.b16 %v485, %v484
  %v607 = vpack.c.b16 %v487, %v486
  %v608 = vpack.c.b16 %v489, %v488
  %v609 = vpack.c.b16 %v491, %v490
  %v610 = vpack.c.b16 %v493, %v492
  %v611 = vpack.c.b16 %v495, %v494
  %v612 = vpack.c.b16 %v497, %v496
  %v613 = vpack.c.b16 %v499, %v498
  %v614 = vpack.c.b16 %v501, %v500
  %v615 = vpack.c.b16 %v503, %v502
  %v616 = vpack.c.b16 %v505, %v504
  %v617 = vpack.c.b16 %v507, %v506
  %v618 = vpack.c.b16 %v509, %v508
  %v619 = vpack.c.b16 %v511, %v510
  %v620 = vpack.c.b16 %v513, %v512
  %v621 = vpack.c.b16 %v515, %v514
  %v622 = vpack.c.b16 %v517, %v516
  %v623 = vpack.c.b16 %v519, %v518
  %v624 = vpack.c.b16 %v521, %v520
  %v625 = vpack.c.b16 %v523, %v522
  %v626 = vpack.c.b16 %v525, %v524
  %v627 = vpack.c.b16 %v527, %v526
  %v628 = vpack.c.b16 %v529, %v528
  %v629 = vpack.c.b16 %v531, %v530
  %v630 = vpack.c.b16 %v533, %v532
  %v631 = vpack.c.b16 %v535, %v534
  %v632 = vpack.c.b16 %v537, %v536
  %v633 = vpack.c.b16 %v539, %v538
  %v634 = vpack.c.b16 %v541, %v540
  %v635 = vpack.c.b16 %v543, %v542
  %v636 = vpack.c.b16 %v545, %v544
  %v637 = vpack.c.b16 %v547, %v546
  %v638 = vpack.c.b16 %v549, %v548
  %v639 = vpack.c.b16 %v551, %v550
  %v640 = vpack.c.b16 %v553, %v552
  %v641 = vpack.c.b16 %v555, %v554
  %v642 = vpack.c.b16 %v557, %v556
  %v643 = vpack.c.b16 %v559, %v558
  %v644 = vpack.c.b16 %v561, %v560
  %v645 = vpack.c.b16 %v563, %v562
  %v646 = vpack.c.b16 %v565, %v564
  %v647 = vpack.c.b16 %v567, %v566
  %v648 = vpack.c.b16 %v569, %v568
  %v649 = vpack.c.b16 %v571, %v570
  %v650 = vpack.c.b16 %v573, %v572
  %v651 = vpack.c.b16 %v575, %v574
  %v652 = vpack.c.b16 %v577, %v576
  %v653 = vpack.c.b16 %v579, %v578
  %v654 = vpack.c.b16 %v581, %v580
  %v655 = vpack.c.b16 %v583, %v582
  %728 = vmatprep.subr.bf16.mxu0 0
  %729 = vmatpush1.bf16.msra.mxu0 %v584
  %730 = vmatprep.subr.bf16.mxu0 0
  %731 = vmatpush1.bf16.msra.mxu0 %v585
  %732 = vmatprep.subr.bf16.mxu0 0
  %733 = vmatpush1.bf16.msra.mxu0 %v586
  %734 = vmatprep.subr.bf16.mxu0 0
  %735 = vmatpush1.bf16.msra.mxu0 %v587
  %736 = vmatprep.subr.bf16.mxu0 0
  %737 = vmatpush1.bf16.msra.mxu0 %v588
  %738 = vmatprep.subr.bf16.mxu0 0
  %739 = vmatpush1.bf16.msra.mxu0 %v589
  %740 = vmatprep.subr.bf16.mxu0 0
  %741 = vmatpush1.bf16.msra.mxu0 %v590
  %742 = vmatprep.subr.bf16.mxu0 0
  %743 = vmatpush1.bf16.msra.mxu0 %v591
  %744 = vmatprep.subr.bf16.mxu0 0
  %745 = vmatpush1.bf16.msra.mxu0 %v592
  %746 = vmatprep.subr.bf16.mxu0 0
  %747 = vmatpush1.bf16.msra.mxu0 %v593
  %748 = vmatprep.subr.bf16.mxu0 0
  %749 = vmatpush1.bf16.msra.mxu0 %v594
  %750 = vmatprep.subr.bf16.mxu0 0
  %751 = vmatpush1.bf16.msra.mxu0 %v595
  %752 = vmatprep.subr.bf16.mxu0 0
  %753 = vmatpush1.bf16.msra.mxu0 %v596
  %754 = vmatprep.subr.bf16.mxu0 0
  %755 = vmatpush1.bf16.msra.mxu0 %v597
  %756 = vmatprep.subr.bf16.mxu0 0
  %757 = vmatpush1.bf16.msra.mxu0 %v598
  %758 = vmatprep.subr.bf16.mxu0 0
  %759 = vmatpush1.bf16.msra.mxu0 %v599
  %760 = vmatprep.mubr.bf16.mxu0 %v279
  %761 = vmatmul.mubr.bf16.gmra.mrb[0].mxu0 %v278
  %v762 = vpop.f32.mrb[0].mxu0
  %v763 = vadd.f32 %v262, %v762
  %v764 = vpop.f32.mrb[0].mxu0
  %v765 = vpop.f32.mrb[0].mxu0
  %v766 = vpop.f32.mrb[0].mxu0
  %767 = vdwg.mxu0
  %768 = vmatprep.subr.bf16.mxu0 0
  %769 = vmatpush1.bf16.msra.mxu0 %v600
  %770 = vmatprep.subr.bf16.mxu0 0
  %771 = vmatpush1.bf16.msra.mxu0 %v601
  %772 = vmatprep.subr.bf16.mxu0 0
  %773 = vmatpush1.bf16.msra.mxu0 %v602
  %774 = vmatprep.subr.bf16.mxu0 0
  %775 = vmatpush1.bf16.msra.mxu0 %v603
  %776 = vmatprep.subr.bf16.mxu0 0
  %777 = vmatpush1.bf16.msra.mxu0 %v604
  %778 = vmatprep.subr.bf16.mxu0 0
  %779 = vmatpush1.bf16.msra.mxu0 %v605
  %780 = vmatprep.subr.bf16.mxu0 0
  %781 = vmatpush1.bf16.msra.mxu0 %v606
  %782 = vmatprep.subr.bf16.mxu0 0
  %783 = vmatpush1.bf16.msra.mxu0 %v607
  %784 = vmatprep.subr.bf16.mxu0 0
  %785 = vmatpush1.bf16.msra.mxu0 %v608
  %786 = vmatprep.subr.bf16.mxu0 0
  %787 = vmatpush1.bf16.msra.mxu0 %v609
  %788 = vmatprep.subr.bf16.mxu0 0
  %789 = vmatpush1.bf16.msra.mxu0 %v610
  %790 = vmatprep.subr.bf16.mxu0 0
  %791 = vmatpush1.bf16.msra.mxu0 %v611
  %792 = vmatprep.subr.bf16.mxu0 0
  %793 = vmatpush1.bf16.msra.mxu0 %v612
  %794 = vmatprep.subr.bf16.mxu0 0
  %795 = vmatpush1.bf16.msra.mxu0 %v613
  %796 = vmatprep.subr.bf16.mxu0 0
  %797 = vmatpush1.bf16.msra.mxu0 %v614
  %798 = vmatprep.subr.bf16.mxu0 0
  %799 = vmatpush1.bf16.msra.mxu0 %v615
  %800 = vmatprep.mubr.bf16.mxu0 %v281
  %801 = vmatmul.mubr.bf16.gmra.mrb[0].mxu0 %v280
  %v802 = vpop.f32.mrb[0].mxu0
  %v803 = vadd.f32 %v763, %v802
  %v804 = vpop.f32.mrb[0].mxu0
  %v805 = vpop.f32.mrb[0].mxu0
  %v806 = vpop.f32.mrb[0].mxu0
  %807 = vdwg.mxu0
  %808 = vmatprep.subr.bf16.mxu0 0
  %809 = vmatpush1.bf16.msra.mxu0 %v616
  %810 = vmatprep.subr.bf16.mxu0 0
  %811 = vmatpush1.bf16.msra.mxu0 %v617
  %812 = vmatprep.subr.bf16.mxu0 0
  %813 = vmatpush1.bf16.msra.mxu0 %v618
  %814 = vmatprep.subr.bf16.mxu0 0
  %815 = vmatpush1.bf16.msra.mxu0 %v619
  %816 = vmatprep.subr.bf16.mxu0 0
  %817 = vmatpush1.bf16.msra.mxu0 %v620
  %818 = vmatprep.subr.bf16.mxu0 0
  %819 = vmatpush1.bf16.msra.mxu0 %v621
  %820 = vmatprep.subr.bf16.mxu0 0
  %821 = vmatpush1.bf16.msra.mxu0 %v622
  %822 = vmatprep.subr.bf16.mxu0 0
  %823 = vmatpush1.bf16.msra.mxu0 %v623
  %824 = vmatprep.subr.bf16.mxu0 0
  %825 = vmatpush1.bf16.msra.mxu0 %v624
  %826 = vmatprep.subr.bf16.mxu0 0
  %827 = vmatpush1.bf16.msra.mxu0 %v625
  %828 = vmatprep.subr.bf16.mxu0 0
  %829 = vmatpush1.bf16.msra.mxu0 %v626
  %830 = vmatprep.subr.bf16.mxu0 0
  %831 = vmatpush1.bf16.msra.mxu0 %v627
  %832 = vmatprep.subr.bf16.mxu0 0
  %833 = vmatpush1.bf16.msra.mxu0 %v628
  %834 = vmatprep.subr.bf16.mxu0 0
  %835 = vmatpush1.bf16.msra.mxu0 %v629
  %836 = vmatprep.subr.bf16.mxu0 0
  %837 = vmatpush1.bf16.msra.mxu0 %v630
  %838 = vmatprep.subr.bf16.mxu0 0
  %839 = vmatpush1.bf16.msra.mxu0 %v631
  %840 = vmatprep.mubr.bf16.mxu0 %v283
  %841 = vmatmul.mubr.bf16.gmra.mrb[0].mxu0 %v282
  %v842 = vpop.f32.mrb[0].mxu0
  %v843 = vadd.f32 %v803, %v842
  %v844 = vpop.f32.mrb[0].mxu0
  %v845 = vpop.f32.mrb[0].mxu0
  %v846 = vpop.f32.mrb[0].mxu0
  %847 = vdwg.mxu0
  %848 = vmatprep.subr.bf16.mxu0 0
  %849 = vmatpush1.bf16.msra.mxu0 %v632
  %850 = vmatprep.subr.bf16.mxu0 0
  %851 = vmatpush1.bf16.msra.mxu0 %v633
  %852 = vmatprep.subr.bf16.mxu0 0
  %853 = vmatpush1.bf16.msra.mxu0 %v634
  %854 = vmatprep.subr.bf16.mxu0 0
  %855 = vmatpush1.bf16.msra.mxu0 %v635
  %856 = vmatprep.subr.bf16.mxu0 0
  %857 = vmatpush1.bf16.msra.mxu0 %v636
  %858 = vmatprep.subr.bf16.mxu0 0
  %859 = vmatpush1.bf16.msra.mxu0 %v637
  %860 = vmatprep.subr.bf16.mxu0 0
  %861 = vmatpush1.bf16.msra.mxu0 %v638
  %862 = vmatprep.subr.bf16.mxu0 0
  %863 = vmatpush1.bf16.msra.mxu0 %v639
  %864 = vmatprep.subr.bf16.mxu0 0
  %865 = vmatpush1.bf16.msra.mxu0 %v640
  %866 = vmatprep.subr.bf16.mxu0 0
  %867 = vmatpush1.bf16.msra.mxu0 %v641
  %868 = vmatprep.subr.bf16.mxu0 0
  %869 = vmatpush1.bf16.msra.mxu0 %v642
  %870 = vmatprep.subr.bf16.mxu0 0
  %871 = vmatpush1.bf16.msra.mxu0 %v643
  %872 = vmatprep.subr.bf16.mxu0 0
  %873 = vmatpush1.bf16.msra.mxu0 %v644
  %874 = vmatprep.subr.bf16.mxu0 0
  %875 = vmatpush1.bf16.msra.mxu0 %v645
  %876 = vmatprep.subr.bf16.mxu0 0
  %877 = vmatpush1.bf16.msra.mxu0 %v646
  %878 = vmatprep.subr.bf16.mxu0 0
  %879 = vmatpush1.bf16.msra.mxu0 %v647
  %880 = vmatprep.mubr.bf16.mxu0 %v285
  %881 = vmatmul.mubr.bf16.gmra.mrb[0].mxu0 %v284
  %v882 = vpop.f32.mrb[0].mxu0
  %v883 = vadd.f32 %v843, %v882
  %v884 = vpop.f32.mrb[0].mxu0
  %v885 = vpop.f32.mrb[0].mxu0
  %v886 = vpop.f32.mrb[0].mxu0
  %887 = vdwg.mxu0
  %888 = vmatprep.subr.bf16.mxu0 0
  %889 = vmatpush1.bf16.msra.mxu0 %v648
  %890 = vmatprep.subr.bf16.mxu0 0
  %891 = vmatpush1.bf16.msra.mxu0 %v649
  %892 = vmatprep.subr.bf16.mxu0 0
  %893 = vmatpush1.bf16.msra.mxu0 %v650
  %894 = vmatprep.subr.bf16.mxu0 0
  %895 = vmatpush1.bf16.msra.mxu0 %v651
  %896 = vmatprep.subr.bf16.mxu0 0
  %897 = vmatpush1.bf16.msra.mxu0 %v652
  %898 = vmatprep.subr.bf16.mxu0 0
  %899 = vmatpush1.bf16.msra.mxu0 %v653
  %900 = vmatprep.subr.bf16.mxu0 0
  %901 = vmatpush1.bf16.msra.mxu0 %v654
  %902 = vmatprep.subr.bf16.mxu0 0
  %903 = vmatpush1.bf16.msra.mxu0 %v655
  %904 = vmatprep.subr.bf16.mxu0 0
  %905 = vmatpush1.bf16.msra.mxu0 0
  %906 = vmatprep.subr.bf16.mxu0 0
  %907 = vmatpush1.bf16.msra.mxu0 0
  %908 = vmatprep.subr.bf16.mxu0 0
  %909 = vmatpush1.bf16.msra.mxu0 0
  %910 = vmatprep.subr.bf16.mxu0 0
  %911 = vmatpush1.bf16.msra.mxu0 0
  %912 = vmatprep.subr.bf16.mxu0 0
  %913 = vmatpush1.bf16.msra.mxu0 0
  %914 = vmatprep.subr.bf16.mxu0 0
  %915 = vmatpush1.bf16.msra.mxu0 0
  %916 = vmatprep.subr.bf16.mxu0 0
  %917 = vmatpush1.bf16.msra.mxu0 0
  %918 = vmatprep.subr.bf16.mxu0 0
  %919 = vmatpush1.bf16.msra.mxu0 0
  %920 = vmatprep.mubr.bf16.mxu0 0
  %921 = vmatmul.mubr.bf16.gmra.mrb[0].mxu0 %v286
  %v922 = vpop.f32.mrb[0].mxu0
  %v923 = vadd.f32 %v883, %v922
  %v924 = vpop.f32.mrb[0].mxu0
  %v925 = vpop.f32.mrb[0].mxu0
  %v926 = vpop.f32.mrb[0].mxu0
  %927 = vdwg.mxu0
  %v928 = vadd.f32 %v923, %v103
  %v929 = vmax.f32 %v928, 0.0
  %930 = vst [vmem:[%s6] sm:$0xff] %v929
  // Predicated region
  $region26: #{resnet18_with_mlp.22} parent=0 // pred_check
    _
  $region27: #{resnet18_with_mlp.22} parent=0 // pred_check_branch
    %932 = sbr.rel (0) target = $region29
  $region28: #{resnet18_with_mlp.22} parent=0 // pred_region
    _
  $region29: #{resnet18_with_mlp.22} parent=0 // pred_fallthru
    _
  // Predicated region
  $region30: #{resnet18_with_mlp.22} parent=0 // pred_check
    _
  $region31: #{resnet18_with_mlp.22} parent=0 // pred_check_branch
    %934 = sbr.rel (0) target = $region33
  $region32: #{resnet18_with_mlp.22} parent=0 // pred_region
    _
  $region33: #{resnet18_with_mlp.22} parent=0 // pred_fallthru
    _

// kernel: resnet18_with_mlp.24
$region0: #{resnet18_with_mlp.24}
  #allocation0 [shape = 'u32[]', space=smem, size = 0x4, offset = 0x4, fixed_abs, tag = 'smem constant byte address 0x4 - core index']
  #allocation1 [shape = 'u32[144,128]{1,0:T(1,128)}', space=vmem, size = 0x12000, scoped, tag = 'internal scratch']
  %s0 = inlined_call_operand.vmem [shape: bf16[8,1152], index: 0, kind: input, shape index: {}]
  %s1 = inlined_call_operand.vmem [shape: bf16[1152,128], index: 1, kind: input, shape index: {}]
  %s2 = inlined_call_operand.vmem [shape: f32[1,128], index: 2, kind: input, shape index: {}]
  %s3 = inlined_call_operand.vmem [shape: f32[8,128], index: 3, kind: input, shape index: {}]
  %s4 = inlined_call_operand.vmem [shape: f32[8,128], index: 4, kind: output, shape index: {}]
  %s5 = sld [smem:[#allocation0]]
  $region26: #{resnet18_with_mlp.24} parent=0
    _
  %s7 = ssub.s32 1, %s5
  %s8 = scalar_select 0, %s7, %s5
  // Predicated region
  $region2: #{resnet18_with_mlp.24} parent=0 // pred_check
    _
  $region3: #{resnet18_with_mlp.24} parent=0 // pred_check_branch
    %10 = sbr.rel (0) target = $region5
  $region4: #{resnet18_with_mlp.24} parent=0 // pred_region
    _
  $region5: #{resnet18_with_mlp.24} parent=0 // pred_fallthru
    _
  // Predicated region
  $region6: #{resnet18_with_mlp.24} parent=0 // pred_check
    _
  $region7: #{resnet18_with_mlp.24} parent=0 // pred_check_branch
    %12 = sbr.rel (0) target = $region9
  $region8: #{resnet18_with_mlp.24} parent=0 // pred_region
    _
  $region9: #{resnet18_with_mlp.24} parent=0 // pred_fallthru
    _
  // Predicated region
  $region10: #{resnet18_with_mlp.24} parent=0 // pred_check
    _
  $region11: #{resnet18_with_mlp.24} parent=0 // pred_check_branch
    %14 = sbr.rel (0) target = $region13
  $region12: #{resnet18_with_mlp.24} parent=0 // pred_region
    _
  $region13: #{resnet18_with_mlp.24} parent=0 // pred_fallthru
    _
  // Predicated region
  $region14: #{resnet18_with_mlp.24} parent=0 // pred_check
    _
  $region15: #{resnet18_with_mlp.24} parent=0 // pred_check_branch
    %16 = sbr.rel (0) target = $region17
  $region16: #{resnet18_with_mlp.24} parent=0 // pred_region
    _
  $region17: #{resnet18_with_mlp.24} parent=0 // pred_fallthru
    _
  %v18 = vld [vmem:[%s0] sm:$0xff]
  %v19 = vld [vmem:[%s0 + $0x8] sm:$0xff]
  %v20 = vld [vmem:[%s0 + $0x10] sm:$0xff]
  %v21 = vld [vmem:[%s0 + $0x18] sm:$0xff]
  %v22 = vld [vmem:[%s0 + $0x20] sm:$0xf]
  %v23 = vld [vmem:[%s1] sm:$0xf]
  %v24 = vld [vmem:[%s1 + $0x4] sm:$0xf]
  %v25 = vld [vmem:[%s1 + $0x8] sm:$0xf]
  %v26 = vld [vmem:[%s1 + $0xc] sm:$0xf]
  %v27 = vld [vmem:[%s1 + $0x10] sm:$0xf]
  %v28 = vld [vmem:[%s1 + $0x14] sm:$0xf]
  %v29 = vld [vmem:[%s1 + $0x18] sm:$0xf]
  %v30 = vld [vmem:[%s1 + $0x1c] sm:$0xf]
  %v31 = vld [vmem:[%s1 + $0x20] sm:$0xf]
  %v32 = vld [vmem:[%s1 + $0x24] sm:$0xf]
  %v33 = vld [vmem:[%s1 + $0x28] sm:$0xf]
  %v34 = vld [vmem:[%s1 + $0x2c] sm:$0xf]
  %v35 = vld [vmem:[%s1 + $0x30] sm:$0xf]
  %v36 = vld [vmem:[%s1 + $0x34] sm:$0xf]
  %v37 = vld [vmem:[%s1 + $0x38] sm:$0xf]
  %v38 = vld [vmem:[%s1 + $0x3c] sm:$0xf]
  %v39 = vld [vmem:[%s1 + $0x40] sm:$0xf]
  %v40 = vld [vmem:[%s1 + $0x44] sm:$0xf]
  %v41 = vld [vmem:[%s1 + $0x48] sm:$0xf]
  %v42 = vld [vmem:[%s1 + $0x4c] sm:$0xf]
  %v43 = vld [vmem:[%s1 + $0x50] sm:$0xf]
  %v44 = vld [vmem:[%s1 + $0x54] sm:$0xf]
  %v45 = vld [vmem:[%s1 + $0x58] sm:$0xf]
  %v46 = vld [vmem:[%s1 + $0x5c] sm:$0xf]
  %v47 = vld [vmem:[%s1 + $0x60] sm:$0xf]
  %v48 = vld [vmem:[%s1 + $0x64] sm:$0xf]
  %v49 = vld [vmem:[%s1 + $0x68] sm:$0xf]
  %v50 = vld [vmem:[%s1 + $0x6c] sm:$0xf]
  %v51 = vld [vmem:[%s1 + $0x70] sm:$0xf]
  %v52 = vld [vmem:[%s1 + $0x74] sm:$0xf]
  %v53 = vld [vmem:[%s1 + $0x78] sm:$0xf]
  %v54 = vld [vmem:[%s1 + $0x7c] sm:$0xf]
  %v55 = vld [vmem:[%s1 + $0x80] sm:$0xf]
  %v56 = vld [vmem:[%s1 + $0x84] sm:$0xf]
  %v57 = vld [vmem:[%s1 + $0x88] sm:$0xf]
  %v58 = vld [vmem:[%s1 + $0x8c] sm:$0xf]
  %v59 = vld [vmem:[%s1 + $0x90] sm:$0xf]
  %v60 = vld [vmem:[%s1 + $0x94] sm:$0xf]
  %v61 = vld [vmem:[%s1 + $0x98] sm:$0xf]
  %v62 = vld [vmem:[%s1 + $0x9c] sm:$0xf]
  %v63 = vld [vmem:[%s1 + $0xa0] sm:$0xf]
  %v64 = vld [vmem:[%s1 + $0xa4] sm:$0xf]
  %v65 = vld [vmem:[%s1 + $0xa8] sm:$0xf]
  %v66 = vld [vmem:[%s1 + $0xac] sm:$0xf]
  %v67 = vld [vmem:[%s1 + $0xb0] sm:$0xf]
  %v68 = vld [vmem:[%s1 + $0xb4] sm:$0xf]
  %v69 = vld [vmem:[%s1 + $0xb8] sm:$0xf]
  %v70 = vld [vmem:[%s1 + $0xbc] sm:$0xf]
  %v71 = vld [vmem:[%s1 + $0xc0] sm:$0xf]
  %v72 = vld [vmem:[%s1 + $0xc4] sm:$0xf]
  %v73 = vld [vmem:[%s1 + $0xc8] sm:$0xf]
  %v74 = vld [vmem:[%s1 + $0xcc] sm:$0xf]
  %v75 = vld [vmem:[%s1 + $0xd0] sm:$0xf]
  %v76 = vld [vmem:[%s1 + $0xd4] sm:$0xf]
  %v77 = vld [vmem:[%s1 + $0xd8] sm:$0xf]
  %v78 = vld [vmem:[%s1 + $0xdc] sm:$0xf]
  %v79 = vld [vmem:[%s1 + $0xe0] sm:$0xf]
  %v80 = vld [vmem:[%s1 + $0xe4] sm:$0xf]
  %v81 = vld [vmem:[%s1 + $0xe8] sm:$0xf]
  %v82 = vld [vmem:[%s1 + $0xec] sm:$0xf]
  %v83 = vld [vmem:[%s1 + $0xf0] sm:$0xf]
  %v84 = vld [vmem:[%s1 + $0xf4] sm:$0xf]
  %v85 = vld [vmem:[%s1 + $0xf8] sm:$0xf]
  %v86 = vld [vmem:[%s1 + $0xfc] sm:$0xf]
  %v87 = vld [vmem:[%s1 + $0x100] sm:$0xf]
  %v88 = vld [vmem:[%s1 + $0x104] sm:$0xf]
  %v89 = vld [vmem:[%s1 + $0x108] sm:$0xf]
  %v90 = vld [vmem:[%s1 + $0x10c] sm:$0xf]
  %v91 = vld [vmem:[%s1 + $0x110] sm:$0xf]
  %v92 = vld [vmem:[%s1 + $0x114] sm:$0xf]
  %v93 = vld [vmem:[%s1 + $0x118] sm:$0xf]
  %v94 = vld [vmem:[%s1 + $0x11c] sm:$0xf]
  %v95 = vld [vmem:[%s1 + $0x120] sm:$0xf]
  %v96 = vld [vmem:[%s1 + $0x124] sm:$0xf]
  %v97 = vld [vmem:[%s1 + $0x128] sm:$0xf]
  %v98 = vld [vmem:[%s1 + $0x12c] sm:$0xf]
  %v99 = vld [vmem:[%s1 + $0x130] sm:$0xf]
  %v100 = vld [vmem:[%s1 + $0x134] sm:$0xf]
  %v101 = vld [vmem:[%s1 + $0x138] sm:$0xf]
  %v102 = vld [vmem:[%s1 + $0x13c] sm:$0xf]
  %v103 = vld [vmem:[%s1 + $0x140] sm:$0xf]
  %v104 = vld [vmem:[%s1 + $0x144] sm:$0xf]
  %v105 = vld [vmem:[%s1 + $0x148] sm:$0xf]
  %v106 = vld [vmem:[%s1 + $0x14c] sm:$0xf]
  %v107 = vld [vmem:[%s1 + $0x150] sm:$0xf]
  %v108 = vld [vmem:[%s1 + $0x154] sm:$0xf]
  %v109 = vld [vmem:[%s1 + $0x158] sm:$0xf]
  %v110 = vld [vmem:[%s1 + $0x15c] sm:$0xf]
  %v111 = vld [vmem:[%s1 + $0x160] sm:$0xf]
  %v112 = vld [vmem:[%s1 + $0x164] sm:$0xf]
  %v113 = vld [vmem:[%s1 + $0x168] sm:$0xf]
  %v114 = vld [vmem:[%s1 + $0x16c] sm:$0xf]
  %v115 = vld [vmem:[%s1 + $0x170] sm:$0xf]
  %v116 = vld [vmem:[%s1 + $0x174] sm:$0xf]
  %v117 = vld [vmem:[%s1 + $0x178] sm:$0xf]
  %v118 = vld [vmem:[%s1 + $0x17c] sm:$0xf]
  %v119 = vld [vmem:[%s1 + $0x180] sm:$0xf]
  %v120 = vld [vmem:[%s1 + $0x184] sm:$0xf]
  %v121 = vld [vmem:[%s1 + $0x188] sm:$0xf]
  %v122 = vld [vmem:[%s1 + $0x18c] sm:$0xf]
  %v123 = vld [vmem:[%s1 + $0x190] sm:$0xf]
  %v124 = vld [vmem:[%s1 + $0x194] sm:$0xf]
  %v125 = vld [vmem:[%s1 + $0x198] sm:$0xf]
  %v126 = vld [vmem:[%s1 + $0x19c] sm:$0xf]
  %v127 = vld [vmem:[%s1 + $0x1a0] sm:$0xf]
  %v128 = vld [vmem:[%s1 + $0x1a4] sm:$0xf]
  %v129 = vld [vmem:[%s1 + $0x1a8] sm:$0xf]
  %v130 = vld [vmem:[%s1 + $0x1ac] sm:$0xf]
  %v131 = vld [vmem:[%s1 + $0x1b0] sm:$0xf]
  %v132 = vld [vmem:[%s1 + $0x1b4] sm:$0xf]
  %v133 = vld [vmem:[%s1 + $0x1b8] sm:$0xf]
  %v134 = vld [vmem:[%s1 + $0x1bc] sm:$0xf]
  %v135 = vld [vmem:[%s1 + $0x1c0] sm:$0xf]
  %v136 = vld [vmem:[%s1 + $0x1c4] sm:$0xf]
  %v137 = vld [vmem:[%s1 + $0x1c8] sm:$0xf]
  %v138 = vld [vmem:[%s1 + $0x1cc] sm:$0xf]
  %v139 = vld [vmem:[%s1 + $0x1d0] sm:$0xf]
  %v140 = vld [vmem:[%s1 + $0x1d4] sm:$0xf]
  %v141 = vld [vmem:[%s1 + $0x1d8] sm:$0xf]
  %v142 = vld [vmem:[%s1 + $0x1dc] sm:$0xf]
  %v143 = vld [vmem:[%s1 + $0x1e0] sm:$0xf]
  %v144 = vld [vmem:[%s1 + $0x1e4] sm:$0xf]
  %v145 = vld [vmem:[%s1 + $0x1e8] sm:$0xf]
  %v146 = vld [vmem:[%s1 + $0x1ec] sm:$0xf]
  %v147 = vld [vmem:[%s1 + $0x1f0] sm:$0xf]
  %v148 = vld [vmem:[%s1 + $0x1f4] sm:$0xf]
  %v149 = vld [vmem:[%s1 + $0x1f8] sm:$0xf]
  %v150 = vld [vmem:[%s1 + $0x1fc] sm:$0xf]
  %v151 = vld [vmem:[%s1 + $0x200] sm:$0xf]
  %v152 = vld [vmem:[%s1 + $0x204] sm:$0xf]
  %v153 = vld [vmem:[%s1 + $0x208] sm:$0xf]
  %v154 = vld [vmem:[%s1 + $0x20c] sm:$0xf]
  %v155 = vld [vmem:[%s1 + $0x210] sm:$0xf]
  %v156 = vld [vmem:[%s1 + $0x214] sm:$0xf]
  %v157 = vld [vmem:[%s1 + $0x218] sm:$0xf]
  %v158 = vld [vmem:[%s1 + $0x21c] sm:$0xf]
  %v159 = vld [vmem:[%s1 + $0x220] sm:$0xf]
  %v160 = vld [vmem:[%s1 + $0x224] sm:$0xf]
  %v161 = vld [vmem:[%s1 + $0x228] sm:$0xf]
  %v162 = vld [vmem:[%s1 + $0x22c] sm:$0xf]
  %v163 = vld [vmem:[%s1 + $0x230] sm:$0xf]
  %v164 = vld [vmem:[%s1 + $0x234] sm:$0xf]
  %v165 = vld [vmem:[%s1 + $0x238] sm:$0xf]
  %v166 = vld [vmem:[%s1 + $0x23c] sm:$0xf]
  %v167 = vld [vmem:[%s2] sm:$0x1]
  %v169 = vlaneseq
  %v170 = vshrl.u32 %v169, 7
  %v171 = vsub.s32 0, %v170
  %v172 = vrot.slane %v167, %v171
  %v179 = vunpack.c.l.b16 %v18
  %v180 = vunpack.c.h.b16 %v18
  %v181 = vunpack.c.l.b16 %v19
  %v182 = vunpack.c.h.b16 %v19
  %v183 = vunpack.c.l.b16 %v20
  %v184 = vunpack.c.h.b16 %v20
  %v185 = vunpack.c.l.b16 %v21
  %v186 = vunpack.c.h.b16 %v21
  %v187 = vunpack.c.l.b16 %v22
  %v188 = vpack.c.b16 %v179, %v179
  %v189 = vpack.c.b16 %v180, %v180
  %v190 = vpack.c.b16 %v181, %v181
  %v191 = vpack.c.b16 %v182, %v182
  %v192 = vpack.c.b16 %v183, %v183
  %v193 = vpack.c.b16 %v184, %v184
  %v194 = vpack.c.b16 %v185, %v185
  %v195 = vpack.c.b16 %v186, %v186
  %v196 = vpack.c.b16 %v187, %v187
  %v350 = vunpack.c.l.b16 %v23
  %v351 = vunpack.c.l.b16 %v24
  %v352 = vunpack.c.l.b16 %v25
  %v353 = vunpack.c.l.b16 %v26
  %v354 = vunpack.c.l.b16 %v27
  %v355 = vunpack.c.l.b16 %v28
  %v356 = vunpack.c.l.b16 %v29
  %v357 = vunpack.c.l.b16 %v30
  %v358 = vunpack.c.l.b16 %v31
  %v359 = vunpack.c.l.b16 %v32
  %v360 = vunpack.c.l.b16 %v33
  %v361 = vunpack.c.l.b16 %v34
  %v362 = vunpack.c.l.b16 %v35
  %v363 = vunpack.c.l.b16 %v36
  %v364 = vunpack.c.l.b16 %v37
  %v365 = vunpack.c.l.b16 %v38
  %v366 = vunpack.c.l.b16 %v39
  %v367 = vunpack.c.l.b16 %v40
  %v368 = vunpack.c.l.b16 %v41
  %v369 = vunpack.c.l.b16 %v42
  %v370 = vunpack.c.l.b16 %v43
  %v371 = vunpack.c.l.b16 %v44
  %v372 = vunpack.c.l.b16 %v45
  %v373 = vunpack.c.l.b16 %v46
  %v374 = vunpack.c.l.b16 %v47
  %v375 = vunpack.c.l.b16 %v48
  %v376 = vunpack.c.l.b16 %v49
  %v377 = vunpack.c.l.b16 %v50
  %v378 = vunpack.c.l.b16 %v51
  %v379 = vunpack.c.l.b16 %v52
  %v380 = vunpack.c.l.b16 %v53
  %v381 = vunpack.c.l.b16 %v54
  %v382 = vunpack.c.l.b16 %v55
  %v383 = vunpack.c.l.b16 %v56
  %v384 = vunpack.c.l.b16 %v57
  %v385 = vunpack.c.l.b16 %v58
  %v386 = vunpack.c.l.b16 %v59
  %v387 = vunpack.c.l.b16 %v60
  %v388 = vunpack.c.l.b16 %v61
  %v389 = vunpack.c.l.b16 %v62
  %v390 = vunpack.c.l.b16 %v63
  %v391 = vunpack.c.l.b16 %v64
  %v392 = vunpack.c.l.b16 %v65
  %v393 = vunpack.c.l.b16 %v66
  %v394 = vunpack.c.l.b16 %v67
  %v395 = vunpack.c.l.b16 %v68
  %v396 = vunpack.c.l.b16 %v69
  %v397 = vunpack.c.l.b16 %v70
  %v398 = vunpack.c.l.b16 %v71
  %v399 = vunpack.c.l.b16 %v72
  %v400 = vunpack.c.l.b16 %v73
  %v401 = vunpack.c.l.b16 %v74
  %v402 = vunpack.c.l.b16 %v75
  %v403 = vunpack.c.l.b16 %v76
  %v404 = vunpack.c.l.b16 %v77
  %v405 = vunpack.c.l.b16 %v78
  %v406 = vunpack.c.l.b16 %v79
  %v407 = vunpack.c.l.b16 %v80
  %v408 = vunpack.c.l.b16 %v81
  %v409 = vunpack.c.l.b16 %v82
  %v410 = vunpack.c.l.b16 %v83
  %v411 = vunpack.c.l.b16 %v84
  %v412 = vunpack.c.l.b16 %v85
  %v413 = vunpack.c.l.b16 %v86
  %v414 = vunpack.c.l.b16 %v87
  %v415 = vunpack.c.l.b16 %v88
  %v416 = vunpack.c.l.b16 %v89
  %v417 = vunpack.c.l.b16 %v90
  %v418 = vunpack.c.l.b16 %v91
  %v419 = vunpack.c.l.b16 %v92
  %v420 = vunpack.c.l.b16 %v93
  %v421 = vunpack.c.l.b16 %v94
  %v422 = vunpack.c.l.b16 %v95
  %v423 = vunpack.c.l.b16 %v96
  %v424 = vunpack.c.l.b16 %v97
  %v425 = vunpack.c.l.b16 %v98
  %v426 = vunpack.c.l.b16 %v99
  %v427 = vunpack.c.l.b16 %v100
  %v428 = vunpack.c.l.b16 %v101
  %v429 = vunpack.c.l.b16 %v102
  %v430 = vunpack.c.l.b16 %v103
  %v431 = vunpack.c.l.b16 %v104
  %v432 = vunpack.c.l.b16 %v105
  %v433 = vunpack.c.l.b16 %v106
  %v434 = vunpack.c.l.b16 %v107
  %v435 = vunpack.c.l.b16 %v108
  %v436 = vunpack.c.l.b16 %v109
  %v437 = vunpack.c.l.b16 %v110
  %v438 = vunpack.c.l.b16 %v111
  %v439 = vunpack.c.l.b16 %v112
  %v440 = vunpack.c.l.b16 %v113
  %v441 = vunpack.c.l.b16 %v114
  %v442 = vunpack.c.l.b16 %v115
  %v443 = vunpack.c.l.b16 %v116
  %v444 = vunpack.c.l.b16 %v117
  %v445 = vunpack.c.l.b16 %v118
  %v446 = vunpack.c.l.b16 %v119
  %v447 = vunpack.c.l.b16 %v120
  %v448 = vunpack.c.l.b16 %v121
  %v449 = vunpack.c.l.b16 %v122
  %v450 = vunpack.c.l.b16 %v123
  %v451 = vunpack.c.l.b16 %v124
  %v452 = vunpack.c.l.b16 %v125
  %v453 = vunpack.c.l.b16 %v126
  %v454 = vunpack.c.l.b16 %v127
  %v455 = vunpack.c.l.b16 %v128
  %v456 = vunpack.c.l.b16 %v129
  %v457 = vunpack.c.l.b16 %v130
  %v458 = vunpack.c.l.b16 %v131
  %v459 = vunpack.c.l.b16 %v132
  %v460 = vunpack.c.l.b16 %v133
  %v461 = vunpack.c.l.b16 %v134
  %v462 = vunpack.c.l.b16 %v135
  %v463 = vunpack.c.l.b16 %v136
  %v464 = vunpack.c.l.b16 %v137
  %v465 = vunpack.c.l.b16 %v138
  %v466 = vunpack.c.l.b16 %v139
  %v467 = vunpack.c.l.b16 %v140
  %v468 = vunpack.c.l.b16 %v141
  %v469 = vunpack.c.l.b16 %v142
  %v470 = vunpack.c.l.b16 %v143
  %v471 = vunpack.c.l.b16 %v144
  %v472 = vunpack.c.l.b16 %v145
  %v473 = vunpack.c.l.b16 %v146
  %v474 = vunpack.c.l.b16 %v147
  %v475 = vunpack.c.l.b16 %v148
  %v476 = vunpack.c.l.b16 %v149
  %v477 = vunpack.c.l.b16 %v150
  %v478 = vunpack.c.l.b16 %v151
  %v479 = vunpack.c.l.b16 %v152
  %v480 = vunpack.c.l.b16 %v153
  %v481 = vunpack.c.l.b16 %v154
  %v482 = vunpack.c.l.b16 %v155
  %v483 = vunpack.c.l.b16 %v156
  %v484 = vunpack.c.l.b16 %v157
  %v485 = vunpack.c.l.b16 %v158
  %v486 = vunpack.c.l.b16 %v159
  %v487 = vunpack.c.l.b16 %v160
  %v488 = vunpack.c.l.b16 %v161
  %v489 = vunpack.c.l.b16 %v162
  %v490 = vunpack.c.l.b16 %v163
  %v491 = vunpack.c.l.b16 %v164
  %v492 = vunpack.c.l.b16 %v165
  %v493 = vunpack.c.l.b16 %v166
  %v494 = vpack.c.b16 %v351, %v350
  %v495 = vpack.c.b16 %v353, %v352
  %v496 = vpack.c.b16 %v355, %v354
  %v497 = vpack.c.b16 %v357, %v356
  %v498 = vpack.c.b16 %v359, %v358
  %v499 = vpack.c.b16 %v361, %v360
  %v500 = vpack.c.b16 %v363, %v362
  %v501 = vpack.c.b16 %v365, %v364
  %v502 = vpack.c.b16 %v367, %v366
  %v503 = vpack.c.b16 %v369, %v368
  %v504 = vpack.c.b16 %v371, %v370
  %v505 = vpack.c.b16 %v373, %v372
  %v506 = vpack.c.b16 %v375, %v374
  %v507 = vpack.c.b16 %v377, %v376
  %v508 = vpack.c.b16 %v379, %v378
  %v509 = vpack.c.b16 %v381, %v380
  %v510 = vpack.c.b16 %v383, %v382
  %v511 = vpack.c.b16 %v385, %v384
  %v512 = vpack.c.b16 %v387, %v386
  %v513 = vpack.c.b16 %v389, %v388
  %v514 = vpack.c.b16 %v391, %v390
  %v515 = vpack.c.b16 %v393, %v392
  %v516 = vpack.c.b16 %v395, %v394
  %v517 = vpack.c.b16 %v397, %v396
  %v518 = vpack.c.b16 %v399, %v398
  %v519 = vpack.c.b16 %v401, %v400
  %v520 = vpack.c.b16 %v403, %v402
  %v521 = vpack.c.b16 %v405, %v404
  %v522 = vpack.c.b16 %v407, %v406
  %v523 = vpack.c.b16 %v409, %v408
  %v524 = vpack.c.b16 %v411, %v410
  %v525 = vpack.c.b16 %v413, %v412
  %v526 = vpack.c.b16 %v415, %v414
  %v527 = vpack.c.b16 %v417, %v416
  %v528 = vpack.c.b16 %v419, %v418
  %v529 = vpack.c.b16 %v421, %v420
  %v530 = vpack.c.b16 %v423, %v422
  %v531 = vpack.c.b16 %v425, %v424
  %v532 = vpack.c.b16 %v427, %v426
  %v533 = vpack.c.b16 %v429, %v428
  %v534 = vpack.c.b16 %v431, %v430
  %v535 = vpack.c.b16 %v433, %v432
  %v536 = vpack.c.b16 %v435, %v434
  %v537 = vpack.c.b16 %v437, %v436
  %v538 = vpack.c.b16 %v439, %v438
  %v539 = vpack.c.b16 %v441, %v440
  %v540 = vpack.c.b16 %v443, %v442
  %v541 = vpack.c.b16 %v445, %v444
  %v542 = vpack.c.b16 %v447, %v446
  %v543 = vpack.c.b16 %v449, %v448
  %v544 = vpack.c.b16 %v451, %v450
  %v545 = vpack.c.b16 %v453, %v452
  %v546 = vpack.c.b16 %v455, %v454
  %v547 = vpack.c.b16 %v457, %v456
  %v548 = vpack.c.b16 %v459, %v458
  %v549 = vpack.c.b16 %v461, %v460
  %v550 = vpack.c.b16 %v463, %v462
  %v551 = vpack.c.b16 %v465, %v464
  %v552 = vpack.c.b16 %v467, %v466
  %v553 = vpack.c.b16 %v469, %v468
  %v554 = vpack.c.b16 %v471, %v470
  %v555 = vpack.c.b16 %v473, %v472
  %v556 = vpack.c.b16 %v475, %v474
  %v557 = vpack.c.b16 %v477, %v476
  %v558 = vpack.c.b16 %v479, %v478
  %v559 = vpack.c.b16 %v481, %v480
  %v560 = vpack.c.b16 %v483, %v482
  %v561 = vpack.c.b16 %v485, %v484
  %v562 = vpack.c.b16 %v487, %v486
  %v563 = vpack.c.b16 %v489, %v488
  %v564 = vpack.c.b16 %v491, %v490
  %v565 = vpack.c.b16 %v493, %v492
  %638 = vmatprep.subr.bf16.mxu0 0
  %639 = vmatpush1.bf16.msra.mxu0 %v494
  %640 = vmatprep.subr.bf16.mxu0 0
  %641 = vmatpush1.bf16.msra.mxu0 %v495
  %642 = vmatprep.subr.bf16.mxu0 0
  %643 = vmatpush1.bf16.msra.mxu0 %v496
  %644 = vmatprep.subr.bf16.mxu0 0
  %645 = vmatpush1.bf16.msra.mxu0 %v497
  %646 = vmatprep.subr.bf16.mxu0 0
  %647 = vmatpush1.bf16.msra.mxu0 %v498
  %648 = vmatprep.subr.bf16.mxu0 0
  %649 = vmatpush1.bf16.msra.mxu0 %v499
  %650 = vmatprep.subr.bf16.mxu0 0
  %651 = vmatpush1.bf16.msra.mxu0 %v500
  %652 = vmatprep.subr.bf16.mxu0 0
  %653 = vmatpush1.bf16.msra.mxu0 %v501
  %654 = vmatprep.subr.bf16.mxu0 0
  %655 = vmatpush1.bf16.msra.mxu0 %v502
  %656 = vmatprep.subr.bf16.mxu0 0
  %657 = vmatpush1.bf16.msra.mxu0 %v503
  %658 = vmatprep.subr.bf16.mxu0 0
  %659 = vmatpush1.bf16.msra.mxu0 %v504
  %660 = vmatprep.subr.bf16.mxu0 0
  %661 = vmatpush1.bf16.msra.mxu0 %v505
  %662 = vmatprep.subr.bf16.mxu0 0
  %663 = vmatpush1.bf16.msra.mxu0 %v506
  %664 = vmatprep.subr.bf16.mxu0 0
  %665 = vmatpush1.bf16.msra.mxu0 %v507
  %666 = vmatprep.subr.bf16.mxu0 0
  %667 = vmatpush1.bf16.msra.mxu0 %v508
  %668 = vmatprep.subr.bf16.mxu0 0
  %669 = vmatpush1.bf16.msra.mxu0 %v509
  %670 = vmatprep.mubr.bf16.mxu0 %v189
  %671 = vmatmul.mubr.bf16.gmra.mrb[0].mxu0 %v188
  %v672 = vpop.f32.mrb[0].mxu0
  %v673 = vadd.f32 %v172, %v672
  %v674 = vpop.f32.mrb[0].mxu0
  %v675 = vpop.f32.mrb[0].mxu0
  %v676 = vpop.f32.mrb[0].mxu0
  %677 = vdwg.mxu0
  %678 = vmatprep.subr.bf16.mxu0 0
  %679 = vmatpush1.bf16.msra.mxu0 %v510
  %680 = vmatprep.subr.bf16.mxu0 0
  %681 = vmatpush1.bf16.msra.mxu0 %v511
  %682 = vmatprep.subr.bf16.mxu0 0
  %683 = vmatpush1.bf16.msra.mxu0 %v512
  %684 = vmatprep.subr.bf16.mxu0 0
  %685 = vmatpush1.bf16.msra.mxu0 %v513
  %686 = vmatprep.subr.bf16.mxu0 0
  %687 = vmatpush1.bf16.msra.mxu0 %v514
  %688 = vmatprep.subr.bf16.mxu0 0
  %689 = vmatpush1.bf16.msra.mxu0 %v515
  %690 = vmatprep.subr.bf16.mxu0 0
  %691 = vmatpush1.bf16.msra.mxu0 %v516
  %692 = vmatprep.subr.bf16.mxu0 0
  %693 = vmatpush1.bf16.msra.mxu0 %v517
  %694 = vmatprep.subr.bf16.mxu0 0
  %695 = vmatpush1.bf16.msra.mxu0 %v518
  %696 = vmatprep.subr.bf16.mxu0 0
  %697 = vmatpush1.bf16.msra.mxu0 %v519
  %698 = vmatprep.subr.bf16.mxu0 0
  %699 = vmatpush1.bf16.msra.mxu0 %v520
  %700 = vmatprep.subr.bf16.mxu0 0
  %701 = vmatpush1.bf16.msra.mxu0 %v521
  %702 = vmatprep.subr.bf16.mxu0 0
  %703 = vmatpush1.bf16.msra.mxu0 %v522
  %704 = vmatprep.subr.bf16.mxu0 0
  %705 = vmatpush1.bf16.msra.mxu0 %v523
  %706 = vmatprep.subr.bf16.mxu0 0
  %707 = vmatpush1.bf16.msra.mxu0 %v524
  %708 = vmatprep.subr.bf16.mxu0 0
  %709 = vmatpush1.bf16.msra.mxu0 %v525
  %710 = vmatprep.mubr.bf16.mxu0 %v191
  %711 = vmatmul.mubr.bf16.gmra.mrb[0].mxu0 %v190
  %v712 = vpop.f32.mrb[0].mxu0
  %v713 = vadd.f32 %v673, %v712
  %v714 = vpop.f32.mrb[0].mxu0
  %v715 = vpop.f32.mrb[0].mxu0
  %v716 = vpop.f32.mrb[0].mxu0
  %717 = vdwg.mxu0
  %718 = vmatprep.subr.bf16.mxu0 0
  %719 = vmatpush1.bf16.msra.mxu0 %v526
  %720 = vmatprep.subr.bf16.mxu0 0
  %721 = vmatpush1.bf16.msra.mxu0 %v527
  %722 = vmatprep.subr.bf16.mxu0 0
  %723 = vmatpush1.bf16.msra.mxu0 %v528
  %724 = vmatprep.subr.bf16.mxu0 0
  %725 = vmatpush1.bf16.msra.mxu0 %v529
  %726 = vmatprep.subr.bf16.mxu0 0
  %727 = vmatpush1.bf16.msra.mxu0 %v530
  %728 = vmatprep.subr.bf16.mxu0 0
  %729 = vmatpush1.bf16.msra.mxu0 %v531
  %730 = vmatprep.subr.bf16.mxu0 0
  %731 = vmatpush1.bf16.msra.mxu0 %v532
  %732 = vmatprep.subr.bf16.mxu0 0
  %733 = vmatpush1.bf16.msra.mxu0 %v533
  %734 = vmatprep.subr.bf16.mxu0 0
  %735 = vmatpush1.bf16.msra.mxu0 %v534
  %736 = vmatprep.subr.bf16.mxu0 0
  %737 = vmatpush1.bf16.msra.mxu0 %v535
  %738 = vmatprep.subr.bf16.mxu0 0
  %739 = vmatpush1.bf16.msra.mxu0 %v536
  %740 = vmatprep.subr.bf16.mxu0 0
  %741 = vmatpush1.bf16.msra.mxu0 %v537
  %742 = vmatprep.subr.bf16.mxu0 0
  %743 = vmatpush1.bf16.msra.mxu0 %v538
  %744 = vmatprep.subr.bf16.mxu0 0
  %745 = vmatpush1.bf16.msra.mxu0 %v539
  %746 = vmatprep.subr.bf16.mxu0 0
  %747 = vmatpush1.bf16.msra.mxu0 %v540
  %748 = vmatprep.subr.bf16.mxu0 0
  %749 = vmatpush1.bf16.msra.mxu0 %v541
  %750 = vmatprep.mubr.bf16.mxu0 %v193
  %751 = vmatmul.mubr.bf16.gmra.mrb[0].mxu0 %v192
  %v752 = vpop.f32.mrb[0].mxu0
  %v753 = vadd.f32 %v713, %v752
  %v754 = vpop.f32.mrb[0].mxu0
  %v755 = vpop.f32.mrb[0].mxu0
  %v756 = vpop.f32.mrb[0].mxu0
  %757 = vdwg.mxu0
  %758 = vmatprep.subr.bf16.mxu0 0
  %759 = vmatpush1.bf16.msra.mxu0 %v542
  %760 = vmatprep.subr.bf16.mxu0 0
  %761 = vmatpush1.bf16.msra.mxu0 %v543
  %762 = vmatprep.subr.bf16.mxu0 0
  %763 = vmatpush1.bf16.msra.mxu0 %v544
  %764 = vmatprep.subr.bf16.mxu0 0
  %765 = vmatpush1.bf16.msra.mxu0 %v545
  %766 = vmatprep.subr.bf16.mxu0 0
  %767 = vmatpush1.bf16.msra.mxu0 %v546
  %768 = vmatprep.subr.bf16.mxu0 0
  %769 = vmatpush1.bf16.msra.mxu0 %v547
  %770 = vmatprep.subr.bf16.mxu0 0
  %771 = vmatpush1.bf16.msra.mxu0 %v548
  %772 = vmatprep.subr.bf16.mxu0 0
  %773 = vmatpush1.bf16.msra.mxu0 %v549
  %774 = vmatprep.subr.bf16.mxu0 0
  %775 = vmatpush1.bf16.msra.mxu0 %v550
  %776 = vmatprep.subr.bf16.mxu0 0
  %777 = vmatpush1.bf16.msra.mxu0 %v551
  %778 = vmatprep.subr.bf16.mxu0 0
  %779 = vmatpush1.bf16.msra.mxu0 %v552
  %780 = vmatprep.subr.bf16.mxu0 0
  %781 = vmatpush1.bf16.msra.mxu0 %v553
  %782 = vmatprep.subr.bf16.mxu0 0
  %783 = vmatpush1.bf16.msra.mxu0 %v554
  %784 = vmatprep.subr.bf16.mxu0 0
  %785 = vmatpush1.bf16.msra.mxu0 %v555
  %786 = vmatprep.subr.bf16.mxu0 0
  %787 = vmatpush1.bf16.msra.mxu0 %v556
  %788 = vmatprep.subr.bf16.mxu0 0
  %789 = vmatpush1.bf16.msra.mxu0 %v557
  %790 = vmatprep.mubr.bf16.mxu0 %v195
  %791 = vmatmul.mubr.bf16.gmra.mrb[0].mxu0 %v194
  %v792 = vpop.f32.mrb[0].mxu0
  %v793 = vadd.f32 %v753, %v792
  %v794 = vpop.f32.mrb[0].mxu0
  %v795 = vpop.f32.mrb[0].mxu0
  %v796 = vpop.f32.mrb[0].mxu0
  %797 = vdwg.mxu0
  %798 = vmatprep.subr.bf16.mxu0 0
  %799 = vmatpush1.bf16.msra.mxu0 %v558
  %800 = vmatprep.subr.bf16.mxu0 0
  %801 = vmatpush1.bf16.msra.mxu0 %v559
  %802 = vmatprep.subr.bf16.mxu0 0
  %803 = vmatpush1.bf16.msra.mxu0 %v560
  %804 = vmatprep.subr.bf16.mxu0 0
  %805 = vmatpush1.bf16.msra.mxu0 %v561
  %806 = vmatprep.subr.bf16.mxu0 0
  %807 = vmatpush1.bf16.msra.mxu0 %v562
  %808 = vmatprep.subr.bf16.mxu0 0
  %809 = vmatpush1.bf16.msra.mxu0 %v563
  %810 = vmatprep.subr.bf16.mxu0 0
  %811 = vmatpush1.bf16.msra.mxu0 %v564
  %812 = vmatprep.subr.bf16.mxu0 0
  %813 = vmatpush1.bf16.msra.mxu0 %v565
  %814 = vmatprep.subr.bf16.mxu0 0
  %815 = vmatpush1.bf16.msra.mxu0 0
  %816 = vmatprep.subr.bf16.mxu0 0
  %817 = vmatpush1.bf16.msra.mxu0 0
  %818 = vmatprep.subr.bf16.mxu0 0
  %819 = vmatpush1.bf16.msra.mxu0 0
  %820 = vmatprep.subr.bf16.mxu0 0
  %821 = vmatpush1.bf16.msra.mxu0 0
  %822 = vmatprep.subr.bf16.mxu0 0
  %823 = vmatpush1.bf16.msra.mxu0 0
  %824 = vmatprep.subr.bf16.mxu0 0
  %825 = vmatpush1.bf16.msra.mxu0 0
  %826 = vmatprep.subr.bf16.mxu0 0
  %827 = vmatpush1.bf16.msra.mxu0 0
  %828 = vmatprep.subr.bf16.mxu0 0
  %829 = vmatpush1.bf16.msra.mxu0 0
  %830 = vmatprep.mubr.bf16.mxu0 0
  %831 = vmatmul.mubr.bf16.gmra.mrb[0].mxu0 %v196
  %v832 = vpop.f32.mrb[0].mxu0
  %v833 = vadd.f32 %v793, %v832
  %v834 = vpop.f32.mrb[0].mxu0
  %v835 = vpop.f32.mrb[0].mxu0
  %v836 = vpop.f32.mrb[0].mxu0
  %837 = vdwg.mxu0
  %v838 = vld [vmem:[%s3] sm:$0xff]
  %v839 = vadd.f32 %v833, %v838
  %v840 = vmax.f32 %v839, 0.0
  %841 = vst [vmem:[%s4] sm:$0xff] %v840
  // Predicated region
  $region18: #{resnet18_with_mlp.24} parent=0 // pred_check
    _
  $region19: #{resnet18_with_mlp.24} parent=0 // pred_check_branch
    %843 = sbr.rel (0) target = $region21
  $region20: #{resnet18_with_mlp.24} parent=0 // pred_region
    _
  $region21: #{resnet18_with_mlp.24} parent=0 // pred_fallthru
    _
  // Predicated region
  $region22: #{resnet18_with_mlp.24} parent=0 // pred_check
    _
  $region23: #{resnet18_with_mlp.24} parent=0 // pred_check_branch
    %845 = sbr.rel (0) target = $region25
  $region24: #{resnet18_with_mlp.24} parent=0 // pred_region
    _
  $region25: #{resnet18_with_mlp.24} parent=0 // pred_fallthru
    _

// kernel: resnet18_with_mlp.26
$region0: #{resnet18_with_mlp.26}
  #allocation0 [shape = 'u32[]', space=smem, size = 0x4, offset = 0x4, fixed_abs, tag = 'smem constant byte address 0x4 - core index']
  #allocation1 [shape = 'u32[144,128]{1,0:T(1,128)}', space=vmem, size = 0x12000, scoped, tag = 'internal scratch']
  %s0 = inlined_call_operand.vmem [shape: f32[2,256], index: 0, kind: input, shape index: {}]
  %s1 = inlined_call_operand.vmem [shape: bf16[256,256], index: 1, kind: input, shape index: {}]
  %s2 = inlined_call_operand.vmem [shape: f32[1,256], index: 2, kind: input, shape index: {}]
  %s3 = inlined_call_operand.vmem [shape: bf16[256,256], index: 3, kind: input, shape index: {}]
  %s4 = inlined_call_operand.vmem [shape: f32[1,256], index: 4, kind: input, shape index: {}]
  %s5 = inlined_call_operand.vmem [shape: f32[2,256], index: 5, kind: output, shape index: {}]
  %s6 = sld [smem:[#allocation0]]
  $region30: #{resnet18_with_mlp.26} parent=0
    _
  %s8 = ssub.s32 1, %s6
  %s9 = scalar_select 0, %s8, %s6
  // Predicated region
  $region2: #{resnet18_with_mlp.26} parent=0 // pred_check
    _
  $region3: #{resnet18_with_mlp.26} parent=0 // pred_check_branch
    %11 = sbr.rel (0) target = $region5
  $region4: #{resnet18_with_mlp.26} parent=0 // pred_region
    _
  $region5: #{resnet18_with_mlp.26} parent=0 // pred_fallthru
    _
  // Predicated region
  $region6: #{resnet18_with_mlp.26} parent=0 // pred_check
    _
  $region7: #{resnet18_with_mlp.26} parent=0 // pred_check_branch
    %13 = sbr.rel (0) target = $region9
  $region8: #{resnet18_with_mlp.26} parent=0 // pred_region
    _
  $region9: #{resnet18_with_mlp.26} parent=0 // pred_fallthru
    _
  // Predicated region
  $region10: #{resnet18_with_mlp.26} parent=0 // pred_check
    _
  $region11: #{resnet18_with_mlp.26} parent=0 // pred_check_branch
    %15 = sbr.rel (0) target = $region13
  $region12: #{resnet18_with_mlp.26} parent=0 // pred_region
    _
  $region13: #{resnet18_with_mlp.26} parent=0 // pred_fallthru
    _
  // Predicated region
  $region14: #{resnet18_with_mlp.26} parent=0 // pred_check
    _
  $region15: #{resnet18_with_mlp.26} parent=0 // pred_check_branch
    %17 = sbr.rel (0) target = $region17
  $region16: #{resnet18_with_mlp.26} parent=0 // pred_region
    _
  $region17: #{resnet18_with_mlp.26} parent=0 // pred_fallthru
    _
  // Predicated region
  $region18: #{resnet18_with_mlp.26} parent=0 // pred_check
    _
  $region19: #{resnet18_with_mlp.26} parent=0 // pred_check_branch
    %19 = sbr.rel (0) target = $region21
  $region20: #{resnet18_with_mlp.26} parent=0 // pred_region
    _
  $region21: #{resnet18_with_mlp.26} parent=0 // pred_fallthru
    _
  %v20 = vld [vmem:[%s0] sm:$0xf]
  %v23 = vunpack.c.l.s4 1983009808
  %v24 = vunpack.c.0.s8 %v23
  %v25 = vlaneseq
  %v26 = vshrl.u32 %v25, 7
  %v27 = vsub.s32 %v24, %v26
  %v28 = vrot.slane %v20, %v27
  %v29 = vcombine.high %v28, %v28
  %v32 = vpack.c.bf16 %v28, %v28
  %v33 = vpack.c.bf16 %v29, %v29
  %v34 = vld [vmem:[%s1] sm:$0xff]
  %v35 = vld [vmem:[%s1 + $0x8] sm:$0xff]
  %v36 = vld [vmem:[%s1 + $0x10] sm:$0xff]
  %v37 = vld [vmem:[%s1 + $0x18] sm:$0xff]
  %v38 = vld [vmem:[%s1 + $0x20] sm:$0xff]
  %v39 = vld [vmem:[%s1 + $0x28] sm:$0xff]
  %v40 = vld [vmem:[%s1 + $0x30] sm:$0xff]
  %v41 = vld [vmem:[%s1 + $0x38] sm:$0xff]
  %v42 = vld [vmem:[%s1 + $0x40] sm:$0xff]
  %v43 = vld [vmem:[%s1 + $0x48] sm:$0xff]
  %v44 = vld [vmem:[%s1 + $0x50] sm:$0xff]
  %v45 = vld [vmem:[%s1 + $0x58] sm:$0xff]
  %v46 = vld [vmem:[%s1 + $0x60] sm:$0xff]
  %v47 = vld [vmem:[%s1 + $0x68] sm:$0xff]
  %v48 = vld [vmem:[%s1 + $0x70] sm:$0xff]
  %v49 = vld [vmem:[%s1 + $0x78] sm:$0xff]
  %v50 = vld [vmem:[%s1 + $0x80] sm:$0xff]
  %v51 = vld [vmem:[%s1 + $0x88] sm:$0xff]
  %v52 = vld [vmem:[%s1 + $0x90] sm:$0xff]
  %v53 = vld [vmem:[%s1 + $0x98] sm:$0xff]
  %v54 = vld [vmem:[%s1 + $0xa0] sm:$0xff]
  %v55 = vld [vmem:[%s1 + $0xa8] sm:$0xff]
  %v56 = vld [vmem:[%s1 + $0xb0] sm:$0xff]
  %v57 = vld [vmem:[%s1 + $0xb8] sm:$0xff]
  %v58 = vld [vmem:[%s1 + $0xc0] sm:$0xff]
  %v59 = vld [vmem:[%s1 + $0xc8] sm:$0xff]
  %v60 = vld [vmem:[%s1 + $0xd0] sm:$0xff]
  %v61 = vld [vmem:[%s1 + $0xd8] sm:$0xff]
  %v62 = vld [vmem:[%s1 + $0xe0] sm:$0xff]
  %v63 = vld [vmem:[%s1 + $0xe8] sm:$0xff]
  %v64 = vld [vmem:[%s1 + $0xf0] sm:$0xff]
  %v65 = vld [vmem:[%s1 + $0xf8] sm:$0xff]
  %v66 = vld [vmem:[%s2] sm:$0x3]
  %v68 = vlaneseq
  %v69 = vshrl.u32 %v68, 7
  %v70 = vsub.s32 0, %v69
  %v71 = vrot.slane %v66, %v70
  %v72 = vlaneseq
  %v73 = vshrl.u32 %v72, 7
  %v74 = vsub.s32 1, %v73
  %v75 = vrot.slane %v66, %v74
  %v110 = vunpack.c.l.b16 %v34
  %v111 = vunpack.c.h.b16 %v34
  %v112 = vunpack.c.l.b16 %v35
  %v113 = vunpack.c.h.b16 %v35
  %v114 = vunpack.c.l.b16 %v36
  %v115 = vunpack.c.h.b16 %v36
  %v116 = vunpack.c.l.b16 %v37
  %v117 = vunpack.c.h.b16 %v37
  %v118 = vunpack.c.l.b16 %v38
  %v119 = vunpack.c.h.b16 %v38
  %v120 = vunpack.c.l.b16 %v39
  %v121 = vunpack.c.h.b16 %v39
  %v122 = vunpack.c.l.b16 %v40
  %v123 = vunpack.c.h.b16 %v40
  %v124 = vunpack.c.l.b16 %v41
  %v125 = vunpack.c.h.b16 %v41
  %v126 = vunpack.c.l.b16 %v42
  %v127 = vunpack.c.h.b16 %v42
  %v128 = vunpack.c.l.b16 %v43
  %v129 = vunpack.c.h.b16 %v43
  %v130 = vunpack.c.l.b16 %v44
  %v131 = vunpack.c.h.b16 %v44
  %v132 = vunpack.c.l.b16 %v45
  %v133 = vunpack.c.h.b16 %v45
  %v134 = vunpack.c.l.b16 %v46
  %v135 = vunpack.c.h.b16 %v46
  %v136 = vunpack.c.l.b16 %v47
  %v137 = vunpack.c.h.b16 %v47
  %v138 = vunpack.c.l.b16 %v48
  %v139 = vunpack.c.h.b16 %v48
  %v140 = vunpack.c.l.b16 %v49
  %v141 = vunpack.c.h.b16 %v49
  %v142 = vunpack.c.l.b16 %v50
  %v143 = vunpack.c.h.b16 %v50
  %v144 = vunpack.c.l.b16 %v51
  %v145 = vunpack.c.h.b16 %v51
  %v146 = vunpack.c.l.b16 %v52
  %v147 = vunpack.c.h.b16 %v52
  %v148 = vunpack.c.l.b16 %v53
  %v149 = vunpack.c.h.b16 %v53
  %v150 = vunpack.c.l.b16 %v54
  %v151 = vunpack.c.h.b16 %v54
  %v152 = vunpack.c.l.b16 %v55
  %v153 = vunpack.c.h.b16 %v55
  %v154 = vunpack.c.l.b16 %v56
  %v155 = vunpack.c.h.b16 %v56
  %v156 = vunpack.c.l.b16 %v57
  %v157 = vunpack.c.h.b16 %v57
  %v158 = vunpack.c.l.b16 %v58
  %v159 = vunpack.c.h.b16 %v58
  %v160 = vunpack.c.l.b16 %v59
  %v161 = vunpack.c.h.b16 %v59
  %v162 = vunpack.c.l.b16 %v60
  %v163 = vunpack.c.h.b16 %v60
  %v164 = vunpack.c.l.b16 %v61
  %v165 = vunpack.c.h.b16 %v61
  %v166 = vunpack.c.l.b16 %v62
  %v167 = vunpack.c.h.b16 %v62
  %v168 = vunpack.c.l.b16 %v63
  %v169 = vunpack.c.h.b16 %v63
  %v170 = vunpack.c.l.b16 %v64
  %v171 = vunpack.c.h.b16 %v64
  %v172 = vunpack.c.l.b16 %v65
  %v173 = vunpack.c.h.b16 %v65
  %v174 = vpack.c.b16 %v112, %v110
  %v175 = vpack.c.b16 %v113, %v111
  %v176 = vpack.c.b16 %v116, %v114
  %v177 = vpack.c.b16 %v117, %v115
  %v178 = vpack.c.b16 %v120, %v118
  %v179 = vpack.c.b16 %v121, %v119
  %v180 = vpack.c.b16 %v124, %v122
  %v181 = vpack.c.b16 %v125, %v123
  %v182 = vpack.c.b16 %v128, %v126
  %v183 = vpack.c.b16 %v129, %v127
  %v184 = vpack.c.b16 %v132, %v130
  %v185 = vpack.c.b16 %v133, %v131
  %v186 = vpack.c.b16 %v136, %v134
  %v187 = vpack.c.b16 %v137, %v135
  %v188 = vpack.c.b16 %v140, %v138
  %v189 = vpack.c.b16 %v141, %v139
  %v190 = vpack.c.b16 %v144, %v142
  %v191 = vpack.c.b16 %v145, %v143
  %v192 = vpack.c.b16 %v148, %v146
  %v193 = vpack.c.b16 %v149, %v147
  %v194 = vpack.c.b16 %v152, %v150
  %v195 = vpack.c.b16 %v153, %v151
  %v196 = vpack.c.b16 %v156, %v154
  %v197 = vpack.c.b16 %v157, %v155
  %v198 = vpack.c.b16 %v160, %v158
  %v199 = vpack.c.b16 %v161, %v159
  %v200 = vpack.c.b16 %v164, %v162
  %v201 = vpack.c.b16 %v165, %v163
  %v202 = vpack.c.b16 %v168, %v166
  %v203 = vpack.c.b16 %v169, %v167
  %v204 = vpack.c.b16 %v172, %v170
  %v205 = vpack.c.b16 %v173, %v171
  %238 = vmatprep.subr.bf16.mxu0 %v175
  %239 = vmatpush1.bf16.msra.mxu0 %v174
  %240 = vmatprep.subr.bf16.mxu0 %v177
  %241 = vmatpush1.bf16.msra.mxu0 %v176
  %242 = vmatprep.subr.bf16.mxu0 %v179
  %243 = vmatpush1.bf16.msra.mxu0 %v178
  %244 = vmatprep.subr.bf16.mxu0 %v181
  %245 = vmatpush1.bf16.msra.mxu0 %v180
  %246 = vmatprep.subr.bf16.mxu0 %v183
  %247 = vmatpush1.bf16.msra.mxu0 %v182
  %248 = vmatprep.subr.bf16.mxu0 %v185
  %249 = vmatpush1.bf16.msra.mxu0 %v184
  %250 = vmatprep.subr.bf16.mxu0 %v187
  %251 = vmatpush1.bf16.msra.mxu0 %v186
  %252 = vmatprep.subr.bf16.mxu0 %v189
  %253 = vmatpush1.bf16.msra.mxu0 %v188
  %254 = vmatprep.subr.bf16.mxu0 %v191
  %255 = vmatpush1.bf16.msra.mxu0 %v190
  %256 = vmatprep.subr.bf16.mxu0 %v193
  %257 = vmatpush1.bf16.msra.mxu0 %v192
  %258 = vmatprep.subr.bf16.mxu0 %v195
  %259 = vmatpush1.bf16.msra.mxu0 %v194
  %260 = vmatprep.subr.bf16.mxu0 %v197
  %261 = vmatpush1.bf16.msra.mxu0 %v196
  %262 = vmatprep.subr.bf16.mxu0 %v199
  %263 = vmatpush1.bf16.msra.mxu0 %v198
  %264 = vmatprep.subr.bf16.mxu0 %v201
  %265 = vmatpush1.bf16.msra.mxu0 %v200
  %266 = vmatprep.subr.bf16.mxu0 %v203
  %267 = vmatpush1.bf16.msra.mxu0 %v202
  %268 = vmatprep.subr.bf16.mxu0 %v205
  %269 = vmatpush1.bf16.msra.mxu0 %v204
  %270 = vmatprep.mubr.bf16.mxu0 %v33
  %271 = vmatmul.mubr.bf16.gmra.mrb[0].mxu0 %v32
  %v272 = vpop.f32.mrb[0].mxu0
  %v273 = vadd.f32 %v71, %v272
  %v274 = vpop.f32.mrb[0].mxu0
  %v275 = vadd.f32 %v75, %v274
  %v276 = vpop.f32.mrb[0].mxu0
  %v277 = vpop.f32.mrb[0].mxu0
  %278 = vdwg.mxu0
  %v279 = vmax.f32 %v273, 0.0
  %v280 = vmax.f32 %v275, 0.0
  %v281 = vpack.c.bf16 %v279, %v279
  %v282 = vpack.c.bf16 %v280, %v280
  %v283 = vld [vmem:[%s3] sm:$0xff]
  %v284 = vld [vmem:[%s3 + $0x8] sm:$0xff]
  %v285 = vld [vmem:[%s3 + $0x10] sm:$0xff]
  %v286 = vld [vmem:[%s3 + $0x18] sm:$0xff]
  %v287 = vld [vmem:[%s3 + $0x20] sm:$0xff]
  %v288 = vld [vmem:[%s3 + $0x28] sm:$0xff]
  %v289 = vld [vmem:[%s3 + $0x30] sm:$0xff]
  %v290 = vld [vmem:[%s3 + $0x38] sm:$0xff]
  %v291 = vld [vmem:[%s3 + $0x40] sm:$0xff]
  %v292 = vld [vmem:[%s3 + $0x48] sm:$0xff]
  %v293 = vld [vmem:[%s3 + $0x50] sm:$0xff]
  %v294 = vld [vmem:[%s3 + $0x58] sm:$0xff]
  %v295 = vld [vmem:[%s3 + $0x60] sm:$0xff]
  %v296 = vld [vmem:[%s3 + $0x68] sm:$0xff]
  %v297 = vld [vmem:[%s3 + $0x70] sm:$0xff]
  %v298 = vld [vmem:[%s3 + $0x78] sm:$0xff]
  %v299 = vld [vmem:[%s3 + $0x80] sm:$0xff]
  %v300 = vld [vmem:[%s3 + $0x88] sm:$0xff]
  %v301 = vld [vmem:[%s3 + $0x90] sm:$0xff]
  %v302 = vld [vmem:[%s3 + $0x98] sm:$0xff]
  %v303 = vld [vmem:[%s3 + $0xa0] sm:$0xff]
  %v304 = vld [vmem:[%s3 + $0xa8] sm:$0xff]
  %v305 = vld [vmem:[%s3 + $0xb0] sm:$0xff]
  %v306 = vld [vmem:[%s3 + $0xb8] sm:$0xff]
  %v307 = vld [vmem:[%s3 + $0xc0] sm:$0xff]
  %v308 = vld [vmem:[%s3 + $0xc8] sm:$0xff]
  %v309 = vld [vmem:[%s3 + $0xd0] sm:$0xff]
  %v310 = vld [vmem:[%s3 + $0xd8] sm:$0xff]
  %v311 = vld [vmem:[%s3 + $0xe0] sm:$0xff]
  %v312 = vld [vmem:[%s3 + $0xe8] sm:$0xff]
  %v313 = vld [vmem:[%s3 + $0xf0] sm:$0xff]
  %v314 = vld [vmem:[%s3 + $0xf8] sm:$0xff]
  %v315 = vld [vmem:[%s4] sm:$0x3]
  %v317 = vlaneseq
  %v318 = vshrl.u32 %v317, 7
  %v319 = vsub.s32 0, %v318
  %v320 = vrot.slane %v315, %v319
  %v321 = vlaneseq
  %v322 = vshrl.u32 %v321, 7
  %v323 = vsub.s32 1, %v322
  %v324 = vrot.slane %v315, %v323
  %v359 = vunpack.c.l.b16 %v283
  %v360 = vunpack.c.h.b16 %v283
  %v361 = vunpack.c.l.b16 %v284
  %v362 = vunpack.c.h.b16 %v284
  %v363 = vunpack.c.l.b16 %v285
  %v364 = vunpack.c.h.b16 %v285
  %v365 = vunpack.c.l.b16 %v286
  %v366 = vunpack.c.h.b16 %v286
  %v367 = vunpack.c.l.b16 %v287
  %v368 = vunpack.c.h.b16 %v287
  %v369 = vunpack.c.l.b16 %v288
  %v370 = vunpack.c.h.b16 %v288
  %v371 = vunpack.c.l.b16 %v289
  %v372 = vunpack.c.h.b16 %v289
  %v373 = vunpack.c.l.b16 %v290
  %v374 = vunpack.c.h.b16 %v290
  %v375 = vunpack.c.l.b16 %v291
  %v376 = vunpack.c.h.b16 %v291
  %v377 = vunpack.c.l.b16 %v292
  %v378 = vunpack.c.h.b16 %v292
  %v379 = vunpack.c.l.b16 %v293
  %v380 = vunpack.c.h.b16 %v293
  %v381 = vunpack.c.l.b16 %v294
  %v382 = vunpack.c.h.b16 %v294
  %v383 = vunpack.c.l.b16 %v295
  %v384 = vunpack.c.h.b16 %v295
  %v385 = vunpack.c.l.b16 %v296
  %v386 = vunpack.c.h.b16 %v296
  %v387 = vunpack.c.l.b16 %v297
  %v388 = vunpack.c.h.b16 %v297
  %v389 = vunpack.c.l.b16 %v298
  %v390 = vunpack.c.h.b16 %v298
  %v391 = vunpack.c.l.b16 %v299
  %v392 = vunpack.c.h.b16 %v299
  %v393 = vunpack.c.l.b16 %v300
  %v394 = vunpack.c.h.b16 %v300
  %v395 = vunpack.c.l.b16 %v301
  %v396 = vunpack.c.h.b16 %v301
  %v397 = vunpack.c.l.b16 %v302
  %v398 = vunpack.c.h.b16 %v302
  %v399 = vunpack.c.l.b16 %v303
  %v400 = vunpack.c.h.b16 %v303
  %v401 = vunpack.c.l.b16 %v304
  %v402 = vunpack.c.h.b16 %v304
  %v403 = vunpack.c.l.b16 %v305
  %v404 = vunpack.c.h.b16 %v305
  %v405 = vunpack.c.l.b16 %v306
  %v406 = vunpack.c.h.b16 %v306
  %v407 = vunpack.c.l.b16 %v307
  %v408 = vunpack.c.h.b16 %v307
  %v409 = vunpack.c.l.b16 %v308
  %v410 = vunpack.c.h.b16 %v308
  %v411 = vunpack.c.l.b16 %v309
  %v412 = vunpack.c.h.b16 %v309
  %v413 = vunpack.c.l.b16 %v310
  %v414 = vunpack.c.h.b16 %v310
  %v415 = vunpack.c.l.b16 %v311
  %v416 = vunpack.c.h.b16 %v311
  %v417 = vunpack.c.l.b16 %v312
  %v418 = vunpack.c.h.b16 %v312
  %v419 = vunpack.c.l.b16 %v313
  %v420 = vunpack.c.h.b16 %v313
  %v421 = vunpack.c.l.b16 %v314
  %v422 = vunpack.c.h.b16 %v314
  %v423 = vpack.c.b16 %v361, %v359
  %v424 = vpack.c.b16 %v362, %v360
  %v425 = vpack.c.b16 %v365, %v363
  %v426 = vpack.c.b16 %v366, %v364
  %v427 = vpack.c.b16 %v369, %v367
  %v428 = vpack.c.b16 %v370, %v368
  %v429 = vpack.c.b16 %v373, %v371
  %v430 = vpack.c.b16 %v374, %v372
  %v431 = vpack.c.b16 %v377, %v375
  %v432 = vpack.c.b16 %v378, %v376
  %v433 = vpack.c.b16 %v381, %v379
  %v434 = vpack.c.b16 %v382, %v380
  %v435 = vpack.c.b16 %v385, %v383
  %v436 = vpack.c.b16 %v386, %v384
  %v437 = vpack.c.b16 %v389, %v387
  %v438 = vpack.c.b16 %v390, %v388
  %v439 = vpack.c.b16 %v393, %v391
  %v440 = vpack.c.b16 %v394, %v392
  %v441 = vpack.c.b16 %v397, %v395
  %v442 = vpack.c.b16 %v398, %v396
  %v443 = vpack.c.b16 %v401, %v399
  %v444 = vpack.c.b16 %v402, %v400
  %v445 = vpack.c.b16 %v405, %v403
  %v446 = vpack.c.b16 %v406, %v404
  %v447 = vpack.c.b16 %v409, %v407
  %v448 = vpack.c.b16 %v410, %v408
  %v449 = vpack.c.b16 %v413, %v411
  %v450 = vpack.c.b16 %v414, %v412
  %v451 = vpack.c.b16 %v417, %v415
  %v452 = vpack.c.b16 %v418, %v416
  %v453 = vpack.c.b16 %v421, %v419
  %v454 = vpack.c.b16 %v422, %v420
  %487 = vmatprep.subr.bf16.mxu0 %v424
  %488 = vmatpush1.bf16.msra.mxu0 %v423
  %489 = vmatprep.subr.bf16.mxu0 %v426
  %490 = vmatpush1.bf16.msra.mxu0 %v425
  %491 = vmatprep.subr.bf16.mxu0 %v428
  %492 = vmatpush1.bf16.msra.mxu0 %v427
  %493 = vmatprep.subr.bf16.mxu0 %v430
  %494 = vmatpush1.bf16.msra.mxu0 %v429
  %495 = vmatprep.subr.bf16.mxu0 %v432
  %496 = vmatpush1.bf16.msra.mxu0 %v431
  %497 = vmatprep.subr.bf16.mxu0 %v434
  %498 = vmatpush1.bf16.msra.mxu0 %v433
  %499 = vmatprep.subr.bf16.mxu0 %v436
  %500 = vmatpush1.bf16.msra.mxu0 %v435
  %501 = vmatprep.subr.bf16.mxu0 %v438
  %502 = vmatpush1.bf16.msra.mxu0 %v437
  %503 = vmatprep.subr.bf16.mxu0 %v440
  %504 = vmatpush1.bf16.msra.mxu0 %v439
  %505 = vmatprep.subr.bf16.mxu0 %v442
  %506 = vmatpush1.bf16.msra.mxu0 %v441
  %507 = vmatprep.subr.bf16.mxu0 %v444
  %508 = vmatpush1.bf16.msra.mxu0 %v443
  %509 = vmatprep.subr.bf16.mxu0 %v446
  %510 = vmatpush1.bf16.msra.mxu0 %v445
  %511 = vmatprep.subr.bf16.mxu0 %v448
  %512 = vmatpush1.bf16.msra.mxu0 %v447
  %513 = vmatprep.subr.bf16.mxu0 %v450
  %514 = vmatpush1.bf16.msra.mxu0 %v449
  %515 = vmatprep.subr.bf16.mxu0 %v452
  %516 = vmatpush1.bf16.msra.mxu0 %v451
  %517 = vmatprep.subr.bf16.mxu0 %v454
  %518 = vmatpush1.bf16.msra.mxu0 %v453
  %519 = vmatprep.mubr.bf16.mxu0 %v282
  %520 = vmatmul.mubr.bf16.gmra.mrb[0].mxu0 %v281
  %v521 = vpop.f32.mrb[0].mxu0
  %v522 = vadd.f32 %v320, %v521
  %v523 = vpop.f32.mrb[0].mxu0
  %v524 = vadd.f32 %v324, %v523
  %v525 = vpop.f32.mrb[0].mxu0
  %v526 = vpop.f32.mrb[0].mxu0
  %527 = vdwg.mxu0
  %v528 = vadd.f32 %v522, %v28
  %v529 = vadd.f32 %v524, %v29
  %v530 = vmax.f32 %v528, 0.0
  %v531 = vmax.f32 %v529, 0.0
  %v534 = vcombine.low %v530, %v531
  %v536 = vunpack.c.l.s4 1983009808
  %v537 = vunpack.c.0.s8 %v536
  %v538 = vlaneseq
  %v539 = vshrl.u32 %v538, 7
  %v540 = vsub.s32 %v537, %v539
  %v541 = vrot.slane %v534, %v540
  %543 = vst [vmem:[%s5] sm:$0xf] %v541
  // Predicated region
  $region22: #{resnet18_with_mlp.26} parent=0 // pred_check
    _
  $region23: #{resnet18_with_mlp.26} parent=0 // pred_check_branch
    %545 = sbr.rel (0) target = $region25
  $region24: #{resnet18_with_mlp.26} parent=0 // pred_region
    _
  $region25: #{resnet18_with_mlp.26} parent=0 // pred_fallthru
    _
  // Predicated region
  $region26: #{resnet18_with_mlp.26} parent=0 // pred_check
    _
  $region27: #{resnet18_with_mlp.26} parent=0 // pred_check_branch
    %547 = sbr.rel (0) target = $region29
  $region28: #{resnet18_with_mlp.26} parent=0 // pred_region
    _
  $region29: #{resnet18_with_mlp.26} parent=0 // pred_fallthru
    _

// kernel: resnet18_with_mlp.28
$region0: #{resnet18_with_mlp.28}
  #allocation0 [shape = 'u32[]', space=smem, size = 0x4, offset = 0x4, fixed_abs, tag = 'smem constant byte address 0x4 - core index']
  #allocation1 [shape = 'u32[144,128]{1,0:T(1,128)}', space=vmem, size = 0x12000, scoped, tag = 'internal scratch']
  %s0 = inlined_call_operand.vmem [shape: f32[2,512], index: 0, kind: input, shape index: {}]
  %s1 = inlined_call_operand.vmem [shape: bf16[512,512], index: 1, kind: input, shape index: {}]
  %s2 = inlined_call_operand.vmem [shape: f32[1,512], index: 2, kind: input, shape index: {}]
  %s3 = inlined_call_operand.vmem [shape: bf16[512,512], index: 3, kind: input, shape index: {}]
  %s4 = inlined_call_operand.vmem [shape: f32[1,512], index: 4, kind: input, shape index: {}]
  %s5 = inlined_call_operand.vmem [shape: f32[2,512], index: 5, kind: output, shape index: {}]
  %s6 = sld [smem:[#allocation0]]
  $region30: #{resnet18_with_mlp.28} parent=0
    _
  %s8 = ssub.s32 1, %s6
  %s9 = scalar_select 0, %s8, %s6
  // Predicated region
  $region2: #{resnet18_with_mlp.28} parent=0 // pred_check
    _
  $region3: #{resnet18_with_mlp.28} parent=0 // pred_check_branch
    %11 = sbr.rel (0) target = $region5
  $region4: #{resnet18_with_mlp.28} parent=0 // pred_region
    _
  $region5: #{resnet18_with_mlp.28} parent=0 // pred_fallthru
    _
  // Predicated region
  $region6: #{resnet18_with_mlp.28} parent=0 // pred_check
    _
  $region7: #{resnet18_with_mlp.28} parent=0 // pred_check_branch
    %13 = sbr.rel (0) target = $region9
  $region8: #{resnet18_with_mlp.28} parent=0 // pred_region
    _
  $region9: #{resnet18_with_mlp.28} parent=0 // pred_fallthru
    _
  // Predicated region
  $region10: #{resnet18_with_mlp.28} parent=0 // pred_check
    _
  $region11: #{resnet18_with_mlp.28} parent=0 // pred_check_branch
    %15 = sbr.rel (0) target = $region13
  $region12: #{resnet18_with_mlp.28} parent=0 // pred_region
    _
  $region13: #{resnet18_with_mlp.28} parent=0 // pred_fallthru
    _
  // Predicated region
  $region14: #{resnet18_with_mlp.28} parent=0 // pred_check
    _
  $region15: #{resnet18_with_mlp.28} parent=0 // pred_check_branch
    %17 = sbr.rel (0) target = $region17
  $region16: #{resnet18_with_mlp.28} parent=0 // pred_region
    _
  $region17: #{resnet18_with_mlp.28} parent=0 // pred_fallthru
    _
  // Predicated region
  $region18: #{resnet18_with_mlp.28} parent=0 // pred_check
    _
  $region19: #{resnet18_with_mlp.28} parent=0 // pred_check_branch
    %19 = sbr.rel (0) target = $region21
  $region20: #{resnet18_with_mlp.28} parent=0 // pred_region
    _
  $region21: #{resnet18_with_mlp.28} parent=0 // pred_fallthru
    _
  %v20 = vld [vmem:[%s0] sm:$0xff]
  %v22 = vcombine.high %v20, %v20
  %v24 = vunpack.c.l.s4 1983009808
  %v25 = vunpack.c.0.s8 %v24
  %v26 = vlaneseq
  %v27 = vshrl.u32 %v26, 7
  %v28 = vsub.s32 %v25, %v27
  %v29 = vrot.slane %v20, %v28
  %v31 = vunpack.c.l.s4 1983009808
  %v32 = vunpack.c.0.s8 %v31
  %v33 = vlaneseq
  %v34 = vshrl.u32 %v33, 7
  %v35 = vsub.s32 %v32, %v34
  %v36 = vrot.slane %v22, %v35
  %v37 = vcombine.high %v29, %v29
  %v38 = vcombine.high %v36, %v36
  %v43 = vpack.c.bf16 %v29, %v29
  %v44 = vpack.c.bf16 %v37, %v37
  %v45 = vpack.c.bf16 %v36, %v36
  %v46 = vpack.c.bf16 %v38, %v38
  %v47 = vld [vmem:[%s1] sm:$0xff]
  %v48 = vld [vmem:[%s1 + $0x8] sm:$0xff]
  %v49 = vld [vmem:[%s1 + $0x10] sm:$0xff]
  %v50 = vld [vmem:[%s1 + $0x18] sm:$0xff]
  %v51 = vld [vmem:[%s1 + $0x20] sm:$0xff]
  %v52 = vld [vmem:[%s1 + $0x28] sm:$0xff]
  %v53 = vld [vmem:[%s1 + $0x30] sm:$0xff]
  %v54 = vld [vmem:[%s1 + $0x38] sm:$0xff]
  %v55 = vld [vmem:[%s1 + $0x40] sm:$0xff]
  %v56 = vld [vmem:[%s1 + $0x48] sm:$0xff]
  %v57 = vld [vmem:[%s1 + $0x50] sm:$0xff]
  %v58 = vld [vmem:[%s1 + $0x58] sm:$0xff]
  %v59 = vld [vmem:[%s1 + $0x60] sm:$0xff]
  %v60 = vld [vmem:[%s1 + $0x68] sm:$0xff]
  %v61 = vld [vmem:[%s1 + $0x70] sm:$0xff]
  %v62 = vld [vmem:[%s1 + $0x78] sm:$0xff]
  %v63 = vld [vmem:[%s1 + $0x80] sm:$0xff]
  %v64 = vld [vmem:[%s1 + $0x88] sm:$0xff]
  %v65 = vld [vmem:[%s1 + $0x90] sm:$0xff]
  %v66 = vld [vmem:[%s1 + $0x98] sm:$0xff]
  %v67 = vld [vmem:[%s1 + $0xa0] sm:$0xff]
  %v68 = vld [vmem:[%s1 + $0xa8] sm:$0xff]
  %v69 = vld [vmem:[%s1 + $0xb0] sm:$0xff]
  %v70 = vld [vmem:[%s1 + $0xb8] sm:$0xff]
  %v71 = vld [vmem:[%s1 + $0xc0] sm:$0xff]
  %v72 = vld [vmem:[%s1 + $0xc8] sm:$0xff]
  %v73 = vld [vmem:[%s1 + $0xd0] sm:$0xff]
  %v74 = vld [vmem:[%s1 + $0xd8] sm:$0xff]
  %v75 = vld [vmem:[%s1 + $0xe0] sm:$0xff]
  %v76 = vld [vmem:[%s1 + $0xe8] sm:$0xff]
  %v77 = vld [vmem:[%s1 + $0xf0] sm:$0xff]
  %v78 = vld [vmem:[%s1 + $0xf8] sm:$0xff]
  %v79 = vld [vmem:[%s1 + $0x100] sm:$0xff]
  %v80 = vld [vmem:[%s1 + $0x108] sm:$0xff]
  %v81 = vld [vmem:[%s1 + $0x110] sm:$0xff]
  %v82 = vld [vmem:[%s1 + $0x118] sm:$0xff]
  %v83 = vld [vmem:[%s1 + $0x120] sm:$0xff]
  %v84 = vld [vmem:[%s1 + $0x128] sm:$0xff]
  %v85 = vld [vmem:[%s1 + $0x130] sm:$0xff]
  %v86 = vld [vmem:[%s1 + $0x138] sm:$0xff]
  %v87 = vld [vmem:[%s1 + $0x140] sm:$0xff]
  %v88 = vld [vmem:[%s1 + $0x148] sm:$0xff]
  %v89 = vld [vmem:[%s1 + $0x150] sm:$0xff]
  %v90 = vld [vmem:[%s1 + $0x158] sm:$0xff]
  %v91 = vld [vmem:[%s1 + $0x160] sm:$0xff]
  %v92 = vld [vmem:[%s1 + $0x168] sm:$0xff]
  %v93 = vld [vmem:[%s1 + $0x170] sm:$0xff]
  %v94 = vld [vmem:[%s1 + $0x178] sm:$0xff]
  %v95 = vld [vmem:[%s1 + $0x180] sm:$0xff]
  %v96 = vld [vmem:[%s1 + $0x188] sm:$0xff]
  %v97 = vld [vmem:[%s1 + $0x190] sm:$0xff]
  %v98 = vld [vmem:[%s1 + $0x198] sm:$0xff]
  %v99 = vld [vmem:[%s1 + $0x1a0] sm:$0xff]
  %v100 = vld [vmem:[%s1 + $0x1a8] sm:$0xff]
  %v101 = vld [vmem:[%s1 + $0x1b0] sm:$0xff]
  %v102 = vld [vmem:[%s1 + $0x1b8] sm:$0xff]
  %v103 = vld [vmem:[%s1 + $0x1c0] sm:$0xff]
  %v104 = vld [vmem:[%s1 + $0x1c8] sm:$0xff]
  %v105 = vld [vmem:[%s1 + $0x1d0] sm:$0xff]
  %v106 = vld [vmem:[%s1 + $0x1d8] sm:$0xff]
  %v107 = vld [vmem:[%s1 + $0x1e0] sm:$0xff]
  %v108 = vld [vmem:[%s1 + $0x1e8] sm:$0xff]
  %v109 = vld [vmem:[%s1 + $0x1f0] sm:$0xff]
  %v110 = vld [vmem:[%s1 + $0x1f8] sm:$0xff]
  %v111 = vld [vmem:[%s1 + $0x200] sm:$0xff]
  %v112 = vld [vmem:[%s1 + $0x208] sm:$0xff]
  %v113 = vld [vmem:[%s1 + $0x210] sm:$0xff]
  %v114 = vld [vmem:[%s1 + $0x218] sm:$0xff]
  %v115 = vld [vmem:[%s1 + $0x220] sm:$0xff]
  %v116 = vld [vmem:[%s1 + $0x228] sm:$0xff]
  %v117 = vld [vmem:[%s1 + $0x230] sm:$0xff]
  %v118 = vld [vmem:[%s1 + $0x238] sm:$0xff]
  %v119 = vld [vmem:[%s1 + $0x240] sm:$0xff]
  %v120 = vld [vmem:[%s1 + $0x248] sm:$0xff]
  %v121 = vld [vmem:[%s1 + $0x250] sm:$0xff]
  %v122 = vld [vmem:[%s1 + $0x258] sm:$0xff]
  %v123 = vld [vmem:[%s1 + $0x260] sm:$0xff]
  %v124 = vld [vmem:[%s1 + $0x268] sm:$0xff]
  %v125 = vld [vmem:[%s1 + $0x270] sm:$0xff]
  %v126 = vld [vmem:[%s1 + $0x278] sm:$0xff]
  %v127 = vld [vmem:[%s1 + $0x280] sm:$0xff]
  %v128 = vld [vmem:[%s1 + $0x288] sm:$0xff]
  %v129 = vld [vmem:[%s1 + $0x290] sm:$0xff]
  %v130 = vld [vmem:[%s1 + $0x298] sm:$0xff]
  %v131 = vld [vmem:[%s1 + $0x2a0] sm:$0xff]
  %v132 = vld [vmem:[%s1 + $0x2a8] sm:$0xff]
  %v133 = vld [vmem:[%s1 + $0x2b0] sm:$0xff]
  %v134 = vld [vmem:[%s1 + $0x2b8] sm:$0xff]
  %v135 = vld [vmem:[%s1 + $0x2c0] sm:$0xff]
  %v136 = vld [vmem:[%s1 + $0x2c8] sm:$0xff]
  %v137 = vld [vmem:[%s1 + $0x2d0] sm:$0xff]
  %v138 = vld [vmem:[%s1 + $0x2d8] sm:$0xff]
  %v139 = vld [vmem:[%s1 + $0x2e0] sm:$0xff]
  %v140 = vld [vmem:[%s1 + $0x2e8] sm:$0xff]
  %v141 = vld [vmem:[%s1 + $0x2f0] sm:$0xff]
  %v142 = vld [vmem:[%s1 + $0x2f8] sm:$0xff]
  %v143 = vld [vmem:[%s1 + $0x300] sm:$0xff]
  %v144 = vld [vmem:[%s1 + $0x308] sm:$0xff]
  %v145 = vld [vmem:[%s1 + $0x310] sm:$0xff]
  %v146 = vld [vmem:[%s1 + $0x318] sm:$0xff]
  %v147 = vld [vmem:[%s1 + $0x320] sm:$0xff]
  %v148 = vld [vmem:[%s1 + $0x328] sm:$0xff]
  %v149 = vld [vmem:[%s1 + $0x330] sm:$0xff]
  %v150 = vld [vmem:[%s1 + $0x338] sm:$0xff]
  %v151 = vld [vmem:[%s1 + $0x340] sm:$0xff]
  %v152 = vld [vmem:[%s1 + $0x348] sm:$0xff]
  %v153 = vld [vmem:[%s1 + $0x350] sm:$0xff]
  %v154 = vld [vmem:[%s1 + $0x358] sm:$0xff]
  %v155 = vld [vmem:[%s1 + $0x360] sm:$0xff]
  %v156 = vld [vmem:[%s1 + $0x368] sm:$0xff]
  %v157 = vld [vmem:[%s1 + $0x370] sm:$0xff]
  %v158 = vld [vmem:[%s1 + $0x378] sm:$0xff]
  %v159 = vld [vmem:[%s1 + $0x380] sm:$0xff]
  %v160 = vld [vmem:[%s1 + $0x388] sm:$0xff]
  %v161 = vld [vmem:[%s1 + $0x390] sm:$0xff]
  %v162 = vld [vmem:[%s1 + $0x398] sm:$0xff]
  %v163 = vld [vmem:[%s1 + $0x3a0] sm:$0xff]
  %v164 = vld [vmem:[%s1 + $0x3a8] sm:$0xff]
  %v165 = vld [vmem:[%s1 + $0x3b0] sm:$0xff]
  %v166 = vld [vmem:[%s1 + $0x3b8] sm:$0xff]
  %v167 = vld [vmem:[%s1 + $0x3c0] sm:$0xff]
  %v168 = vld [vmem:[%s1 + $0x3c8] sm:$0xff]
  %v169 = vld [vmem:[%s1 + $0x3d0] sm:$0xff]
  %v170 = vld [vmem:[%s1 + $0x3d8] sm:$0xff]
  %v171 = vld [vmem:[%s1 + $0x3e0] sm:$0xff]
  %v172 = vld [vmem:[%s1 + $0x3e8] sm:$0xff]
  %v173 = vld [vmem:[%s1 + $0x3f0] sm:$0xff]
  %v174 = vld [vmem:[%s1 + $0x3f8] sm:$0xff]
  %v175 = vld [vmem:[%s2] sm:$0xf]
  %v177 = vlaneseq
  %v178 = vshrl.u32 %v177, 7
  %v179 = vsub.s32 0, %v178
  %v180 = vrot.slane %v175, %v179
  %v181 = vlaneseq
  %v182 = vshrl.u32 %v181, 7
  %v183 = vsub.s32 1, %v182
  %v184 = vrot.slane %v175, %v183
  %v185 = vlaneseq
  %v186 = vshrl.u32 %v185, 7
  %v187 = vsub.s32 2, %v186
  %v188 = vrot.slane %v175, %v187
  %v189 = vlaneseq
  %v190 = vshrl.u32 %v189, 7
  %v191 = vsub.s32 3, %v190
  %v192 = vrot.slane %v175, %v191
  %v325 = vunpack.c.l.b16 %v47
  %v326 = vunpack.c.h.b16 %v47
  %v327 = vunpack.c.l.b16 %v48
  %v328 = vunpack.c.h.b16 %v48
  %v329 = vunpack.c.l.b16 %v49
  %v330 = vunpack.c.h.b16 %v49
  %v331 = vunpack.c.l.b16 %v50
  %v332 = vunpack.c.h.b16 %v50
  %v333 = vunpack.c.l.b16 %v51
  %v334 = vunpack.c.h.b16 %v51
  %v335 = vunpack.c.l.b16 %v52
  %v336 = vunpack.c.h.b16 %v52
  %v337 = vunpack.c.l.b16 %v53
  %v338 = vunpack.c.h.b16 %v53
  %v339 = vunpack.c.l.b16 %v54
  %v340 = vunpack.c.h.b16 %v54
  %v341 = vunpack.c.l.b16 %v55
  %v342 = vunpack.c.h.b16 %v55
  %v343 = vunpack.c.l.b16 %v56
  %v344 = vunpack.c.h.b16 %v56
  %v345 = vunpack.c.l.b16 %v57
  %v346 = vunpack.c.h.b16 %v57
  %v347 = vunpack.c.l.b16 %v58
  %v348 = vunpack.c.h.b16 %v58
  %v349 = vunpack.c.l.b16 %v59
  %v350 = vunpack.c.h.b16 %v59
  %v351 = vunpack.c.l.b16 %v60
  %v352 = vunpack.c.h.b16 %v60
  %v353 = vunpack.c.l.b16 %v61
  %v354 = vunpack.c.h.b16 %v61
  %v355 = vunpack.c.l.b16 %v62
  %v356 = vunpack.c.h.b16 %v62
  %v357 = vunpack.c.l.b16 %v63
  %v358 = vunpack.c.h.b16 %v63
  %v359 = vunpack.c.l.b16 %v64
  %v360 = vunpack.c.h.b16 %v64
  %v361 = vunpack.c.l.b16 %v65
  %v362 = vunpack.c.h.b16 %v65
  %v363 = vunpack.c.l.b16 %v66
  %v364 = vunpack.c.h.b16 %v66
  %v365 = vunpack.c.l.b16 %v67
  %v366 = vunpack.c.h.b16 %v67
  %v367 = vunpack.c.l.b16 %v68
  %v368 = vunpack.c.h.b16 %v68
  %v369 = vunpack.c.l.b16 %v69
  %v370 = vunpack.c.h.b16 %v69
  %v371 = vunpack.c.l.b16 %v70
  %v372 = vunpack.c.h.b16 %v70
  %v373 = vunpack.c.l.b16 %v71
  %v374 = vunpack.c.h.b16 %v71
  %v375 = vunpack.c.l.b16 %v72
  %v376 = vunpack.c.h.b16 %v72
  %v377 = vunpack.c.l.b16 %v73
  %v378 = vunpack.c.h.b16 %v73
  %v379 = vunpack.c.l.b16 %v74
  %v380 = vunpack.c.h.b16 %v74
  %v381 = vunpack.c.l.b16 %v75
  %v382 = vunpack.c.h.b16 %v75
  %v383 = vunpack.c.l.b16 %v76
  %v384 = vunpack.c.h.b16 %v76
  %v385 = vunpack.c.l.b16 %v77
  %v386 = vunpack.c.h.b16 %v77
  %v387 = vunpack.c.l.b16 %v78
  %v388 = vunpack.c.h.b16 %v78
  %v389 = vunpack.c.l.b16 %v79
  %v390 = vunpack.c.h.b16 %v79
  %v391 = vunpack.c.l.b16 %v80
  %v392 = vunpack.c.h.b16 %v80
  %v393 = vunpack.c.l.b16 %v81
  %v394 = vunpack.c.h.b16 %v81
  %v395 = vunpack.c.l.b16 %v82
  %v396 = vunpack.c.h.b16 %v82
  %v397 = vunpack.c.l.b16 %v83
  %v398 = vunpack.c.h.b16 %v83
  %v399 = vunpack.c.l.b16 %v84
  %v400 = vunpack.c.h.b16 %v84
  %v401 = vunpack.c.l.b16 %v85
  %v402 = vunpack.c.h.b16 %v85
  %v403 = vunpack.c.l.b16 %v86
  %v404 = vunpack.c.h.b16 %v86
  %v405 = vunpack.c.l.b16 %v87
  %v406 = vunpack.c.h.b16 %v87
  %v407 = vunpack.c.l.b16 %v88
  %v408 = vunpack.c.h.b16 %v88
  %v409 = vunpack.c.l.b16 %v89
  %v410 = vunpack.c.h.b16 %v89
  %v411 = vunpack.c.l.b16 %v90
  %v412 = vunpack.c.h.b16 %v90
  %v413 = vunpack.c.l.b16 %v91
  %v414 = vunpack.c.h.b16 %v91
  %v415 = vunpack.c.l.b16 %v92
  %v416 = vunpack.c.h.b16 %v92
  %v417 = vunpack.c.l.b16 %v93
  %v418 = vunpack.c.h.b16 %v93
  %v419 = vunpack.c.l.b16 %v94
  %v420 = vunpack.c.h.b16 %v94
  %v421 = vunpack.c.l.b16 %v95
  %v422 = vunpack.c.h.b16 %v95
  %v423 = vunpack.c.l.b16 %v96
  %v424 = vunpack.c.h.b16 %v96
  %v425 = vunpack.c.l.b16 %v97
  %v426 = vunpack.c.h.b16 %v97
  %v427 = vunpack.c.l.b16 %v98
  %v428 = vunpack.c.h.b16 %v98
  %v429 = vunpack.c.l.b16 %v99
  %v430 = vunpack.c.h.b16 %v99
  %v431 = vunpack.c.l.b16 %v100
  %v432 = vunpack.c.h.b16 %v100
  %v433 = vunpack.c.l.b16 %v101
  %v434 = vunpack.c.h.b16 %v101
  %v435 = vunpack.c.l.b16 %v102
  %v436 = vunpack.c.h.b16 %v102
  %v437 = vunpack.c.l.b16 %v103
  %v438 = vunpack.c.h.b16 %v103
  %v439 = vunpack.c.l.b16 %v104
  %v440 = vunpack.c.h.b16 %v104
  %v441 = vunpack.c.l.b16 %v105
  %v442 = vunpack.c.h.b16 %v105
  %v443 = vunpack.c.l.b16 %v106
  %v444 = vunpack.c.h.b16 %v106
  %v445 = vunpack.c.l.b16 %v107
  %v446 = vunpack.c.h.b16 %v107
  %v447 = vunpack.c.l.b16 %v108
  %v448 = vunpack.c.h.b16 %v108
  %v449 = vunpack.c.l.b16 %v109
  %v450 = vunpack.c.h.b16 %v109
  %v451 = vunpack.c.l.b16 %v110
  %v452 = vunpack.c.h.b16 %v110
  %v453 = vunpack.c.l.b16 %v111
  %v454 = vunpack.c.h.b16 %v111
  %v455 = vunpack.c.l.b16 %v112
  %v456 = vunpack.c.h.b16 %v112
  %v457 = vunpack.c.l.b16 %v113
  %v458 = vunpack.c.h.b16 %v113
  %v459 = vunpack.c.l.b16 %v114
  %v460 = vunpack.c.h.b16 %v114
  %v461 = vunpack.c.l.b16 %v115
  %v462 = vunpack.c.h.b16 %v115
  %v463 = vunpack.c.l.b16 %v116
  %v464 = vunpack.c.h.b16 %v116
  %v465 = vunpack.c.l.b16 %v117
  %v466 = vunpack.c.h.b16 %v117
  %v467 = vunpack.c.l.b16 %v118
  %v468 = vunpack.c.h.b16 %v118
  %v469 = vunpack.c.l.b16 %v119
  %v470 = vunpack.c.h.b16 %v119
  %v471 = vunpack.c.l.b16 %v120
  %v472 = vunpack.c.h.b16 %v120
  %v473 = vunpack.c.l.b16 %v121
  %v474 = vunpack.c.h.b16 %v121
  %v475 = vunpack.c.l.b16 %v122
  %v476 = vunpack.c.h.b16 %v122
  %v477 = vunpack.c.l.b16 %v123
  %v478 = vunpack.c.h.b16 %v123
  %v479 = vunpack.c.l.b16 %v124
  %v480 = vunpack.c.h.b16 %v124
  %v481 = vunpack.c.l.b16 %v125
  %v482 = vunpack.c.h.b16 %v125
  %v483 = vunpack.c.l.b16 %v126
  %v484 = vunpack.c.h.b16 %v126
  %v485 = vunpack.c.l.b16 %v127
  %v486 = vunpack.c.h.b16 %v127
  %v487 = vunpack.c.l.b16 %v128
  %v488 = vunpack.c.h.b16 %v128
  %v489 = vunpack.c.l.b16 %v129
  %v490 = vunpack.c.h.b16 %v129
  %v491 = vunpack.c.l.b16 %v130
  %v492 = vunpack.c.h.b16 %v130
  %v493 = vunpack.c.l.b16 %v131
  %v494 = vunpack.c.h.b16 %v131
  %v495 = vunpack.c.l.b16 %v132
  %v496 = vunpack.c.h.b16 %v132
  %v497 = vunpack.c.l.b16 %v133
  %v498 = vunpack.c.h.b16 %v133
  %v499 = vunpack.c.l.b16 %v134
  %v500 = vunpack.c.h.b16 %v134
  %v501 = vunpack.c.l.b16 %v135
  %v502 = vunpack.c.h.b16 %v135
  %v503 = vunpack.c.l.b16 %v136
  %v504 = vunpack.c.h.b16 %v136
  %v505 = vunpack.c.l.b16 %v137
  %v506 = vunpack.c.h.b16 %v137
  %v507 = vunpack.c.l.b16 %v138
  %v508 = vunpack.c.h.b16 %v138
  %v509 = vunpack.c.l.b16 %v139
  %v510 = vunpack.c.h.b16 %v139
  %v511 = vunpack.c.l.b16 %v140
  %v512 = vunpack.c.h.b16 %v140
  %v513 = vunpack.c.l.b16 %v141
  %v514 = vunpack.c.h.b16 %v141
  %v515 = vunpack.c.l.b16 %v142
  %v516 = vunpack.c.h.b16 %v142
  %v517 = vunpack.c.l.b16 %v143
  %v518 = vunpack.c.h.b16 %v143
  %v519 = vunpack.c.l.b16 %v144
  %v520 = vunpack.c.h.b16 %v144
  %v521 = vunpack.c.l.b16 %v145
  %v522 = vunpack.c.h.b16 %v145
  %v523 = vunpack.c.l.b16 %v146
  %v524 = vunpack.c.h.b16 %v146
  %v525 = vunpack.c.l.b16 %v147
  %v526 = vunpack.c.h.b16 %v147
  %v527 = vunpack.c.l.b16 %v148
  %v528 = vunpack.c.h.b16 %v148
  %v529 = vunpack.c.l.b16 %v149
  %v530 = vunpack.c.h.b16 %v149
  %v531 = vunpack.c.l.b16 %v150
  %v532 = vunpack.c.h.b16 %v150
  %v533 = vunpack.c.l.b16 %v151
  %v534 = vunpack.c.h.b16 %v151
  %v535 = vunpack.c.l.b16 %v152
  %v536 = vunpack.c.h.b16 %v152
  %v537 = vunpack.c.l.b16 %v153
  %v538 = vunpack.c.h.b16 %v153
  %v539 = vunpack.c.l.b16 %v154
  %v540 = vunpack.c.h.b16 %v154
  %v541 = vunpack.c.l.b16 %v155
  %v542 = vunpack.c.h.b16 %v155
  %v543 = vunpack.c.l.b16 %v156
  %v544 = vunpack.c.h.b16 %v156
  %v545 = vunpack.c.l.b16 %v157
  %v546 = vunpack.c.h.b16 %v157
  %v547 = vunpack.c.l.b16 %v158
  %v548 = vunpack.c.h.b16 %v158
  %v549 = vunpack.c.l.b16 %v159
  %v550 = vunpack.c.h.b16 %v159
  %v551 = vunpack.c.l.b16 %v160
  %v552 = vunpack.c.h.b16 %v160
  %v553 = vunpack.c.l.b16 %v161
  %v554 = vunpack.c.h.b16 %v161
  %v555 = vunpack.c.l.b16 %v162
  %v556 = vunpack.c.h.b16 %v162
  %v557 = vunpack.c.l.b16 %v163
  %v558 = vunpack.c.h.b16 %v163
  %v559 = vunpack.c.l.b16 %v164
  %v560 = vunpack.c.h.b16 %v164
  %v561 = vunpack.c.l.b16 %v165
  %v562 = vunpack.c.h.b16 %v165
  %v563 = vunpack.c.l.b16 %v166
  %v564 = vunpack.c.h.b16 %v166
  %v565 = vunpack.c.l.b16 %v167
  %v566 = vunpack.c.h.b16 %v167
  %v567 = vunpack.c.l.b16 %v168
  %v568 = vunpack.c.h.b16 %v168
  %v569 = vunpack.c.l.b16 %v169
  %v570 = vunpack.c.h.b16 %v169
  %v571 = vunpack.c.l.b16 %v170
  %v572 = vunpack.c.h.b16 %v170
  %v573 = vunpack.c.l.b16 %v171
  %v574 = vunpack.c.h.b16 %v171
  %v575 = vunpack.c.l.b16 %v172
  %v576 = vunpack.c.h.b16 %v172
  %v577 = vunpack.c.l.b16 %v173
  %v578 = vunpack.c.h.b16 %v173
  %v579 = vunpack.c.l.b16 %v174
  %v580 = vunpack.c.h.b16 %v174
  %v581 = vpack.c.b16 %v329, %v325
  %v582 = vpack.c.b16 %v330, %v326
  %v583 = vpack.c.b16 %v331, %v327
  %v584 = vpack.c.b16 %v332, %v328
  %v585 = vpack.c.b16 %v337, %v333
  %v586 = vpack.c.b16 %v338, %v334
  %v587 = vpack.c.b16 %v339, %v335
  %v588 = vpack.c.b16 %v340, %v336
  %v589 = vpack.c.b16 %v345, %v341
  %v590 = vpack.c.b16 %v346, %v342
  %v591 = vpack.c.b16 %v347, %v343
  %v592 = vpack.c.b16 %v348, %v344
  %v593 = vpack.c.b16 %v353, %v349
  %v594 = vpack.c.b16 %v354, %v350
  %v595 = vpack.c.b16 %v355, %v351
  %v596 = vpack.c.b16 %v356, %v352
  %v597 = vpack.c.b16 %v361, %v357
  %v598 = vpack.c.b16 %v362, %v358
  %v599 = vpack.c.b16 %v363, %v359
  %v600 = vpack.c.b16 %v364, %v360
  %v601 = vpack.c.b16 %v369, %v365
  %v602 = vpack.c.b16 %v370, %v366
  %v603 = vpack.c.b16 %v371, %v367
  %v604 = vpack.c.b16 %v372, %v368
  %v605 = vpack.c.b16 %v377, %v373
  %v606 = vpack.c.b16 %v378, %v374
  %v607 = vpack.c.b16 %v379, %v375
  %v608 = vpack.c.b16 %v380, %v376
  %v609 = vpack.c.b16 %v385, %v381
  %v610 = vpack.c.b16 %v386, %v382
  %v611 = vpack.c.b16 %v387, %v383
  %v612 = vpack.c.b16 %v388, %v384
  %v613 = vpack.c.b16 %v393, %v389
  %v614 = vpack.c.b16 %v394, %v390
  %v615 = vpack.c.b16 %v395, %v391
  %v616 = vpack.c.b16 %v396, %v392
  %v617 = vpack.c.b16 %v401, %v397
  %v618 = vpack.c.b16 %v402, %v398
  %v619 = vpack.c.b16 %v403, %v399
  %v620 = vpack.c.b16 %v404, %v400
  %v621 = vpack.c.b16 %v409, %v405
  %v622 = vpack.c.b16 %v410, %v406
  %v623 = vpack.c.b16 %v411, %v407
  %v624 = vpack.c.b16 %v412, %v408
  %v625 = vpack.c.b16 %v417, %v413
  %v626 = vpack.c.b16 %v418, %v414
  %v627 = vpack.c.b16 %v419, %v415
  %v628 = vpack.c.b16 %v420, %v416
  %v629 = vpack.c.b16 %v425, %v421
  %v630 = vpack.c.b16 %v426, %v422
  %v631 = vpack.c.b16 %v427, %v423
  %v632 = vpack.c.b16 %v428, %v424
  %v633 = vpack.c.b16 %v433, %v429
  %v634 = vpack.c.b16 %v434, %v430
  %v635 = vpack.c.b16 %v435, %v431
  %v636 = vpack.c.b16 %v436, %v432
  %v637 = vpack.c.b16 %v441, %v437
  %v638 = vpack.c.b16 %v442, %v438
  %v639 = vpack.c.b16 %v443, %v439
  %v640 = vpack.c.b16 %v444, %v440
  %v641 = vpack.c.b16 %v449, %v445
  %v642 = vpack.c.b16 %v450, %v446
  %v643 = vpack.c.b16 %v451, %v447
  %v644 = vpack.c.b16 %v452, %v448
  %v645 = vpack.c.b16 %v457, %v453
  %v646 = vpack.c.b16 %v458, %v454
  %v647 = vpack.c.b16 %v459, %v455
  %v648 = vpack.c.b16 %v460, %v456
  %v649 = vpack.c.b16 %v465, %v461
  %v650 = vpack.c.b16 %v466, %v462
  %v651 = vpack.c.b16 %v467, %v463
  %v652 = vpack.c.b16 %v468, %v464
  %v653 = vpack.c.b16 %v473, %v469
  %v654 = vpack.c.b16 %v474, %v470
  %v655 = vpack.c.b16 %v475, %v471
  %v656 = vpack.c.b16 %v476, %v472
  %v657 = vpack.c.b16 %v481, %v477
  %v658 = vpack.c.b16 %v482, %v478
  %v659 = vpack.c.b16 %v483, %v479
  %v660 = vpack.c.b16 %v484, %v480
  %v661 = vpack.c.b16 %v489, %v485
  %v662 = vpack.c.b16 %v490, %v486
  %v663 = vpack.c.b16 %v491, %v487
  %v664 = vpack.c.b16 %v492, %v488
  %v665 = vpack.c.b16 %v497, %v493
  %v666 = vpack.c.b16 %v498, %v494
  %v667 = vpack.c.b16 %v499, %v495
  %v668 = vpack.c.b16 %v500, %v496
  %v669 = vpack.c.b16 %v505, %v501
  %v670 = vpack.c.b16 %v506, %v502
  %v671 = vpack.c.b16 %v507, %v503
  %v672 = vpack.c.b16 %v508, %v504
  %v673 = vpack.c.b16 %v513, %v509
  %v674 = vpack.c.b16 %v514, %v510
  %v675 = vpack.c.b16 %v515, %v511
  %v676 = vpack.c.b16 %v516, %v512
  %v677 = vpack.c.b16 %v521, %v517
  %v678 = vpack.c.b16 %v522, %v518
  %v679 = vpack.c.b16 %v523, %v519
  %v680 = vpack.c.b16 %v524, %v520
  %v681 = vpack.c.b16 %v529, %v525
  %v682 = vpack.c.b16 %v530, %v526
  %v683 = vpack.c.b16 %v531, %v527
  %v684 = vpack.c.b16 %v532, %v528
  %v685 = vpack.c.b16 %v537, %v533
  %v686 = vpack.c.b16 %v538, %v534
  %v687 = vpack.c.b16 %v539, %v535
  %v688 = vpack.c.b16 %v540, %v536
  %v689 = vpack.c.b16 %v545, %v541
  %v690 = vpack.c.b16 %v546, %v542
  %v691 = vpack.c.b16 %v547, %v543
  %v692 = vpack.c.b16 %v548, %v544
  %v693 = vpack.c.b16 %v553, %v549
  %v694 = vpack.c.b16 %v554, %v550
  %v695 = vpack.c.b16 %v555, %v551
  %v696 = vpack.c.b16 %v556, %v552
  %v697 = vpack.c.b16 %v561, %v557
  %v698 = vpack.c.b16 %v562, %v558
  %v699 = vpack.c.b16 %v563, %v559
  %v700 = vpack.c.b16 %v564, %v560
  %v701 = vpack.c.b16 %v569, %v565
  %v702 = vpack.c.b16 %v570, %v566
  %v703 = vpack.c.b16 %v571, %v567
  %v704 = vpack.c.b16 %v572, %v568
  %v705 = vpack.c.b16 %v577, %v573
  %v706 = vpack.c.b16 %v578, %v574
  %v707 = vpack.c.b16 %v579, %v575
  %v708 = vpack.c.b16 %v580, %v576
  %837 = vmatprep.subr.bf16.mxu0 %v582
  %838 = vmatpush1.bf16.msra.mxu0 %v581
  %839 = vmatprep.subr.bf16.mxu0 %v586
  %840 = vmatpush1.bf16.msra.mxu0 %v585
  %841 = vmatprep.subr.bf16.mxu0 %v590
  %842 = vmatpush1.bf16.msra.mxu0 %v589
  %843 = vmatprep.subr.bf16.mxu0 %v594
  %844 = vmatpush1.bf16.msra.mxu0 %v593
  %845 = vmatprep.subr.bf16.mxu0 %v598
  %846 = vmatpush1.bf16.msra.mxu0 %v597
  %847 = vmatprep.subr.bf16.mxu0 %v602
  %848 = vmatpush1.bf16.msra.mxu0 %v601
  %849 = vmatprep.subr.bf16.mxu0 %v606
  %850 = vmatpush1.bf16.msra.mxu0 %v605
  %851 = vmatprep.subr.bf16.mxu0 %v610
  %852 = vmatpush1.bf16.msra.mxu0 %v609
  %853 = vmatprep.subr.bf16.mxu0 %v614
  %854 = vmatpush1.bf16.msra.mxu0 %v613
  %855 = vmatprep.subr.bf16.mxu0 %v618
  %856 = vmatpush1.bf16.msra.mxu0 %v617
  %857 = vmatprep.subr.bf16.mxu0 %v622
  %858 = vmatpush1.bf16.msra.mxu0 %v621
  %859 = vmatprep.subr.bf16.mxu0 %v626
  %860 = vmatpush1.bf16.msra.mxu0 %v625
  %861 = vmatprep.subr.bf16.mxu0 %v630
  %862 = vmatpush1.bf16.msra.mxu0 %v629
  %863 = vmatprep.subr.bf16.mxu0 %v634
  %864 = vmatpush1.bf16.msra.mxu0 %v633
  %865 = vmatprep.subr.bf16.mxu0 %v638
  %866 = vmatpush1.bf16.msra.mxu0 %v637
  %867 = vmatprep.subr.bf16.mxu0 %v642
  %868 = vmatpush1.bf16.msra.mxu0 %v641
  %869 = vmatprep.mubr.bf16.mxu0 %v44
  %870 = vmatmul.mubr.bf16.gmra.mrb[0].mxu0 %v43
  %v871 = vpop.f32.mrb[0].mxu0
  %v872 = vadd.f32 %v180, %v871
  %v873 = vpop.f32.mrb[0].mxu0
  %v874 = vadd.f32 %v184, %v873
  %v875 = vpop.f32.mrb[0].mxu0
  %v876 = vpop.f32.mrb[0].mxu0
  %877 = vdwg.mxu0
  %878 = vmatprep.subr.bf16.mxu0 %v646
  %879 = vmatpush1.bf16.msra.mxu0 %v645
  %880 = vmatprep.subr.bf16.mxu0 %v650
  %881 = vmatpush1.bf16.msra.mxu0 %v649
  %882 = vmatprep.subr.bf16.mxu0 %v654
  %883 = vmatpush1.bf16.msra.mxu0 %v653
  %884 = vmatprep.subr.bf16.mxu0 %v658
  %885 = vmatpush1.bf16.msra.mxu0 %v657
  %886 = vmatprep.subr.bf16.mxu0 %v662
  %887 = vmatpush1.bf16.msra.mxu0 %v661
  %888 = vmatprep.subr.bf16.mxu0 %v666
  %889 = vmatpush1.bf16.msra.mxu0 %v665
  %890 = vmatprep.subr.bf16.mxu0 %v670
  %891 = vmatpush1.bf16.msra.mxu0 %v669
  %892 = vmatprep.subr.bf16.mxu0 %v674
  %893 = vmatpush1.bf16.msra.mxu0 %v673
  %894 = vmatprep.subr.bf16.mxu0 %v678
  %895 = vmatpush1.bf16.msra.mxu0 %v677
  %896 = vmatprep.subr.bf16.mxu0 %v682
  %897 = vmatpush1.bf16.msra.mxu0 %v681
  %898 = vmatprep.subr.bf16.mxu0 %v686
  %899 = vmatpush1.bf16.msra.mxu0 %v685
  %900 = vmatprep.subr.bf16.mxu0 %v690
  %901 = vmatpush1.bf16.msra.mxu0 %v689
  %902 = vmatprep.subr.bf16.mxu0 %v694
  %903 = vmatpush1.bf16.msra.mxu0 %v693
  %904 = vmatprep.subr.bf16.mxu0 %v698
  %905 = vmatpush1.bf16.msra.mxu0 %v697
  %906 = vmatprep.subr.bf16.mxu0 %v702
  %907 = vmatpush1.bf16.msra.mxu0 %v701
  %908 = vmatprep.subr.bf16.mxu0 %v706
  %909 = vmatpush1.bf16.msra.mxu0 %v705
  %910 = vmatprep.mubr.bf16.mxu0 %v46
  %911 = vmatmul.mubr.bf16.gmra.mrb[0].mxu0 %v45
  %v912 = vpop.f32.mrb[0].mxu0
  %v913 = vadd.f32 %v872, %v912
  %v914 = vpop.f32.mrb[0].mxu0
  %v915 = vadd.f32 %v874, %v914
  %v916 = vpop.f32.mrb[0].mxu0
  %v917 = vpop.f32.mrb[0].mxu0
  %918 = vdwg.mxu0
  %919 = vmatprep.subr.bf16.mxu0 %v584
  %920 = vmatpush1.bf16.msra.mxu0 %v583
  %921 = vmatprep.subr.bf16.mxu0 %v588
  %922 = vmatpush1.bf16.msra.mxu0 %v587
  %923 = vmatprep.subr.bf16.mxu0 %v592
  %924 = vmatpush1.bf16.msra.mxu0 %v591
  %925 = vmatprep.subr.bf16.mxu0 %v596
  %926 = vmatpush1.bf16.msra.mxu0 %v595
  %927 = vmatprep.subr.bf16.mxu0 %v600
  %928 = vmatpush1.bf16.msra.mxu0 %v599
  %929 = vmatprep.subr.bf16.mxu0 %v604
  %930 = vmatpush1.bf16.msra.mxu0 %v603
  %931 = vmatprep.subr.bf16.mxu0 %v608
  %932 = vmatpush1.bf16.msra.mxu0 %v607
  %933 = vmatprep.subr.bf16.mxu0 %v612
  %934 = vmatpush1.bf16.msra.mxu0 %v611
  %935 = vmatprep.subr.bf16.mxu0 %v616
  %936 = vmatpush1.bf16.msra.mxu0 %v615
  %937 = vmatprep.subr.bf16.mxu0 %v620
  %938 = vmatpush1.bf16.msra.mxu0 %v619
  %939 = vmatprep.subr.bf16.mxu0 %v624
  %940 = vmatpush1.bf16.msra.mxu0 %v623
  %941 = vmatprep.subr.bf16.mxu0 %v628
  %942 = vmatpush1.bf16.msra.mxu0 %v627
  %943 = vmatprep.subr.bf16.mxu0 %v632
  %944 = vmatpush1.bf16.msra.mxu0 %v631
  %945 = vmatprep.subr.bf16.mxu0 %v636
  %946 = vmatpush1.bf16.msra.mxu0 %v635
  %947 = vmatprep.subr.bf16.mxu0 %v640
  %948 = vmatpush1.bf16.msra.mxu0 %v639
  %949 = vmatprep.subr.bf16.mxu0 %v644
  %950 = vmatpush1.bf16.msra.mxu0 %v643
  %951 = vmatprep.mubr.bf16.mxu0 %v44
  %952 = vmatmul.mubr.bf16.gmra.mrb[0].mxu0 %v43
  %v953 = vpop.f32.mrb[0].mxu0
  %v954 = vadd.f32 %v188, %v953
  %v955 = vpop.f32.mrb[0].mxu0
  %v956 = vadd.f32 %v192, %v955
  %v957 = vpop.f32.mrb[0].mxu0
  %v958 = vpop.f32.mrb[0].mxu0
  %959 = vdwg.mxu0
  %960 = vmatprep.subr.bf16.mxu0 %v648
  %961 = vmatpush1.bf16.msra.mxu0 %v647
  %962 = vmatprep.subr.bf16.mxu0 %v652
  %963 = vmatpush1.bf16.msra.mxu0 %v651
  %964 = vmatprep.subr.bf16.mxu0 %v656
  %965 = vmatpush1.bf16.msra.mxu0 %v655
  %966 = vmatprep.subr.bf16.mxu0 %v660
  %967 = vmatpush1.bf16.msra.mxu0 %v659
  %968 = vmatprep.subr.bf16.mxu0 %v664
  %969 = vmatpush1.bf16.msra.mxu0 %v663
  %970 = vmatprep.subr.bf16.mxu0 %v668
  %971 = vmatpush1.bf16.msra.mxu0 %v667
  %972 = vmatprep.subr.bf16.mxu0 %v672
  %973 = vmatpush1.bf16.msra.mxu0 %v671
  %974 = vmatprep.subr.bf16.mxu0 %v676
  %975 = vmatpush1.bf16.msra.mxu0 %v675
  %976 = vmatprep.subr.bf16.mxu0 %v680
  %977 = vmatpush1.bf16.msra.mxu0 %v679
  %978 = vmatprep.subr.bf16.mxu0 %v684
  %979 = vmatpush1.bf16.msra.mxu0 %v683
  %980 = vmatprep.subr.bf16.mxu0 %v688
  %981 = vmatpush1.bf16.msra.mxu0 %v687
  %982 = vmatprep.subr.bf16.mxu0 %v692
  %983 = vmatpush1.bf16.msra.mxu0 %v691
  %984 = vmatprep.subr.bf16.mxu0 %v696
  %985 = vmatpush1.bf16.msra.mxu0 %v695
  %986 = vmatprep.subr.bf16.mxu0 %v700
  %987 = vmatpush1.bf16.msra.mxu0 %v699
  %988 = vmatprep.subr.bf16.mxu0 %v704
  %989 = vmatpush1.bf16.msra.mxu0 %v703
  %990 = vmatprep.subr.bf16.mxu0 %v708
  %991 = vmatpush1.bf16.msra.mxu0 %v707
  %992 = vmatprep.mubr.bf16.mxu0 %v46
  %993 = vmatmul.mubr.bf16.gmra.mrb[0].mxu0 %v45
  %v994 = vpop.f32.mrb[0].mxu0
  %v995 = vadd.f32 %v954, %v994
  %v996 = vpop.f32.mrb[0].mxu0
  %v997 = vadd.f32 %v956, %v996
  %v998 = vpop.f32.mrb[0].mxu0
  %v999 = vpop.f32.mrb[0].mxu0
  %1000 = vdwg.mxu0
  %v1001 = vmax.f32 %v913, 0.0
  %v1002 = vmax.f32 %v915, 0.0
  %v1003 = vmax.f32 %v995, 0.0
  %v1004 = vmax.f32 %v997, 0.0
  %v1005 = vpack.c.bf16 %v1001, %v1001
  %v1006 = vpack.c.bf16 %v1002, %v1002
  %v1007 = vpack.c.bf16 %v1003, %v1003
  %v1008 = vpack.c.bf16 %v1004, %v1004
  %v1009 = vld [vmem:[%s3] sm:$0xff]
  %v1010 = vld [vmem:[%s3 + $0x8] sm:$0xff]
  %v1011 = vld [vmem:[%s3 + $0x10] sm:$0xff]
  %v1012 = vld [vmem:[%s3 + $0x18] sm:$0xff]
  %v1013 = vld [vmem:[%s3 + $0x20] sm:$0xff]
  %v1014 = vld [vmem:[%s3 + $0x28] sm:$0xff]
  %v1015 = vld [vmem:[%s3 + $0x30] sm:$0xff]
  %v1016 = vld [vmem:[%s3 + $0x38] sm:$0xff]
  %v1017 = vld [vmem:[%s3 + $0x40] sm:$0xff]
  %v1018 = vld [vmem:[%s3 + $0x48] sm:$0xff]
  %v1019 = vld [vmem:[%s3 + $0x50] sm:$0xff]
  %v1020 = vld [vmem:[%s3 + $0x58] sm:$0xff]
  %v1021 = vld [vmem:[%s3 + $0x60] sm:$0xff]
  %v1022 = vld [vmem:[%s3 + $0x68] sm:$0xff]
  %v1023 = vld [vmem:[%s3 + $0x70] sm:$0xff]
  %v1024 = vld [vmem:[%s3 + $0x78] sm:$0xff]
  %v1025 = vld [vmem:[%s3 + $0x80] sm:$0xff]
  %v1026 = vld [vmem:[%s3 + $0x88] sm:$0xff]
  %v1027 = vld [vmem:[%s3 + $0x90] sm:$0xff]
  %v1028 = vld [vmem:[%s3 + $0x98] sm:$0xff]
  %v1029 = vld [vmem:[%s3 + $0xa0] sm:$0xff]
  %v1030 = vld [vmem:[%s3 + $0xa8] sm:$0xff]
  %v1031 = vld [vmem:[%s3 + $0xb0] sm:$0xff]
  %v1032 = vld [vmem:[%s3 + $0xb8] sm:$0xff]
  %v1033 = vld [vmem:[%s3 + $0xc0] sm:$0xff]
  %v1034 = vld [vmem:[%s3 + $0xc8] sm:$0xff]
  %v1035 = vld [vmem:[%s3 + $0xd0] sm:$0xff]
  %v1036 = vld [vmem:[%s3 + $0xd8] sm:$0xff]
  %v1037 = vld [vmem:[%s3 + $0xe0] sm:$0xff]
  %v1038 = vld [vmem:[%s3 + $0xe8] sm:$0xff]
  %v1039 = vld [vmem:[%s3 + $0xf0] sm:$0xff]
  %v1040 = vld [vmem:[%s3 + $0xf8] sm:$0xff]
  %v1041 = vld [vmem:[%s3 + $0x100] sm:$0xff]
  %v1042 = vld [vmem:[%s3 + $0x108] sm:$0xff]
  %v1043 = vld [vmem:[%s3 + $0x110] sm:$0xff]
  %v1044 = vld [vmem:[%s3 + $0x118] sm:$0xff]
  %v1045 = vld [vmem:[%s3 + $0x120] sm:$0xff]
  %v1046 = vld [vmem:[%s3 + $0x128] sm:$0xff]
  %v1047 = vld [vmem:[%s3 + $0x130] sm:$0xff]
  %v1048 = vld [vmem:[%s3 + $0x138] sm:$0xff]
  %v1049 = vld [vmem:[%s3 + $0x140] sm:$0xff]
  %v1050 = vld [vmem:[%s3 + $0x148] sm:$0xff]
  %v1051 = vld [vmem:[%s3 + $0x150] sm:$0xff]
  %v1052 = vld [vmem:[%s3 + $0x158] sm:$0xff]
  %v1053 = vld [vmem:[%s3 + $0x160] sm:$0xff]
  %v1054 = vld [vmem:[%s3 + $0x168] sm:$0xff]
  %v1055 = vld [vmem:[%s3 + $0x170] sm:$0xff]
  %v1056 = vld [vmem:[%s3 + $0x178] sm:$0xff]
  %v1057 = vld [vmem:[%s3 + $0x180] sm:$0xff]
  %v1058 = vld [vmem:[%s3 + $0x188] sm:$0xff]
  %v1059 = vld [vmem:[%s3 + $0x190] sm:$0xff]
  %v1060 = vld [vmem:[%s3 + $0x198] sm:$0xff]
  %v1061 = vld [vmem:[%s3 + $0x1a0] sm:$0xff]
  %v1062 = vld [vmem:[%s3 + $0x1a8] sm:$0xff]
  %v1063 = vld [vmem:[%s3 + $0x1b0] sm:$0xff]
  %v1064 = vld [vmem:[%s3 + $0x1b8] sm:$0xff]
  %v1065 = vld [vmem:[%s3 + $0x1c0] sm:$0xff]
  %v1066 = vld [vmem:[%s3 + $0x1c8] sm:$0xff]
  %v1067 = vld [vmem:[%s3 + $0x1d0] sm:$0xff]
  %v1068 = vld [vmem:[%s3 + $0x1d8] sm:$0xff]
  %v1069 = vld [vmem:[%s3 + $0x1e0] sm:$0xff]
  %v1070 = vld [vmem:[%s3 + $0x1e8] sm:$0xff]
  %v1071 = vld [vmem:[%s3 + $0x1f0] sm:$0xff]
  %v1072 = vld [vmem:[%s3 + $0x1f8] sm:$0xff]
  %v1073 = vld [vmem:[%s3 + $0x200] sm:$0xff]
  %v1074 = vld [vmem:[%s3 + $0x208] sm:$0xff]
  %v1075 = vld [vmem:[%s3 + $0x210] sm:$0xff]
  %v1076 = vld [vmem:[%s3 + $0x218] sm:$0xff]
  %v1077 = vld [vmem:[%s3 + $0x220] sm:$0xff]
  %v1078 = vld [vmem:[%s3 + $0x228] sm:$0xff]
  %v1079 = vld [vmem:[%s3 + $0x230] sm:$0xff]
  %v1080 = vld [vmem:[%s3 + $0x238] sm:$0xff]
  %v1081 = vld [vmem:[%s3 + $0x240] sm:$0xff]
  %v1082 = vld [vmem:[%s3 + $0x248] sm:$0xff]
  %v1083 = vld [vmem:[%s3 + $0x250] sm:$0xff]
  %v1084 = vld [vmem:[%s3 + $0x258] sm:$0xff]
  %v1085 = vld [vmem:[%s3 + $0x260] sm:$0xff]
  %v1086 = vld [vmem:[%s3 + $0x268] sm:$0xff]
  %v1087 = vld [vmem:[%s3 + $0x270] sm:$0xff]
  %v1088 = vld [vmem:[%s3 + $0x278] sm:$0xff]
  %v1089 = vld [vmem:[%s3 + $0x280] sm:$0xff]
  %v1090 = vld [vmem:[%s3 + $0x288] sm:$0xff]
  %v1091 = vld [vmem:[%s3 + $0x290] sm:$0xff]
  %v1092 = vld [vmem:[%s3 + $0x298] sm:$0xff]
  %v1093 = vld [vmem:[%s3 + $0x2a0] sm:$0xff]
  %v1094 = vld [vmem:[%s3 + $0x2a8] sm:$0xff]
  %v1095 = vld [vmem:[%s3 + $0x2b0] sm:$0xff]
  %v1096 = vld [vmem:[%s3 + $0x2b8] sm:$0xff]
  %v1097 = vld [vmem:[%s3 + $0x2c0] sm:$0xff]
  %v1098 = vld [vmem:[%s3 + $0x2c8] sm:$0xff]
  %v1099 = vld [vmem:[%s3 + $0x2d0] sm:$0xff]
  %v1100 = vld [vmem:[%s3 + $0x2d8] sm:$0xff]
  %v1101 = vld [vmem:[%s3 + $0x2e0] sm:$0xff]
  %v1102 = vld [vmem:[%s3 + $0x2e8] sm:$0xff]
  %v1103 = vld [vmem:[%s3 + $0x2f0] sm:$0xff]
  %v1104 = vld [vmem:[%s3 + $0x2f8] sm:$0xff]
  %v1105 = vld [vmem:[%s3 + $0x300] sm:$0xff]
  %v1106 = vld [vmem:[%s3 + $0x308] sm:$0xff]
  %v1107 = vld [vmem:[%s3 + $0x310] sm:$0xff]
  %v1108 = vld [vmem:[%s3 + $0x318] sm:$0xff]
  %v1109 = vld [vmem:[%s3 + $0x320] sm:$0xff]
  %v1110 = vld [vmem:[%s3 + $0x328] sm:$0xff]
  %v1111 = vld [vmem:[%s3 + $0x330] sm:$0xff]
  %v1112 = vld [vmem:[%s3 + $0x338] sm:$0xff]
  %v1113 = vld [vmem:[%s3 + $0x340] sm:$0xff]
  %v1114 = vld [vmem:[%s3 + $0x348] sm:$0xff]
  %v1115 = vld [vmem:[%s3 + $0x350] sm:$0xff]
  %v1116 = vld [vmem:[%s3 + $0x358] sm:$0xff]
  %v1117 = vld [vmem:[%s3 + $0x360] sm:$0xff]
  %v1118 = vld [vmem:[%s3 + $0x368] sm:$0xff]
  %v1119 = vld [vmem:[%s3 + $0x370] sm:$0xff]
  %v1120 = vld [vmem:[%s3 + $0x378] sm:$0xff]
  %v1121 = vld [vmem:[%s3 + $0x380] sm:$0xff]
  %v1122 = vld [vmem:[%s3 + $0x388] sm:$0xff]
  %v1123 = vld [vmem:[%s3 + $0x390] sm:$0xff]
  %v1124 = vld [vmem:[%s3 + $0x398] sm:$0xff]
  %v1125 = vld [vmem:[%s3 + $0x3a0] sm:$0xff]
  %v1126 = vld [vmem:[%s3 + $0x3a8] sm:$0xff]
  %v1127 = vld [vmem:[%s3 + $0x3b0] sm:$0xff]
  %v1128 = vld [vmem:[%s3 + $0x3b8] sm:$0xff]
  %v1129 = vld [vmem:[%s3 + $0x3c0] sm:$0xff]
  %v1130 = vld [vmem:[%s3 + $0x3c8] sm:$0xff]
  %v1131 = vld [vmem:[%s3 + $0x3d0] sm:$0xff]
  %v1132 = vld [vmem:[%s3 + $0x3d8] sm:$0xff]
  %v1133 = vld [vmem:[%s3 + $0x3e0] sm:$0xff]
  %v1134 = vld [vmem:[%s3 + $0x3e8] sm:$0xff]
  %v1135 = vld [vmem:[%s3 + $0x3f0] sm:$0xff]
  %v1136 = vld [vmem:[%s3 + $0x3f8] sm:$0xff]
  %v1137 = vld [vmem:[%s4] sm:$0xf]
  %v1139 = vlaneseq
  %v1140 = vshrl.u32 %v1139, 7
  %v1141 = vsub.s32 0, %v1140
  %v1142 = vrot.slane %v1137, %v1141
  %v1143 = vlaneseq
  %v1144 = vshrl.u32 %v1143, 7
  %v1145 = vsub.s32 1, %v1144
  %v1146 = vrot.slane %v1137, %v1145
  %v1147 = vlaneseq
  %v1148 = vshrl.u32 %v1147, 7
  %v1149 = vsub.s32 2, %v1148
  %v1150 = vrot.slane %v1137, %v1149
  %v1151 = vlaneseq
  %v1152 = vshrl.u32 %v1151, 7
  %v1153 = vsub.s32 3, %v1152
  %v1154 = vrot.slane %v1137, %v1153
  %v1287 = vunpack.c.l.b16 %v1009
  %v1288 = vunpack.c.h.b16 %v1009
  %v1289 = vunpack.c.l.b16 %v1010
  %v1290 = vunpack.c.h.b16 %v1010
  %v1291 = vunpack.c.l.b16 %v1011
  %v1292 = vunpack.c.h.b16 %v1011
  %v1293 = vunpack.c.l.b16 %v1012
  %v1294 = vunpack.c.h.b16 %v1012
  %v1295 = vunpack.c.l.b16 %v1013
  %v1296 = vunpack.c.h.b16 %v1013
  %v1297 = vunpack.c.l.b16 %v1014
  %v1298 = vunpack.c.h.b16 %v1014
  %v1299 = vunpack.c.l.b16 %v1015
  %v1300 = vunpack.c.h.b16 %v1015
  %v1301 = vunpack.c.l.b16 %v1016
  %v1302 = vunpack.c.h.b16 %v1016
  %v1303 = vunpack.c.l.b16 %v1017
  %v1304 = vunpack.c.h.b16 %v1017
  %v1305 = vunpack.c.l.b16 %v1018
  %v1306 = vunpack.c.h.b16 %v1018
  %v1307 = vunpack.c.l.b16 %v1019
  %v1308 = vunpack.c.h.b16 %v1019
  %v1309 = vunpack.c.l.b16 %v1020
  %v1310 = vunpack.c.h.b16 %v1020
  %v1311 = vunpack.c.l.b16 %v1021
  %v1312 = vunpack.c.h.b16 %v1021
  %v1313 = vunpack.c.l.b16 %v1022
  %v1314 = vunpack.c.h.b16 %v1022
  %v1315 = vunpack.c.l.b16 %v1023
  %v1316 = vunpack.c.h.b16 %v1023
  %v1317 = vunpack.c.l.b16 %v1024
  %v1318 = vunpack.c.h.b16 %v1024
  %v1319 = vunpack.c.l.b16 %v1025
  %v1320 = vunpack.c.h.b16 %v1025
  %v1321 = vunpack.c.l.b16 %v1026
  %v1322 = vunpack.c.h.b16 %v1026
  %v1323 = vunpack.c.l.b16 %v1027
  %v1324 = vunpack.c.h.b16 %v1027
  %v1325 = vunpack.c.l.b16 %v1028
  %v1326 = vunpack.c.h.b16 %v1028
  %v1327 = vunpack.c.l.b16 %v1029
  %v1328 = vunpack.c.h.b16 %v1029
  %v1329 = vunpack.c.l.b16 %v1030
  %v1330 = vunpack.c.h.b16 %v1030
  %v1331 = vunpack.c.l.b16 %v1031
  %v1332 = vunpack.c.h.b16 %v1031
  %v1333 = vunpack.c.l.b16 %v1032
  %v1334 = vunpack.c.h.b16 %v1032
  %v1335 = vunpack.c.l.b16 %v1033
  %v1336 = vunpack.c.h.b16 %v1033
  %v1337 = vunpack.c.l.b16 %v1034
  %v1338 = vunpack.c.h.b16 %v1034
  %v1339 = vunpack.c.l.b16 %v1035
  %v1340 = vunpack.c.h.b16 %v1035
  %v1341 = vunpack.c.l.b16 %v1036
  %v1342 = vunpack.c.h.b16 %v1036
  %v1343 = vunpack.c.l.b16 %v1037
  %v1344 = vunpack.c.h.b16 %v1037
  %v1345 = vunpack.c.l.b16 %v1038
  %v1346 = vunpack.c.h.b16 %v1038
  %v1347 = vunpack.c.l.b16 %v1039
  %v1348 = vunpack.c.h.b16 %v1039
  %v1349 = vunpack.c.l.b16 %v1040
  %v1350 = vunpack.c.h.b16 %v1040
  %v1351 = vunpack.c.l.b16 %v1041
  %v1352 = vunpack.c.h.b16 %v1041
  %v1353 = vunpack.c.l.b16 %v1042
  %v1354 = vunpack.c.h.b16 %v1042
  %v1355 = vunpack.c.l.b16 %v1043
  %v1356 = vunpack.c.h.b16 %v1043
  %v1357 = vunpack.c.l.b16 %v1044
  %v1358 = vunpack.c.h.b16 %v1044
  %v1359 = vunpack.c.l.b16 %v1045
  %v1360 = vunpack.c.h.b16 %v1045
  %v1361 = vunpack.c.l.b16 %v1046
  %v1362 = vunpack.c.h.b16 %v1046
  %v1363 = vunpack.c.l.b16 %v1047
  %v1364 = vunpack.c.h.b16 %v1047
  %v1365 = vunpack.c.l.b16 %v1048
  %v1366 = vunpack.c.h.b16 %v1048
  %v1367 = vunpack.c.l.b16 %v1049
  %v1368 = vunpack.c.h.b16 %v1049
  %v1369 = vunpack.c.l.b16 %v1050
  %v1370 = vunpack.c.h.b16 %v1050
  %v1371 = vunpack.c.l.b16 %v1051
  %v1372 = vunpack.c.h.b16 %v1051
  %v1373 = vunpack.c.l.b16 %v1052
  %v1374 = vunpack.c.h.b16 %v1052
  %v1375 = vunpack.c.l.b16 %v1053
  %v1376 = vunpack.c.h.b16 %v1053
  %v1377 = vunpack.c.l.b16 %v1054
  %v1378 = vunpack.c.h.b16 %v1054
  %v1379 = vunpack.c.l.b16 %v1055
  %v1380 = vunpack.c.h.b16 %v1055
  %v1381 = vunpack.c.l.b16 %v1056
  %v1382 = vunpack.c.h.b16 %v1056
  %v1383 = vunpack.c.l.b16 %v1057
  %v1384 = vunpack.c.h.b16 %v1057
  %v1385 = vunpack.c.l.b16 %v1058
  %v1386 = vunpack.c.h.b16 %v1058
  %v1387 = vunpack.c.l.b16 %v1059
  %v1388 = vunpack.c.h.b16 %v1059
  %v1389 = vunpack.c.l.b16 %v1060
  %v1390 = vunpack.c.h.b16 %v1060
  %v1391 = vunpack.c.l.b16 %v1061
  %v1392 = vunpack.c.h.b16 %v1061
  %v1393 = vunpack.c.l.b16 %v1062
  %v1394 = vunpack.c.h.b16 %v1062
  %v1395 = vunpack.c.l.b16 %v1063
  %v1396 = vunpack.c.h.b16 %v1063
  %v1397 = vunpack.c.l.b16 %v1064
  %v1398 = vunpack.c.h.b16 %v1064
  %v1399 = vunpack.c.l.b16 %v1065
  %v1400 = vunpack.c.h.b16 %v1065
  %v1401 = vunpack.c.l.b16 %v1066
  %v1402 = vunpack.c.h.b16 %v1066
  %v1403 = vunpack.c.l.b16 %v1067
  %v1404 = vunpack.c.h.b16 %v1067
  %v1405 = vunpack.c.l.b16 %v1068
  %v1406 = vunpack.c.h.b16 %v1068
  %v1407 = vunpack.c.l.b16 %v1069
  %v1408 = vunpack.c.h.b16 %v1069
  %v1409 = vunpack.c.l.b16 %v1070
  %v1410 = vunpack.c.h.b16 %v1070
  %v1411 = vunpack.c.l.b16 %v1071
  %v1412 = vunpack.c.h.b16 %v1071
  %v1413 = vunpack.c.l.b16 %v1072
  %v1414 = vunpack.c.h.b16 %v1072
  %v1415 = vunpack.c.l.b16 %v1073
  %v1416 = vunpack.c.h.b16 %v1073
  %v1417 = vunpack.c.l.b16 %v1074
  %v1418 = vunpack.c.h.b16 %v1074
  %v1419 = vunpack.c.l.b16 %v1075
  %v1420 = vunpack.c.h.b16 %v1075
  %v1421 = vunpack.c.l.b16 %v1076
  %v1422 = vunpack.c.h.b16 %v1076
  %v1423 = vunpack.c.l.b16 %v1077
  %v1424 = vunpack.c.h.b16 %v1077
  %v1425 = vunpack.c.l.b16 %v1078
  %v1426 = vunpack.c.h.b16 %v1078
  %v1427 = vunpack.c.l.b16 %v1079
  %v1428 = vunpack.c.h.b16 %v1079
  %v1429 = vunpack.c.l.b16 %v1080
  %v1430 = vunpack.c.h.b16 %v1080
  %v1431 = vunpack.c.l.b16 %v1081
  %v1432 = vunpack.c.h.b16 %v1081
  %v1433 = vunpack.c.l.b16 %v1082
  %v1434 = vunpack.c.h.b16 %v1082
  %v1435 = vunpack.c.l.b16 %v1083
  %v1436 = vunpack.c.h.b16 %v1083
  %v1437 = vunpack.c.l.b16 %v1084
  %v1438 = vunpack.c.h.b16 %v1084
  %v1439 = vunpack.c.l.b16 %v1085
  %v1440 = vunpack.c.h.b16 %v1085
  %v1441 = vunpack.c.l.b16 %v1086
  %v1442 = vunpack.c.h.b16 %v1086
  %v1443 = vunpack.c.l.b16 %v1087
  %v1444 = vunpack.c.h.b16 %v1087
  %v1445 = vunpack.c.l.b16 %v1088
  %v1446 = vunpack.c.h.b16 %v1088
  %v1447 = vunpack.c.l.b16 %v1089
  %v1448 = vunpack.c.h.b16 %v1089
  %v1449 = vunpack.c.l.b16 %v1090
  %v1450 = vunpack.c.h.b16 %v1090
  %v1451 = vunpack.c.l.b16 %v1091
  %v1452 = vunpack.c.h.b16 %v1091
  %v1453 = vunpack.c.l.b16 %v1092
  %v1454 = vunpack.c.h.b16 %v1092
  %v1455 = vunpack.c.l.b16 %v1093
  %v1456 = vunpack.c.h.b16 %v1093
  %v1457 = vunpack.c.l.b16 %v1094
  %v1458 = vunpack.c.h.b16 %v1094
  %v1459 = vunpack.c.l.b16 %v1095
  %v1460 = vunpack.c.h.b16 %v1095
  %v1461 = vunpack.c.l.b16 %v1096
  %v1462 = vunpack.c.h.b16 %v1096
  %v1463 = vunpack.c.l.b16 %v1097
  %v1464 = vunpack.c.h.b16 %v1097
  %v1465 = vunpack.c.l.b16 %v1098
  %v1466 = vunpack.c.h.b16 %v1098
  %v1467 = vunpack.c.l.b16 %v1099
  %v1468 = vunpack.c.h.b16 %v1099
  %v1469 = vunpack.c.l.b16 %v1100
  %v1470 = vunpack.c.h.b16 %v1100
  %v1471 = vunpack.c.l.b16 %v1101
  %v1472 = vunpack.c.h.b16 %v1101
  %v1473 = vunpack.c.l.b16 %v1102
  %v1474 = vunpack.c.h.b16 %v1102
  %v1475 = vunpack.c.l.b16 %v1103
  %v1476 = vunpack.c.h.b16 %v1103
  %v1477 = vunpack.c.l.b16 %v1104
  %v1478 = vunpack.c.h.b16 %v1104
  %v1479 = vunpack.c.l.b16 %v1105
  %v1480 = vunpack.c.h.b16 %v1105
  %v1481 = vunpack.c.l.b16 %v1106
  %v1482 = vunpack.c.h.b16 %v1106
  %v1483 = vunpack.c.l.b16 %v1107
  %v1484 = vunpack.c.h.b16 %v1107
  %v1485 = vunpack.c.l.b16 %v1108
  %v1486 = vunpack.c.h.b16 %v1108
  %v1487 = vunpack.c.l.b16 %v1109
  %v1488 = vunpack.c.h.b16 %v1109
  %v1489 = vunpack.c.l.b16 %v1110
  %v1490 = vunpack.c.h.b16 %v1110
  %v1491 = vunpack.c.l.b16 %v1111
  %v1492 = vunpack.c.h.b16 %v1111
  %v1493 = vunpack.c.l.b16 %v1112
  %v1494 = vunpack.c.h.b16 %v1112
  %v1495 = vunpack.c.l.b16 %v1113
  %v1496 = vunpack.c.h.b16 %v1113
  %v1497 = vunpack.c.l.b16 %v1114
  %v1498 = vunpack.c.h.b16 %v1114
  %v1499 = vunpack.c.l.b16 %v1115
  %v1500 = vunpack.c.h.b16 %v1115
  %v1501 = vunpack.c.l.b16 %v1116
  %v1502 = vunpack.c.h.b16 %v1116
  %v1503 = vunpack.c.l.b16 %v1117
  %v1504 = vunpack.c.h.b16 %v1117
  %v1505 = vunpack.c.l.b16 %v1118
  %v1506 = vunpack.c.h.b16 %v1118
  %v1507 = vunpack.c.l.b16 %v1119
  %v1508 = vunpack.c.h.b16 %v1119
  %v1509 = vunpack.c.l.b16 %v1120
  %v1510 = vunpack.c.h.b16 %v1120
  %v1511 = vunpack.c.l.b16 %v1121
  %v1512 = vunpack.c.h.b16 %v1121
  %v1513 = vunpack.c.l.b16 %v1122
  %v1514 = vunpack.c.h.b16 %v1122
  %v1515 = vunpack.c.l.b16 %v1123
  %v1516 = vunpack.c.h.b16 %v1123
  %v1517 = vunpack.c.l.b16 %v1124
  %v1518 = vunpack.c.h.b16 %v1124
  %v1519 = vunpack.c.l.b16 %v1125
  %v1520 = vunpack.c.h.b16 %v1125
  %v1521 = vunpack.c.l.b16 %v1126
  %v1522 = vunpack.c.h.b16 %v1126
  %v1523 = vunpack.c.l.b16 %v1127
  %v1524 = vunpack.c.h.b16 %v1127
  %v1525 = vunpack.c.l.b16 %v1128
  %v1526 = vunpack.c.h.b16 %v1128
  %v1527 = vunpack.c.l.b16 %v1129
  %v1528 = vunpack.c.h.b16 %v1129
  %v1529 = vunpack.c.l.b16 %v1130
  %v1530 = vunpack.c.h.b16 %v1130
  %v1531 = vunpack.c.l.b16 %v1131
  %v1532 = vunpack.c.h.b16 %v1131
  %v1533 = vunpack.c.l.b16 %v1132
  %v1534 = vunpack.c.h.b16 %v1132
  %v1535 = vunpack.c.l.b16 %v1133
  %v1536 = vunpack.c.h.b16 %v1133
  %v1537 = vunpack.c.l.b16 %v1134
  %v1538 = vunpack.c.h.b16 %v1134
  %v1539 = vunpack.c.l.b16 %v1135
  %v1540 = vunpack.c.h.b16 %v1135
  %v1541 = vunpack.c.l.b16 %v1136
  %v1542 = vunpack.c.h.b16 %v1136
  %v1543 = vpack.c.b16 %v1291, %v1287
  %v1544 = vpack.c.b16 %v1292, %v1288
  %v1545 = vpack.c.b16 %v1293, %v1289
  %v1546 = vpack.c.b16 %v1294, %v1290
  %v1547 = vpack.c.b16 %v1299, %v1295
  %v1548 = vpack.c.b16 %v1300, %v1296
  %v1549 = vpack.c.b16 %v1301, %v1297
  %v1550 = vpack.c.b16 %v1302, %v1298
  %v1551 = vpack.c.b16 %v1307, %v1303
  %v1552 = vpack.c.b16 %v1308, %v1304
  %v1553 = vpack.c.b16 %v1309, %v1305
  %v1554 = vpack.c.b16 %v1310, %v1306
  %v1555 = vpack.c.b16 %v1315, %v1311
  %v1556 = vpack.c.b16 %v1316, %v1312
  %v1557 = vpack.c.b16 %v1317, %v1313
  %v1558 = vpack.c.b16 %v1318, %v1314
  %v1559 = vpack.c.b16 %v1323, %v1319
  %v1560 = vpack.c.b16 %v1324, %v1320
  %v1561 = vpack.c.b16 %v1325, %v1321
  %v1562 = vpack.c.b16 %v1326, %v1322
  %v1563 = vpack.c.b16 %v1331, %v1327
  %v1564 = vpack.c.b16 %v1332, %v1328
  %v1565 = vpack.c.b16 %v1333, %v1329
  %v1566 = vpack.c.b16 %v1334, %v1330
  %v1567 = vpack.c.b16 %v1339, %v1335
  %v1568 = vpack.c.b16 %v1340, %v1336
  %v1569 = vpack.c.b16 %v1341, %v1337
  %v1570 = vpack.c.b16 %v1342, %v1338
  %v1571 = vpack.c.b16 %v1347, %v1343
  %v1572 = vpack.c.b16 %v1348, %v1344
  %v1573 = vpack.c.b16 %v1349, %v1345
  %v1574 = vpack.c.b16 %v1350, %v1346
  %v1575 = vpack.c.b16 %v1355, %v1351
  %v1576 = vpack.c.b16 %v1356, %v1352
  %v1577 = vpack.c.b16 %v1357, %v1353
  %v1578 = vpack.c.b16 %v1358, %v1354
  %v1579 = vpack.c.b16 %v1363, %v1359
  %v1580 = vpack.c.b16 %v1364, %v1360
  %v1581 = vpack.c.b16 %v1365, %v1361
  %v1582 = vpack.c.b16 %v1366, %v1362
  %v1583 = vpack.c.b16 %v1371, %v1367
  %v1584 = vpack.c.b16 %v1372, %v1368
  %v1585 = vpack.c.b16 %v1373, %v1369
  %v1586 = vpack.c.b16 %v1374, %v1370
  %v1587 = vpack.c.b16 %v1379, %v1375
  %v1588 = vpack.c.b16 %v1380, %v1376
  %v1589 = vpack.c.b16 %v1381, %v1377
  %v1590 = vpack.c.b16 %v1382, %v1378
  %v1591 = vpack.c.b16 %v1387, %v1383
  %v1592 = vpack.c.b16 %v1388, %v1384
  %v1593 = vpack.c.b16 %v1389, %v1385
  %v1594 = vpack.c.b16 %v1390, %v1386
  %v1595 = vpack.c.b16 %v1395, %v1391
  %v1596 = vpack.c.b16 %v1396, %v1392
  %v1597 = vpack.c.b16 %v1397, %v1393
  %v1598 = vpack.c.b16 %v1398, %v1394
  %v1599 = vpack.c.b16 %v1403, %v1399
  %v1600 = vpack.c.b16 %v1404, %v1400
  %v1601 = vpack.c.b16 %v1405, %v1401
  %v1602 = vpack.c.b16 %v1406, %v1402
  %v1603 = vpack.c.b16 %v1411, %v1407
  %v1604 = vpack.c.b16 %v1412, %v1408
  %v1605 = vpack.c.b16 %v1413, %v1409
  %v1606 = vpack.c.b16 %v1414, %v1410
  %v1607 = vpack.c.b16 %v1419, %v1415
  %v1608 = vpack.c.b16 %v1420, %v1416
  %v1609 = vpack.c.b16 %v1421, %v1417
  %v1610 = vpack.c.b16 %v1422, %v1418
  %v1611 = vpack.c.b16 %v1427, %v1423
  %v1612 = vpack.c.b16 %v1428, %v1424
  %v1613 = vpack.c.b16 %v1429, %v1425
  %v1614 = vpack.c.b16 %v1430, %v1426
  %v1615 = vpack.c.b16 %v1435, %v1431
  %v1616 = vpack.c.b16 %v1436, %v1432
  %v1617 = vpack.c.b16 %v1437, %v1433
  %v1618 = vpack.c.b16 %v1438, %v1434
  %v1619 = vpack.c.b16 %v1443, %v1439
  %v1620 = vpack.c.b16 %v1444, %v1440
  %v1621 = vpack.c.b16 %v1445, %v1441
  %v1622 = vpack.c.b16 %v1446, %v1442
  %v1623 = vpack.c.b16 %v1451, %v1447
  %v1624 = vpack.c.b16 %v1452, %v1448
  %v1625 = vpack.c.b16 %v1453, %v1449
  %v1626 = vpack.c.b16 %v1454, %v1450
  %v1627 = vpack.c.b16 %v1459, %v1455
  %v1628 = vpack.c.b16 %v1460, %v1456
  %v1629 = vpack.c.b16 %v1461, %v1457
  %v1630 = vpack.c.b16 %v1462, %v1458
  %v1631 = vpack.c.b16 %v1467, %v1463
  %v1632 = vpack.c.b16 %v1468, %v1464
  %v1633 = vpack.c.b16 %v1469, %v1465
  %v1634 = vpack.c.b16 %v1470, %v1466
  %v1635 = vpack.c.b16 %v1475, %v1471
  %v1636 = vpack.c.b16 %v1476, %v1472
  %v1637 = vpack.c.b16 %v1477, %v1473
  %v1638 = vpack.c.b16 %v1478, %v1474
  %v1639 = vpack.c.b16 %v1483, %v1479
  %v1640 = vpack.c.b16 %v1484, %v1480
  %v1641 = vpack.c.b16 %v1485, %v1481
  %v1642 = vpack.c.b16 %v1486, %v1482
  %v1643 = vpack.c.b16 %v1491, %v1487
  %v1644 = vpack.c.b16 %v1492, %v1488
  %v1645 = vpack.c.b16 %v1493, %v1489
  %v1646 = vpack.c.b16 %v1494, %v1490
  %v1647 = vpack.c.b16 %v1499, %v1495
  %v1648 = vpack.c.b16 %v1500, %v1496
  %v1649 = vpack.c.b16 %v1501, %v1497
  %v1650 = vpack.c.b16 %v1502, %v1498
  %v1651 = vpack.c.b16 %v1507, %v1503
  %v1652 = vpack.c.b16 %v1508, %v1504
  %v1653 = vpack.c.b16 %v1509, %v1505
  %v1654 = vpack.c.b16 %v1510, %v1506
  %v1655 = vpack.c.b16 %v1515, %v1511
  %v1656 = vpack.c.b16 %v1516, %v1512
  %v1657 = vpack.c.b16 %v1517, %v1513
  %v1658 = vpack.c.b16 %v1518, %v1514
  %v1659 = vpack.c.b16 %v1523, %v1519
  %v1660 = vpack.c.b16 %v1524, %v1520
  %v1661 = vpack.c.b16 %v1525, %v1521
  %v1662 = vpack.c.b16 %v1526, %v1522
  %v1663 = vpack.c.b16 %v1531, %v1527
  %v1664 = vpack.c.b16 %v1532, %v1528
  %v1665 = vpack.c.b16 %v1533, %v1529
  %v1666 = vpack.c.b16 %v1534, %v1530
  %v1667 = vpack.c.b16 %v1539, %v1535
  %v1668 = vpack.c.b16 %v1540, %v1536
  %v1669 = vpack.c.b16 %v1541, %v1537
  %v1670 = vpack.c.b16 %v1542, %v1538
  %1799 = vmatprep.subr.bf16.mxu0 %v1544
  %1800 = vmatpush1.bf16.msra.mxu0 %v1543
  %1801 = vmatprep.subr.bf16.mxu0 %v1548
  %1802 = vmatpush1.bf16.msra.mxu0 %v1547
  %1803 = vmatprep.subr.bf16.mxu0 %v1552
  %1804 = vmatpush1.bf16.msra.mxu0 %v1551
  %1805 = vmatprep.subr.bf16.mxu0 %v1556
  %1806 = vmatpush1.bf16.msra.mxu0 %v1555
  %1807 = vmatprep.subr.bf16.mxu0 %v1560
  %1808 = vmatpush1.bf16.msra.mxu0 %v1559
  %1809 = vmatprep.subr.bf16.mxu0 %v1564
  %1810 = vmatpush1.bf16.msra.mxu0 %v1563
  %1811 = vmatprep.subr.bf16.mxu0 %v1568
  %1812 = vmatpush1.bf16.msra.mxu0 %v1567
  %1813 = vmatprep.subr.bf16.mxu0 %v1572
  %1814 = vmatpush1.bf16.msra.mxu0 %v1571
  %1815 = vmatprep.subr.bf16.mxu0 %v1576
  %1816 = vmatpush1.bf16.msra.mxu0 %v1575
  %1817 = vmatprep.subr.bf16.mxu0 %v1580
  %1818 = vmatpush1.bf16.msra.mxu0 %v1579
  %1819 = vmatprep.subr.bf16.mxu0 %v1584
  %1820 = vmatpush1.bf16.msra.mxu0 %v1583
  %1821 = vmatprep.subr.bf16.mxu0 %v1588
  %1822 = vmatpush1.bf16.msra.mxu0 %v1587
  %1823 = vmatprep.subr.bf16.mxu0 %v1592
  %1824 = vmatpush1.bf16.msra.mxu0 %v1591
  %1825 = vmatprep.subr.bf16.mxu0 %v1596
  %1826 = vmatpush1.bf16.msra.mxu0 %v1595
  %1827 = vmatprep.subr.bf16.mxu0 %v1600
  %1828 = vmatpush1.bf16.msra.mxu0 %v1599
  %1829 = vmatprep.subr.bf16.mxu0 %v1604
  %1830 = vmatpush1.bf16.msra.mxu0 %v1603
  %1831 = vmatprep.mubr.bf16.mxu0 %v1006
  %1832 = vmatmul.mubr.bf16.gmra.mrb[0].mxu0 %v1005
  %v1833 = vpop.f32.mrb[0].mxu0
  %v1834 = vadd.f32 %v1142, %v1833
  %v1835 = vpop.f32.mrb[0].mxu0
  %v1836 = vadd.f32 %v1146, %v1835
  %v1837 = vpop.f32.mrb[0].mxu0
  %v1838 = vpop.f32.mrb[0].mxu0
  %1839 = vdwg.mxu0
  %1840 = vmatprep.subr.bf16.mxu0 %v1608
  %1841 = vmatpush1.bf16.msra.mxu0 %v1607
  %1842 = vmatprep.subr.bf16.mxu0 %v1612
  %1843 = vmatpush1.bf16.msra.mxu0 %v1611
  %1844 = vmatprep.subr.bf16.mxu0 %v1616
  %1845 = vmatpush1.bf16.msra.mxu0 %v1615
  %1846 = vmatprep.subr.bf16.mxu0 %v1620
  %1847 = vmatpush1.bf16.msra.mxu0 %v1619
  %1848 = vmatprep.subr.bf16.mxu0 %v1624
  %1849 = vmatpush1.bf16.msra.mxu0 %v1623
  %1850 = vmatprep.subr.bf16.mxu0 %v1628
  %1851 = vmatpush1.bf16.msra.mxu0 %v1627
  %1852 = vmatprep.subr.bf16.mxu0 %v1632
  %1853 = vmatpush1.bf16.msra.mxu0 %v1631
  %1854 = vmatprep.subr.bf16.mxu0 %v1636
  %1855 = vmatpush1.bf16.msra.mxu0 %v1635
  %1856 = vmatprep.subr.bf16.mxu0 %v1640
  %1857 = vmatpush1.bf16.msra.mxu0 %v1639
  %1858 = vmatprep.subr.bf16.mxu0 %v1644
  %1859 = vmatpush1.bf16.msra.mxu0 %v1643
  %1860 = vmatprep.subr.bf16.mxu0 %v1648
  %1861 = vmatpush1.bf16.msra.mxu0 %v1647
  %1862 = vmatprep.subr.bf16.mxu0 %v1652
  %1863 = vmatpush1.bf16.msra.mxu0 %v1651
  %1864 = vmatprep.subr.bf16.mxu0 %v1656
  %1865 = vmatpush1.bf16.msra.mxu0 %v1655
  %1866 = vmatprep.subr.bf16.mxu0 %v1660
  %1867 = vmatpush1.bf16.msra.mxu0 %v1659
  %1868 = vmatprep.subr.bf16.mxu0 %v1664
  %1869 = vmatpush1.bf16.msra.mxu0 %v1663
  %1870 = vmatprep.subr.bf16.mxu0 %v1668
  %1871 = vmatpush1.bf16.msra.mxu0 %v1667
  %1872 = vmatprep.mubr.bf16.mxu0 %v1008
  %1873 = vmatmul.mubr.bf16.gmra.mrb[0].mxu0 %v1007
  %v1874 = vpop.f32.mrb[0].mxu0
  %v1875 = vadd.f32 %v1834, %v1874
  %v1876 = vpop.f32.mrb[0].mxu0
  %v1877 = vadd.f32 %v1836, %v1876
  %v1878 = vpop.f32.mrb[0].mxu0
  %v1879 = vpop.f32.mrb[0].mxu0
  %1880 = vdwg.mxu0
  %1881 = vmatprep.subr.bf16.mxu0 %v1546
  %1882 = vmatpush1.bf16.msra.mxu0 %v1545
  %1883 = vmatprep.subr.bf16.mxu0 %v1550
  %1884 = vmatpush1.bf16.msra.mxu0 %v1549
  %1885 = vmatprep.subr.bf16.mxu0 %v1554
  %1886 = vmatpush1.bf16.msra.mxu0 %v1553
  %1887 = vmatprep.subr.bf16.mxu0 %v1558
  %1888 = vmatpush1.bf16.msra.mxu0 %v1557
  %1889 = vmatprep.subr.bf16.mxu0 %v1562
  %1890 = vmatpush1.bf16.msra.mxu0 %v1561
  %1891 = vmatprep.subr.bf16.mxu0 %v1566
  %1892 = vmatpush1.bf16.msra.mxu0 %v1565
  %1893 = vmatprep.subr.bf16.mxu0 %v1570
  %1894 = vmatpush1.bf16.msra.mxu0 %v1569
  %1895 = vmatprep.subr.bf16.mxu0 %v1574
  %1896 = vmatpush1.bf16.msra.mxu0 %v1573
  %1897 = vmatprep.subr.bf16.mxu0 %v1578
  %1898 = vmatpush1.bf16.msra.mxu0 %v1577
  %1899 = vmatprep.subr.bf16.mxu0 %v1582
  %1900 = vmatpush1.bf16.msra.mxu0 %v1581
  %1901 = vmatprep.subr.bf16.mxu0 %v1586
  %1902 = vmatpush1.bf16.msra.mxu0 %v1585
  %1903 = vmatprep.subr.bf16.mxu0 %v1590
  %1904 = vmatpush1.bf16.msra.mxu0 %v1589
  %1905 = vmatprep.subr.bf16.mxu0 %v1594
  %1906 = vmatpush1.bf16.msra.mxu0 %v1593
  %1907 = vmatprep.subr.bf16.mxu0 %v1598
  %1908 = vmatpush1.bf16.msra.mxu0 %v1597
  %1909 = vmatprep.subr.bf16.mxu0 %v1602
  %1910 = vmatpush1.bf16.msra.mxu0 %v1601
  %1911 = vmatprep.subr.bf16.mxu0 %v1606
  %1912 = vmatpush1.bf16.msra.mxu0 %v1605
  %1913 = vmatprep.mubr.bf16.mxu0 %v1006
  %1914 = vmatmul.mubr.bf16.gmra.mrb[0].mxu0 %v1005
  %v1915 = vpop.f32.mrb[0].mxu0
  %v1916 = vadd.f32 %v1150, %v1915
  %v1917 = vpop.f32.mrb[0].mxu0
  %v1918 = vadd.f32 %v1154, %v1917
  %v1919 = vpop.f32.mrb[0].mxu0
  %v1920 = vpop.f32.mrb[0].mxu0
  %1921 = vdwg.mxu0
  %1922 = vmatprep.subr.bf16.mxu0 %v1610
  %1923 = vmatpush1.bf16.msra.mxu0 %v1609
  %1924 = vmatprep.subr.bf16.mxu0 %v1614
  %1925 = vmatpush1.bf16.msra.mxu0 %v1613
  %1926 = vmatprep.subr.bf16.mxu0 %v1618
  %1927 = vmatpush1.bf16.msra.mxu0 %v1617
  %1928 = vmatprep.subr.bf16.mxu0 %v1622
  %1929 = vmatpush1.bf16.msra.mxu0 %v1621
  %1930 = vmatprep.subr.bf16.mxu0 %v1626
  %1931 = vmatpush1.bf16.msra.mxu0 %v1625
  %1932 = vmatprep.subr.bf16.mxu0 %v1630
  %1933 = vmatpush1.bf16.msra.mxu0 %v1629
  %1934 = vmatprep.subr.bf16.mxu0 %v1634
  %1935 = vmatpush1.bf16.msra.mxu0 %v1633
  %1936 = vmatprep.subr.bf16.mxu0 %v1638
  %1937 = vmatpush1.bf16.msra.mxu0 %v1637
  %1938 = vmatprep.subr.bf16.mxu0 %v1642
  %1939 = vmatpush1.bf16.msra.mxu0 %v1641
  %1940 = vmatprep.subr.bf16.mxu0 %v1646
  %1941 = vmatpush1.bf16.msra.mxu0 %v1645
  %1942 = vmatprep.subr.bf16.mxu0 %v1650
  %1943 = vmatpush1.bf16.msra.mxu0 %v1649
  %1944 = vmatprep.subr.bf16.mxu0 %v1654
  %1945 = vmatpush1.bf16.msra.mxu0 %v1653
  %1946 = vmatprep.subr.bf16.mxu0 %v1658
  %1947 = vmatpush1.bf16.msra.mxu0 %v1657
  %1948 = vmatprep.subr.bf16.mxu0 %v1662
  %1949 = vmatpush1.bf16.msra.mxu0 %v1661
  %1950 = vmatprep.subr.bf16.mxu0 %v1666
  %1951 = vmatpush1.bf16.msra.mxu0 %v1665
  %1952 = vmatprep.subr.bf16.mxu0 %v1670
  %1953 = vmatpush1.bf16.msra.mxu0 %v1669
  %1954 = vmatprep.mubr.bf16.mxu0 %v1008
  %1955 = vmatmul.mubr.bf16.gmra.mrb[0].mxu0 %v1007
  %v1956 = vpop.f32.mrb[0].mxu0
  %v1957 = vadd.f32 %v1916, %v1956
  %v1958 = vpop.f32.mrb[0].mxu0
  %v1959 = vadd.f32 %v1918, %v1958
  %v1960 = vpop.f32.mrb[0].mxu0
  %v1961 = vpop.f32.mrb[0].mxu0
  %1962 = vdwg.mxu0
  %v1963 = vadd.f32 %v1875, %v29
  %v1964 = vadd.f32 %v1877, %v37
  %v1965 = vadd.f32 %v1957, %v36
  %v1966 = vadd.f32 %v1959, %v38
  %v1967 = vmax.f32 %v1963, 0.0
  %v1968 = vmax.f32 %v1964, 0.0
  %v1969 = vmax.f32 %v1965, 0.0
  %v1970 = vmax.f32 %v1966, 0.0
  %v1975 = vcombine.low %v1967, %v1968
  %v1976 = vcombine.low %v1969, %v1970
  %v1978 = vunpack.c.l.s4 1983009808
  %v1979 = vunpack.c.0.s8 %v1978
  %v1980 = vlaneseq
  %v1981 = vshrl.u32 %v1980, 7
  %v1982 = vsub.s32 %v1979, %v1981
  %v1983 = vrot.slane %v1975, %v1982
  %v1985 = vunpack.c.l.s4 1983009808
  %v1986 = vunpack.c.0.s8 %v1985
  %v1987 = vlaneseq
  %v1988 = vshrl.u32 %v1987, 7
  %v1989 = vsub.s32 %v1986, %v1988
  %v1990 = vrot.slane %v1976, %v1989
  %v1991 = vcombine.low %v1983, %v1990
  %1993 = vst [vmem:[%s5] sm:$0xff] %v1991
  // Predicated region
  $region22: #{resnet18_with_mlp.28} parent=0 // pred_check
    _
  $region23: #{resnet18_with_mlp.28} parent=0 // pred_check_branch
    %1995 = sbr.rel (0) target = $region25
  $region24: #{resnet18_with_mlp.28} parent=0 // pred_region
    _
  $region25: #{resnet18_with_mlp.28} parent=0 // pred_fallthru
    _
  // Predicated region
  $region26: #{resnet18_with_mlp.28} parent=0 // pred_check
    _
  $region27: #{resnet18_with_mlp.28} parent=0 // pred_check_branch
    %1997 = sbr.rel (0) target = $region29
  $region28: #{resnet18_with_mlp.28} parent=0 // pred_region
    _
  $region29: #{resnet18_with_mlp.28} parent=0 // pred_fallthru
    _

// kernel: resnet18_with_mlp.27
$region0: #{resnet18_with_mlp.27}
  #allocation0 [shape = 'u32[]', space=smem, size = 0x4, offset = 0x4, fixed_abs, tag = 'smem constant byte address 0x4 - core index']
  #allocation1 [shape = 'u32[144,128]{1,0:T(1,128)}', space=vmem, size = 0x12000, scoped, tag = 'internal scratch']
  %s0 = inlined_call_operand.vmem [shape: bf16[2,256], index: 0, kind: input, shape index: {}, may-alias: {0,1}]
  %s1 = inlined_call_operand.vmem [shape: bf16[2,256], index: 1, kind: input, shape index: {}, may-alias: {0,1}]
  %s2 = inlined_call_operand.vmem [shape: bf16[256,512], index: 2, kind: input, shape index: {}]
  %s3 = inlined_call_operand.vmem [shape: f32[1,512], index: 3, kind: input, shape index: {}]
  %s4 = inlined_call_operand.vmem [shape: bf16[256,512], index: 4, kind: input, shape index: {}]
  %s5 = inlined_call_operand.vmem [shape: f32[1,512], index: 5, kind: input, shape index: {}]
  %s6 = inlined_call_operand.vmem [shape: bf16[512,512], index: 6, kind: input, shape index: {}]
  %s7 = inlined_call_operand.vmem [shape: f32[1,512], index: 7, kind: input, shape index: {}]
  %s8 = inlined_call_operand.vmem [shape: f32[2,512], index: 8, kind: output, shape index: {}]
  %s9 = sld [smem:[#allocation0]]
  $region42: #{resnet18_with_mlp.27} parent=0
    _
  %s11 = ssub.s32 1, %s9
  %s12 = scalar_select 0, %s11, %s9
  // Predicated region
  $region2: #{resnet18_with_mlp.27} parent=0 // pred_check
    _
  $region3: #{resnet18_with_mlp.27} parent=0 // pred_check_branch
    %14 = sbr.rel (0) target = $region5
  $region4: #{resnet18_with_mlp.27} parent=0 // pred_region
    _
  $region5: #{resnet18_with_mlp.27} parent=0 // pred_fallthru
    _
  // Predicated region
  $region6: #{resnet18_with_mlp.27} parent=0 // pred_check
    _
  $region7: #{resnet18_with_mlp.27} parent=0 // pred_check_branch
    %16 = sbr.rel (0) target = $region9
  $region8: #{resnet18_with_mlp.27} parent=0 // pred_region
    _
  $region9: #{resnet18_with_mlp.27} parent=0 // pred_fallthru
    _
  // Predicated region
  $region10: #{resnet18_with_mlp.27} parent=0 // pred_check
    _
  $region11: #{resnet18_with_mlp.27} parent=0 // pred_check_branch
    %18 = sbr.rel (0) target = $region13
  $region12: #{resnet18_with_mlp.27} parent=0 // pred_region
    _
  $region13: #{resnet18_with_mlp.27} parent=0 // pred_fallthru
    _
  // Predicated region
  $region14: #{resnet18_with_mlp.27} parent=0 // pred_check
    _
  $region15: #{resnet18_with_mlp.27} parent=0 // pred_check_branch
    %20 = sbr.rel (0) target = $region17
  $region16: #{resnet18_with_mlp.27} parent=0 // pred_region
    _
  $region17: #{resnet18_with_mlp.27} parent=0 // pred_fallthru
    _
  // Predicated region
  $region18: #{resnet18_with_mlp.27} parent=0 // pred_check
    _
  $region19: #{resnet18_with_mlp.27} parent=0 // pred_check_branch
    %22 = sbr.rel (0) target = $region21
  $region20: #{resnet18_with_mlp.27} parent=0 // pred_region
    _
  $region21: #{resnet18_with_mlp.27} parent=0 // pred_fallthru
    _
  // Predicated region
  $region22: #{resnet18_with_mlp.27} parent=0 // pred_check
    _
  $region23: #{resnet18_with_mlp.27} parent=0 // pred_check_branch
    %24 = sbr.rel (0) target = $region25
  $region24: #{resnet18_with_mlp.27} parent=0 // pred_region
    _
  $region25: #{resnet18_with_mlp.27} parent=0 // pred_fallthru
    _
  // Predicated region
  $region26: #{resnet18_with_mlp.27} parent=0 // pred_check
    _
  $region27: #{resnet18_with_mlp.27} parent=0 // pred_check_branch
    %26 = sbr.rel (0) target = $region29
  $region28: #{resnet18_with_mlp.27} parent=0 // pred_region
    _
  $region29: #{resnet18_with_mlp.27} parent=0 // pred_fallthru
    _
  // Predicated region
  $region30: #{resnet18_with_mlp.27} parent=0 // pred_check
    _
  $region31: #{resnet18_with_mlp.27} parent=0 // pred_check_branch
    %28 = sbr.rel (0) target = $region33
  $region32: #{resnet18_with_mlp.27} parent=0 // pred_region
    _
  $region33: #{resnet18_with_mlp.27} parent=0 // pred_fallthru
    _
  %v29 = vld [vmem:[%s0] sm:$0x3]
  %v30 = vld [vmem:[%s2] sm:$0xff]
  %v31 = vld [vmem:[%s2 + $0x8] sm:$0xff]
  %v32 = vld [vmem:[%s2 + $0x10] sm:$0xff]
  %v33 = vld [vmem:[%s2 + $0x18] sm:$0xff]
  %v34 = vld [vmem:[%s2 + $0x20] sm:$0xff]
  %v35 = vld [vmem:[%s2 + $0x28] sm:$0xff]
  %v36 = vld [vmem:[%s2 + $0x30] sm:$0xff]
  %v37 = vld [vmem:[%s2 + $0x38] sm:$0xff]
  %v38 = vld [vmem:[%s2 + $0x40] sm:$0xff]
  %v39 = vld [vmem:[%s2 + $0x48] sm:$0xff]
  %v40 = vld [vmem:[%s2 + $0x50] sm:$0xff]
  %v41 = vld [vmem:[%s2 + $0x58] sm:$0xff]
  %v42 = vld [vmem:[%s2 + $0x60] sm:$0xff]
  %v43 = vld [vmem:[%s2 + $0x68] sm:$0xff]
  %v44 = vld [vmem:[%s2 + $0x70] sm:$0xff]
  %v45 = vld [vmem:[%s2 + $0x78] sm:$0xff]
  %v46 = vld [vmem:[%s2 + $0x80] sm:$0xff]
  %v47 = vld [vmem:[%s2 + $0x88] sm:$0xff]
  %v48 = vld [vmem:[%s2 + $0x90] sm:$0xff]
  %v49 = vld [vmem:[%s2 + $0x98] sm:$0xff]
  %v50 = vld [vmem:[%s2 + $0xa0] sm:$0xff]
  %v51 = vld [vmem:[%s2 + $0xa8] sm:$0xff]
  %v52 = vld [vmem:[%s2 + $0xb0] sm:$0xff]
  %v53 = vld [vmem:[%s2 + $0xb8] sm:$0xff]
  %v54 = vld [vmem:[%s2 + $0xc0] sm:$0xff]
  %v55 = vld [vmem:[%s2 + $0xc8] sm:$0xff]
  %v56 = vld [vmem:[%s2 + $0xd0] sm:$0xff]
  %v57 = vld [vmem:[%s2 + $0xd8] sm:$0xff]
  %v58 = vld [vmem:[%s2 + $0xe0] sm:$0xff]
  %v59 = vld [vmem:[%s2 + $0xe8] sm:$0xff]
  %v60 = vld [vmem:[%s2 + $0xf0] sm:$0xff]
  %v61 = vld [vmem:[%s2 + $0xf8] sm:$0xff]
  %v62 = vld [vmem:[%s2 + $0x100] sm:$0xff]
  %v63 = vld [vmem:[%s2 + $0x108] sm:$0xff]
  %v64 = vld [vmem:[%s2 + $0x110] sm:$0xff]
  %v65 = vld [vmem:[%s2 + $0x118] sm:$0xff]
  %v66 = vld [vmem:[%s2 + $0x120] sm:$0xff]
  %v67 = vld [vmem:[%s2 + $0x128] sm:$0xff]
  %v68 = vld [vmem:[%s2 + $0x130] sm:$0xff]
  %v69 = vld [vmem:[%s2 + $0x138] sm:$0xff]
  %v70 = vld [vmem:[%s2 + $0x140] sm:$0xff]
  %v71 = vld [vmem:[%s2 + $0x148] sm:$0xff]
  %v72 = vld [vmem:[%s2 + $0x150] sm:$0xff]
  %v73 = vld [vmem:[%s2 + $0x158] sm:$0xff]
  %v74 = vld [vmem:[%s2 + $0x160] sm:$0xff]
  %v75 = vld [vmem:[%s2 + $0x168] sm:$0xff]
  %v76 = vld [vmem:[%s2 + $0x170] sm:$0xff]
  %v77 = vld [vmem:[%s2 + $0x178] sm:$0xff]
  %v78 = vld [vmem:[%s2 + $0x180] sm:$0xff]
  %v79 = vld [vmem:[%s2 + $0x188] sm:$0xff]
  %v80 = vld [vmem:[%s2 + $0x190] sm:$0xff]
  %v81 = vld [vmem:[%s2 + $0x198] sm:$0xff]
  %v82 = vld [vmem:[%s2 + $0x1a0] sm:$0xff]
  %v83 = vld [vmem:[%s2 + $0x1a8] sm:$0xff]
  %v84 = vld [vmem:[%s2 + $0x1b0] sm:$0xff]
  %v85 = vld [vmem:[%s2 + $0x1b8] sm:$0xff]
  %v86 = vld [vmem:[%s2 + $0x1c0] sm:$0xff]
  %v87 = vld [vmem:[%s2 + $0x1c8] sm:$0xff]
  %v88 = vld [vmem:[%s2 + $0x1d0] sm:$0xff]
  %v89 = vld [vmem:[%s2 + $0x1d8] sm:$0xff]
  %v90 = vld [vmem:[%s2 + $0x1e0] sm:$0xff]
  %v91 = vld [vmem:[%s2 + $0x1e8] sm:$0xff]
  %v92 = vld [vmem:[%s2 + $0x1f0] sm:$0xff]
  %v93 = vld [vmem:[%s2 + $0x1f8] sm:$0xff]
  %v94 = vld [vmem:[%s3] sm:$0xf]
  %v96 = vlaneseq
  %v97 = vshrl.u32 %v96, 7
  %v98 = vsub.s32 0, %v97
  %v99 = vrot.slane %v94, %v98
  %v100 = vlaneseq
  %v101 = vshrl.u32 %v100, 7
  %v102 = vsub.s32 1, %v101
  %v103 = vrot.slane %v94, %v102
  %v104 = vlaneseq
  %v105 = vshrl.u32 %v104, 7
  %v106 = vsub.s32 2, %v105
  %v107 = vrot.slane %v94, %v106
  %v108 = vlaneseq
  %v109 = vshrl.u32 %v108, 7
  %v110 = vsub.s32 3, %v109
  %v111 = vrot.slane %v94, %v110
  %v118 = vunpack.c.l.s4 1966171168
  %v119 = vunpack.c.0.s8 %v118
  %v120 = vlaneseq
  %v121 = vshrl.u32 %v120, 7
  %v122 = vsub.s32 %v119, %v121
  %v123 = vrot.slane %v29, %v122
  %v124 = vcombine.high %v123, %v123
  %v126 = vunpack.c.l.s4 1966171168
  %v127 = vunpack.c.0.s8 %v126
  %v128 = vlaneseq
  %v129 = vshrl.u32 %v128, 7
  %v130 = vsub.s32 %v127, %v129
  %v131 = vrot.slane %v123, %v130
  %v133 = vunpack.c.l.s4 1966171168
  %v134 = vunpack.c.0.s8 %v133
  %v135 = vlaneseq
  %v136 = vshrl.u32 %v135, 7
  %v137 = vsub.s32 %v134, %v136
  %v138 = vrot.slane %v124, %v137
  %v205 = vunpack.c.l.b16 %v30
  %v206 = vunpack.c.h.b16 %v30
  %v207 = vunpack.c.l.b16 %v31
  %v208 = vunpack.c.h.b16 %v31
  %v209 = vunpack.c.l.b16 %v32
  %v210 = vunpack.c.h.b16 %v32
  %v211 = vunpack.c.l.b16 %v33
  %v212 = vunpack.c.h.b16 %v33
  %v213 = vunpack.c.l.b16 %v34
  %v214 = vunpack.c.h.b16 %v34
  %v215 = vunpack.c.l.b16 %v35
  %v216 = vunpack.c.h.b16 %v35
  %v217 = vunpack.c.l.b16 %v36
  %v218 = vunpack.c.h.b16 %v36
  %v219 = vunpack.c.l.b16 %v37
  %v220 = vunpack.c.h.b16 %v37
  %v221 = vunpack.c.l.b16 %v38
  %v222 = vunpack.c.h.b16 %v38
  %v223 = vunpack.c.l.b16 %v39
  %v224 = vunpack.c.h.b16 %v39
  %v225 = vunpack.c.l.b16 %v40
  %v226 = vunpack.c.h.b16 %v40
  %v227 = vunpack.c.l.b16 %v41
  %v228 = vunpack.c.h.b16 %v41
  %v229 = vunpack.c.l.b16 %v42
  %v230 = vunpack.c.h.b16 %v42
  %v231 = vunpack.c.l.b16 %v43
  %v232 = vunpack.c.h.b16 %v43
  %v233 = vunpack.c.l.b16 %v44
  %v234 = vunpack.c.h.b16 %v44
  %v235 = vunpack.c.l.b16 %v45
  %v236 = vunpack.c.h.b16 %v45
  %v237 = vunpack.c.l.b16 %v46
  %v238 = vunpack.c.h.b16 %v46
  %v239 = vunpack.c.l.b16 %v47
  %v240 = vunpack.c.h.b16 %v47
  %v241 = vunpack.c.l.b16 %v48
  %v242 = vunpack.c.h.b16 %v48
  %v243 = vunpack.c.l.b16 %v49
  %v244 = vunpack.c.h.b16 %v49
  %v245 = vunpack.c.l.b16 %v50
  %v246 = vunpack.c.h.b16 %v50
  %v247 = vunpack.c.l.b16 %v51
  %v248 = vunpack.c.h.b16 %v51
  %v249 = vunpack.c.l.b16 %v52
  %v250 = vunpack.c.h.b16 %v52
  %v251 = vunpack.c.l.b16 %v53
  %v252 = vunpack.c.h.b16 %v53
  %v253 = vunpack.c.l.b16 %v54
  %v254 = vunpack.c.h.b16 %v54
  %v255 = vunpack.c.l.b16 %v55
  %v256 = vunpack.c.h.b16 %v55
  %v257 = vunpack.c.l.b16 %v56
  %v258 = vunpack.c.h.b16 %v56
  %v259 = vunpack.c.l.b16 %v57
  %v260 = vunpack.c.h.b16 %v57
  %v261 = vunpack.c.l.b16 %v58
  %v262 = vunpack.c.h.b16 %v58
  %v263 = vunpack.c.l.b16 %v59
  %v264 = vunpack.c.h.b16 %v59
  %v265 = vunpack.c.l.b16 %v60
  %v266 = vunpack.c.h.b16 %v60
  %v267 = vunpack.c.l.b16 %v61
  %v268 = vunpack.c.h.b16 %v61
  %v269 = vunpack.c.l.b16 %v62
  %v270 = vunpack.c.h.b16 %v62
  %v271 = vunpack.c.l.b16 %v63
  %v272 = vunpack.c.h.b16 %v63
  %v273 = vunpack.c.l.b16 %v64
  %v274 = vunpack.c.h.b16 %v64
  %v275 = vunpack.c.l.b16 %v65
  %v276 = vunpack.c.h.b16 %v65
  %v277 = vunpack.c.l.b16 %v66
  %v278 = vunpack.c.h.b16 %v66
  %v279 = vunpack.c.l.b16 %v67
  %v280 = vunpack.c.h.b16 %v67
  %v281 = vunpack.c.l.b16 %v68
  %v282 = vunpack.c.h.b16 %v68
  %v283 = vunpack.c.l.b16 %v69
  %v284 = vunpack.c.h.b16 %v69
  %v285 = vunpack.c.l.b16 %v70
  %v286 = vunpack.c.h.b16 %v70
  %v287 = vunpack.c.l.b16 %v71
  %v288 = vunpack.c.h.b16 %v71
  %v289 = vunpack.c.l.b16 %v72
  %v290 = vunpack.c.h.b16 %v72
  %v291 = vunpack.c.l.b16 %v73
  %v292 = vunpack.c.h.b16 %v73
  %v293 = vunpack.c.l.b16 %v74
  %v294 = vunpack.c.h.b16 %v74
  %v295 = vunpack.c.l.b16 %v75
  %v296 = vunpack.c.h.b16 %v75
  %v297 = vunpack.c.l.b16 %v76
  %v298 = vunpack.c.h.b16 %v76
  %v299 = vunpack.c.l.b16 %v77
  %v300 = vunpack.c.h.b16 %v77
  %v301 = vunpack.c.l.b16 %v78
  %v302 = vunpack.c.h.b16 %v78
  %v303 = vunpack.c.l.b16 %v79
  %v304 = vunpack.c.h.b16 %v79
  %v305 = vunpack.c.l.b16 %v80
  %v306 = vunpack.c.h.b16 %v80
  %v307 = vunpack.c.l.b16 %v81
  %v308 = vunpack.c.h.b16 %v81
  %v309 = vunpack.c.l.b16 %v82
  %v310 = vunpack.c.h.b16 %v82
  %v311 = vunpack.c.l.b16 %v83
  %v312 = vunpack.c.h.b16 %v83
  %v313 = vunpack.c.l.b16 %v84
  %v314 = vunpack.c.h.b16 %v84
  %v315 = vunpack.c.l.b16 %v85
  %v316 = vunpack.c.h.b16 %v85
  %v317 = vunpack.c.l.b16 %v86
  %v318 = vunpack.c.h.b16 %v86
  %v319 = vunpack.c.l.b16 %v87
  %v320 = vunpack.c.h.b16 %v87
  %v321 = vunpack.c.l.b16 %v88
  %v322 = vunpack.c.h.b16 %v88
  %v323 = vunpack.c.l.b16 %v89
  %v324 = vunpack.c.h.b16 %v89
  %v325 = vunpack.c.l.b16 %v90
  %v326 = vunpack.c.h.b16 %v90
  %v327 = vunpack.c.l.b16 %v91
  %v328 = vunpack.c.h.b16 %v91
  %v329 = vunpack.c.l.b16 %v92
  %v330 = vunpack.c.h.b16 %v92
  %v331 = vunpack.c.l.b16 %v93
  %v332 = vunpack.c.h.b16 %v93
  %v333 = vpack.c.b16 %v209, %v205
  %v334 = vpack.c.b16 %v210, %v206
  %v335 = vpack.c.b16 %v211, %v207
  %v336 = vpack.c.b16 %v212, %v208
  %v337 = vpack.c.b16 %v217, %v213
  %v338 = vpack.c.b16 %v218, %v214
  %v339 = vpack.c.b16 %v219, %v215
  %v340 = vpack.c.b16 %v220, %v216
  %v341 = vpack.c.b16 %v225, %v221
  %v342 = vpack.c.b16 %v226, %v222
  %v343 = vpack.c.b16 %v227, %v223
  %v344 = vpack.c.b16 %v228, %v224
  %v345 = vpack.c.b16 %v233, %v229
  %v346 = vpack.c.b16 %v234, %v230
  %v347 = vpack.c.b16 %v235, %v231
  %v348 = vpack.c.b16 %v236, %v232
  %v349 = vpack.c.b16 %v241, %v237
  %v350 = vpack.c.b16 %v242, %v238
  %v351 = vpack.c.b16 %v243, %v239
  %v352 = vpack.c.b16 %v244, %v240
  %v353 = vpack.c.b16 %v249, %v245
  %v354 = vpack.c.b16 %v250, %v246
  %v355 = vpack.c.b16 %v251, %v247
  %v356 = vpack.c.b16 %v252, %v248
  %v357 = vpack.c.b16 %v257, %v253
  %v358 = vpack.c.b16 %v258, %v254
  %v359 = vpack.c.b16 %v259, %v255
  %v360 = vpack.c.b16 %v260, %v256
  %v361 = vpack.c.b16 %v265, %v261
  %v362 = vpack.c.b16 %v266, %v262
  %v363 = vpack.c.b16 %v267, %v263
  %v364 = vpack.c.b16 %v268, %v264
  %v365 = vpack.c.b16 %v273, %v269
  %v366 = vpack.c.b16 %v274, %v270
  %v367 = vpack.c.b16 %v275, %v271
  %v368 = vpack.c.b16 %v276, %v272
  %v369 = vpack.c.b16 %v281, %v277
  %v370 = vpack.c.b16 %v282, %v278
  %v371 = vpack.c.b16 %v283, %v279
  %v372 = vpack.c.b16 %v284, %v280
  %v373 = vpack.c.b16 %v289, %v285
  %v374 = vpack.c.b16 %v290, %v286
  %v375 = vpack.c.b16 %v291, %v287
  %v376 = vpack.c.b16 %v292, %v288
  %v377 = vpack.c.b16 %v297, %v293
  %v378 = vpack.c.b16 %v298, %v294
  %v379 = vpack.c.b16 %v299, %v295
  %v380 = vpack.c.b16 %v300, %v296
  %v381 = vpack.c.b16 %v305, %v301
  %v382 = vpack.c.b16 %v306, %v302
  %v383 = vpack.c.b16 %v307, %v303
  %v384 = vpack.c.b16 %v308, %v304
  %v385 = vpack.c.b16 %v313, %v309
  %v386 = vpack.c.b16 %v314, %v310
  %v387 = vpack.c.b16 %v315, %v311
  %v388 = vpack.c.b16 %v316, %v312
  %v389 = vpack.c.b16 %v321, %v317
  %v390 = vpack.c.b16 %v322, %v318
  %v391 = vpack.c.b16 %v323, %v319
  %v392 = vpack.c.b16 %v324, %v320
  %v393 = vpack.c.b16 %v329, %v325
  %v394 = vpack.c.b16 %v330, %v326
  %v395 = vpack.c.b16 %v331, %v327
  %v396 = vpack.c.b16 %v332, %v328
  %461 = vmatprep.subr.bf16.mxu0 %v334
  %462 = vmatpush1.bf16.msra.mxu0 %v333
  %463 = vmatprep.subr.bf16.mxu0 %v338
  %464 = vmatpush1.bf16.msra.mxu0 %v337
  %465 = vmatprep.subr.bf16.mxu0 %v342
  %466 = vmatpush1.bf16.msra.mxu0 %v341
  %467 = vmatprep.subr.bf16.mxu0 %v346
  %468 = vmatpush1.bf16.msra.mxu0 %v345
  %469 = vmatprep.subr.bf16.mxu0 %v350
  %470 = vmatpush1.bf16.msra.mxu0 %v349
  %471 = vmatprep.subr.bf16.mxu0 %v354
  %472 = vmatpush1.bf16.msra.mxu0 %v353
  %473 = vmatprep.subr.bf16.mxu0 %v358
  %474 = vmatpush1.bf16.msra.mxu0 %v357
  %475 = vmatprep.subr.bf16.mxu0 %v362
  %476 = vmatpush1.bf16.msra.mxu0 %v361
  %477 = vmatprep.subr.bf16.mxu0 %v366
  %478 = vmatpush1.bf16.msra.mxu0 %v365
  %479 = vmatprep.subr.bf16.mxu0 %v370
  %480 = vmatpush1.bf16.msra.mxu0 %v369
  %481 = vmatprep.subr.bf16.mxu0 %v374
  %482 = vmatpush1.bf16.msra.mxu0 %v373
  %483 = vmatprep.subr.bf16.mxu0 %v378
  %484 = vmatpush1.bf16.msra.mxu0 %v377
  %485 = vmatprep.subr.bf16.mxu0 %v382
  %486 = vmatpush1.bf16.msra.mxu0 %v381
  %487 = vmatprep.subr.bf16.mxu0 %v386
  %488 = vmatpush1.bf16.msra.mxu0 %v385
  %489 = vmatprep.subr.bf16.mxu0 %v390
  %490 = vmatpush1.bf16.msra.mxu0 %v389
  %491 = vmatprep.subr.bf16.mxu0 %v394
  %492 = vmatpush1.bf16.msra.mxu0 %v393
  %493 = vmatprep.mubr.bf16.mxu0 %v138
  %494 = vmatmul.mubr.bf16.gmra.mrb[0].mxu0 %v131
  %v495 = vpop.f32.mrb[0].mxu0
  %v496 = vadd.f32 %v99, %v495
  %v497 = vpop.f32.mrb[0].mxu0
  %v498 = vadd.f32 %v103, %v497
  %v499 = vpop.f32.mrb[0].mxu0
  %v500 = vpop.f32.mrb[0].mxu0
  %501 = vdwg.mxu0
  %502 = vmatprep.subr.bf16.mxu0 %v336
  %503 = vmatpush1.bf16.msra.mxu0 %v335
  %504 = vmatprep.subr.bf16.mxu0 %v340
  %505 = vmatpush1.bf16.msra.mxu0 %v339
  %506 = vmatprep.subr.bf16.mxu0 %v344
  %507 = vmatpush1.bf16.msra.mxu0 %v343
  %508 = vmatprep.subr.bf16.mxu0 %v348
  %509 = vmatpush1.bf16.msra.mxu0 %v347
  %510 = vmatprep.subr.bf16.mxu0 %v352
  %511 = vmatpush1.bf16.msra.mxu0 %v351
  %512 = vmatprep.subr.bf16.mxu0 %v356
  %513 = vmatpush1.bf16.msra.mxu0 %v355
  %514 = vmatprep.subr.bf16.mxu0 %v360
  %515 = vmatpush1.bf16.msra.mxu0 %v359
  %516 = vmatprep.subr.bf16.mxu0 %v364
  %517 = vmatpush1.bf16.msra.mxu0 %v363
  %518 = vmatprep.subr.bf16.mxu0 %v368
  %519 = vmatpush1.bf16.msra.mxu0 %v367
  %520 = vmatprep.subr.bf16.mxu0 %v372
  %521 = vmatpush1.bf16.msra.mxu0 %v371
  %522 = vmatprep.subr.bf16.mxu0 %v376
  %523 = vmatpush1.bf16.msra.mxu0 %v375
  %524 = vmatprep.subr.bf16.mxu0 %v380
  %525 = vmatpush1.bf16.msra.mxu0 %v379
  %526 = vmatprep.subr.bf16.mxu0 %v384
  %527 = vmatpush1.bf16.msra.mxu0 %v383
  %528 = vmatprep.subr.bf16.mxu0 %v388
  %529 = vmatpush1.bf16.msra.mxu0 %v387
  %530 = vmatprep.subr.bf16.mxu0 %v392
  %531 = vmatpush1.bf16.msra.mxu0 %v391
  %532 = vmatprep.subr.bf16.mxu0 %v396
  %533 = vmatpush1.bf16.msra.mxu0 %v395
  %534 = vmatprep.mubr.bf16.mxu0 %v138
  %535 = vmatmul.mubr.bf16.gmra.mrb[0].mxu0 %v131
  %v536 = vpop.f32.mrb[0].mxu0
  %v537 = vadd.f32 %v107, %v536
  %v538 = vpop.f32.mrb[0].mxu0
  %v539 = vadd.f32 %v111, %v538
  %v540 = vpop.f32.mrb[0].mxu0
  %v541 = vpop.f32.mrb[0].mxu0
  %542 = vdwg.mxu0
  %v543 = vmax.f32 %v496, 0.0
  %v544 = vmax.f32 %v498, 0.0
  %v545 = vmax.f32 %v537, 0.0
  %v546 = vmax.f32 %v539, 0.0
  %v547 = vld [vmem:[%s1] sm:$0x3]
  %v548 = vld [vmem:[%s4] sm:$0xff]
  %v549 = vld [vmem:[%s4 + $0x8] sm:$0xff]
  %v550 = vld [vmem:[%s4 + $0x10] sm:$0xff]
  %v551 = vld [vmem:[%s4 + $0x18] sm:$0xff]
  %v552 = vld [vmem:[%s4 + $0x20] sm:$0xff]
  %v553 = vld [vmem:[%s4 + $0x28] sm:$0xff]
  %v554 = vld [vmem:[%s4 + $0x30] sm:$0xff]
  %v555 = vld [vmem:[%s4 + $0x38] sm:$0xff]
  %v556 = vld [vmem:[%s4 + $0x40] sm:$0xff]
  %v557 = vld [vmem:[%s4 + $0x48] sm:$0xff]
  %v558 = vld [vmem:[%s4 + $0x50] sm:$0xff]
  %v559 = vld [vmem:[%s4 + $0x58] sm:$0xff]
  %v560 = vld [vmem:[%s4 + $0x60] sm:$0xff]
  %v561 = vld [vmem:[%s4 + $0x68] sm:$0xff]
  %v562 = vld [vmem:[%s4 + $0x70] sm:$0xff]
  %v563 = vld [vmem:[%s4 + $0x78] sm:$0xff]
  %v564 = vld [vmem:[%s4 + $0x80] sm:$0xff]
  %v565 = vld [vmem:[%s4 + $0x88] sm:$0xff]
  %v566 = vld [vmem:[%s4 + $0x90] sm:$0xff]
  %v567 = vld [vmem:[%s4 + $0x98] sm:$0xff]
  %v568 = vld [vmem:[%s4 + $0xa0] sm:$0xff]
  %v569 = vld [vmem:[%s4 + $0xa8] sm:$0xff]
  %v570 = vld [vmem:[%s4 + $0xb0] sm:$0xff]
  %v571 = vld [vmem:[%s4 + $0xb8] sm:$0xff]
  %v572 = vld [vmem:[%s4 + $0xc0] sm:$0xff]
  %v573 = vld [vmem:[%s4 + $0xc8] sm:$0xff]
  %v574 = vld [vmem:[%s4 + $0xd0] sm:$0xff]
  %v575 = vld [vmem:[%s4 + $0xd8] sm:$0xff]
  %v576 = vld [vmem:[%s4 + $0xe0] sm:$0xff]
  %v577 = vld [vmem:[%s4 + $0xe8] sm:$0xff]
  %v578 = vld [vmem:[%s4 + $0xf0] sm:$0xff]
  %v579 = vld [vmem:[%s4 + $0xf8] sm:$0xff]
  %v580 = vld [vmem:[%s4 + $0x100] sm:$0xff]
  %v581 = vld [vmem:[%s4 + $0x108] sm:$0xff]
  %v582 = vld [vmem:[%s4 + $0x110] sm:$0xff]
  %v583 = vld [vmem:[%s4 + $0x118] sm:$0xff]
  %v584 = vld [vmem:[%s4 + $0x120] sm:$0xff]
  %v585 = vld [vmem:[%s4 + $0x128] sm:$0xff]
  %v586 = vld [vmem:[%s4 + $0x130] sm:$0xff]
  %v587 = vld [vmem:[%s4 + $0x138] sm:$0xff]
  %v588 = vld [vmem:[%s4 + $0x140] sm:$0xff]
  %v589 = vld [vmem:[%s4 + $0x148] sm:$0xff]
  %v590 = vld [vmem:[%s4 + $0x150] sm:$0xff]
  %v591 = vld [vmem:[%s4 + $0x158] sm:$0xff]
  %v592 = vld [vmem:[%s4 + $0x160] sm:$0xff]
  %v593 = vld [vmem:[%s4 + $0x168] sm:$0xff]
  %v594 = vld [vmem:[%s4 + $0x170] sm:$0xff]
  %v595 = vld [vmem:[%s4 + $0x178] sm:$0xff]
  %v596 = vld [vmem:[%s4 + $0x180] sm:$0xff]
  %v597 = vld [vmem:[%s4 + $0x188] sm:$0xff]
  %v598 = vld [vmem:[%s4 + $0x190] sm:$0xff]
  %v599 = vld [vmem:[%s4 + $0x198] sm:$0xff]
  %v600 = vld [vmem:[%s4 + $0x1a0] sm:$0xff]
  %v601 = vld [vmem:[%s4 + $0x1a8] sm:$0xff]
  %v602 = vld [vmem:[%s4 + $0x1b0] sm:$0xff]
  %v603 = vld [vmem:[%s4 + $0x1b8] sm:$0xff]
  %v604 = vld [vmem:[%s4 + $0x1c0] sm:$0xff]
  %v605 = vld [vmem:[%s4 + $0x1c8] sm:$0xff]
  %v606 = vld [vmem:[%s4 + $0x1d0] sm:$0xff]
  %v607 = vld [vmem:[%s4 + $0x1d8] sm:$0xff]
  %v608 = vld [vmem:[%s4 + $0x1e0] sm:$0xff]
  %v609 = vld [vmem:[%s4 + $0x1e8] sm:$0xff]
  %v610 = vld [vmem:[%s4 + $0x1f0] sm:$0xff]
  %v611 = vld [vmem:[%s4 + $0x1f8] sm:$0xff]
  %v612 = vld [vmem:[%s5] sm:$0xf]
  %v614 = vlaneseq
  %v615 = vshrl.u32 %v614, 7
  %v616 = vsub.s32 0, %v615
  %v617 = vrot.slane %v612, %v616
  %v618 = vlaneseq
  %v619 = vshrl.u32 %v618, 7
  %v620 = vsub.s32 1, %v619
  %v621 = vrot.slane %v612, %v620
  %v622 = vlaneseq
  %v623 = vshrl.u32 %v622, 7
  %v624 = vsub.s32 2, %v623
  %v625 = vrot.slane %v612, %v624
  %v626 = vlaneseq
  %v627 = vshrl.u32 %v626, 7
  %v628 = vsub.s32 3, %v627
  %v629 = vrot.slane %v612, %v628
  %v636 = vunpack.c.l.s4 1966171168
  %v637 = vunpack.c.0.s8 %v636
  %v638 = vlaneseq
  %v639 = vshrl.u32 %v638, 7
  %v640 = vsub.s32 %v637, %v639
  %v641 = vrot.slane %v547, %v640
  %v642 = vcombine.high %v641, %v641
  %v644 = vunpack.c.l.s4 1966171168
  %v645 = vunpack.c.0.s8 %v644
  %v646 = vlaneseq
  %v647 = vshrl.u32 %v646, 7
  %v648 = vsub.s32 %v645, %v647
  %v649 = vrot.slane %v641, %v648
  %v651 = vunpack.c.l.s4 1966171168
  %v652 = vunpack.c.0.s8 %v651
  %v653 = vlaneseq
  %v654 = vshrl.u32 %v653, 7
  %v655 = vsub.s32 %v652, %v654
  %v656 = vrot.slane %v642, %v655
  %v723 = vunpack.c.l.b16 %v548
  %v724 = vunpack.c.h.b16 %v548
  %v725 = vunpack.c.l.b16 %v549
  %v726 = vunpack.c.h.b16 %v549
  %v727 = vunpack.c.l.b16 %v550
  %v728 = vunpack.c.h.b16 %v550
  %v729 = vunpack.c.l.b16 %v551
  %v730 = vunpack.c.h.b16 %v551
  %v731 = vunpack.c.l.b16 %v552
  %v732 = vunpack.c.h.b16 %v552
  %v733 = vunpack.c.l.b16 %v553
  %v734 = vunpack.c.h.b16 %v553
  %v735 = vunpack.c.l.b16 %v554
  %v736 = vunpack.c.h.b16 %v554
  %v737 = vunpack.c.l.b16 %v555
  %v738 = vunpack.c.h.b16 %v555
  %v739 = vunpack.c.l.b16 %v556
  %v740 = vunpack.c.h.b16 %v556
  %v741 = vunpack.c.l.b16 %v557
  %v742 = vunpack.c.h.b16 %v557
  %v743 = vunpack.c.l.b16 %v558
  %v744 = vunpack.c.h.b16 %v558
  %v745 = vunpack.c.l.b16 %v559
  %v746 = vunpack.c.h.b16 %v559
  %v747 = vunpack.c.l.b16 %v560
  %v748 = vunpack.c.h.b16 %v560
  %v749 = vunpack.c.l.b16 %v561
  %v750 = vunpack.c.h.b16 %v561
  %v751 = vunpack.c.l.b16 %v562
  %v752 = vunpack.c.h.b16 %v562
  %v753 = vunpack.c.l.b16 %v563
  %v754 = vunpack.c.h.b16 %v563
  %v755 = vunpack.c.l.b16 %v564
  %v756 = vunpack.c.h.b16 %v564
  %v757 = vunpack.c.l.b16 %v565
  %v758 = vunpack.c.h.b16 %v565
  %v759 = vunpack.c.l.b16 %v566
  %v760 = vunpack.c.h.b16 %v566
  %v761 = vunpack.c.l.b16 %v567
  %v762 = vunpack.c.h.b16 %v567
  %v763 = vunpack.c.l.b16 %v568
  %v764 = vunpack.c.h.b16 %v568
  %v765 = vunpack.c.l.b16 %v569
  %v766 = vunpack.c.h.b16 %v569
  %v767 = vunpack.c.l.b16 %v570
  %v768 = vunpack.c.h.b16 %v570
  %v769 = vunpack.c.l.b16 %v571
  %v770 = vunpack.c.h.b16 %v571
  %v771 = vunpack.c.l.b16 %v572
  %v772 = vunpack.c.h.b16 %v572
  %v773 = vunpack.c.l.b16 %v573
  %v774 = vunpack.c.h.b16 %v573
  %v775 = vunpack.c.l.b16 %v574
  %v776 = vunpack.c.h.b16 %v574
  %v777 = vunpack.c.l.b16 %v575
  %v778 = vunpack.c.h.b16 %v575
  %v779 = vunpack.c.l.b16 %v576
  %v780 = vunpack.c.h.b16 %v576
  %v781 = vunpack.c.l.b16 %v577
  %v782 = vunpack.c.h.b16 %v577
  %v783 = vunpack.c.l.b16 %v578
  %v784 = vunpack.c.h.b16 %v578
  %v785 = vunpack.c.l.b16 %v579
  %v786 = vunpack.c.h.b16 %v579
  %v787 = vunpack.c.l.b16 %v580
  %v788 = vunpack.c.h.b16 %v580
  %v789 = vunpack.c.l.b16 %v581
  %v790 = vunpack.c.h.b16 %v581
  %v791 = vunpack.c.l.b16 %v582
  %v792 = vunpack.c.h.b16 %v582
  %v793 = vunpack.c.l.b16 %v583
  %v794 = vunpack.c.h.b16 %v583
  %v795 = vunpack.c.l.b16 %v584
  %v796 = vunpack.c.h.b16 %v584
  %v797 = vunpack.c.l.b16 %v585
  %v798 = vunpack.c.h.b16 %v585
  %v799 = vunpack.c.l.b16 %v586
  %v800 = vunpack.c.h.b16 %v586
  %v801 = vunpack.c.l.b16 %v587
  %v802 = vunpack.c.h.b16 %v587
  %v803 = vunpack.c.l.b16 %v588
  %v804 = vunpack.c.h.b16 %v588
  %v805 = vunpack.c.l.b16 %v589
  %v806 = vunpack.c.h.b16 %v589
  %v807 = vunpack.c.l.b16 %v590
  %v808 = vunpack.c.h.b16 %v590
  %v809 = vunpack.c.l.b16 %v591
  %v810 = vunpack.c.h.b16 %v591
  %v811 = vunpack.c.l.b16 %v592
  %v812 = vunpack.c.h.b16 %v592
  %v813 = vunpack.c.l.b16 %v593
  %v814 = vunpack.c.h.b16 %v593
  %v815 = vunpack.c.l.b16 %v594
  %v816 = vunpack.c.h.b16 %v594
  %v817 = vunpack.c.l.b16 %v595
  %v818 = vunpack.c.h.b16 %v595
  %v819 = vunpack.c.l.b16 %v596
  %v820 = vunpack.c.h.b16 %v596
  %v821 = vunpack.c.l.b16 %v597
  %v822 = vunpack.c.h.b16 %v597
  %v823 = vunpack.c.l.b16 %v598
  %v824 = vunpack.c.h.b16 %v598
  %v825 = vunpack.c.l.b16 %v599
  %v826 = vunpack.c.h.b16 %v599
  %v827 = vunpack.c.l.b16 %v600
  %v828 = vunpack.c.h.b16 %v600
  %v829 = vunpack.c.l.b16 %v601
  %v830 = vunpack.c.h.b16 %v601
  %v831 = vunpack.c.l.b16 %v602
  %v832 = vunpack.c.h.b16 %v602
  %v833 = vunpack.c.l.b16 %v603
  %v834 = vunpack.c.h.b16 %v603
  %v835 = vunpack.c.l.b16 %v604
  %v836 = vunpack.c.h.b16 %v604
  %v837 = vunpack.c.l.b16 %v605
  %v838 = vunpack.c.h.b16 %v605
  %v839 = vunpack.c.l.b16 %v606
  %v840 = vunpack.c.h.b16 %v606
  %v841 = vunpack.c.l.b16 %v607
  %v842 = vunpack.c.h.b16 %v607
  %v843 = vunpack.c.l.b16 %v608
  %v844 = vunpack.c.h.b16 %v608
  %v845 = vunpack.c.l.b16 %v609
  %v846 = vunpack.c.h.b16 %v609
  %v847 = vunpack.c.l.b16 %v610
  %v848 = vunpack.c.h.b16 %v610
  %v849 = vunpack.c.l.b16 %v611
  %v850 = vunpack.c.h.b16 %v611
  %v851 = vpack.c.b16 %v727, %v723
  %v852 = vpack.c.b16 %v728, %v724
  %v853 = vpack.c.b16 %v729, %v725
  %v854 = vpack.c.b16 %v730, %v726
  %v855 = vpack.c.b16 %v735, %v731
  %v856 = vpack.c.b16 %v736, %v732
  %v857 = vpack.c.b16 %v737, %v733
  %v858 = vpack.c.b16 %v738, %v734
  %v859 = vpack.c.b16 %v743, %v739
  %v860 = vpack.c.b16 %v744, %v740
  %v861 = vpack.c.b16 %v745, %v741
  %v862 = vpack.c.b16 %v746, %v742
  %v863 = vpack.c.b16 %v751, %v747
  %v864 = vpack.c.b16 %v752, %v748
  %v865 = vpack.c.b16 %v753, %v749
  %v866 = vpack.c.b16 %v754, %v750
  %v867 = vpack.c.b16 %v759, %v755
  %v868 = vpack.c.b16 %v760, %v756
  %v869 = vpack.c.b16 %v761, %v757
  %v870 = vpack.c.b16 %v762, %v758
  %v871 = vpack.c.b16 %v767, %v763
  %v872 = vpack.c.b16 %v768, %v764
  %v873 = vpack.c.b16 %v769, %v765
  %v874 = vpack.c.b16 %v770, %v766
  %v875 = vpack.c.b16 %v775, %v771
  %v876 = vpack.c.b16 %v776, %v772
  %v877 = vpack.c.b16 %v777, %v773
  %v878 = vpack.c.b16 %v778, %v774
  %v879 = vpack.c.b16 %v783, %v779
  %v880 = vpack.c.b16 %v784, %v780
  %v881 = vpack.c.b16 %v785, %v781
  %v882 = vpack.c.b16 %v786, %v782
  %v883 = vpack.c.b16 %v791, %v787
  %v884 = vpack.c.b16 %v792, %v788
  %v885 = vpack.c.b16 %v793, %v789
  %v886 = vpack.c.b16 %v794, %v790
  %v887 = vpack.c.b16 %v799, %v795
  %v888 = vpack.c.b16 %v800, %v796
  %v889 = vpack.c.b16 %v801, %v797
  %v890 = vpack.c.b16 %v802, %v798
  %v891 = vpack.c.b16 %v807, %v803
  %v892 = vpack.c.b16 %v808, %v804
  %v893 = vpack.c.b16 %v809, %v805
  %v894 = vpack.c.b16 %v810, %v806
  %v895 = vpack.c.b16 %v815, %v811
  %v896 = vpack.c.b16 %v816, %v812
  %v897 = vpack.c.b16 %v817, %v813
  %v898 = vpack.c.b16 %v818, %v814
  %v899 = vpack.c.b16 %v823, %v819
  %v900 = vpack.c.b16 %v824, %v820
  %v901 = vpack.c.b16 %v825, %v821
  %v902 = vpack.c.b16 %v826, %v822
  %v903 = vpack.c.b16 %v831, %v827
  %v904 = vpack.c.b16 %v832, %v828
  %v905 = vpack.c.b16 %v833, %v829
  %v906 = vpack.c.b16 %v834, %v830
  %v907 = vpack.c.b16 %v839, %v835
  %v908 = vpack.c.b16 %v840, %v836
  %v909 = vpack.c.b16 %v841, %v837
  %v910 = vpack.c.b16 %v842, %v838
  %v911 = vpack.c.b16 %v847, %v843
  %v912 = vpack.c.b16 %v848, %v844
  %v913 = vpack.c.b16 %v849, %v845
  %v914 = vpack.c.b16 %v850, %v846
  %979 = vmatprep.subr.bf16.mxu0 %v852
  %980 = vmatpush1.bf16.msra.mxu0 %v851
  %981 = vmatprep.subr.bf16.mxu0 %v856
  %982 = vmatpush1.bf16.msra.mxu0 %v855
  %983 = vmatprep.subr.bf16.mxu0 %v860
  %984 = vmatpush1.bf16.msra.mxu0 %v859
  %985 = vmatprep.subr.bf16.mxu0 %v864
  %986 = vmatpush1.bf16.msra.mxu0 %v863
  %987 = vmatprep.subr.bf16.mxu0 %v868
  %988 = vmatpush1.bf16.msra.mxu0 %v867
  %989 = vmatprep.subr.bf16.mxu0 %v872
  %990 = vmatpush1.bf16.msra.mxu0 %v871
  %991 = vmatprep.subr.bf16.mxu0 %v876
  %992 = vmatpush1.bf16.msra.mxu0 %v875
  %993 = vmatprep.subr.bf16.mxu0 %v880
  %994 = vmatpush1.bf16.msra.mxu0 %v879
  %995 = vmatprep.subr.bf16.mxu0 %v884
  %996 = vmatpush1.bf16.msra.mxu0 %v883
  %997 = vmatprep.subr.bf16.mxu0 %v888
  %998 = vmatpush1.bf16.msra.mxu0 %v887
  %999 = vmatprep.subr.bf16.mxu0 %v892
  %1000 = vmatpush1.bf16.msra.mxu0 %v891
  %1001 = vmatprep.subr.bf16.mxu0 %v896
  %1002 = vmatpush1.bf16.msra.mxu0 %v895
  %1003 = vmatprep.subr.bf16.mxu0 %v900
  %1004 = vmatpush1.bf16.msra.mxu0 %v899
  %1005 = vmatprep.subr.bf16.mxu0 %v904
  %1006 = vmatpush1.bf16.msra.mxu0 %v903
  %1007 = vmatprep.subr.bf16.mxu0 %v908
  %1008 = vmatpush1.bf16.msra.mxu0 %v907
  %1009 = vmatprep.subr.bf16.mxu0 %v912
  %1010 = vmatpush1.bf16.msra.mxu0 %v911
  %1011 = vmatprep.mubr.bf16.mxu0 %v656
  %1012 = vmatmul.mubr.bf16.gmra.mrb[0].mxu0 %v649
  %v1013 = vpop.f32.mrb[0].mxu0
  %v1014 = vadd.f32 %v617, %v1013
  %v1015 = vpop.f32.mrb[0].mxu0
  %v1016 = vadd.f32 %v621, %v1015
  %v1017 = vpop.f32.mrb[0].mxu0
  %v1018 = vpop.f32.mrb[0].mxu0
  %1019 = vdwg.mxu0
  %1020 = vmatprep.subr.bf16.mxu0 %v854
  %1021 = vmatpush1.bf16.msra.mxu0 %v853
  %1022 = vmatprep.subr.bf16.mxu0 %v858
  %1023 = vmatpush1.bf16.msra.mxu0 %v857
  %1024 = vmatprep.subr.bf16.mxu0 %v862
  %1025 = vmatpush1.bf16.msra.mxu0 %v861
  %1026 = vmatprep.subr.bf16.mxu0 %v866
  %1027 = vmatpush1.bf16.msra.mxu0 %v865
  %1028 = vmatprep.subr.bf16.mxu0 %v870
  %1029 = vmatpush1.bf16.msra.mxu0 %v869
  %1030 = vmatprep.subr.bf16.mxu0 %v874
  %1031 = vmatpush1.bf16.msra.mxu0 %v873
  %1032 = vmatprep.subr.bf16.mxu0 %v878
  %1033 = vmatpush1.bf16.msra.mxu0 %v877
  %1034 = vmatprep.subr.bf16.mxu0 %v882
  %1035 = vmatpush1.bf16.msra.mxu0 %v881
  %1036 = vmatprep.subr.bf16.mxu0 %v886
  %1037 = vmatpush1.bf16.msra.mxu0 %v885
  %1038 = vmatprep.subr.bf16.mxu0 %v890
  %1039 = vmatpush1.bf16.msra.mxu0 %v889
  %1040 = vmatprep.subr.bf16.mxu0 %v894
  %1041 = vmatpush1.bf16.msra.mxu0 %v893
  %1042 = vmatprep.subr.bf16.mxu0 %v898
  %1043 = vmatpush1.bf16.msra.mxu0 %v897
  %1044 = vmatprep.subr.bf16.mxu0 %v902
  %1045 = vmatpush1.bf16.msra.mxu0 %v901
  %1046 = vmatprep.subr.bf16.mxu0 %v906
  %1047 = vmatpush1.bf16.msra.mxu0 %v905
  %1048 = vmatprep.subr.bf16.mxu0 %v910
  %1049 = vmatpush1.bf16.msra.mxu0 %v909
  %1050 = vmatprep.subr.bf16.mxu0 %v914
  %1051 = vmatpush1.bf16.msra.mxu0 %v913
  %1052 = vmatprep.mubr.bf16.mxu0 %v656
  %1053 = vmatmul.mubr.bf16.gmra.mrb[0].mxu0 %v649
  %v1054 = vpop.f32.mrb[0].mxu0
  %v1055 = vadd.f32 %v625, %v1054
  %v1056 = vpop.f32.mrb[0].mxu0
  %v1057 = vadd.f32 %v629, %v1056
  %v1058 = vpop.f32.mrb[0].mxu0
  %v1059 = vpop.f32.mrb[0].mxu0
  %1060 = vdwg.mxu0
  %v1061 = vpack.c.bf16 %v543, %v543
  %v1062 = vpack.c.bf16 %v544, %v544
  %v1063 = vpack.c.bf16 %v545, %v545
  %v1064 = vpack.c.bf16 %v546, %v546
  %v1065 = vld [vmem:[%s6] sm:$0xff]
  %v1066 = vld [vmem:[%s6 + $0x8] sm:$0xff]
  %v1067 = vld [vmem:[%s6 + $0x10] sm:$0xff]
  %v1068 = vld [vmem:[%s6 + $0x18] sm:$0xff]
  %v1069 = vld [vmem:[%s6 + $0x20] sm:$0xff]
  %v1070 = vld [vmem:[%s6 + $0x28] sm:$0xff]
  %v1071 = vld [vmem:[%s6 + $0x30] sm:$0xff]
  %v1072 = vld [vmem:[%s6 + $0x38] sm:$0xff]
  %v1073 = vld [vmem:[%s6 + $0x40] sm:$0xff]
  %v1074 = vld [vmem:[%s6 + $0x48] sm:$0xff]
  %v1075 = vld [vmem:[%s6 + $0x50] sm:$0xff]
  %v1076 = vld [vmem:[%s6 + $0x58] sm:$0xff]
  %v1077 = vld [vmem:[%s6 + $0x60] sm:$0xff]
  %v1078 = vld [vmem:[%s6 + $0x68] sm:$0xff]
  %v1079 = vld [vmem:[%s6 + $0x70] sm:$0xff]
  %v1080 = vld [vmem:[%s6 + $0x78] sm:$0xff]
  %v1081 = vld [vmem:[%s6 + $0x80] sm:$0xff]
  %v1082 = vld [vmem:[%s6 + $0x88] sm:$0xff]
  %v1083 = vld [vmem:[%s6 + $0x90] sm:$0xff]
  %v1084 = vld [vmem:[%s6 + $0x98] sm:$0xff]
  %v1085 = vld [vmem:[%s6 + $0xa0] sm:$0xff]
  %v1086 = vld [vmem:[%s6 + $0xa8] sm:$0xff]
  %v1087 = vld [vmem:[%s6 + $0xb0] sm:$0xff]
  %v1088 = vld [vmem:[%s6 + $0xb8] sm:$0xff]
  %v1089 = vld [vmem:[%s6 + $0xc0] sm:$0xff]
  %v1090 = vld [vmem:[%s6 + $0xc8] sm:$0xff]
  %v1091 = vld [vmem:[%s6 + $0xd0] sm:$0xff]
  %v1092 = vld [vmem:[%s6 + $0xd8] sm:$0xff]
  %v1093 = vld [vmem:[%s6 + $0xe0] sm:$0xff]
  %v1094 = vld [vmem:[%s6 + $0xe8] sm:$0xff]
  %v1095 = vld [vmem:[%s6 + $0xf0] sm:$0xff]
  %v1096 = vld [vmem:[%s6 + $0xf8] sm:$0xff]
  %v1097 = vld [vmem:[%s6 + $0x100] sm:$0xff]
  %v1098 = vld [vmem:[%s6 + $0x108] sm:$0xff]
  %v1099 = vld [vmem:[%s6 + $0x110] sm:$0xff]
  %v1100 = vld [vmem:[%s6 + $0x118] sm:$0xff]
  %v1101 = vld [vmem:[%s6 + $0x120] sm:$0xff]
  %v1102 = vld [vmem:[%s6 + $0x128] sm:$0xff]
  %v1103 = vld [vmem:[%s6 + $0x130] sm:$0xff]
  %v1104 = vld [vmem:[%s6 + $0x138] sm:$0xff]
  %v1105 = vld [vmem:[%s6 + $0x140] sm:$0xff]
  %v1106 = vld [vmem:[%s6 + $0x148] sm:$0xff]
  %v1107 = vld [vmem:[%s6 + $0x150] sm:$0xff]
  %v1108 = vld [vmem:[%s6 + $0x158] sm:$0xff]
  %v1109 = vld [vmem:[%s6 + $0x160] sm:$0xff]
  %v1110 = vld [vmem:[%s6 + $0x168] sm:$0xff]
  %v1111 = vld [vmem:[%s6 + $0x170] sm:$0xff]
  %v1112 = vld [vmem:[%s6 + $0x178] sm:$0xff]
  %v1113 = vld [vmem:[%s6 + $0x180] sm:$0xff]
  %v1114 = vld [vmem:[%s6 + $0x188] sm:$0xff]
  %v1115 = vld [vmem:[%s6 + $0x190] sm:$0xff]
  %v1116 = vld [vmem:[%s6 + $0x198] sm:$0xff]
  %v1117 = vld [vmem:[%s6 + $0x1a0] sm:$0xff]
  %v1118 = vld [vmem:[%s6 + $0x1a8] sm:$0xff]
  %v1119 = vld [vmem:[%s6 + $0x1b0] sm:$0xff]
  %v1120 = vld [vmem:[%s6 + $0x1b8] sm:$0xff]
  %v1121 = vld [vmem:[%s6 + $0x1c0] sm:$0xff]
  %v1122 = vld [vmem:[%s6 + $0x1c8] sm:$0xff]
  %v1123 = vld [vmem:[%s6 + $0x1d0] sm:$0xff]
  %v1124 = vld [vmem:[%s6 + $0x1d8] sm:$0xff]
  %v1125 = vld [vmem:[%s6 + $0x1e0] sm:$0xff]
  %v1126 = vld [vmem:[%s6 + $0x1e8] sm:$0xff]
  %v1127 = vld [vmem:[%s6 + $0x1f0] sm:$0xff]
  %v1128 = vld [vmem:[%s6 + $0x1f8] sm:$0xff]
  %v1129 = vld [vmem:[%s6 + $0x200] sm:$0xff]
  %v1130 = vld [vmem:[%s6 + $0x208] sm:$0xff]
  %v1131 = vld [vmem:[%s6 + $0x210] sm:$0xff]
  %v1132 = vld [vmem:[%s6 + $0x218] sm:$0xff]
  %v1133 = vld [vmem:[%s6 + $0x220] sm:$0xff]
  %v1134 = vld [vmem:[%s6 + $0x228] sm:$0xff]
  %v1135 = vld [vmem:[%s6 + $0x230] sm:$0xff]
  %v1136 = vld [vmem:[%s6 + $0x238] sm:$0xff]
  %v1137 = vld [vmem:[%s6 + $0x240] sm:$0xff]
  %v1138 = vld [vmem:[%s6 + $0x248] sm:$0xff]
  %v1139 = vld [vmem:[%s6 + $0x250] sm:$0xff]
  %v1140 = vld [vmem:[%s6 + $0x258] sm:$0xff]
  %v1141 = vld [vmem:[%s6 + $0x260] sm:$0xff]
  %v1142 = vld [vmem:[%s6 + $0x268] sm:$0xff]
  %v1143 = vld [vmem:[%s6 + $0x270] sm:$0xff]
  %v1144 = vld [vmem:[%s6 + $0x278] sm:$0xff]
  %v1145 = vld [vmem:[%s6 + $0x280] sm:$0xff]
  %v1146 = vld [vmem:[%s6 + $0x288] sm:$0xff]
  %v1147 = vld [vmem:[%s6 + $0x290] sm:$0xff]
  %v1148 = vld [vmem:[%s6 + $0x298] sm:$0xff]
  %v1149 = vld [vmem:[%s6 + $0x2a0] sm:$0xff]
  %v1150 = vld [vmem:[%s6 + $0x2a8] sm:$0xff]
  %v1151 = vld [vmem:[%s6 + $0x2b0] sm:$0xff]
  %v1152 = vld [vmem:[%s6 + $0x2b8] sm:$0xff]
  %v1153 = vld [vmem:[%s6 + $0x2c0] sm:$0xff]
  %v1154 = vld [vmem:[%s6 + $0x2c8] sm:$0xff]
  %v1155 = vld [vmem:[%s6 + $0x2d0] sm:$0xff]
  %v1156 = vld [vmem:[%s6 + $0x2d8] sm:$0xff]
  %v1157 = vld [vmem:[%s6 + $0x2e0] sm:$0xff]
  %v1158 = vld [vmem:[%s6 + $0x2e8] sm:$0xff]
  %v1159 = vld [vmem:[%s6 + $0x2f0] sm:$0xff]
  %v1160 = vld [vmem:[%s6 + $0x2f8] sm:$0xff]
  %v1161 = vld [vmem:[%s6 + $0x300] sm:$0xff]
  %v1162 = vld [vmem:[%s6 + $0x308] sm:$0xff]
  %v1163 = vld [vmem:[%s6 + $0x310] sm:$0xff]
  %v1164 = vld [vmem:[%s6 + $0x318] sm:$0xff]
  %v1165 = vld [vmem:[%s6 + $0x320] sm:$0xff]
  %v1166 = vld [vmem:[%s6 + $0x328] sm:$0xff]
  %v1167 = vld [vmem:[%s6 + $0x330] sm:$0xff]
  %v1168 = vld [vmem:[%s6 + $0x338] sm:$0xff]
  %v1169 = vld [vmem:[%s6 + $0x340] sm:$0xff]
  %v1170 = vld [vmem:[%s6 + $0x348] sm:$0xff]
  %v1171 = vld [vmem:[%s6 + $0x350] sm:$0xff]
  %v1172 = vld [vmem:[%s6 + $0x358] sm:$0xff]
  %v1173 = vld [vmem:[%s6 + $0x360] sm:$0xff]
  %v1174 = vld [vmem:[%s6 + $0x368] sm:$0xff]
  %v1175 = vld [vmem:[%s6 + $0x370] sm:$0xff]
  %v1176 = vld [vmem:[%s6 + $0x378] sm:$0xff]
  %v1177 = vld [vmem:[%s6 + $0x380] sm:$0xff]
  %v1178 = vld [vmem:[%s6 + $0x388] sm:$0xff]
  %v1179 = vld [vmem:[%s6 + $0x390] sm:$0xff]
  %v1180 = vld [vmem:[%s6 + $0x398] sm:$0xff]
  %v1181 = vld [vmem:[%s6 + $0x3a0] sm:$0xff]
  %v1182 = vld [vmem:[%s6 + $0x3a8] sm:$0xff]
  %v1183 = vld [vmem:[%s6 + $0x3b0] sm:$0xff]
  %v1184 = vld [vmem:[%s6 + $0x3b8] sm:$0xff]
  %v1185 = vld [vmem:[%s6 + $0x3c0] sm:$0xff]
  %v1186 = vld [vmem:[%s6 + $0x3c8] sm:$0xff]
  %v1187 = vld [vmem:[%s6 + $0x3d0] sm:$0xff]
  %v1188 = vld [vmem:[%s6 + $0x3d8] sm:$0xff]
  %v1189 = vld [vmem:[%s6 + $0x3e0] sm:$0xff]
  %v1190 = vld [vmem:[%s6 + $0x3e8] sm:$0xff]
  %v1191 = vld [vmem:[%s6 + $0x3f0] sm:$0xff]
  %v1192 = vld [vmem:[%s6 + $0x3f8] sm:$0xff]
  %v1193 = vld [vmem:[%s7] sm:$0xf]
  %v1195 = vlaneseq
  %v1196 = vshrl.u32 %v1195, 7
  %v1197 = vsub.s32 0, %v1196
  %v1198 = vrot.slane %v1193, %v1197
  %v1199 = vlaneseq
  %v1200 = vshrl.u32 %v1199, 7
  %v1201 = vsub.s32 1, %v1200
  %v1202 = vrot.slane %v1193, %v1201
  %v1203 = vlaneseq
  %v1204 = vshrl.u32 %v1203, 7
  %v1205 = vsub.s32 2, %v1204
  %v1206 = vrot.slane %v1193, %v1205
  %v1207 = vlaneseq
  %v1208 = vshrl.u32 %v1207, 7
  %v1209 = vsub.s32 3, %v1208
  %v1210 = vrot.slane %v1193, %v1209
  %v1343 = vunpack.c.l.b16 %v1065
  %v1344 = vunpack.c.h.b16 %v1065
  %v1345 = vunpack.c.l.b16 %v1066
  %v1346 = vunpack.c.h.b16 %v1066
  %v1347 = vunpack.c.l.b16 %v1067
  %v1348 = vunpack.c.h.b16 %v1067
  %v1349 = vunpack.c.l.b16 %v1068
  %v1350 = vunpack.c.h.b16 %v1068
  %v1351 = vunpack.c.l.b16 %v1069
  %v1352 = vunpack.c.h.b16 %v1069
  %v1353 = vunpack.c.l.b16 %v1070
  %v1354 = vunpack.c.h.b16 %v1070
  %v1355 = vunpack.c.l.b16 %v1071
  %v1356 = vunpack.c.h.b16 %v1071
  %v1357 = vunpack.c.l.b16 %v1072
  %v1358 = vunpack.c.h.b16 %v1072
  %v1359 = vunpack.c.l.b16 %v1073
  %v1360 = vunpack.c.h.b16 %v1073
  %v1361 = vunpack.c.l.b16 %v1074
  %v1362 = vunpack.c.h.b16 %v1074
  %v1363 = vunpack.c.l.b16 %v1075
  %v1364 = vunpack.c.h.b16 %v1075
  %v1365 = vunpack.c.l.b16 %v1076
  %v1366 = vunpack.c.h.b16 %v1076
  %v1367 = vunpack.c.l.b16 %v1077
  %v1368 = vunpack.c.h.b16 %v1077
  %v1369 = vunpack.c.l.b16 %v1078
  %v1370 = vunpack.c.h.b16 %v1078
  %v1371 = vunpack.c.l.b16 %v1079
  %v1372 = vunpack.c.h.b16 %v1079
  %v1373 = vunpack.c.l.b16 %v1080
  %v1374 = vunpack.c.h.b16 %v1080
  %v1375 = vunpack.c.l.b16 %v1081
  %v1376 = vunpack.c.h.b16 %v1081
  %v1377 = vunpack.c.l.b16 %v1082
  %v1378 = vunpack.c.h.b16 %v1082
  %v1379 = vunpack.c.l.b16 %v1083
  %v1380 = vunpack.c.h.b16 %v1083
  %v1381 = vunpack.c.l.b16 %v1084
  %v1382 = vunpack.c.h.b16 %v1084
  %v1383 = vunpack.c.l.b16 %v1085
  %v1384 = vunpack.c.h.b16 %v1085
  %v1385 = vunpack.c.l.b16 %v1086
  %v1386 = vunpack.c.h.b16 %v1086
  %v1387 = vunpack.c.l.b16 %v1087
  %v1388 = vunpack.c.h.b16 %v1087
  %v1389 = vunpack.c.l.b16 %v1088
  %v1390 = vunpack.c.h.b16 %v1088
  %v1391 = vunpack.c.l.b16 %v1089
  %v1392 = vunpack.c.h.b16 %v1089
  %v1393 = vunpack.c.l.b16 %v1090
  %v1394 = vunpack.c.h.b16 %v1090
  %v1395 = vunpack.c.l.b16 %v1091
  %v1396 = vunpack.c.h.b16 %v1091
  %v1397 = vunpack.c.l.b16 %v1092
  %v1398 = vunpack.c.h.b16 %v1092
  %v1399 = vunpack.c.l.b16 %v1093
  %v1400 = vunpack.c.h.b16 %v1093
  %v1401 = vunpack.c.l.b16 %v1094
  %v1402 = vunpack.c.h.b16 %v1094
  %v1403 = vunpack.c.l.b16 %v1095
  %v1404 = vunpack.c.h.b16 %v1095
  %v1405 = vunpack.c.l.b16 %v1096
  %v1406 = vunpack.c.h.b16 %v1096
  %v1407 = vunpack.c.l.b16 %v1097
  %v1408 = vunpack.c.h.b16 %v1097
  %v1409 = vunpack.c.l.b16 %v1098
  %v1410 = vunpack.c.h.b16 %v1098
  %v1411 = vunpack.c.l.b16 %v1099
  %v1412 = vunpack.c.h.b16 %v1099
  %v1413 = vunpack.c.l.b16 %v1100
  %v1414 = vunpack.c.h.b16 %v1100
  %v1415 = vunpack.c.l.b16 %v1101
  %v1416 = vunpack.c.h.b16 %v1101
  %v1417 = vunpack.c.l.b16 %v1102
  %v1418 = vunpack.c.h.b16 %v1102
  %v1419 = vunpack.c.l.b16 %v1103
  %v1420 = vunpack.c.h.b16 %v1103
  %v1421 = vunpack.c.l.b16 %v1104
  %v1422 = vunpack.c.h.b16 %v1104
  %v1423 = vunpack.c.l.b16 %v1105
  %v1424 = vunpack.c.h.b16 %v1105
  %v1425 = vunpack.c.l.b16 %v1106
  %v1426 = vunpack.c.h.b16 %v1106
  %v1427 = vunpack.c.l.b16 %v1107
  %v1428 = vunpack.c.h.b16 %v1107
  %v1429 = vunpack.c.l.b16 %v1108
  %v1430 = vunpack.c.h.b16 %v1108
  %v1431 = vunpack.c.l.b16 %v1109
  %v1432 = vunpack.c.h.b16 %v1109
  %v1433 = vunpack.c.l.b16 %v1110
  %v1434 = vunpack.c.h.b16 %v1110
  %v1435 = vunpack.c.l.b16 %v1111
  %v1436 = vunpack.c.h.b16 %v1111
  %v1437 = vunpack.c.l.b16 %v1112
  %v1438 = vunpack.c.h.b16 %v1112
  %v1439 = vunpack.c.l.b16 %v1113
  %v1440 = vunpack.c.h.b16 %v1113
  %v1441 = vunpack.c.l.b16 %v1114
  %v1442 = vunpack.c.h.b16 %v1114
  %v1443 = vunpack.c.l.b16 %v1115
  %v1444 = vunpack.c.h.b16 %v1115
  %v1445 = vunpack.c.l.b16 %v1116
  %v1446 = vunpack.c.h.b16 %v1116
  %v1447 = vunpack.c.l.b16 %v1117
  %v1448 = vunpack.c.h.b16 %v1117
  %v1449 = vunpack.c.l.b16 %v1118
  %v1450 = vunpack.c.h.b16 %v1118
  %v1451 = vunpack.c.l.b16 %v1119
  %v1452 = vunpack.c.h.b16 %v1119
  %v1453 = vunpack.c.l.b16 %v1120
  %v1454 = vunpack.c.h.b16 %v1120
  %v1455 = vunpack.c.l.b16 %v1121
  %v1456 = vunpack.c.h.b16 %v1121
  %v1457 = vunpack.c.l.b16 %v1122
  %v1458 = vunpack.c.h.b16 %v1122
  %v1459 = vunpack.c.l.b16 %v1123
  %v1460 = vunpack.c.h.b16 %v1123
  %v1461 = vunpack.c.l.b16 %v1124
  %v1462 = vunpack.c.h.b16 %v1124
  %v1463 = vunpack.c.l.b16 %v1125
  %v1464 = vunpack.c.h.b16 %v1125
  %v1465 = vunpack.c.l.b16 %v1126
  %v1466 = vunpack.c.h.b16 %v1126
  %v1467 = vunpack.c.l.b16 %v1127
  %v1468 = vunpack.c.h.b16 %v1127
  %v1469 = vunpack.c.l.b16 %v1128
  %v1470 = vunpack.c.h.b16 %v1128
  %v1471 = vunpack.c.l.b16 %v1129
  %v1472 = vunpack.c.h.b16 %v1129
  %v1473 = vunpack.c.l.b16 %v1130
  %v1474 = vunpack.c.h.b16 %v1130
  %v1475 = vunpack.c.l.b16 %v1131
  %v1476 = vunpack.c.h.b16 %v1131
  %v1477 = vunpack.c.l.b16 %v1132
  %v1478 = vunpack.c.h.b16 %v1132
  %v1479 = vunpack.c.l.b16 %v1133
  %v1480 = vunpack.c.h.b16 %v1133
  %v1481 = vunpack.c.l.b16 %v1134
  %v1482 = vunpack.c.h.b16 %v1134
  %v1483 = vunpack.c.l.b16 %v1135
  %v1484 = vunpack.c.h.b16 %v1135
  %v1485 = vunpack.c.l.b16 %v1136
  %v1486 = vunpack.c.h.b16 %v1136
  %v1487 = vunpack.c.l.b16 %v1137
  %v1488 = vunpack.c.h.b16 %v1137
  %v1489 = vunpack.c.l.b16 %v1138
  %v1490 = vunpack.c.h.b16 %v1138
  %v1491 = vunpack.c.l.b16 %v1139
  %v1492 = vunpack.c.h.b16 %v1139
  %v1493 = vunpack.c.l.b16 %v1140
  %v1494 = vunpack.c.h.b16 %v1140
  %v1495 = vunpack.c.l.b16 %v1141
  %v1496 = vunpack.c.h.b16 %v1141
  %v1497 = vunpack.c.l.b16 %v1142
  %v1498 = vunpack.c.h.b16 %v1142
  %v1499 = vunpack.c.l.b16 %v1143
  %v1500 = vunpack.c.h.b16 %v1143
  %v1501 = vunpack.c.l.b16 %v1144
  %v1502 = vunpack.c.h.b16 %v1144
  %v1503 = vunpack.c.l.b16 %v1145
  %v1504 = vunpack.c.h.b16 %v1145
  %v1505 = vunpack.c.l.b16 %v1146
  %v1506 = vunpack.c.h.b16 %v1146
  %v1507 = vunpack.c.l.b16 %v1147
  %v1508 = vunpack.c.h.b16 %v1147
  %v1509 = vunpack.c.l.b16 %v1148
  %v1510 = vunpack.c.h.b16 %v1148
  %v1511 = vunpack.c.l.b16 %v1149
  %v1512 = vunpack.c.h.b16 %v1149
  %v1513 = vunpack.c.l.b16 %v1150
  %v1514 = vunpack.c.h.b16 %v1150
  %v1515 = vunpack.c.l.b16 %v1151
  %v1516 = vunpack.c.h.b16 %v1151
  %v1517 = vunpack.c.l.b16 %v1152
  %v1518 = vunpack.c.h.b16 %v1152
  %v1519 = vunpack.c.l.b16 %v1153
  %v1520 = vunpack.c.h.b16 %v1153
  %v1521 = vunpack.c.l.b16 %v1154
  %v1522 = vunpack.c.h.b16 %v1154
  %v1523 = vunpack.c.l.b16 %v1155
  %v1524 = vunpack.c.h.b16 %v1155
  %v1525 = vunpack.c.l.b16 %v1156
  %v1526 = vunpack.c.h.b16 %v1156
  %v1527 = vunpack.c.l.b16 %v1157
  %v1528 = vunpack.c.h.b16 %v1157
  %v1529 = vunpack.c.l.b16 %v1158
  %v1530 = vunpack.c.h.b16 %v1158
  %v1531 = vunpack.c.l.b16 %v1159
  %v1532 = vunpack.c.h.b16 %v1159
  %v1533 = vunpack.c.l.b16 %v1160
  %v1534 = vunpack.c.h.b16 %v1160
  %v1535 = vunpack.c.l.b16 %v1161
  %v1536 = vunpack.c.h.b16 %v1161
  %v1537 = vunpack.c.l.b16 %v1162
  %v1538 = vunpack.c.h.b16 %v1162
  %v1539 = vunpack.c.l.b16 %v1163
  %v1540 = vunpack.c.h.b16 %v1163
  %v1541 = vunpack.c.l.b16 %v1164
  %v1542 = vunpack.c.h.b16 %v1164
  %v1543 = vunpack.c.l.b16 %v1165
  %v1544 = vunpack.c.h.b16 %v1165
  %v1545 = vunpack.c.l.b16 %v1166
  %v1546 = vunpack.c.h.b16 %v1166
  %v1547 = vunpack.c.l.b16 %v1167
  %v1548 = vunpack.c.h.b16 %v1167
  %v1549 = vunpack.c.l.b16 %v1168
  %v1550 = vunpack.c.h.b16 %v1168
  %v1551 = vunpack.c.l.b16 %v1169
  %v1552 = vunpack.c.h.b16 %v1169
  %v1553 = vunpack.c.l.b16 %v1170
  %v1554 = vunpack.c.h.b16 %v1170
  %v1555 = vunpack.c.l.b16 %v1171
  %v1556 = vunpack.c.h.b16 %v1171
  %v1557 = vunpack.c.l.b16 %v1172
  %v1558 = vunpack.c.h.b16 %v1172
  %v1559 = vunpack.c.l.b16 %v1173
  %v1560 = vunpack.c.h.b16 %v1173
  %v1561 = vunpack.c.l.b16 %v1174
  %v1562 = vunpack.c.h.b16 %v1174
  %v1563 = vunpack.c.l.b16 %v1175
  %v1564 = vunpack.c.h.b16 %v1175
  %v1565 = vunpack.c.l.b16 %v1176
  %v1566 = vunpack.c.h.b16 %v1176
  %v1567 = vunpack.c.l.b16 %v1177
  %v1568 = vunpack.c.h.b16 %v1177
  %v1569 = vunpack.c.l.b16 %v1178
  %v1570 = vunpack.c.h.b16 %v1178
  %v1571 = vunpack.c.l.b16 %v1179
  %v1572 = vunpack.c.h.b16 %v1179
  %v1573 = vunpack.c.l.b16 %v1180
  %v1574 = vunpack.c.h.b16 %v1180
  %v1575 = vunpack.c.l.b16 %v1181
  %v1576 = vunpack.c.h.b16 %v1181
  %v1577 = vunpack.c.l.b16 %v1182
  %v1578 = vunpack.c.h.b16 %v1182
  %v1579 = vunpack.c.l.b16 %v1183
  %v1580 = vunpack.c.h.b16 %v1183
  %v1581 = vunpack.c.l.b16 %v1184
  %v1582 = vunpack.c.h.b16 %v1184
  %v1583 = vunpack.c.l.b16 %v1185
  %v1584 = vunpack.c.h.b16 %v1185
  %v1585 = vunpack.c.l.b16 %v1186
  %v1586 = vunpack.c.h.b16 %v1186
  %v1587 = vunpack.c.l.b16 %v1187
  %v1588 = vunpack.c.h.b16 %v1187
  %v1589 = vunpack.c.l.b16 %v1188
  %v1590 = vunpack.c.h.b16 %v1188
  %v1591 = vunpack.c.l.b16 %v1189
  %v1592 = vunpack.c.h.b16 %v1189
  %v1593 = vunpack.c.l.b16 %v1190
  %v1594 = vunpack.c.h.b16 %v1190
  %v1595 = vunpack.c.l.b16 %v1191
  %v1596 = vunpack.c.h.b16 %v1191
  %v1597 = vunpack.c.l.b16 %v1192
  %v1598 = vunpack.c.h.b16 %v1192
  %v1599 = vpack.c.b16 %v1347, %v1343
  %v1600 = vpack.c.b16 %v1348, %v1344
  %v1601 = vpack.c.b16 %v1349, %v1345
  %v1602 = vpack.c.b16 %v1350, %v1346
  %v1603 = vpack.c.b16 %v1355, %v1351
  %v1604 = vpack.c.b16 %v1356, %v1352
  %v1605 = vpack.c.b16 %v1357, %v1353
  %v1606 = vpack.c.b16 %v1358, %v1354
  %v1607 = vpack.c.b16 %v1363, %v1359
  %v1608 = vpack.c.b16 %v1364, %v1360
  %v1609 = vpack.c.b16 %v1365, %v1361
  %v1610 = vpack.c.b16 %v1366, %v1362
  %v1611 = vpack.c.b16 %v1371, %v1367
  %v1612 = vpack.c.b16 %v1372, %v1368
  %v1613 = vpack.c.b16 %v1373, %v1369
  %v1614 = vpack.c.b16 %v1374, %v1370
  %v1615 = vpack.c.b16 %v1379, %v1375
  %v1616 = vpack.c.b16 %v1380, %v1376
  %v1617 = vpack.c.b16 %v1381, %v1377
  %v1618 = vpack.c.b16 %v1382, %v1378
  %v1619 = vpack.c.b16 %v1387, %v1383
  %v1620 = vpack.c.b16 %v1388, %v1384
  %v1621 = vpack.c.b16 %v1389, %v1385
  %v1622 = vpack.c.b16 %v1390, %v1386
  %v1623 = vpack.c.b16 %v1395, %v1391
  %v1624 = vpack.c.b16 %v1396, %v1392
  %v1625 = vpack.c.b16 %v1397, %v1393
  %v1626 = vpack.c.b16 %v1398, %v1394
  %v1627 = vpack.c.b16 %v1403, %v1399
  %v1628 = vpack.c.b16 %v1404, %v1400
  %v1629 = vpack.c.b16 %v1405, %v1401
  %v1630 = vpack.c.b16 %v1406, %v1402
  %v1631 = vpack.c.b16 %v1411, %v1407
  %v1632 = vpack.c.b16 %v1412, %v1408
  %v1633 = vpack.c.b16 %v1413, %v1409
  %v1634 = vpack.c.b16 %v1414, %v1410
  %v1635 = vpack.c.b16 %v1419, %v1415
  %v1636 = vpack.c.b16 %v1420, %v1416
  %v1637 = vpack.c.b16 %v1421, %v1417
  %v1638 = vpack.c.b16 %v1422, %v1418
  %v1639 = vpack.c.b16 %v1427, %v1423
  %v1640 = vpack.c.b16 %v1428, %v1424
  %v1641 = vpack.c.b16 %v1429, %v1425
  %v1642 = vpack.c.b16 %v1430, %v1426
  %v1643 = vpack.c.b16 %v1435, %v1431
  %v1644 = vpack.c.b16 %v1436, %v1432
  %v1645 = vpack.c.b16 %v1437, %v1433
  %v1646 = vpack.c.b16 %v1438, %v1434
  %v1647 = vpack.c.b16 %v1443, %v1439
  %v1648 = vpack.c.b16 %v1444, %v1440
  %v1649 = vpack.c.b16 %v1445, %v1441
  %v1650 = vpack.c.b16 %v1446, %v1442
  %v1651 = vpack.c.b16 %v1451, %v1447
  %v1652 = vpack.c.b16 %v1452, %v1448
  %v1653 = vpack.c.b16 %v1453, %v1449
  %v1654 = vpack.c.b16 %v1454, %v1450
  %v1655 = vpack.c.b16 %v1459, %v1455
  %v1656 = vpack.c.b16 %v1460, %v1456
  %v1657 = vpack.c.b16 %v1461, %v1457
  %v1658 = vpack.c.b16 %v1462, %v1458
  %v1659 = vpack.c.b16 %v1467, %v1463
  %v1660 = vpack.c.b16 %v1468, %v1464
  %v1661 = vpack.c.b16 %v1469, %v1465
  %v1662 = vpack.c.b16 %v1470, %v1466
  %v1663 = vpack.c.b16 %v1475, %v1471
  %v1664 = vpack.c.b16 %v1476, %v1472
  %v1665 = vpack.c.b16 %v1477, %v1473
  %v1666 = vpack.c.b16 %v1478, %v1474
  %v1667 = vpack.c.b16 %v1483, %v1479
  %v1668 = vpack.c.b16 %v1484, %v1480
  %v1669 = vpack.c.b16 %v1485, %v1481
  %v1670 = vpack.c.b16 %v1486, %v1482
  %v1671 = vpack.c.b16 %v1491, %v1487
  %v1672 = vpack.c.b16 %v1492, %v1488
  %v1673 = vpack.c.b16 %v1493, %v1489
  %v1674 = vpack.c.b16 %v1494, %v1490
  %v1675 = vpack.c.b16 %v1499, %v1495
  %v1676 = vpack.c.b16 %v1500, %v1496
  %v1677 = vpack.c.b16 %v1501, %v1497
  %v1678 = vpack.c.b16 %v1502, %v1498
  %v1679 = vpack.c.b16 %v1507, %v1503
  %v1680 = vpack.c.b16 %v1508, %v1504
  %v1681 = vpack.c.b16 %v1509, %v1505
  %v1682 = vpack.c.b16 %v1510, %v1506
  %v1683 = vpack.c.b16 %v1515, %v1511
  %v1684 = vpack.c.b16 %v1516, %v1512
  %v1685 = vpack.c.b16 %v1517, %v1513
  %v1686 = vpack.c.b16 %v1518, %v1514
  %v1687 = vpack.c.b16 %v1523, %v1519
  %v1688 = vpack.c.b16 %v1524, %v1520
  %v1689 = vpack.c.b16 %v1525, %v1521
  %v1690 = vpack.c.b16 %v1526, %v1522
  %v1691 = vpack.c.b16 %v1531, %v1527
  %v1692 = vpack.c.b16 %v1532, %v1528
  %v1693 = vpack.c.b16 %v1533, %v1529
  %v1694 = vpack.c.b16 %v1534, %v1530
  %v1695 = vpack.c.b16 %v1539, %v1535
  %v1696 = vpack.c.b16 %v1540, %v1536
  %v1697 = vpack.c.b16 %v1541, %v1537
  %v1698 = vpack.c.b16 %v1542, %v1538
  %v1699 = vpack.c.b16 %v1547, %v1543
  %v1700 = vpack.c.b16 %v1548, %v1544
  %v1701 = vpack.c.b16 %v1549, %v1545
  %v1702 = vpack.c.b16 %v1550, %v1546
  %v1703 = vpack.c.b16 %v1555, %v1551
  %v1704 = vpack.c.b16 %v1556, %v1552
  %v1705 = vpack.c.b16 %v1557, %v1553
  %v1706 = vpack.c.b16 %v1558, %v1554
  %v1707 = vpack.c.b16 %v1563, %v1559
  %v1708 = vpack.c.b16 %v1564, %v1560
  %v1709 = vpack.c.b16 %v1565, %v1561
  %v1710 = vpack.c.b16 %v1566, %v1562
  %v1711 = vpack.c.b16 %v1571, %v1567
  %v1712 = vpack.c.b16 %v1572, %v1568
  %v1713 = vpack.c.b16 %v1573, %v1569
  %v1714 = vpack.c.b16 %v1574, %v1570
  %v1715 = vpack.c.b16 %v1579, %v1575
  %v1716 = vpack.c.b16 %v1580, %v1576
  %v1717 = vpack.c.b16 %v1581, %v1577
  %v1718 = vpack.c.b16 %v1582, %v1578
  %v1719 = vpack.c.b16 %v1587, %v1583
  %v1720 = vpack.c.b16 %v1588, %v1584
  %v1721 = vpack.c.b16 %v1589, %v1585
  %v1722 = vpack.c.b16 %v1590, %v1586
  %v1723 = vpack.c.b16 %v1595, %v1591
  %v1724 = vpack.c.b16 %v1596, %v1592
  %v1725 = vpack.c.b16 %v1597, %v1593
  %v1726 = vpack.c.b16 %v1598, %v1594
  %1855 = vmatprep.subr.bf16.mxu0 %v1600
  %1856 = vmatpush1.bf16.msra.mxu0 %v1599
  %1857 = vmatprep.subr.bf16.mxu0 %v1604
  %1858 = vmatpush1.bf16.msra.mxu0 %v1603
  %1859 = vmatprep.subr.bf16.mxu0 %v1608
  %1860 = vmatpush1.bf16.msra.mxu0 %v1607
  %1861 = vmatprep.subr.bf16.mxu0 %v1612
  %1862 = vmatpush1.bf16.msra.mxu0 %v1611
  %1863 = vmatprep.subr.bf16.mxu0 %v1616
  %1864 = vmatpush1.bf16.msra.mxu0 %v1615
  %1865 = vmatprep.subr.bf16.mxu0 %v1620
  %1866 = vmatpush1.bf16.msra.mxu0 %v1619
  %1867 = vmatprep.subr.bf16.mxu0 %v1624
  %1868 = vmatpush1.bf16.msra.mxu0 %v1623
  %1869 = vmatprep.subr.bf16.mxu0 %v1628
  %1870 = vmatpush1.bf16.msra.mxu0 %v1627
  %1871 = vmatprep.subr.bf16.mxu0 %v1632
  %1872 = vmatpush1.bf16.msra.mxu0 %v1631
  %1873 = vmatprep.subr.bf16.mxu0 %v1636
  %1874 = vmatpush1.bf16.msra.mxu0 %v1635
  %1875 = vmatprep.subr.bf16.mxu0 %v1640
  %1876 = vmatpush1.bf16.msra.mxu0 %v1639
  %1877 = vmatprep.subr.bf16.mxu0 %v1644
  %1878 = vmatpush1.bf16.msra.mxu0 %v1643
  %1879 = vmatprep.subr.bf16.mxu0 %v1648
  %1880 = vmatpush1.bf16.msra.mxu0 %v1647
  %1881 = vmatprep.subr.bf16.mxu0 %v1652
  %1882 = vmatpush1.bf16.msra.mxu0 %v1651
  %1883 = vmatprep.subr.bf16.mxu0 %v1656
  %1884 = vmatpush1.bf16.msra.mxu0 %v1655
  %1885 = vmatprep.subr.bf16.mxu0 %v1660
  %1886 = vmatpush1.bf16.msra.mxu0 %v1659
  %1887 = vmatprep.mubr.bf16.mxu0 %v1062
  %1888 = vmatmul.mubr.bf16.gmra.mrb[0].mxu0 %v1061
  %v1889 = vpop.f32.mrb[0].mxu0
  %v1890 = vadd.f32 %v1198, %v1889
  %v1891 = vpop.f32.mrb[0].mxu0
  %v1892 = vadd.f32 %v1202, %v1891
  %v1893 = vpop.f32.mrb[0].mxu0
  %v1894 = vpop.f32.mrb[0].mxu0
  %1895 = vdwg.mxu0
  %1896 = vmatprep.subr.bf16.mxu0 %v1664
  %1897 = vmatpush1.bf16.msra.mxu0 %v1663
  %1898 = vmatprep.subr.bf16.mxu0 %v1668
  %1899 = vmatpush1.bf16.msra.mxu0 %v1667
  %1900 = vmatprep.subr.bf16.mxu0 %v1672
  %1901 = vmatpush1.bf16.msra.mxu0 %v1671
  %1902 = vmatprep.subr.bf16.mxu0 %v1676
  %1903 = vmatpush1.bf16.msra.mxu0 %v1675
  %1904 = vmatprep.subr.bf16.mxu0 %v1680
  %1905 = vmatpush1.bf16.msra.mxu0 %v1679
  %1906 = vmatprep.subr.bf16.mxu0 %v1684
  %1907 = vmatpush1.bf16.msra.mxu0 %v1683
  %1908 = vmatprep.subr.bf16.mxu0 %v1688
  %1909 = vmatpush1.bf16.msra.mxu0 %v1687
  %1910 = vmatprep.subr.bf16.mxu0 %v1692
  %1911 = vmatpush1.bf16.msra.mxu0 %v1691
  %1912 = vmatprep.subr.bf16.mxu0 %v1696
  %1913 = vmatpush1.bf16.msra.mxu0 %v1695
  %1914 = vmatprep.subr.bf16.mxu0 %v1700
  %1915 = vmatpush1.bf16.msra.mxu0 %v1699
  %1916 = vmatprep.subr.bf16.mxu0 %v1704
  %1917 = vmatpush1.bf16.msra.mxu0 %v1703
  %1918 = vmatprep.subr.bf16.mxu0 %v1708
  %1919 = vmatpush1.bf16.msra.mxu0 %v1707
  %1920 = vmatprep.subr.bf16.mxu0 %v1712
  %1921 = vmatpush1.bf16.msra.mxu0 %v1711
  %1922 = vmatprep.subr.bf16.mxu0 %v1716
  %1923 = vmatpush1.bf16.msra.mxu0 %v1715
  %1924 = vmatprep.subr.bf16.mxu0 %v1720
  %1925 = vmatpush1.bf16.msra.mxu0 %v1719
  %1926 = vmatprep.subr.bf16.mxu0 %v1724
  %1927 = vmatpush1.bf16.msra.mxu0 %v1723
  %1928 = vmatprep.mubr.bf16.mxu0 %v1064
  %1929 = vmatmul.mubr.bf16.gmra.mrb[0].mxu0 %v1063
  %v1930 = vpop.f32.mrb[0].mxu0
  %v1931 = vadd.f32 %v1890, %v1930
  %v1932 = vpop.f32.mrb[0].mxu0
  %v1933 = vadd.f32 %v1892, %v1932
  %v1934 = vpop.f32.mrb[0].mxu0
  %v1935 = vpop.f32.mrb[0].mxu0
  %1936 = vdwg.mxu0
  %1937 = vmatprep.subr.bf16.mxu0 %v1602
  %1938 = vmatpush1.bf16.msra.mxu0 %v1601
  %1939 = vmatprep.subr.bf16.mxu0 %v1606
  %1940 = vmatpush1.bf16.msra.mxu0 %v1605
  %1941 = vmatprep.subr.bf16.mxu0 %v1610
  %1942 = vmatpush1.bf16.msra.mxu0 %v1609
  %1943 = vmatprep.subr.bf16.mxu0 %v1614
  %1944 = vmatpush1.bf16.msra.mxu0 %v1613
  %1945 = vmatprep.subr.bf16.mxu0 %v1618
  %1946 = vmatpush1.bf16.msra.mxu0 %v1617
  %1947 = vmatprep.subr.bf16.mxu0 %v1622
  %1948 = vmatpush1.bf16.msra.mxu0 %v1621
  %1949 = vmatprep.subr.bf16.mxu0 %v1626
  %1950 = vmatpush1.bf16.msra.mxu0 %v1625
  %1951 = vmatprep.subr.bf16.mxu0 %v1630
  %1952 = vmatpush1.bf16.msra.mxu0 %v1629
  %1953 = vmatprep.subr.bf16.mxu0 %v1634
  %1954 = vmatpush1.bf16.msra.mxu0 %v1633
  %1955 = vmatprep.subr.bf16.mxu0 %v1638
  %1956 = vmatpush1.bf16.msra.mxu0 %v1637
  %1957 = vmatprep.subr.bf16.mxu0 %v1642
  %1958 = vmatpush1.bf16.msra.mxu0 %v1641
  %1959 = vmatprep.subr.bf16.mxu0 %v1646
  %1960 = vmatpush1.bf16.msra.mxu0 %v1645
  %1961 = vmatprep.subr.bf16.mxu0 %v1650
  %1962 = vmatpush1.bf16.msra.mxu0 %v1649
  %1963 = vmatprep.subr.bf16.mxu0 %v1654
  %1964 = vmatpush1.bf16.msra.mxu0 %v1653
  %1965 = vmatprep.subr.bf16.mxu0 %v1658
  %1966 = vmatpush1.bf16.msra.mxu0 %v1657
  %1967 = vmatprep.subr.bf16.mxu0 %v1662
  %1968 = vmatpush1.bf16.msra.mxu0 %v1661
  %1969 = vmatprep.mubr.bf16.mxu0 %v1062
  %1970 = vmatmul.mubr.bf16.gmra.mrb[0].mxu0 %v1061
  %v1971 = vpop.f32.mrb[0].mxu0
  %v1972 = vadd.f32 %v1206, %v1971
  %v1973 = vpop.f32.mrb[0].mxu0
  %v1974 = vadd.f32 %v1210, %v1973
  %v1975 = vpop.f32.mrb[0].mxu0
  %v1976 = vpop.f32.mrb[0].mxu0
  %1977 = vdwg.mxu0
  %1978 = vmatprep.subr.bf16.mxu0 %v1666
  %1979 = vmatpush1.bf16.msra.mxu0 %v1665
  %1980 = vmatprep.subr.bf16.mxu0 %v1670
  %1981 = vmatpush1.bf16.msra.mxu0 %v1669
  %1982 = vmatprep.subr.bf16.mxu0 %v1674
  %1983 = vmatpush1.bf16.msra.mxu0 %v1673
  %1984 = vmatprep.subr.bf16.mxu0 %v1678
  %1985 = vmatpush1.bf16.msra.mxu0 %v1677
  %1986 = vmatprep.subr.bf16.mxu0 %v1682
  %1987 = vmatpush1.bf16.msra.mxu0 %v1681
  %1988 = vmatprep.subr.bf16.mxu0 %v1686
  %1989 = vmatpush1.bf16.msra.mxu0 %v1685
  %1990 = vmatprep.subr.bf16.mxu0 %v1690
  %1991 = vmatpush1.bf16.msra.mxu0 %v1689
  %1992 = vmatprep.subr.bf16.mxu0 %v1694
  %1993 = vmatpush1.bf16.msra.mxu0 %v1693
  %1994 = vmatprep.subr.bf16.mxu0 %v1698
  %1995 = vmatpush1.bf16.msra.mxu0 %v1697
  %1996 = vmatprep.subr.bf16.mxu0 %v1702
  %1997 = vmatpush1.bf16.msra.mxu0 %v1701
  %1998 = vmatprep.subr.bf16.mxu0 %v1706
  %1999 = vmatpush1.bf16.msra.mxu0 %v1705
  %2000 = vmatprep.subr.bf16.mxu0 %v1710
  %2001 = vmatpush1.bf16.msra.mxu0 %v1709
  %2002 = vmatprep.subr.bf16.mxu0 %v1714
  %2003 = vmatpush1.bf16.msra.mxu0 %v1713
  %2004 = vmatprep.subr.bf16.mxu0 %v1718
  %2005 = vmatpush1.bf16.msra.mxu0 %v1717
  %2006 = vmatprep.subr.bf16.mxu0 %v1722
  %2007 = vmatpush1.bf16.msra.mxu0 %v1721
  %2008 = vmatprep.subr.bf16.mxu0 %v1726
  %2009 = vmatpush1.bf16.msra.mxu0 %v1725
  %2010 = vmatprep.mubr.bf16.mxu0 %v1064
  %2011 = vmatmul.mubr.bf16.gmra.mrb[0].mxu0 %v1063
  %v2012 = vpop.f32.mrb[0].mxu0
  %v2013 = vadd.f32 %v1972, %v2012
  %v2014 = vpop.f32.mrb[0].mxu0
  %v2015 = vadd.f32 %v1974, %v2014
  %v2016 = vpop.f32.mrb[0].mxu0
  %v2017 = vpop.f32.mrb[0].mxu0
  %2018 = vdwg.mxu0
  %v2019 = vadd.f32 %v1931, %v1014
  %v2020 = vadd.f32 %v1933, %v1016
  %v2021 = vadd.f32 %v2013, %v1055
  %v2022 = vadd.f32 %v2015, %v1057
  %v2023 = vmax.f32 %v2019, 0.0
  %v2024 = vmax.f32 %v2020, 0.0
  %v2025 = vmax.f32 %v2021, 0.0
  %v2026 = vmax.f32 %v2022, 0.0
  %v2031 = vcombine.low %v2023, %v2024
  %v2032 = vcombine.low %v2025, %v2026
  %v2034 = vunpack.c.l.s4 1983009808
  %v2035 = vunpack.c.0.s8 %v2034
  %v2036 = vlaneseq
  %v2037 = vshrl.u32 %v2036, 7
  %v2038 = vsub.s32 %v2035, %v2037
  %v2039 = vrot.slane %v2031, %v2038
  %v2041 = vunpack.c.l.s4 1983009808
  %v2042 = vunpack.c.0.s8 %v2041
  %v2043 = vlaneseq
  %v2044 = vshrl.u32 %v2043, 7
  %v2045 = vsub.s32 %v2042, %v2044
  %v2046 = vrot.slane %v2032, %v2045
  %v2047 = vcombine.low %v2039, %v2046
  %2049 = vst [vmem:[%s8] sm:$0xff] %v2047
  // Predicated region
  $region34: #{resnet18_with_mlp.27} parent=0 // pred_check
    _
  $region35: #{resnet18_with_mlp.27} parent=0 // pred_check_branch
    %2051 = sbr.rel (0) target = $region37
  $region36: #{resnet18_with_mlp.27} parent=0 // pred_region
    _
  $region37: #{resnet18_with_mlp.27} parent=0 // pred_fallthru
    _
  // Predicated region
  $region38: #{resnet18_with_mlp.27} parent=0 // pred_check
    _
  $region39: #{resnet18_with_mlp.27} parent=0 // pred_check_branch
    %2053 = sbr.rel (0) target = $region41
  $region40: #{resnet18_with_mlp.27} parent=0 // pred_region
    _
  $region41: #{resnet18_with_mlp.27} parent=0 // pred_fallthru
    _

// kernel: resnet18_with_mlp.25
$region0: #{resnet18_with_mlp.25}
  #allocation0 [shape = 'u32[]', space=smem, size = 0x4, offset = 0x4, fixed_abs, tag = 'smem constant byte address 0x4 - core index']
  #allocation1 [shape = 'u32[144,128]{1,0:T(1,128)}', space=vmem, size = 0x12000, scoped, tag = 'internal scratch']
  %s0 = inlined_call_operand.vmem [shape: bf16[2,1152], index: 0, kind: input, shape index: {}]
  %s1 = inlined_call_operand.vmem [shape: bf16[2,128], index: 1, kind: input, shape index: {}]
  %s2 = inlined_call_operand.vmem [shape: bf16[1152,256], index: 2, kind: input, shape index: {}]
  %s3 = inlined_call_operand.vmem [shape: f32[1,256], index: 3, kind: input, shape index: {}]
  %s4 = inlined_call_operand.vmem [shape: bf16[128,256], index: 4, kind: input, shape index: {}]
  %s5 = inlined_call_operand.vmem [shape: f32[1,256], index: 5, kind: input, shape index: {}]
  %s6 = inlined_call_operand.vmem [shape: bf16[256,256], index: 6, kind: input, shape index: {}]
  %s7 = inlined_call_operand.vmem [shape: f32[1,256], index: 7, kind: input, shape index: {}]
  %s8 = inlined_call_operand.vmem [shape: f32[2,256], index: 8, kind: output, shape index: {}]
  %s9 = sld [smem:[#allocation0]]
  $region42: #{resnet18_with_mlp.25} parent=0
    _
  %s11 = ssub.s32 1, %s9
  %s12 = scalar_select 0, %s11, %s9
  // Predicated region
  $region2: #{resnet18_with_mlp.25} parent=0 // pred_check
    _
  $region3: #{resnet18_with_mlp.25} parent=0 // pred_check_branch
    %14 = sbr.rel (0) target = $region5
  $region4: #{resnet18_with_mlp.25} parent=0 // pred_region
    _
  $region5: #{resnet18_with_mlp.25} parent=0 // pred_fallthru
    _
  // Predicated region
  $region6: #{resnet18_with_mlp.25} parent=0 // pred_check
    _
  $region7: #{resnet18_with_mlp.25} parent=0 // pred_check_branch
    %16 = sbr.rel (0) target = $region9
  $region8: #{resnet18_with_mlp.25} parent=0 // pred_region
    _
  $region9: #{resnet18_with_mlp.25} parent=0 // pred_fallthru
    _
  // Predicated region
  $region10: #{resnet18_with_mlp.25} parent=0 // pred_check
    _
  $region11: #{resnet18_with_mlp.25} parent=0 // pred_check_branch
    %18 = sbr.rel (0) target = $region13
  $region12: #{resnet18_with_mlp.25} parent=0 // pred_region
    _
  $region13: #{resnet18_with_mlp.25} parent=0 // pred_fallthru
    _
  // Predicated region
  $region14: #{resnet18_with_mlp.25} parent=0 // pred_check
    _
  $region15: #{resnet18_with_mlp.25} parent=0 // pred_check_branch
    %20 = sbr.rel (0) target = $region17
  $region16: #{resnet18_with_mlp.25} parent=0 // pred_region
    _
  $region17: #{resnet18_with_mlp.25} parent=0 // pred_fallthru
    _
  // Predicated region
  $region18: #{resnet18_with_mlp.25} parent=0 // pred_check
    _
  $region19: #{resnet18_with_mlp.25} parent=0 // pred_check_branch
    %22 = sbr.rel (0) target = $region21
  $region20: #{resnet18_with_mlp.25} parent=0 // pred_region
    _
  $region21: #{resnet18_with_mlp.25} parent=0 // pred_fallthru
    _
  // Predicated region
  $region22: #{resnet18_with_mlp.25} parent=0 // pred_check
    _
  $region23: #{resnet18_with_mlp.25} parent=0 // pred_check_branch
    %24 = sbr.rel (0) target = $region25
  $region24: #{resnet18_with_mlp.25} parent=0 // pred_region
    _
  $region25: #{resnet18_with_mlp.25} parent=0 // pred_fallthru
    _
  // Predicated region
  $region26: #{resnet18_with_mlp.25} parent=0 // pred_check
    _
  $region27: #{resnet18_with_mlp.25} parent=0 // pred_check_branch
    %26 = sbr.rel (0) target = $region29
  $region28: #{resnet18_with_mlp.25} parent=0 // pred_region
    _
  $region29: #{resnet18_with_mlp.25} parent=0 // pred_fallthru
    _
  // Predicated region
  $region30: #{resnet18_with_mlp.25} parent=0 // pred_check
    _
  $region31: #{resnet18_with_mlp.25} parent=0 // pred_check_branch
    %28 = sbr.rel (0) target = $region33
  $region32: #{resnet18_with_mlp.25} parent=0 // pred_region
    _
  $region33: #{resnet18_with_mlp.25} parent=0 // pred_fallthru
    _
  %v30 = vld [vmem:[%s0] sm:$0xff]
  %v31 = vld [vmem:[%s0 + $0x8] sm:$0x1]
  %v32 = vld [vmem:[%s2] sm:$0xff]
  %v33 = vld [vmem:[%s2 + $0x8] sm:$0xff]
  %v34 = vld [vmem:[%s2 + $0x10] sm:$0xff]
  %v35 = vld [vmem:[%s2 + $0x18] sm:$0xff]
  %v36 = vld [vmem:[%s2 + $0x20] sm:$0xff]
  %v37 = vld [vmem:[%s2 + $0x28] sm:$0xff]
  %v38 = vld [vmem:[%s2 + $0x30] sm:$0xff]
  %v39 = vld [vmem:[%s2 + $0x38] sm:$0xff]
  %v40 = vld [vmem:[%s2 + $0x40] sm:$0xff]
  %v41 = vld [vmem:[%s2 + $0x48] sm:$0xff]
  %v42 = vld [vmem:[%s2 + $0x50] sm:$0xff]
  %v43 = vld [vmem:[%s2 + $0x58] sm:$0xff]
  %v44 = vld [vmem:[%s2 + $0x60] sm:$0xff]
  %v45 = vld [vmem:[%s2 + $0x68] sm:$0xff]
  %v46 = vld [vmem:[%s2 + $0x70] sm:$0xff]
  %v47 = vld [vmem:[%s2 + $0x78] sm:$0xff]
  %v48 = vld [vmem:[%s2 + $0x80] sm:$0xff]
  %v49 = vld [vmem:[%s2 + $0x88] sm:$0xff]
  %v50 = vld [vmem:[%s2 + $0x90] sm:$0xff]
  %v51 = vld [vmem:[%s2 + $0x98] sm:$0xff]
  %v52 = vld [vmem:[%s2 + $0xa0] sm:$0xff]
  %v53 = vld [vmem:[%s2 + $0xa8] sm:$0xff]
  %v54 = vld [vmem:[%s2 + $0xb0] sm:$0xff]
  %v55 = vld [vmem:[%s2 + $0xb8] sm:$0xff]
  %v56 = vld [vmem:[%s2 + $0xc0] sm:$0xff]
  %v57 = vld [vmem:[%s2 + $0xc8] sm:$0xff]
  %v58 = vld [vmem:[%s2 + $0xd0] sm:$0xff]
  %v59 = vld [vmem:[%s2 + $0xd8] sm:$0xff]
  %v60 = vld [vmem:[%s2 + $0xe0] sm:$0xff]
  %v61 = vld [vmem:[%s2 + $0xe8] sm:$0xff]
  %v62 = vld [vmem:[%s2 + $0xf0] sm:$0xff]
  %v63 = vld [vmem:[%s2 + $0xf8] sm:$0xff]
  %v64 = vld [vmem:[%s2 + $0x100] sm:$0xff]
  %v65 = vld [vmem:[%s2 + $0x108] sm:$0xff]
  %v66 = vld [vmem:[%s2 + $0x110] sm:$0xff]
  %v67 = vld [vmem:[%s2 + $0x118] sm:$0xff]
  %v68 = vld [vmem:[%s2 + $0x120] sm:$0xff]
  %v69 = vld [vmem:[%s2 + $0x128] sm:$0xff]
  %v70 = vld [vmem:[%s2 + $0x130] sm:$0xff]
  %v71 = vld [vmem:[%s2 + $0x138] sm:$0xff]
  %v72 = vld [vmem:[%s2 + $0x140] sm:$0xff]
  %v73 = vld [vmem:[%s2 + $0x148] sm:$0xff]
  %v74 = vld [vmem:[%s2 + $0x150] sm:$0xff]
  %v75 = vld [vmem:[%s2 + $0x158] sm:$0xff]
  %v76 = vld [vmem:[%s2 + $0x160] sm:$0xff]
  %v77 = vld [vmem:[%s2 + $0x168] sm:$0xff]
  %v78 = vld [vmem:[%s2 + $0x170] sm:$0xff]
  %v79 = vld [vmem:[%s2 + $0x178] sm:$0xff]
  %v80 = vld [vmem:[%s2 + $0x180] sm:$0xff]
  %v81 = vld [vmem:[%s2 + $0x188] sm:$0xff]
  %v82 = vld [vmem:[%s2 + $0x190] sm:$0xff]
  %v83 = vld [vmem:[%s2 + $0x198] sm:$0xff]
  %v84 = vld [vmem:[%s2 + $0x1a0] sm:$0xff]
  %v85 = vld [vmem:[%s2 + $0x1a8] sm:$0xff]
  %v86 = vld [vmem:[%s2 + $0x1b0] sm:$0xff]
  %v87 = vld [vmem:[%s2 + $0x1b8] sm:$0xff]
  %v88 = vld [vmem:[%s2 + $0x1c0] sm:$0xff]
  %v89 = vld [vmem:[%s2 + $0x1c8] sm:$0xff]
  %v90 = vld [vmem:[%s2 + $0x1d0] sm:$0xff]
  %v91 = vld [vmem:[%s2 + $0x1d8] sm:$0xff]
  %v92 = vld [vmem:[%s2 + $0x1e0] sm:$0xff]
  %v93 = vld [vmem:[%s2 + $0x1e8] sm:$0xff]
  %v94 = vld [vmem:[%s2 + $0x1f0] sm:$0xff]
  %v95 = vld [vmem:[%s2 + $0x1f8] sm:$0xff]
  %v96 = vld [vmem:[%s2 + $0x200] sm:$0xff]
  %v97 = vld [vmem:[%s2 + $0x208] sm:$0xff]
  %v98 = vld [vmem:[%s2 + $0x210] sm:$0xff]
  %v99 = vld [vmem:[%s2 + $0x218] sm:$0xff]
  %v100 = vld [vmem:[%s2 + $0x220] sm:$0xff]
  %v101 = vld [vmem:[%s2 + $0x228] sm:$0xff]
  %v102 = vld [vmem:[%s2 + $0x230] sm:$0xff]
  %v103 = vld [vmem:[%s2 + $0x238] sm:$0xff]
  %v104 = vld [vmem:[%s2 + $0x240] sm:$0xff]
  %v105 = vld [vmem:[%s2 + $0x248] sm:$0xff]
  %v106 = vld [vmem:[%s2 + $0x250] sm:$0xff]
  %v107 = vld [vmem:[%s2 + $0x258] sm:$0xff]
  %v108 = vld [vmem:[%s2 + $0x260] sm:$0xff]
  %v109 = vld [vmem:[%s2 + $0x268] sm:$0xff]
  %v110 = vld [vmem:[%s2 + $0x270] sm:$0xff]
  %v111 = vld [vmem:[%s2 + $0x278] sm:$0xff]
  %v112 = vld [vmem:[%s2 + $0x280] sm:$0xff]
  %v113 = vld [vmem:[%s2 + $0x288] sm:$0xff]
  %v114 = vld [vmem:[%s2 + $0x290] sm:$0xff]
  %v115 = vld [vmem:[%s2 + $0x298] sm:$0xff]
  %v116 = vld [vmem:[%s2 + $0x2a0] sm:$0xff]
  %v117 = vld [vmem:[%s2 + $0x2a8] sm:$0xff]
  %v118 = vld [vmem:[%s2 + $0x2b0] sm:$0xff]
  %v119 = vld [vmem:[%s2 + $0x2b8] sm:$0xff]
  %v120 = vld [vmem:[%s2 + $0x2c0] sm:$0xff]
  %v121 = vld [vmem:[%s2 + $0x2c8] sm:$0xff]
  %v122 = vld [vmem:[%s2 + $0x2d0] sm:$0xff]
  %v123 = vld [vmem:[%s2 + $0x2d8] sm:$0xff]
  %v124 = vld [vmem:[%s2 + $0x2e0] sm:$0xff]
  %v125 = vld [vmem:[%s2 + $0x2e8] sm:$0xff]
  %v126 = vld [vmem:[%s2 + $0x2f0] sm:$0xff]
  %v127 = vld [vmem:[%s2 + $0x2f8] sm:$0xff]
  %v128 = vld [vmem:[%s2 + $0x300] sm:$0xff]
  %v129 = vld [vmem:[%s2 + $0x308] sm:$0xff]
  %v130 = vld [vmem:[%s2 + $0x310] sm:$0xff]
  %v131 = vld [vmem:[%s2 + $0x318] sm:$0xff]
  %v132 = vld [vmem:[%s2 + $0x320] sm:$0xff]
  %v133 = vld [vmem:[%s2 + $0x328] sm:$0xff]
  %v134 = vld [vmem:[%s2 + $0x330] sm:$0xff]
  %v135 = vld [vmem:[%s2 + $0x338] sm:$0xff]
  %v136 = vld [vmem:[%s2 + $0x340] sm:$0xff]
  %v137 = vld [vmem:[%s2 + $0x348] sm:$0xff]
  %v138 = vld [vmem:[%s2 + $0x350] sm:$0xff]
  %v139 = vld [vmem:[%s2 + $0x358] sm:$0xff]
  %v140 = vld [vmem:[%s2 + $0x360] sm:$0xff]
  %v141 = vld [vmem:[%s2 + $0x368] sm:$0xff]
  %v142 = vld [vmem:[%s2 + $0x370] sm:$0xff]
  %v143 = vld [vmem:[%s2 + $0x378] sm:$0xff]
  %v144 = vld [vmem:[%s2 + $0x380] sm:$0xff]
  %v145 = vld [vmem:[%s2 + $0x388] sm:$0xff]
  %v146 = vld [vmem:[%s2 + $0x390] sm:$0xff]
  %v147 = vld [vmem:[%s2 + $0x398] sm:$0xff]
  %v148 = vld [vmem:[%s2 + $0x3a0] sm:$0xff]
  %v149 = vld [vmem:[%s2 + $0x3a8] sm:$0xff]
  %v150 = vld [vmem:[%s2 + $0x3b0] sm:$0xff]
  %v151 = vld [vmem:[%s2 + $0x3b8] sm:$0xff]
  %v152 = vld [vmem:[%s2 + $0x3c0] sm:$0xff]
  %v153 = vld [vmem:[%s2 + $0x3c8] sm:$0xff]
  %v154 = vld [vmem:[%s2 + $0x3d0] sm:$0xff]
  %v155 = vld [vmem:[%s2 + $0x3d8] sm:$0xff]
  %v156 = vld [vmem:[%s2 + $0x3e0] sm:$0xff]
  %v157 = vld [vmem:[%s2 + $0x3e8] sm:$0xff]
  %v158 = vld [vmem:[%s2 + $0x3f0] sm:$0xff]
  %v159 = vld [vmem:[%s2 + $0x3f8] sm:$0xff]
  %v160 = vld [vmem:[%s2 + $0x400] sm:$0xff]
  %v161 = vld [vmem:[%s2 + $0x408] sm:$0xff]
  %v162 = vld [vmem:[%s2 + $0x410] sm:$0xff]
  %v163 = vld [vmem:[%s2 + $0x418] sm:$0xff]
  %v164 = vld [vmem:[%s2 + $0x420] sm:$0xff]
  %v165 = vld [vmem:[%s2 + $0x428] sm:$0xff]
  %v166 = vld [vmem:[%s2 + $0x430] sm:$0xff]
  %v167 = vld [vmem:[%s2 + $0x438] sm:$0xff]
  %v168 = vld [vmem:[%s2 + $0x440] sm:$0xff]
  %v169 = vld [vmem:[%s2 + $0x448] sm:$0xff]
  %v170 = vld [vmem:[%s2 + $0x450] sm:$0xff]
  %v171 = vld [vmem:[%s2 + $0x458] sm:$0xff]
  %v172 = vld [vmem:[%s2 + $0x460] sm:$0xff]
  %v173 = vld [vmem:[%s2 + $0x468] sm:$0xff]
  %v174 = vld [vmem:[%s2 + $0x470] sm:$0xff]
  %v175 = vld [vmem:[%s2 + $0x478] sm:$0xff]
  %v176 = vld [vmem:[%s3] sm:$0x3]
  %v178 = vlaneseq
  %v179 = vshrl.u32 %v178, 7
  %v180 = vsub.s32 0, %v179
  %v181 = vrot.slane %v176, %v180
  %v182 = vlaneseq
  %v183 = vshrl.u32 %v182, 7
  %v184 = vsub.s32 1, %v183
  %v185 = vrot.slane %v176, %v184
  %v190 = vcombine.high %v30, %v30
  %v192 = vunpack.c.l.s4 1966171168
  %v193 = vunpack.c.0.s8 %v192
  %v194 = vlaneseq
  %v195 = vshrl.u32 %v194, 7
  %v196 = vsub.s32 %v193, %v195
  %v197 = vrot.slane %v30, %v196
  %v199 = vunpack.c.l.s4 1966171168
  %v200 = vunpack.c.0.s8 %v199
  %v201 = vlaneseq
  %v202 = vshrl.u32 %v201, 7
  %v203 = vsub.s32 %v200, %v202
  %v204 = vrot.slane %v190, %v203
  %v205 = vcombine.high %v197, %v197
  %v206 = vcombine.high %v204, %v204
  %v208 = vunpack.c.l.s4 1966171168
  %v209 = vunpack.c.0.s8 %v208
  %v210 = vlaneseq
  %v211 = vshrl.u32 %v210, 7
  %v212 = vsub.s32 %v209, %v211
  %v213 = vrot.slane %v197, %v212
  %v215 = vunpack.c.l.s4 1966171168
  %v216 = vunpack.c.0.s8 %v215
  %v217 = vlaneseq
  %v218 = vshrl.u32 %v217, 7
  %v219 = vsub.s32 %v216, %v218
  %v220 = vrot.slane %v204, %v219
  %v222 = vunpack.c.l.s4 1966171168
  %v223 = vunpack.c.0.s8 %v222
  %v224 = vlaneseq
  %v225 = vshrl.u32 %v224, 7
  %v226 = vsub.s32 %v223, %v225
  %v227 = vrot.slane %v205, %v226
  %v229 = vunpack.c.l.s4 1966171168
  %v230 = vunpack.c.0.s8 %v229
  %v231 = vlaneseq
  %v232 = vshrl.u32 %v231, 7
  %v233 = vsub.s32 %v230, %v232
  %v234 = vrot.slane %v206, %v233
  %v235 = vcombine.high %v213, %v213
  %v236 = vcombine.high %v220, %v220
  %v237 = vcombine.high %v227, %v227
  %v238 = vcombine.high %v234, %v234
  %v240 = vunpack.c.l.s4 1966171168
  %v241 = vunpack.c.0.s8 %v240
  %v242 = vlaneseq
  %v243 = vshrl.u32 %v242, 7
  %v244 = vsub.s32 %v241, %v243
  %v245 = vrot.slane %v31, %v244
  %v247 = vunpack.c.l.s4 1966171168
  %v248 = vunpack.c.0.s8 %v247
  %v249 = vlaneseq
  %v250 = vshrl.u32 %v249, 7
  %v251 = vsub.s32 %v248, %v250
  %v252 = vrot.slane %v245, %v251
  %v406 = vunpack.c.l.b16 %v32
  %v407 = vunpack.c.h.b16 %v32
  %v408 = vunpack.c.l.b16 %v33
  %v409 = vunpack.c.h.b16 %v33
  %v410 = vunpack.c.l.b16 %v34
  %v411 = vunpack.c.h.b16 %v34
  %v412 = vunpack.c.l.b16 %v35
  %v413 = vunpack.c.h.b16 %v35
  %v414 = vunpack.c.l.b16 %v36
  %v415 = vunpack.c.h.b16 %v36
  %v416 = vunpack.c.l.b16 %v37
  %v417 = vunpack.c.h.b16 %v37
  %v418 = vunpack.c.l.b16 %v38
  %v419 = vunpack.c.h.b16 %v38
  %v420 = vunpack.c.l.b16 %v39
  %v421 = vunpack.c.h.b16 %v39
  %v422 = vunpack.c.l.b16 %v40
  %v423 = vunpack.c.h.b16 %v40
  %v424 = vunpack.c.l.b16 %v41
  %v425 = vunpack.c.h.b16 %v41
  %v426 = vunpack.c.l.b16 %v42
  %v427 = vunpack.c.h.b16 %v42
  %v428 = vunpack.c.l.b16 %v43
  %v429 = vunpack.c.h.b16 %v43
  %v430 = vunpack.c.l.b16 %v44
  %v431 = vunpack.c.h.b16 %v44
  %v432 = vunpack.c.l.b16 %v45
  %v433 = vunpack.c.h.b16 %v45
  %v434 = vunpack.c.l.b16 %v46
  %v435 = vunpack.c.h.b16 %v46
  %v436 = vunpack.c.l.b16 %v47
  %v437 = vunpack.c.h.b16 %v47
  %v438 = vunpack.c.l.b16 %v48
  %v439 = vunpack.c.h.b16 %v48
  %v440 = vunpack.c.l.b16 %v49
  %v441 = vunpack.c.h.b16 %v49
  %v442 = vunpack.c.l.b16 %v50
  %v443 = vunpack.c.h.b16 %v50
  %v444 = vunpack.c.l.b16 %v51
  %v445 = vunpack.c.h.b16 %v51
  %v446 = vunpack.c.l.b16 %v52
  %v447 = vunpack.c.h.b16 %v52
  %v448 = vunpack.c.l.b16 %v53
  %v449 = vunpack.c.h.b16 %v53
  %v450 = vunpack.c.l.b16 %v54
  %v451 = vunpack.c.h.b16 %v54
  %v452 = vunpack.c.l.b16 %v55
  %v453 = vunpack.c.h.b16 %v55
  %v454 = vunpack.c.l.b16 %v56
  %v455 = vunpack.c.h.b16 %v56
  %v456 = vunpack.c.l.b16 %v57
  %v457 = vunpack.c.h.b16 %v57
  %v458 = vunpack.c.l.b16 %v58
  %v459 = vunpack.c.h.b16 %v58
  %v460 = vunpack.c.l.b16 %v59
  %v461 = vunpack.c.h.b16 %v59
  %v462 = vunpack.c.l.b16 %v60
  %v463 = vunpack.c.h.b16 %v60
  %v464 = vunpack.c.l.b16 %v61
  %v465 = vunpack.c.h.b16 %v61
  %v466 = vunpack.c.l.b16 %v62
  %v467 = vunpack.c.h.b16 %v62
  %v468 = vunpack.c.l.b16 %v63
  %v469 = vunpack.c.h.b16 %v63
  %v470 = vunpack.c.l.b16 %v64
  %v471 = vunpack.c.h.b16 %v64
  %v472 = vunpack.c.l.b16 %v65
  %v473 = vunpack.c.h.b16 %v65
  %v474 = vunpack.c.l.b16 %v66
  %v475 = vunpack.c.h.b16 %v66
  %v476 = vunpack.c.l.b16 %v67
  %v477 = vunpack.c.h.b16 %v67
  %v478 = vunpack.c.l.b16 %v68
  %v479 = vunpack.c.h.b16 %v68
  %v480 = vunpack.c.l.b16 %v69
  %v481 = vunpack.c.h.b16 %v69
  %v482 = vunpack.c.l.b16 %v70
  %v483 = vunpack.c.h.b16 %v70
  %v484 = vunpack.c.l.b16 %v71
  %v485 = vunpack.c.h.b16 %v71
  %v486 = vunpack.c.l.b16 %v72
  %v487 = vunpack.c.h.b16 %v72
  %v488 = vunpack.c.l.b16 %v73
  %v489 = vunpack.c.h.b16 %v73
  %v490 = vunpack.c.l.b16 %v74
  %v491 = vunpack.c.h.b16 %v74
  %v492 = vunpack.c.l.b16 %v75
  %v493 = vunpack.c.h.b16 %v75
  %v494 = vunpack.c.l.b16 %v76
  %v495 = vunpack.c.h.b16 %v76
  %v496 = vunpack.c.l.b16 %v77
  %v497 = vunpack.c.h.b16 %v77
  %v498 = vunpack.c.l.b16 %v78
  %v499 = vunpack.c.h.b16 %v78
  %v500 = vunpack.c.l.b16 %v79
  %v501 = vunpack.c.h.b16 %v79
  %v502 = vunpack.c.l.b16 %v80
  %v503 = vunpack.c.h.b16 %v80
  %v504 = vunpack.c.l.b16 %v81
  %v505 = vunpack.c.h.b16 %v81
  %v506 = vunpack.c.l.b16 %v82
  %v507 = vunpack.c.h.b16 %v82
  %v508 = vunpack.c.l.b16 %v83
  %v509 = vunpack.c.h.b16 %v83
  %v510 = vunpack.c.l.b16 %v84
  %v511 = vunpack.c.h.b16 %v84
  %v512 = vunpack.c.l.b16 %v85
  %v513 = vunpack.c.h.b16 %v85
  %v514 = vunpack.c.l.b16 %v86
  %v515 = vunpack.c.h.b16 %v86
  %v516 = vunpack.c.l.b16 %v87
  %v517 = vunpack.c.h.b16 %v87
  %v518 = vunpack.c.l.b16 %v88
  %v519 = vunpack.c.h.b16 %v88
  %v520 = vunpack.c.l.b16 %v89
  %v521 = vunpack.c.h.b16 %v89
  %v522 = vunpack.c.l.b16 %v90
  %v523 = vunpack.c.h.b16 %v90
  %v524 = vunpack.c.l.b16 %v91
  %v525 = vunpack.c.h.b16 %v91
  %v526 = vunpack.c.l.b16 %v92
  %v527 = vunpack.c.h.b16 %v92
  %v528 = vunpack.c.l.b16 %v93
  %v529 = vunpack.c.h.b16 %v93
  %v530 = vunpack.c.l.b16 %v94
  %v531 = vunpack.c.h.b16 %v94
  %v532 = vunpack.c.l.b16 %v95
  %v533 = vunpack.c.h.b16 %v95
  %v534 = vunpack.c.l.b16 %v96
  %v535 = vunpack.c.h.b16 %v96
  %v536 = vunpack.c.l.b16 %v97
  %v537 = vunpack.c.h.b16 %v97
  %v538 = vunpack.c.l.b16 %v98
  %v539 = vunpack.c.h.b16 %v98
  %v540 = vunpack.c.l.b16 %v99
  %v541 = vunpack.c.h.b16 %v99
  %v542 = vunpack.c.l.b16 %v100
  %v543 = vunpack.c.h.b16 %v100
  %v544 = vunpack.c.l.b16 %v101
  %v545 = vunpack.c.h.b16 %v101
  %v546 = vunpack.c.l.b16 %v102
  %v547 = vunpack.c.h.b16 %v102
  %v548 = vunpack.c.l.b16 %v103
  %v549 = vunpack.c.h.b16 %v103
  %v550 = vunpack.c.l.b16 %v104
  %v551 = vunpack.c.h.b16 %v104
  %v552 = vunpack.c.l.b16 %v105
  %v553 = vunpack.c.h.b16 %v105
  %v554 = vunpack.c.l.b16 %v106
  %v555 = vunpack.c.h.b16 %v106
  %v556 = vunpack.c.l.b16 %v107
  %v557 = vunpack.c.h.b16 %v107
  %v558 = vunpack.c.l.b16 %v108
  %v559 = vunpack.c.h.b16 %v108
  %v560 = vunpack.c.l.b16 %v109
  %v561 = vunpack.c.h.b16 %v109
  %v562 = vunpack.c.l.b16 %v110
  %v563 = vunpack.c.h.b16 %v110
  %v564 = vunpack.c.l.b16 %v111
  %v565 = vunpack.c.h.b16 %v111
  %v566 = vunpack.c.l.b16 %v112
  %v567 = vunpack.c.h.b16 %v112
  %v568 = vunpack.c.l.b16 %v113
  %v569 = vunpack.c.h.b16 %v113
  %v570 = vunpack.c.l.b16 %v114
  %v571 = vunpack.c.h.b16 %v114
  %v572 = vunpack.c.l.b16 %v115
  %v573 = vunpack.c.h.b16 %v115
  %v574 = vunpack.c.l.b16 %v116
  %v575 = vunpack.c.h.b16 %v116
  %v576 = vunpack.c.l.b16 %v117
  %v577 = vunpack.c.h.b16 %v117
  %v578 = vunpack.c.l.b16 %v118
  %v579 = vunpack.c.h.b16 %v118
  %v580 = vunpack.c.l.b16 %v119
  %v581 = vunpack.c.h.b16 %v119
  %v582 = vunpack.c.l.b16 %v120
  %v583 = vunpack.c.h.b16 %v120
  %v584 = vunpack.c.l.b16 %v121
  %v585 = vunpack.c.h.b16 %v121
  %v586 = vunpack.c.l.b16 %v122
  %v587 = vunpack.c.h.b16 %v122
  %v588 = vunpack.c.l.b16 %v123
  %v589 = vunpack.c.h.b16 %v123
  %v590 = vunpack.c.l.b16 %v124
  %v591 = vunpack.c.h.b16 %v124
  %v592 = vunpack.c.l.b16 %v125
  %v593 = vunpack.c.h.b16 %v125
  %v594 = vunpack.c.l.b16 %v126
  %v595 = vunpack.c.h.b16 %v126
  %v596 = vunpack.c.l.b16 %v127
  %v597 = vunpack.c.h.b16 %v127
  %v598 = vunpack.c.l.b16 %v128
  %v599 = vunpack.c.h.b16 %v128
  %v600 = vunpack.c.l.b16 %v129
  %v601 = vunpack.c.h.b16 %v129
  %v602 = vunpack.c.l.b16 %v130
  %v603 = vunpack.c.h.b16 %v130
  %v604 = vunpack.c.l.b16 %v131
  %v605 = vunpack.c.h.b16 %v131
  %v606 = vunpack.c.l.b16 %v132
  %v607 = vunpack.c.h.b16 %v132
  %v608 = vunpack.c.l.b16 %v133
  %v609 = vunpack.c.h.b16 %v133
  %v610 = vunpack.c.l.b16 %v134
  %v611 = vunpack.c.h.b16 %v134
  %v612 = vunpack.c.l.b16 %v135
  %v613 = vunpack.c.h.b16 %v135
  %v614 = vunpack.c.l.b16 %v136
  %v615 = vunpack.c.h.b16 %v136
  %v616 = vunpack.c.l.b16 %v137
  %v617 = vunpack.c.h.b16 %v137
  %v618 = vunpack.c.l.b16 %v138
  %v619 = vunpack.c.h.b16 %v138
  %v620 = vunpack.c.l.b16 %v139
  %v621 = vunpack.c.h.b16 %v139
  %v622 = vunpack.c.l.b16 %v140
  %v623 = vunpack.c.h.b16 %v140
  %v624 = vunpack.c.l.b16 %v141
  %v625 = vunpack.c.h.b16 %v141
  %v626 = vunpack.c.l.b16 %v142
  %v627 = vunpack.c.h.b16 %v142
  %v628 = vunpack.c.l.b16 %v143
  %v629 = vunpack.c.h.b16 %v143
  %v630 = vunpack.c.l.b16 %v144
  %v631 = vunpack.c.h.b16 %v144
  %v632 = vunpack.c.l.b16 %v145
  %v633 = vunpack.c.h.b16 %v145
  %v634 = vunpack.c.l.b16 %v146
  %v635 = vunpack.c.h.b16 %v146
  %v636 = vunpack.c.l.b16 %v147
  %v637 = vunpack.c.h.b16 %v147
  %v638 = vunpack.c.l.b16 %v148
  %v639 = vunpack.c.h.b16 %v148
  %v640 = vunpack.c.l.b16 %v149
  %v641 = vunpack.c.h.b16 %v149
  %v642 = vunpack.c.l.b16 %v150
  %v643 = vunpack.c.h.b16 %v150
  %v644 = vunpack.c.l.b16 %v151
  %v645 = vunpack.c.h.b16 %v151
  %v646 = vunpack.c.l.b16 %v152
  %v647 = vunpack.c.h.b16 %v152
  %v648 = vunpack.c.l.b16 %v153
  %v649 = vunpack.c.h.b16 %v153
  %v650 = vunpack.c.l.b16 %v154
  %v651 = vunpack.c.h.b16 %v154
  %v652 = vunpack.c.l.b16 %v155
  %v653 = vunpack.c.h.b16 %v155
  %v654 = vunpack.c.l.b16 %v156
  %v655 = vunpack.c.h.b16 %v156
  %v656 = vunpack.c.l.b16 %v157
  %v657 = vunpack.c.h.b16 %v157
  %v658 = vunpack.c.l.b16 %v158
  %v659 = vunpack.c.h.b16 %v158
  %v660 = vunpack.c.l.b16 %v159
  %v661 = vunpack.c.h.b16 %v159
  %v662 = vunpack.c.l.b16 %v160
  %v663 = vunpack.c.h.b16 %v160
  %v664 = vunpack.c.l.b16 %v161
  %v665 = vunpack.c.h.b16 %v161
  %v666 = vunpack.c.l.b16 %v162
  %v667 = vunpack.c.h.b16 %v162
  %v668 = vunpack.c.l.b16 %v163
  %v669 = vunpack.c.h.b16 %v163
  %v670 = vunpack.c.l.b16 %v164
  %v671 = vunpack.c.h.b16 %v164
  %v672 = vunpack.c.l.b16 %v165
  %v673 = vunpack.c.h.b16 %v165
  %v674 = vunpack.c.l.b16 %v166
  %v675 = vunpack.c.h.b16 %v166
  %v676 = vunpack.c.l.b16 %v167
  %v677 = vunpack.c.h.b16 %v167
  %v678 = vunpack.c.l.b16 %v168
  %v679 = vunpack.c.h.b16 %v168
  %v680 = vunpack.c.l.b16 %v169
  %v681 = vunpack.c.h.b16 %v169
  %v682 = vunpack.c.l.b16 %v170
  %v683 = vunpack.c.h.b16 %v170
  %v684 = vunpack.c.l.b16 %v171
  %v685 = vunpack.c.h.b16 %v171
  %v686 = vunpack.c.l.b16 %v172
  %v687 = vunpack.c.h.b16 %v172
  %v688 = vunpack.c.l.b16 %v173
  %v689 = vunpack.c.h.b16 %v173
  %v690 = vunpack.c.l.b16 %v174
  %v691 = vunpack.c.h.b16 %v174
  %v692 = vunpack.c.l.b16 %v175
  %v693 = vunpack.c.h.b16 %v175
  %v694 = vpack.c.b16 %v408, %v406
  %v695 = vpack.c.b16 %v409, %v407
  %v696 = vpack.c.b16 %v412, %v410
  %v697 = vpack.c.b16 %v413, %v411
  %v698 = vpack.c.b16 %v416, %v414
  %v699 = vpack.c.b16 %v417, %v415
  %v700 = vpack.c.b16 %v420, %v418
  %v701 = vpack.c.b16 %v421, %v419
  %v702 = vpack.c.b16 %v424, %v422
  %v703 = vpack.c.b16 %v425, %v423
  %v704 = vpack.c.b16 %v428, %v426
  %v705 = vpack.c.b16 %v429, %v427
  %v706 = vpack.c.b16 %v432, %v430
  %v707 = vpack.c.b16 %v433, %v431
  %v708 = vpack.c.b16 %v436, %v434
  %v709 = vpack.c.b16 %v437, %v435
  %v710 = vpack.c.b16 %v440, %v438
  %v711 = vpack.c.b16 %v441, %v439
  %v712 = vpack.c.b16 %v444, %v442
  %v713 = vpack.c.b16 %v445, %v443
  %v714 = vpack.c.b16 %v448, %v446
  %v715 = vpack.c.b16 %v449, %v447
  %v716 = vpack.c.b16 %v452, %v450
  %v717 = vpack.c.b16 %v453, %v451
  %v718 = vpack.c.b16 %v456, %v454
  %v719 = vpack.c.b16 %v457, %v455
  %v720 = vpack.c.b16 %v460, %v458
  %v721 = vpack.c.b16 %v461, %v459
  %v722 = vpack.c.b16 %v464, %v462
  %v723 = vpack.c.b16 %v465, %v463
  %v724 = vpack.c.b16 %v468, %v466
  %v725 = vpack.c.b16 %v469, %v467
  %v726 = vpack.c.b16 %v472, %v470
  %v727 = vpack.c.b16 %v473, %v471
  %v728 = vpack.c.b16 %v476, %v474
  %v729 = vpack.c.b16 %v477, %v475
  %v730 = vpack.c.b16 %v480, %v478
  %v731 = vpack.c.b16 %v481, %v479
  %v732 = vpack.c.b16 %v484, %v482
  %v733 = vpack.c.b16 %v485, %v483
  %v734 = vpack.c.b16 %v488, %v486
  %v735 = vpack.c.b16 %v489, %v487
  %v736 = vpack.c.b16 %v492, %v490
  %v737 = vpack.c.b16 %v493, %v491
  %v738 = vpack.c.b16 %v496, %v494
  %v739 = vpack.c.b16 %v497, %v495
  %v740 = vpack.c.b16 %v500, %v498
  %v741 = vpack.c.b16 %v501, %v499
  %v742 = vpack.c.b16 %v504, %v502
  %v743 = vpack.c.b16 %v505, %v503
  %v744 = vpack.c.b16 %v508, %v506
  %v745 = vpack.c.b16 %v509, %v507
  %v746 = vpack.c.b16 %v512, %v510
  %v747 = vpack.c.b16 %v513, %v511
  %v748 = vpack.c.b16 %v516, %v514
  %v749 = vpack.c.b16 %v517, %v515
  %v750 = vpack.c.b16 %v520, %v518
  %v751 = vpack.c.b16 %v521, %v519
  %v752 = vpack.c.b16 %v524, %v522
  %v753 = vpack.c.b16 %v525, %v523
  %v754 = vpack.c.b16 %v528, %v526
  %v755 = vpack.c.b16 %v529, %v527
  %v756 = vpack.c.b16 %v532, %v530
  %v757 = vpack.c.b16 %v533, %v531
  %v758 = vpack.c.b16 %v536, %v534
  %v759 = vpack.c.b16 %v537, %v535
  %v760 = vpack.c.b16 %v540, %v538
  %v761 = vpack.c.b16 %v541, %v539
  %v762 = vpack.c.b16 %v544, %v542
  %v763 = vpack.c.b16 %v545, %v543
  %v764 = vpack.c.b16 %v548, %v546
  %v765 = vpack.c.b16 %v549, %v547
  %v766 = vpack.c.b16 %v552, %v550
  %v767 = vpack.c.b16 %v553, %v551
  %v768 = vpack.c.b16 %v556, %v554
  %v769 = vpack.c.b16 %v557, %v555
  %v770 = vpack.c.b16 %v560, %v558
  %v771 = vpack.c.b16 %v561, %v559
  %v772 = vpack.c.b16 %v564, %v562
  %v773 = vpack.c.b16 %v565, %v563
  %v774 = vpack.c.b16 %v568, %v566
  %v775 = vpack.c.b16 %v569, %v567
  %v776 = vpack.c.b16 %v572, %v570
  %v777 = vpack.c.b16 %v573, %v571
  %v778 = vpack.c.b16 %v576, %v574
  %v779 = vpack.c.b16 %v577, %v575
  %v780 = vpack.c.b16 %v580, %v578
  %v781 = vpack.c.b16 %v581, %v579
  %v782 = vpack.c.b16 %v584, %v582
  %v783 = vpack.c.b16 %v585, %v583
  %v784 = vpack.c.b16 %v588, %v586
  %v785 = vpack.c.b16 %v589, %v587
  %v786 = vpack.c.b16 %v592, %v590
  %v787 = vpack.c.b16 %v593, %v591
  %v788 = vpack.c.b16 %v596, %v594
  %v789 = vpack.c.b16 %v597, %v595
  %v790 = vpack.c.b16 %v600, %v598
  %v791 = vpack.c.b16 %v601, %v599
  %v792 = vpack.c.b16 %v604, %v602
  %v793 = vpack.c.b16 %v605, %v603
  %v794 = vpack.c.b16 %v608, %v606
  %v795 = vpack.c.b16 %v609, %v607
  %v796 = vpack.c.b16 %v612, %v610
  %v797 = vpack.c.b16 %v613, %v611
  %v798 = vpack.c.b16 %v616, %v614
  %v799 = vpack.c.b16 %v617, %v615
  %v800 = vpack.c.b16 %v620, %v618
  %v801 = vpack.c.b16 %v621, %v619
  %v802 = vpack.c.b16 %v624, %v622
  %v803 = vpack.c.b16 %v625, %v623
  %v804 = vpack.c.b16 %v628, %v626
  %v805 = vpack.c.b16 %v629, %v627
  %v806 = vpack.c.b16 %v632, %v630
  %v807 = vpack.c.b16 %v633, %v631
  %v808 = vpack.c.b16 %v636, %v634
  %v809 = vpack.c.b16 %v637, %v635
  %v810 = vpack.c.b16 %v640, %v638
  %v811 = vpack.c.b16 %v641, %v639
  %v812 = vpack.c.b16 %v644, %v642
  %v813 = vpack.c.b16 %v645, %v643
  %v814 = vpack.c.b16 %v648, %v646
  %v815 = vpack.c.b16 %v649, %v647
  %v816 = vpack.c.b16 %v652, %v650
  %v817 = vpack.c.b16 %v653, %v651
  %v818 = vpack.c.b16 %v656, %v654
  %v819 = vpack.c.b16 %v657, %v655
  %v820 = vpack.c.b16 %v660, %v658
  %v821 = vpack.c.b16 %v661, %v659
  %v822 = vpack.c.b16 %v664, %v662
  %v823 = vpack.c.b16 %v665, %v663
  %v824 = vpack.c.b16 %v668, %v666
  %v825 = vpack.c.b16 %v669, %v667
  %v826 = vpack.c.b16 %v672, %v670
  %v827 = vpack.c.b16 %v673, %v671
  %v828 = vpack.c.b16 %v676, %v674
  %v829 = vpack.c.b16 %v677, %v675
  %v830 = vpack.c.b16 %v680, %v678
  %v831 = vpack.c.b16 %v681, %v679
  %v832 = vpack.c.b16 %v684, %v682
  %v833 = vpack.c.b16 %v685, %v683
  %v834 = vpack.c.b16 %v688, %v686
  %v835 = vpack.c.b16 %v689, %v687
  %v836 = vpack.c.b16 %v692, %v690
  %v837 = vpack.c.b16 %v693, %v691
  %982 = vmatprep.subr.bf16.mxu0 %v695
  %983 = vmatpush1.bf16.msra.mxu0 %v694
  %984 = vmatprep.subr.bf16.mxu0 %v697
  %985 = vmatpush1.bf16.msra.mxu0 %v696
  %986 = vmatprep.subr.bf16.mxu0 %v699
  %987 = vmatpush1.bf16.msra.mxu0 %v698
  %988 = vmatprep.subr.bf16.mxu0 %v701
  %989 = vmatpush1.bf16.msra.mxu0 %v700
  %990 = vmatprep.subr.bf16.mxu0 %v703
  %991 = vmatpush1.bf16.msra.mxu0 %v702
  %992 = vmatprep.subr.bf16.mxu0 %v705
  %993 = vmatpush1.bf16.msra.mxu0 %v704
  %994 = vmatprep.subr.bf16.mxu0 %v707
  %995 = vmatpush1.bf16.msra.mxu0 %v706
  %996 = vmatprep.subr.bf16.mxu0 %v709
  %997 = vmatpush1.bf16.msra.mxu0 %v708
  %998 = vmatprep.subr.bf16.mxu0 %v711
  %999 = vmatpush1.bf16.msra.mxu0 %v710
  %1000 = vmatprep.subr.bf16.mxu0 %v713
  %1001 = vmatpush1.bf16.msra.mxu0 %v712
  %1002 = vmatprep.subr.bf16.mxu0 %v715
  %1003 = vmatpush1.bf16.msra.mxu0 %v714
  %1004 = vmatprep.subr.bf16.mxu0 %v717
  %1005 = vmatpush1.bf16.msra.mxu0 %v716
  %1006 = vmatprep.subr.bf16.mxu0 %v719
  %1007 = vmatpush1.bf16.msra.mxu0 %v718
  %1008 = vmatprep.subr.bf16.mxu0 %v721
  %1009 = vmatpush1.bf16.msra.mxu0 %v720
  %1010 = vmatprep.subr.bf16.mxu0 %v723
  %1011 = vmatpush1.bf16.msra.mxu0 %v722
  %1012 = vmatprep.subr.bf16.mxu0 %v725
  %1013 = vmatpush1.bf16.msra.mxu0 %v724
  %1014 = vmatprep.mubr.bf16.mxu0 %v227
  %1015 = vmatmul.mubr.bf16.gmra.mrb[0].mxu0 %v213
  %v1016 = vpop.f32.mrb[0].mxu0
  %v1017 = vadd.f32 %v181, %v1016
  %v1018 = vpop.f32.mrb[0].mxu0
  %v1019 = vadd.f32 %v185, %v1018
  %v1020 = vpop.f32.mrb[0].mxu0
  %v1021 = vpop.f32.mrb[0].mxu0
  %1022 = vdwg.mxu0
  %1023 = vmatprep.subr.bf16.mxu0 %v727
  %1024 = vmatpush1.bf16.msra.mxu0 %v726
  %1025 = vmatprep.subr.bf16.mxu0 %v729
  %1026 = vmatpush1.bf16.msra.mxu0 %v728
  %1027 = vmatprep.subr.bf16.mxu0 %v731
  %1028 = vmatpush1.bf16.msra.mxu0 %v730
  %1029 = vmatprep.subr.bf16.mxu0 %v733
  %1030 = vmatpush1.bf16.msra.mxu0 %v732
  %1031 = vmatprep.subr.bf16.mxu0 %v735
  %1032 = vmatpush1.bf16.msra.mxu0 %v734
  %1033 = vmatprep.subr.bf16.mxu0 %v737
  %1034 = vmatpush1.bf16.msra.mxu0 %v736
  %1035 = vmatprep.subr.bf16.mxu0 %v739
  %1036 = vmatpush1.bf16.msra.mxu0 %v738
  %1037 = vmatprep.subr.bf16.mxu0 %v741
  %1038 = vmatpush1.bf16.msra.mxu0 %v740
  %1039 = vmatprep.subr.bf16.mxu0 %v743
  %1040 = vmatpush1.bf16.msra.mxu0 %v742
  %1041 = vmatprep.subr.bf16.mxu0 %v745
  %1042 = vmatpush1.bf16.msra.mxu0 %v744
  %1043 = vmatprep.subr.bf16.mxu0 %v747
  %1044 = vmatpush1.bf16.msra.mxu0 %v746
  %1045 = vmatprep.subr.bf16.mxu0 %v749
  %1046 = vmatpush1.bf16.msra.mxu0 %v748
  %1047 = vmatprep.subr.bf16.mxu0 %v751
  %1048 = vmatpush1.bf16.msra.mxu0 %v750
  %1049 = vmatprep.subr.bf16.mxu0 %v753
  %1050 = vmatpush1.bf16.msra.mxu0 %v752
  %1051 = vmatprep.subr.bf16.mxu0 %v755
  %1052 = vmatpush1.bf16.msra.mxu0 %v754
  %1053 = vmatprep.subr.bf16.mxu0 %v757
  %1054 = vmatpush1.bf16.msra.mxu0 %v756
  %1055 = vmatprep.mubr.bf16.mxu0 %v237
  %1056 = vmatmul.mubr.bf16.gmra.mrb[0].mxu0 %v235
  %v1057 = vpop.f32.mrb[0].mxu0
  %v1058 = vadd.f32 %v1017, %v1057
  %v1059 = vpop.f32.mrb[0].mxu0
  %v1060 = vadd.f32 %v1019, %v1059
  %v1061 = vpop.f32.mrb[0].mxu0
  %v1062 = vpop.f32.mrb[0].mxu0
  %1063 = vdwg.mxu0
  %1064 = vmatprep.subr.bf16.mxu0 %v759
  %1065 = vmatpush1.bf16.msra.mxu0 %v758
  %1066 = vmatprep.subr.bf16.mxu0 %v761
  %1067 = vmatpush1.bf16.msra.mxu0 %v760
  %1068 = vmatprep.subr.bf16.mxu0 %v763
  %1069 = vmatpush1.bf16.msra.mxu0 %v762
  %1070 = vmatprep.subr.bf16.mxu0 %v765
  %1071 = vmatpush1.bf16.msra.mxu0 %v764
  %1072 = vmatprep.subr.bf16.mxu0 %v767
  %1073 = vmatpush1.bf16.msra.mxu0 %v766
  %1074 = vmatprep.subr.bf16.mxu0 %v769
  %1075 = vmatpush1.bf16.msra.mxu0 %v768
  %1076 = vmatprep.subr.bf16.mxu0 %v771
  %1077 = vmatpush1.bf16.msra.mxu0 %v770
  %1078 = vmatprep.subr.bf16.mxu0 %v773
  %1079 = vmatpush1.bf16.msra.mxu0 %v772
  %1080 = vmatprep.subr.bf16.mxu0 %v775
  %1081 = vmatpush1.bf16.msra.mxu0 %v774
  %1082 = vmatprep.subr.bf16.mxu0 %v777
  %1083 = vmatpush1.bf16.msra.mxu0 %v776
  %1084 = vmatprep.subr.bf16.mxu0 %v779
  %1085 = vmatpush1.bf16.msra.mxu0 %v778
  %1086 = vmatprep.subr.bf16.mxu0 %v781
  %1087 = vmatpush1.bf16.msra.mxu0 %v780
  %1088 = vmatprep.subr.bf16.mxu0 %v783
  %1089 = vmatpush1.bf16.msra.mxu0 %v782
  %1090 = vmatprep.subr.bf16.mxu0 %v785
  %1091 = vmatpush1.bf16.msra.mxu0 %v784
  %1092 = vmatprep.subr.bf16.mxu0 %v787
  %1093 = vmatpush1.bf16.msra.mxu0 %v786
  %1094 = vmatprep.subr.bf16.mxu0 %v789
  %1095 = vmatpush1.bf16.msra.mxu0 %v788
  %1096 = vmatprep.mubr.bf16.mxu0 %v234
  %1097 = vmatmul.mubr.bf16.gmra.mrb[0].mxu0 %v220
  %v1098 = vpop.f32.mrb[0].mxu0
  %v1099 = vadd.f32 %v1058, %v1098
  %v1100 = vpop.f32.mrb[0].mxu0
  %v1101 = vadd.f32 %v1060, %v1100
  %v1102 = vpop.f32.mrb[0].mxu0
  %v1103 = vpop.f32.mrb[0].mxu0
  %1104 = vdwg.mxu0
  %1105 = vmatprep.subr.bf16.mxu0 %v791
  %1106 = vmatpush1.bf16.msra.mxu0 %v790
  %1107 = vmatprep.subr.bf16.mxu0 %v793
  %1108 = vmatpush1.bf16.msra.mxu0 %v792
  %1109 = vmatprep.subr.bf16.mxu0 %v795
  %1110 = vmatpush1.bf16.msra.mxu0 %v794
  %1111 = vmatprep.subr.bf16.mxu0 %v797
  %1112 = vmatpush1.bf16.msra.mxu0 %v796
  %1113 = vmatprep.subr.bf16.mxu0 %v799
  %1114 = vmatpush1.bf16.msra.mxu0 %v798
  %1115 = vmatprep.subr.bf16.mxu0 %v801
  %1116 = vmatpush1.bf16.msra.mxu0 %v800
  %1117 = vmatprep.subr.bf16.mxu0 %v803
  %1118 = vmatpush1.bf16.msra.mxu0 %v802
  %1119 = vmatprep.subr.bf16.mxu0 %v805
  %1120 = vmatpush1.bf16.msra.mxu0 %v804
  %1121 = vmatprep.subr.bf16.mxu0 %v807
  %1122 = vmatpush1.bf16.msra.mxu0 %v806
  %1123 = vmatprep.subr.bf16.mxu0 %v809
  %1124 = vmatpush1.bf16.msra.mxu0 %v808
  %1125 = vmatprep.subr.bf16.mxu0 %v811
  %1126 = vmatpush1.bf16.msra.mxu0 %v810
  %1127 = vmatprep.subr.bf16.mxu0 %v813
  %1128 = vmatpush1.bf16.msra.mxu0 %v812
  %1129 = vmatprep.subr.bf16.mxu0 %v815
  %1130 = vmatpush1.bf16.msra.mxu0 %v814
  %1131 = vmatprep.subr.bf16.mxu0 %v817
  %1132 = vmatpush1.bf16.msra.mxu0 %v816
  %1133 = vmatprep.subr.bf16.mxu0 %v819
  %1134 = vmatpush1.bf16.msra.mxu0 %v818
  %1135 = vmatprep.subr.bf16.mxu0 %v821
  %1136 = vmatpush1.bf16.msra.mxu0 %v820
  %1137 = vmatprep.mubr.bf16.mxu0 %v238
  %1138 = vmatmul.mubr.bf16.gmra.mrb[0].mxu0 %v236
  %v1139 = vpop.f32.mrb[0].mxu0
  %v1140 = vadd.f32 %v1099, %v1139
  %v1141 = vpop.f32.mrb[0].mxu0
  %v1142 = vadd.f32 %v1101, %v1141
  %v1143 = vpop.f32.mrb[0].mxu0
  %v1144 = vpop.f32.mrb[0].mxu0
  %1145 = vdwg.mxu0
  %1146 = vmatprep.subr.bf16.mxu0 %v823
  %1147 = vmatpush1.bf16.msra.mxu0 %v822
  %1148 = vmatprep.subr.bf16.mxu0 %v825
  %1149 = vmatpush1.bf16.msra.mxu0 %v824
  %1150 = vmatprep.subr.bf16.mxu0 %v827
  %1151 = vmatpush1.bf16.msra.mxu0 %v826
  %1152 = vmatprep.subr.bf16.mxu0 %v829
  %1153 = vmatpush1.bf16.msra.mxu0 %v828
  %1154 = vmatprep.subr.bf16.mxu0 %v831
  %1155 = vmatpush1.bf16.msra.mxu0 %v830
  %1156 = vmatprep.subr.bf16.mxu0 %v833
  %1157 = vmatpush1.bf16.msra.mxu0 %v832
  %1158 = vmatprep.subr.bf16.mxu0 %v835
  %1159 = vmatpush1.bf16.msra.mxu0 %v834
  %1160 = vmatprep.subr.bf16.mxu0 %v837
  %1161 = vmatpush1.bf16.msra.mxu0 %v836
  %1162 = vmatprep.subr.bf16.mxu0 0
  %1163 = vmatpush1.bf16.msra.mxu0 0
  %1164 = vmatprep.subr.bf16.mxu0 0
  %1165 = vmatpush1.bf16.msra.mxu0 0
  %1166 = vmatprep.subr.bf16.mxu0 0
  %1167 = vmatpush1.bf16.msra.mxu0 0
  %1168 = vmatprep.subr.bf16.mxu0 0
  %1169 = vmatpush1.bf16.msra.mxu0 0
  %1170 = vmatprep.subr.bf16.mxu0 0
  %1171 = vmatpush1.bf16.msra.mxu0 0
  %1172 = vmatprep.subr.bf16.mxu0 0
  %1173 = vmatpush1.bf16.msra.mxu0 0
  %1174 = vmatprep.subr.bf16.mxu0 0
  %1175 = vmatpush1.bf16.msra.mxu0 0
  %1176 = vmatprep.subr.bf16.mxu0 0
  %1177 = vmatpush1.bf16.msra.mxu0 0
  %1178 = vmatprep.mubr.bf16.mxu0 0
  %1179 = vmatmul.mubr.bf16.gmra.mrb[0].mxu0 %v252
  %v1180 = vpop.f32.mrb[0].mxu0
  %v1181 = vadd.f32 %v1140, %v1180
  %v1182 = vpop.f32.mrb[0].mxu0
  %v1183 = vadd.f32 %v1142, %v1182
  %v1184 = vpop.f32.mrb[0].mxu0
  %v1185 = vpop.f32.mrb[0].mxu0
  %1186 = vdwg.mxu0
  %v1187 = vmax.f32 %v1181, 0.0
  %v1188 = vmax.f32 %v1183, 0.0
  %v1189 = vld [vmem:[%s1] sm:$0x1]
  %v1190 = vld [vmem:[%s4] sm:$0xff]
  %v1191 = vld [vmem:[%s4 + $0x8] sm:$0xff]
  %v1192 = vld [vmem:[%s4 + $0x10] sm:$0xff]
  %v1193 = vld [vmem:[%s4 + $0x18] sm:$0xff]
  %v1194 = vld [vmem:[%s4 + $0x20] sm:$0xff]
  %v1195 = vld [vmem:[%s4 + $0x28] sm:$0xff]
  %v1196 = vld [vmem:[%s4 + $0x30] sm:$0xff]
  %v1197 = vld [vmem:[%s4 + $0x38] sm:$0xff]
  %v1198 = vld [vmem:[%s4 + $0x40] sm:$0xff]
  %v1199 = vld [vmem:[%s4 + $0x48] sm:$0xff]
  %v1200 = vld [vmem:[%s4 + $0x50] sm:$0xff]
  %v1201 = vld [vmem:[%s4 + $0x58] sm:$0xff]
  %v1202 = vld [vmem:[%s4 + $0x60] sm:$0xff]
  %v1203 = vld [vmem:[%s4 + $0x68] sm:$0xff]
  %v1204 = vld [vmem:[%s4 + $0x70] sm:$0xff]
  %v1205 = vld [vmem:[%s4 + $0x78] sm:$0xff]
  %v1206 = vld [vmem:[%s5] sm:$0x3]
  %v1208 = vlaneseq
  %v1209 = vshrl.u32 %v1208, 7
  %v1210 = vsub.s32 0, %v1209
  %v1211 = vrot.slane %v1206, %v1210
  %v1212 = vlaneseq
  %v1213 = vshrl.u32 %v1212, 7
  %v1214 = vsub.s32 1, %v1213
  %v1215 = vrot.slane %v1206, %v1214
  %v1234 = vunpack.c.l.b16 %v1190
  %v1235 = vunpack.c.h.b16 %v1190
  %v1236 = vunpack.c.l.b16 %v1191
  %v1237 = vunpack.c.h.b16 %v1191
  %v1238 = vunpack.c.l.b16 %v1192
  %v1239 = vunpack.c.h.b16 %v1192
  %v1240 = vunpack.c.l.b16 %v1193
  %v1241 = vunpack.c.h.b16 %v1193
  %v1242 = vunpack.c.l.b16 %v1194
  %v1243 = vunpack.c.h.b16 %v1194
  %v1244 = vunpack.c.l.b16 %v1195
  %v1245 = vunpack.c.h.b16 %v1195
  %v1246 = vunpack.c.l.b16 %v1196
  %v1247 = vunpack.c.h.b16 %v1196
  %v1248 = vunpack.c.l.b16 %v1197
  %v1249 = vunpack.c.h.b16 %v1197
  %v1250 = vunpack.c.l.b16 %v1198
  %v1251 = vunpack.c.h.b16 %v1198
  %v1252 = vunpack.c.l.b16 %v1199
  %v1253 = vunpack.c.h.b16 %v1199
  %v1254 = vunpack.c.l.b16 %v1200
  %v1255 = vunpack.c.h.b16 %v1200
  %v1256 = vunpack.c.l.b16 %v1201
  %v1257 = vunpack.c.h.b16 %v1201
  %v1258 = vunpack.c.l.b16 %v1202
  %v1259 = vunpack.c.h.b16 %v1202
  %v1260 = vunpack.c.l.b16 %v1203
  %v1261 = vunpack.c.h.b16 %v1203
  %v1262 = vunpack.c.l.b16 %v1204
  %v1263 = vunpack.c.h.b16 %v1204
  %v1264 = vunpack.c.l.b16 %v1205
  %v1265 = vunpack.c.h.b16 %v1205
  %v1266 = vpack.c.b16 %v1236, %v1234
  %v1267 = vpack.c.b16 %v1237, %v1235
  %v1268 = vpack.c.b16 %v1240, %v1238
  %v1269 = vpack.c.b16 %v1241, %v1239
  %v1270 = vpack.c.b16 %v1244, %v1242
  %v1271 = vpack.c.b16 %v1245, %v1243
  %v1272 = vpack.c.b16 %v1248, %v1246
  %v1273 = vpack.c.b16 %v1249, %v1247
  %v1274 = vpack.c.b16 %v1252, %v1250
  %v1275 = vpack.c.b16 %v1253, %v1251
  %v1276 = vpack.c.b16 %v1256, %v1254
  %v1277 = vpack.c.b16 %v1257, %v1255
  %v1278 = vpack.c.b16 %v1260, %v1258
  %v1279 = vpack.c.b16 %v1261, %v1259
  %v1280 = vpack.c.b16 %v1264, %v1262
  %v1281 = vpack.c.b16 %v1265, %v1263
  %1298 = vmatprep.subr.bf16.mxu0 %v1267
  %1299 = vmatpush1.bf16.msra.mxu0 %v1266
  %1300 = vmatprep.subr.bf16.mxu0 %v1269
  %1301 = vmatpush1.bf16.msra.mxu0 %v1268
  %1302 = vmatprep.subr.bf16.mxu0 %v1271
  %1303 = vmatpush1.bf16.msra.mxu0 %v1270
  %1304 = vmatprep.subr.bf16.mxu0 %v1273
  %1305 = vmatpush1.bf16.msra.mxu0 %v1272
  %1306 = vmatprep.subr.bf16.mxu0 %v1275
  %1307 = vmatpush1.bf16.msra.mxu0 %v1274
  %1308 = vmatprep.subr.bf16.mxu0 %v1277
  %1309 = vmatpush1.bf16.msra.mxu0 %v1276
  %1310 = vmatprep.subr.bf16.mxu0 %v1279
  %1311 = vmatpush1.bf16.msra.mxu0 %v1278
  %1312 = vmatprep.subr.bf16.mxu0 %v1281
  %1313 = vmatpush1.bf16.msra.mxu0 %v1280
  %1314 = vmatprep.subr.bf16.mxu0 0
  %1315 = vmatpush1.bf16.msra.mxu0 0
  %1316 = vmatprep.subr.bf16.mxu0 0
  %1317 = vmatpush1.bf16.msra.mxu0 0
  %1318 = vmatprep.subr.bf16.mxu0 0
  %1319 = vmatpush1.bf16.msra.mxu0 0
  %1320 = vmatprep.subr.bf16.mxu0 0
  %1321 = vmatpush1.bf16.msra.mxu0 0
  %1322 = vmatprep.subr.bf16.mxu0 0
  %1323 = vmatpush1.bf16.msra.mxu0 0
  %1324 = vmatprep.subr.bf16.mxu0 0
  %1325 = vmatpush1.bf16.msra.mxu0 0
  %1326 = vmatprep.subr.bf16.mxu0 0
  %1327 = vmatpush1.bf16.msra.mxu0 0
  %1328 = vmatprep.subr.bf16.mxu0 0
  %1329 = vmatpush1.bf16.msra.mxu0 0
  %1330 = vmatprep.mubr.bf16.mxu0 0
  %1331 = vmatmul.mubr.bf16.gmra.mrb[0].mxu0 %v1189
  %v1332 = vpop.f32.mrb[0].mxu0
  %v1333 = vadd.f32 %v1211, %v1332
  %v1334 = vpop.f32.mrb[0].mxu0
  %v1335 = vadd.f32 %v1215, %v1334
  %v1336 = vpop.f32.mrb[0].mxu0
  %v1337 = vpop.f32.mrb[0].mxu0
  %1338 = vdwg.mxu0
  %v1339 = vpack.c.bf16 %v1187, %v1187
  %v1340 = vpack.c.bf16 %v1188, %v1188
  %v1341 = vld [vmem:[%s6] sm:$0xff]
  %v1342 = vld [vmem:[%s6 + $0x8] sm:$0xff]
  %v1343 = vld [vmem:[%s6 + $0x10] sm:$0xff]
  %v1344 = vld [vmem:[%s6 + $0x18] sm:$0xff]
  %v1345 = vld [vmem:[%s6 + $0x20] sm:$0xff]
  %v1346 = vld [vmem:[%s6 + $0x28] sm:$0xff]
  %v1347 = vld [vmem:[%s6 + $0x30] sm:$0xff]
  %v1348 = vld [vmem:[%s6 + $0x38] sm:$0xff]
  %v1349 = vld [vmem:[%s6 + $0x40] sm:$0xff]
  %v1350 = vld [vmem:[%s6 + $0x48] sm:$0xff]
  %v1351 = vld [vmem:[%s6 + $0x50] sm:$0xff]
  %v1352 = vld [vmem:[%s6 + $0x58] sm:$0xff]
  %v1353 = vld [vmem:[%s6 + $0x60] sm:$0xff]
  %v1354 = vld [vmem:[%s6 + $0x68] sm:$0xff]
  %v1355 = vld [vmem:[%s6 + $0x70] sm:$0xff]
  %v1356 = vld [vmem:[%s6 + $0x78] sm:$0xff]
  %v1357 = vld [vmem:[%s6 + $0x80] sm:$0xff]
  %v1358 = vld [vmem:[%s6 + $0x88] sm:$0xff]
  %v1359 = vld [vmem:[%s6 + $0x90] sm:$0xff]
  %v1360 = vld [vmem:[%s6 + $0x98] sm:$0xff]
  %v1361 = vld [vmem:[%s6 + $0xa0] sm:$0xff]
  %v1362 = vld [vmem:[%s6 + $0xa8] sm:$0xff]
  %v1363 = vld [vmem:[%s6 + $0xb0] sm:$0xff]
  %v1364 = vld [vmem:[%s6 + $0xb8] sm:$0xff]
  %v1365 = vld [vmem:[%s6 + $0xc0] sm:$0xff]
  %v1366 = vld [vmem:[%s6 + $0xc8] sm:$0xff]
  %v1367 = vld [vmem:[%s6 + $0xd0] sm:$0xff]
  %v1368 = vld [vmem:[%s6 + $0xd8] sm:$0xff]
  %v1369 = vld [vmem:[%s6 + $0xe0] sm:$0xff]
  %v1370 = vld [vmem:[%s6 + $0xe8] sm:$0xff]
  %v1371 = vld [vmem:[%s6 + $0xf0] sm:$0xff]
  %v1372 = vld [vmem:[%s6 + $0xf8] sm:$0xff]
  %v1373 = vld [vmem:[%s7] sm:$0x3]
  %v1375 = vlaneseq
  %v1376 = vshrl.u32 %v1375, 7
  %v1377 = vsub.s32 0, %v1376
  %v1378 = vrot.slane %v1373, %v1377
  %v1379 = vlaneseq
  %v1380 = vshrl.u32 %v1379, 7
  %v1381 = vsub.s32 1, %v1380
  %v1382 = vrot.slane %v1373, %v1381
  %v1417 = vunpack.c.l.b16 %v1341
  %v1418 = vunpack.c.h.b16 %v1341
  %v1419 = vunpack.c.l.b16 %v1342
  %v1420 = vunpack.c.h.b16 %v1342
  %v1421 = vunpack.c.l.b16 %v1343
  %v1422 = vunpack.c.h.b16 %v1343
  %v1423 = vunpack.c.l.b16 %v1344
  %v1424 = vunpack.c.h.b16 %v1344
  %v1425 = vunpack.c.l.b16 %v1345
  %v1426 = vunpack.c.h.b16 %v1345
  %v1427 = vunpack.c.l.b16 %v1346
  %v1428 = vunpack.c.h.b16 %v1346
  %v1429 = vunpack.c.l.b16 %v1347
  %v1430 = vunpack.c.h.b16 %v1347
  %v1431 = vunpack.c.l.b16 %v1348
  %v1432 = vunpack.c.h.b16 %v1348
  %v1433 = vunpack.c.l.b16 %v1349
  %v1434 = vunpack.c.h.b16 %v1349
  %v1435 = vunpack.c.l.b16 %v1350
  %v1436 = vunpack.c.h.b16 %v1350
  %v1437 = vunpack.c.l.b16 %v1351
  %v1438 = vunpack.c.h.b16 %v1351
  %v1439 = vunpack.c.l.b16 %v1352
  %v1440 = vunpack.c.h.b16 %v1352
  %v1441 = vunpack.c.l.b16 %v1353
  %v1442 = vunpack.c.h.b16 %v1353
  %v1443 = vunpack.c.l.b16 %v1354
  %v1444 = vunpack.c.h.b16 %v1354
  %v1445 = vunpack.c.l.b16 %v1355
  %v1446 = vunpack.c.h.b16 %v1355
  %v1447 = vunpack.c.l.b16 %v1356
  %v1448 = vunpack.c.h.b16 %v1356
  %v1449 = vunpack.c.l.b16 %v1357
  %v1450 = vunpack.c.h.b16 %v1357
  %v1451 = vunpack.c.l.b16 %v1358
  %v1452 = vunpack.c.h.b16 %v1358
  %v1453 = vunpack.c.l.b16 %v1359
  %v1454 = vunpack.c.h.b16 %v1359
  %v1455 = vunpack.c.l.b16 %v1360
  %v1456 = vunpack.c.h.b16 %v1360
  %v1457 = vunpack.c.l.b16 %v1361
  %v1458 = vunpack.c.h.b16 %v1361
  %v1459 = vunpack.c.l.b16 %v1362
  %v1460 = vunpack.c.h.b16 %v1362
  %v1461 = vunpack.c.l.b16 %v1363
  %v1462 = vunpack.c.h.b16 %v1363
  %v1463 = vunpack.c.l.b16 %v1364
  %v1464 = vunpack.c.h.b16 %v1364
  %v1465 = vunpack.c.l.b16 %v1365
  %v1466 = vunpack.c.h.b16 %v1365
  %v1467 = vunpack.c.l.b16 %v1366
  %v1468 = vunpack.c.h.b16 %v1366
  %v1469 = vunpack.c.l.b16 %v1367
  %v1470 = vunpack.c.h.b16 %v1367
  %v1471 = vunpack.c.l.b16 %v1368
  %v1472 = vunpack.c.h.b16 %v1368
  %v1473 = vunpack.c.l.b16 %v1369
  %v1474 = vunpack.c.h.b16 %v1369
  %v1475 = vunpack.c.l.b16 %v1370
  %v1476 = vunpack.c.h.b16 %v1370
  %v1477 = vunpack.c.l.b16 %v1371
  %v1478 = vunpack.c.h.b16 %v1371
  %v1479 = vunpack.c.l.b16 %v1372
  %v1480 = vunpack.c.h.b16 %v1372
  %v1481 = vpack.c.b16 %v1419, %v1417
  %v1482 = vpack.c.b16 %v1420, %v1418
  %v1483 = vpack.c.b16 %v1423, %v1421
  %v1484 = vpack.c.b16 %v1424, %v1422
  %v1485 = vpack.c.b16 %v1427, %v1425
  %v1486 = vpack.c.b16 %v1428, %v1426
  %v1487 = vpack.c.b16 %v1431, %v1429
  %v1488 = vpack.c.b16 %v1432, %v1430
  %v1489 = vpack.c.b16 %v1435, %v1433
  %v1490 = vpack.c.b16 %v1436, %v1434
  %v1491 = vpack.c.b16 %v1439, %v1437
  %v1492 = vpack.c.b16 %v1440, %v1438
  %v1493 = vpack.c.b16 %v1443, %v1441
  %v1494 = vpack.c.b16 %v1444, %v1442
  %v1495 = vpack.c.b16 %v1447, %v1445
  %v1496 = vpack.c.b16 %v1448, %v1446
  %v1497 = vpack.c.b16 %v1451, %v1449
  %v1498 = vpack.c.b16 %v1452, %v1450
  %v1499 = vpack.c.b16 %v1455, %v1453
  %v1500 = vpack.c.b16 %v1456, %v1454
  %v1501 = vpack.c.b16 %v1459, %v1457
  %v1502 = vpack.c.b16 %v1460, %v1458
  %v1503 = vpack.c.b16 %v1463, %v1461
  %v1504 = vpack.c.b16 %v1464, %v1462
  %v1505 = vpack.c.b16 %v1467, %v1465
  %v1506 = vpack.c.b16 %v1468, %v1466
  %v1507 = vpack.c.b16 %v1471, %v1469
  %v1508 = vpack.c.b16 %v1472, %v1470
  %v1509 = vpack.c.b16 %v1475, %v1473
  %v1510 = vpack.c.b16 %v1476, %v1474
  %v1511 = vpack.c.b16 %v1479, %v1477
  %v1512 = vpack.c.b16 %v1480, %v1478
  %1545 = vmatprep.subr.bf16.mxu0 %v1482
  %1546 = vmatpush1.bf16.msra.mxu0 %v1481
  %1547 = vmatprep.subr.bf16.mxu0 %v1484
  %1548 = vmatpush1.bf16.msra.mxu0 %v1483
  %1549 = vmatprep.subr.bf16.mxu0 %v1486
  %1550 = vmatpush1.bf16.msra.mxu0 %v1485
  %1551 = vmatprep.subr.bf16.mxu0 %v1488
  %1552 = vmatpush1.bf16.msra.mxu0 %v1487
  %1553 = vmatprep.subr.bf16.mxu0 %v1490
  %1554 = vmatpush1.bf16.msra.mxu0 %v1489
  %1555 = vmatprep.subr.bf16.mxu0 %v1492
  %1556 = vmatpush1.bf16.msra.mxu0 %v1491
  %1557 = vmatprep.subr.bf16.mxu0 %v1494
  %1558 = vmatpush1.bf16.msra.mxu0 %v1493
  %1559 = vmatprep.subr.bf16.mxu0 %v1496
  %1560 = vmatpush1.bf16.msra.mxu0 %v1495
  %1561 = vmatprep.subr.bf16.mxu0 %v1498
  %1562 = vmatpush1.bf16.msra.mxu0 %v1497
  %1563 = vmatprep.subr.bf16.mxu0 %v1500
  %1564 = vmatpush1.bf16.msra.mxu0 %v1499
  %1565 = vmatprep.subr.bf16.mxu0 %v1502
  %1566 = vmatpush1.bf16.msra.mxu0 %v1501
  %1567 = vmatprep.subr.bf16.mxu0 %v1504
  %1568 = vmatpush1.bf16.msra.mxu0 %v1503
  %1569 = vmatprep.subr.bf16.mxu0 %v1506
  %1570 = vmatpush1.bf16.msra.mxu0 %v1505
  %1571 = vmatprep.subr.bf16.mxu0 %v1508
  %1572 = vmatpush1.bf16.msra.mxu0 %v1507
  %1573 = vmatprep.subr.bf16.mxu0 %v1510
  %1574 = vmatpush1.bf16.msra.mxu0 %v1509
  %1575 = vmatprep.subr.bf16.mxu0 %v1512
  %1576 = vmatpush1.bf16.msra.mxu0 %v1511
  %1577 = vmatprep.mubr.bf16.mxu0 %v1340
  %1578 = vmatmul.mubr.bf16.gmra.mrb[0].mxu0 %v1339
  %v1579 = vpop.f32.mrb[0].mxu0
  %v1580 = vadd.f32 %v1378, %v1579
  %v1581 = vpop.f32.mrb[0].mxu0
  %v1582 = vadd.f32 %v1382, %v1581
  %v1583 = vpop.f32.mrb[0].mxu0
  %v1584 = vpop.f32.mrb[0].mxu0
  %1585 = vdwg.mxu0
  %v1586 = vadd.f32 %v1580, %v1333
  %v1587 = vadd.f32 %v1582, %v1335
  %v1588 = vmax.f32 %v1586, 0.0
  %v1589 = vmax.f32 %v1587, 0.0
  %v1592 = vcombine.low %v1588, %v1589
  %v1594 = vunpack.c.l.s4 1983009808
  %v1595 = vunpack.c.0.s8 %v1594
  %v1596 = vlaneseq
  %v1597 = vshrl.u32 %v1596, 7
  %v1598 = vsub.s32 %v1595, %v1597
  %v1599 = vrot.slane %v1592, %v1598
  %1601 = vst [vmem:[%s8] sm:$0xf] %v1599
  // Predicated region
  $region34: #{resnet18_with_mlp.25} parent=0 // pred_check
    _
  $region35: #{resnet18_with_mlp.25} parent=0 // pred_check_branch
    %1603 = sbr.rel (0) target = $region37
  $region36: #{resnet18_with_mlp.25} parent=0 // pred_region
    _
  $region37: #{resnet18_with_mlp.25} parent=0 // pred_fallthru
    _
  // Predicated region
  $region38: #{resnet18_with_mlp.25} parent=0 // pred_check
    _
  $region39: #{resnet18_with_mlp.25} parent=0 // pred_check_branch
    %1605 = sbr.rel (0) target = $region41
  $region40: #{resnet18_with_mlp.25} parent=0 // pred_region
    _
  $region41: #{resnet18_with_mlp.25} parent=0 // pred_fallthru
    _

// kernel: resnet18_with_mlp.29
$region0: #{resnet18_with_mlp.29}
  #allocation0 [shape = 'u32[]', space=smem, size = 0x4, offset = 0x4, fixed_abs, tag = 'smem constant byte address 0x4 - core index']
  #allocation1 [shape = 'u32[144,128]{1,0:T(1,128)}', space=vmem, size = 0x12000, scoped, tag = 'internal scratch']
  %s0 = inlined_call_operand.vmem [shape: f32[1,2,512], index: 0, kind: input, shape index: {}]
  %s1 = inlined_call_operand.vmem [shape: bf16[512,512], index: 1, kind: input, shape index: {}]
  %s2 = inlined_call_operand.vmem [shape: f32[1,512], index: 2, kind: input, shape index: {}]
  %s3 = inlined_call_operand.vmem [shape: bf16[512,256], index: 3, kind: input, shape index: {}]
  %s4 = inlined_call_operand.vmem [shape: f32[1,256], index: 4, kind: input, shape index: {}]
  %s5 = inlined_call_operand.vmem [shape: bf16[256,128], index: 5, kind: input, shape index: {}]
  %s6 = inlined_call_operand.vmem [shape: f32[1,128], index: 6, kind: input, shape index: {}]
  %s7 = inlined_call_operand.hbm [shape: f32[2,128], index: 7, kind: output, shape index: {}]
  %s8 = sld [smem:[#allocation0]]
  $region38: #{resnet18_with_mlp.29} parent=0
    _
  %s10 = ssub.s32 1, %s8
  %s11 = scalar_select 0, %s10, %s8
  $region1: #{resnet18_with_mlp.29} parent=0
    #allocation2 [shape = 'u8[1024]{0}', space=vmem, size = 0x400, scoped, tag = 'output window, operand 0, single buffered']
    #allocation3 [shape = 's32[1]{0}', space=sflag, size = 0x4, scoped, tag = 'scoped memory for resnet18_with_mlp.29']
    %12 = vsyncpa [#allocation3], 0
    // Predicated region
    $region2: #{resnet18_with_mlp.29} parent=1 // pred_check
      _
    $region3: #{resnet18_with_mlp.29} parent=1 // pred_check_branch
      %14 = sbr.rel (0) target = $region5
    $region4: #{resnet18_with_mlp.29} parent=1 // pred_region
      _
    $region5: #{resnet18_with_mlp.29} parent=1 // pred_fallthru
      _
    // Predicated region
    $region6: #{resnet18_with_mlp.29} parent=1 // pred_check
      _
    $region7: #{resnet18_with_mlp.29} parent=1 // pred_check_branch
      %16 = sbr.rel (0) target = $region9
    $region8: #{resnet18_with_mlp.29} parent=1 // pred_region
      _
    $region9: #{resnet18_with_mlp.29} parent=1 // pred_fallthru
      _
    // Predicated region
    $region10: #{resnet18_with_mlp.29} parent=1 // pred_check
      _
    $region11: #{resnet18_with_mlp.29} parent=1 // pred_check_branch
      %18 = sbr.rel (0) target = $region13
    $region12: #{resnet18_with_mlp.29} parent=1 // pred_region
      _
    $region13: #{resnet18_with_mlp.29} parent=1 // pred_fallthru
      _
    // Predicated region
    $region14: #{resnet18_with_mlp.29} parent=1 // pred_check
      _
    $region15: #{resnet18_with_mlp.29} parent=1 // pred_check_branch
      %20 = sbr.rel (0) target = $region17
    $region16: #{resnet18_with_mlp.29} parent=1 // pred_region
      _
    $region17: #{resnet18_with_mlp.29} parent=1 // pred_fallthru
      _
    // Predicated region
    $region18: #{resnet18_with_mlp.29} parent=1 // pred_check
      _
    $region19: #{resnet18_with_mlp.29} parent=1 // pred_check_branch
      %22 = sbr.rel (0) target = $region21
    $region20: #{resnet18_with_mlp.29} parent=1 // pred_region
      _
    $region21: #{resnet18_with_mlp.29} parent=1 // pred_fallthru
      _
    // Predicated region
    $region22: #{resnet18_with_mlp.29} parent=1 // pred_check
      _
    $region23: #{resnet18_with_mlp.29} parent=1 // pred_check_branch
      %24 = sbr.rel (0) target = $region25
    $region24: #{resnet18_with_mlp.29} parent=1 // pred_region
      _
    $region25: #{resnet18_with_mlp.29} parent=1 // pred_fallthru
      _
    // Predicated region
    $region26: #{resnet18_with_mlp.29} parent=1 // pred_check
      _
    $region27: #{resnet18_with_mlp.29} parent=1 // pred_check_branch
      %26 = sbr.rel (0) target = $region29
    $region28: #{resnet18_with_mlp.29} parent=1 // pred_region
      _
    $region29: #{resnet18_with_mlp.29} parent=1 // pred_fallthru
      _
    %v28 = vld [vmem:[%s0] sm:$0xff]
    %v29 = vadd.f32 %v28, 0.0
    %v31 = vcombine.high %v29, %v29
    %v33 = vunpack.c.l.s4 1983009808
    %v34 = vunpack.c.0.s8 %v33
    %v35 = vlaneseq
    %v36 = vshrl.u32 %v35, 7
    %v37 = vsub.s32 %v34, %v36
    %v38 = vrot.slane %v29, %v37
    %v40 = vunpack.c.l.s4 1983009808
    %v41 = vunpack.c.0.s8 %v40
    %v42 = vlaneseq
    %v43 = vshrl.u32 %v42, 7
    %v44 = vsub.s32 %v41, %v43
    %v45 = vrot.slane %v31, %v44
    %v46 = vcombine.high %v38, %v38
    %v47 = vcombine.high %v45, %v45
    %v52 = vpack.c.bf16 %v38, %v38
    %v53 = vpack.c.bf16 %v46, %v46
    %v54 = vpack.c.bf16 %v45, %v45
    %v55 = vpack.c.bf16 %v47, %v47
    %v56 = vld [vmem:[%s1] sm:$0xff]
    %v57 = vld [vmem:[%s1 + $0x8] sm:$0xff]
    %v58 = vld [vmem:[%s1 + $0x10] sm:$0xff]
    %v59 = vld [vmem:[%s1 + $0x18] sm:$0xff]
    %v60 = vld [vmem:[%s1 + $0x20] sm:$0xff]
    %v61 = vld [vmem:[%s1 + $0x28] sm:$0xff]
    %v62 = vld [vmem:[%s1 + $0x30] sm:$0xff]
    %v63 = vld [vmem:[%s1 + $0x38] sm:$0xff]
    %v64 = vld [vmem:[%s1 + $0x40] sm:$0xff]
    %v65 = vld [vmem:[%s1 + $0x48] sm:$0xff]
    %v66 = vld [vmem:[%s1 + $0x50] sm:$0xff]
    %v67 = vld [vmem:[%s1 + $0x58] sm:$0xff]
    %v68 = vld [vmem:[%s1 + $0x60] sm:$0xff]
    %v69 = vld [vmem:[%s1 + $0x68] sm:$0xff]
    %v70 = vld [vmem:[%s1 + $0x70] sm:$0xff]
    %v71 = vld [vmem:[%s1 + $0x78] sm:$0xff]
    %v72 = vld [vmem:[%s1 + $0x80] sm:$0xff]
    %v73 = vld [vmem:[%s1 + $0x88] sm:$0xff]
    %v74 = vld [vmem:[%s1 + $0x90] sm:$0xff]
    %v75 = vld [vmem:[%s1 + $0x98] sm:$0xff]
    %v76 = vld [vmem:[%s1 + $0xa0] sm:$0xff]
    %v77 = vld [vmem:[%s1 + $0xa8] sm:$0xff]
    %v78 = vld [vmem:[%s1 + $0xb0] sm:$0xff]
    %v79 = vld [vmem:[%s1 + $0xb8] sm:$0xff]
    %v80 = vld [vmem:[%s1 + $0xc0] sm:$0xff]
    %v81 = vld [vmem:[%s1 + $0xc8] sm:$0xff]
    %v82 = vld [vmem:[%s1 + $0xd0] sm:$0xff]
    %v83 = vld [vmem:[%s1 + $0xd8] sm:$0xff]
    %v84 = vld [vmem:[%s1 + $0xe0] sm:$0xff]
    %v85 = vld [vmem:[%s1 + $0xe8] sm:$0xff]
    %v86 = vld [vmem:[%s1 + $0xf0] sm:$0xff]
    %v87 = vld [vmem:[%s1 + $0xf8] sm:$0xff]
    %v88 = vld [vmem:[%s1 + $0x100] sm:$0xff]
    %v89 = vld [vmem:[%s1 + $0x108] sm:$0xff]
    %v90 = vld [vmem:[%s1 + $0x110] sm:$0xff]
    %v91 = vld [vmem:[%s1 + $0x118] sm:$0xff]
    %v92 = vld [vmem:[%s1 + $0x120] sm:$0xff]
    %v93 = vld [vmem:[%s1 + $0x128] sm:$0xff]
    %v94 = vld [vmem:[%s1 + $0x130] sm:$0xff]
    %v95 = vld [vmem:[%s1 + $0x138] sm:$0xff]
    %v96 = vld [vmem:[%s1 + $0x140] sm:$0xff]
    %v97 = vld [vmem:[%s1 + $0x148] sm:$0xff]
    %v98 = vld [vmem:[%s1 + $0x150] sm:$0xff]
    %v99 = vld [vmem:[%s1 + $0x158] sm:$0xff]
    %v100 = vld [vmem:[%s1 + $0x160] sm:$0xff]
    %v101 = vld [vmem:[%s1 + $0x168] sm:$0xff]
    %v102 = vld [vmem:[%s1 + $0x170] sm:$0xff]
    %v103 = vld [vmem:[%s1 + $0x178] sm:$0xff]
    %v104 = vld [vmem:[%s1 + $0x180] sm:$0xff]
    %v105 = vld [vmem:[%s1 + $0x188] sm:$0xff]
    %v106 = vld [vmem:[%s1 + $0x190] sm:$0xff]
    %v107 = vld [vmem:[%s1 + $0x198] sm:$0xff]
    %v108 = vld [vmem:[%s1 + $0x1a0] sm:$0xff]
    %v109 = vld [vmem:[%s1 + $0x1a8] sm:$0xff]
    %v110 = vld [vmem:[%s1 + $0x1b0] sm:$0xff]
    %v111 = vld [vmem:[%s1 + $0x1b8] sm:$0xff]
    %v112 = vld [vmem:[%s1 + $0x1c0] sm:$0xff]
    %v113 = vld [vmem:[%s1 + $0x1c8] sm:$0xff]
    %v114 = vld [vmem:[%s1 + $0x1d0] sm:$0xff]
    %v115 = vld [vmem:[%s1 + $0x1d8] sm:$0xff]
    %v116 = vld [vmem:[%s1 + $0x1e0] sm:$0xff]
    %v117 = vld [vmem:[%s1 + $0x1e8] sm:$0xff]
    %v118 = vld [vmem:[%s1 + $0x1f0] sm:$0xff]
    %v119 = vld [vmem:[%s1 + $0x1f8] sm:$0xff]
    %v120 = vld [vmem:[%s1 + $0x200] sm:$0xff]
    %v121 = vld [vmem:[%s1 + $0x208] sm:$0xff]
    %v122 = vld [vmem:[%s1 + $0x210] sm:$0xff]
    %v123 = vld [vmem:[%s1 + $0x218] sm:$0xff]
    %v124 = vld [vmem:[%s1 + $0x220] sm:$0xff]
    %v125 = vld [vmem:[%s1 + $0x228] sm:$0xff]
    %v126 = vld [vmem:[%s1 + $0x230] sm:$0xff]
    %v127 = vld [vmem:[%s1 + $0x238] sm:$0xff]
    %v128 = vld [vmem:[%s1 + $0x240] sm:$0xff]
    %v129 = vld [vmem:[%s1 + $0x248] sm:$0xff]
    %v130 = vld [vmem:[%s1 + $0x250] sm:$0xff]
    %v131 = vld [vmem:[%s1 + $0x258] sm:$0xff]
    %v132 = vld [vmem:[%s1 + $0x260] sm:$0xff]
    %v133 = vld [vmem:[%s1 + $0x268] sm:$0xff]
    %v134 = vld [vmem:[%s1 + $0x270] sm:$0xff]
    %v135 = vld [vmem:[%s1 + $0x278] sm:$0xff]
    %v136 = vld [vmem:[%s1 + $0x280] sm:$0xff]
    %v137 = vld [vmem:[%s1 + $0x288] sm:$0xff]
    %v138 = vld [vmem:[%s1 + $0x290] sm:$0xff]
    %v139 = vld [vmem:[%s1 + $0x298] sm:$0xff]
    %v140 = vld [vmem:[%s1 + $0x2a0] sm:$0xff]
    %v141 = vld [vmem:[%s1 + $0x2a8] sm:$0xff]
    %v142 = vld [vmem:[%s1 + $0x2b0] sm:$0xff]
    %v143 = vld [vmem:[%s1 + $0x2b8] sm:$0xff]
    %v144 = vld [vmem:[%s1 + $0x2c0] sm:$0xff]
    %v145 = vld [vmem:[%s1 + $0x2c8] sm:$0xff]
    %v146 = vld [vmem:[%s1 + $0x2d0] sm:$0xff]
    %v147 = vld [vmem:[%s1 + $0x2d8] sm:$0xff]
    %v148 = vld [vmem:[%s1 + $0x2e0] sm:$0xff]
    %v149 = vld [vmem:[%s1 + $0x2e8] sm:$0xff]
    %v150 = vld [vmem:[%s1 + $0x2f0] sm:$0xff]
    %v151 = vld [vmem:[%s1 + $0x2f8] sm:$0xff]
    %v152 = vld [vmem:[%s1 + $0x300] sm:$0xff]
    %v153 = vld [vmem:[%s1 + $0x308] sm:$0xff]
    %v154 = vld [vmem:[%s1 + $0x310] sm:$0xff]
    %v155 = vld [vmem:[%s1 + $0x318] sm:$0xff]
    %v156 = vld [vmem:[%s1 + $0x320] sm:$0xff]
    %v157 = vld [vmem:[%s1 + $0x328] sm:$0xff]
    %v158 = vld [vmem:[%s1 + $0x330] sm:$0xff]
    %v159 = vld [vmem:[%s1 + $0x338] sm:$0xff]
    %v160 = vld [vmem:[%s1 + $0x340] sm:$0xff]
    %v161 = vld [vmem:[%s1 + $0x348] sm:$0xff]
    %v162 = vld [vmem:[%s1 + $0x350] sm:$0xff]
    %v163 = vld [vmem:[%s1 + $0x358] sm:$0xff]
    %v164 = vld [vmem:[%s1 + $0x360] sm:$0xff]
    %v165 = vld [vmem:[%s1 + $0x368] sm:$0xff]
    %v166 = vld [vmem:[%s1 + $0x370] sm:$0xff]
    %v167 = vld [vmem:[%s1 + $0x378] sm:$0xff]
    %v168 = vld [vmem:[%s1 + $0x380] sm:$0xff]
    %v169 = vld [vmem:[%s1 + $0x388] sm:$0xff]
    %v170 = vld [vmem:[%s1 + $0x390] sm:$0xff]
    %v171 = vld [vmem:[%s1 + $0x398] sm:$0xff]
    %v172 = vld [vmem:[%s1 + $0x3a0] sm:$0xff]
    %v173 = vld [vmem:[%s1 + $0x3a8] sm:$0xff]
    %v174 = vld [vmem:[%s1 + $0x3b0] sm:$0xff]
    %v175 = vld [vmem:[%s1 + $0x3b8] sm:$0xff]
    %v176 = vld [vmem:[%s1 + $0x3c0] sm:$0xff]
    %v177 = vld [vmem:[%s1 + $0x3c8] sm:$0xff]
    %v178 = vld [vmem:[%s1 + $0x3d0] sm:$0xff]
    %v179 = vld [vmem:[%s1 + $0x3d8] sm:$0xff]
    %v180 = vld [vmem:[%s1 + $0x3e0] sm:$0xff]
    %v181 = vld [vmem:[%s1 + $0x3e8] sm:$0xff]
    %v182 = vld [vmem:[%s1 + $0x3f0] sm:$0xff]
    %v183 = vld [vmem:[%s1 + $0x3f8] sm:$0xff]
    %v184 = vld [vmem:[%s2] sm:$0xf]
    %v186 = vlaneseq
    %v187 = vshrl.u32 %v186, 7
    %v188 = vsub.s32 0, %v187
    %v189 = vrot.slane %v184, %v188
    %v190 = vlaneseq
    %v191 = vshrl.u32 %v190, 7
    %v192 = vsub.s32 1, %v191
    %v193 = vrot.slane %v184, %v192
    %v194 = vlaneseq
    %v195 = vshrl.u32 %v194, 7
    %v196 = vsub.s32 2, %v195
    %v197 = vrot.slane %v184, %v196
    %v198 = vlaneseq
    %v199 = vshrl.u32 %v198, 7
    %v200 = vsub.s32 3, %v199
    %v201 = vrot.slane %v184, %v200
    %v334 = vunpack.c.l.b16 %v56
    %v335 = vunpack.c.h.b16 %v56
    %v336 = vunpack.c.l.b16 %v57
    %v337 = vunpack.c.h.b16 %v57
    %v338 = vunpack.c.l.b16 %v58
    %v339 = vunpack.c.h.b16 %v58
    %v340 = vunpack.c.l.b16 %v59
    %v341 = vunpack.c.h.b16 %v59
    %v342 = vunpack.c.l.b16 %v60
    %v343 = vunpack.c.h.b16 %v60
    %v344 = vunpack.c.l.b16 %v61
    %v345 = vunpack.c.h.b16 %v61
    %v346 = vunpack.c.l.b16 %v62
    %v347 = vunpack.c.h.b16 %v62
    %v348 = vunpack.c.l.b16 %v63
    %v349 = vunpack.c.h.b16 %v63
    %v350 = vunpack.c.l.b16 %v64
    %v351 = vunpack.c.h.b16 %v64
    %v352 = vunpack.c.l.b16 %v65
    %v353 = vunpack.c.h.b16 %v65
    %v354 = vunpack.c.l.b16 %v66
    %v355 = vunpack.c.h.b16 %v66
    %v356 = vunpack.c.l.b16 %v67
    %v357 = vunpack.c.h.b16 %v67
    %v358 = vunpack.c.l.b16 %v68
    %v359 = vunpack.c.h.b16 %v68
    %v360 = vunpack.c.l.b16 %v69
    %v361 = vunpack.c.h.b16 %v69
    %v362 = vunpack.c.l.b16 %v70
    %v363 = vunpack.c.h.b16 %v70
    %v364 = vunpack.c.l.b16 %v71
    %v365 = vunpack.c.h.b16 %v71
    %v366 = vunpack.c.l.b16 %v72
    %v367 = vunpack.c.h.b16 %v72
    %v368 = vunpack.c.l.b16 %v73
    %v369 = vunpack.c.h.b16 %v73
    %v370 = vunpack.c.l.b16 %v74
    %v371 = vunpack.c.h.b16 %v74
    %v372 = vunpack.c.l.b16 %v75
    %v373 = vunpack.c.h.b16 %v75
    %v374 = vunpack.c.l.b16 %v76
    %v375 = vunpack.c.h.b16 %v76
    %v376 = vunpack.c.l.b16 %v77
    %v377 = vunpack.c.h.b16 %v77
    %v378 = vunpack.c.l.b16 %v78
    %v379 = vunpack.c.h.b16 %v78
    %v380 = vunpack.c.l.b16 %v79
    %v381 = vunpack.c.h.b16 %v79
    %v382 = vunpack.c.l.b16 %v80
    %v383 = vunpack.c.h.b16 %v80
    %v384 = vunpack.c.l.b16 %v81
    %v385 = vunpack.c.h.b16 %v81
    %v386 = vunpack.c.l.b16 %v82
    %v387 = vunpack.c.h.b16 %v82
    %v388 = vunpack.c.l.b16 %v83
    %v389 = vunpack.c.h.b16 %v83
    %v390 = vunpack.c.l.b16 %v84
    %v391 = vunpack.c.h.b16 %v84
    %v392 = vunpack.c.l.b16 %v85
    %v393 = vunpack.c.h.b16 %v85
    %v394 = vunpack.c.l.b16 %v86
    %v395 = vunpack.c.h.b16 %v86
    %v396 = vunpack.c.l.b16 %v87
    %v397 = vunpack.c.h.b16 %v87
    %v398 = vunpack.c.l.b16 %v88
    %v399 = vunpack.c.h.b16 %v88
    %v400 = vunpack.c.l.b16 %v89
    %v401 = vunpack.c.h.b16 %v89
    %v402 = vunpack.c.l.b16 %v90
    %v403 = vunpack.c.h.b16 %v90
    %v404 = vunpack.c.l.b16 %v91
    %v405 = vunpack.c.h.b16 %v91
    %v406 = vunpack.c.l.b16 %v92
    %v407 = vunpack.c.h.b16 %v92
    %v408 = vunpack.c.l.b16 %v93
    %v409 = vunpack.c.h.b16 %v93
    %v410 = vunpack.c.l.b16 %v94
    %v411 = vunpack.c.h.b16 %v94
    %v412 = vunpack.c.l.b16 %v95
    %v413 = vunpack.c.h.b16 %v95
    %v414 = vunpack.c.l.b16 %v96
    %v415 = vunpack.c.h.b16 %v96
    %v416 = vunpack.c.l.b16 %v97
    %v417 = vunpack.c.h.b16 %v97
    %v418 = vunpack.c.l.b16 %v98
    %v419 = vunpack.c.h.b16 %v98
    %v420 = vunpack.c.l.b16 %v99
    %v421 = vunpack.c.h.b16 %v99
    %v422 = vunpack.c.l.b16 %v100
    %v423 = vunpack.c.h.b16 %v100
    %v424 = vunpack.c.l.b16 %v101
    %v425 = vunpack.c.h.b16 %v101
    %v426 = vunpack.c.l.b16 %v102
    %v427 = vunpack.c.h.b16 %v102
    %v428 = vunpack.c.l.b16 %v103
    %v429 = vunpack.c.h.b16 %v103
    %v430 = vunpack.c.l.b16 %v104
    %v431 = vunpack.c.h.b16 %v104
    %v432 = vunpack.c.l.b16 %v105
    %v433 = vunpack.c.h.b16 %v105
    %v434 = vunpack.c.l.b16 %v106
    %v435 = vunpack.c.h.b16 %v106
    %v436 = vunpack.c.l.b16 %v107
    %v437 = vunpack.c.h.b16 %v107
    %v438 = vunpack.c.l.b16 %v108
    %v439 = vunpack.c.h.b16 %v108
    %v440 = vunpack.c.l.b16 %v109
    %v441 = vunpack.c.h.b16 %v109
    %v442 = vunpack.c.l.b16 %v110
    %v443 = vunpack.c.h.b16 %v110
    %v444 = vunpack.c.l.b16 %v111
    %v445 = vunpack.c.h.b16 %v111
    %v446 = vunpack.c.l.b16 %v112
    %v447 = vunpack.c.h.b16 %v112
    %v448 = vunpack.c.l.b16 %v113
    %v449 = vunpack.c.h.b16 %v113
    %v450 = vunpack.c.l.b16 %v114
    %v451 = vunpack.c.h.b16 %v114
    %v452 = vunpack.c.l.b16 %v115
    %v453 = vunpack.c.h.b16 %v115
    %v454 = vunpack.c.l.b16 %v116
    %v455 = vunpack.c.h.b16 %v116
    %v456 = vunpack.c.l.b16 %v117
    %v457 = vunpack.c.h.b16 %v117
    %v458 = vunpack.c.l.b16 %v118
    %v459 = vunpack.c.h.b16 %v118
    %v460 = vunpack.c.l.b16 %v119
    %v461 = vunpack.c.h.b16 %v119
    %v462 = vunpack.c.l.b16 %v120
    %v463 = vunpack.c.h.b16 %v120
    %v464 = vunpack.c.l.b16 %v121
    %v465 = vunpack.c.h.b16 %v121
    %v466 = vunpack.c.l.b16 %v122
    %v467 = vunpack.c.h.b16 %v122
    %v468 = vunpack.c.l.b16 %v123
    %v469 = vunpack.c.h.b16 %v123
    %v470 = vunpack.c.l.b16 %v124
    %v471 = vunpack.c.h.b16 %v124
    %v472 = vunpack.c.l.b16 %v125
    %v473 = vunpack.c.h.b16 %v125
    %v474 = vunpack.c.l.b16 %v126
    %v475 = vunpack.c.h.b16 %v126
    %v476 = vunpack.c.l.b16 %v127
    %v477 = vunpack.c.h.b16 %v127
    %v478 = vunpack.c.l.b16 %v128
    %v479 = vunpack.c.h.b16 %v128
    %v480 = vunpack.c.l.b16 %v129
    %v481 = vunpack.c.h.b16 %v129
    %v482 = vunpack.c.l.b16 %v130
    %v483 = vunpack.c.h.b16 %v130
    %v484 = vunpack.c.l.b16 %v131
    %v485 = vunpack.c.h.b16 %v131
    %v486 = vunpack.c.l.b16 %v132
    %v487 = vunpack.c.h.b16 %v132
    %v488 = vunpack.c.l.b16 %v133
    %v489 = vunpack.c.h.b16 %v133
    %v490 = vunpack.c.l.b16 %v134
    %v491 = vunpack.c.h.b16 %v134
    %v492 = vunpack.c.l.b16 %v135
    %v493 = vunpack.c.h.b16 %v135
    %v494 = vunpack.c.l.b16 %v136
    %v495 = vunpack.c.h.b16 %v136
    %v496 = vunpack.c.l.b16 %v137
    %v497 = vunpack.c.h.b16 %v137
    %v498 = vunpack.c.l.b16 %v138
    %v499 = vunpack.c.h.b16 %v138
    %v500 = vunpack.c.l.b16 %v139
    %v501 = vunpack.c.h.b16 %v139
    %v502 = vunpack.c.l.b16 %v140
    %v503 = vunpack.c.h.b16 %v140
    %v504 = vunpack.c.l.b16 %v141
    %v505 = vunpack.c.h.b16 %v141
    %v506 = vunpack.c.l.b16 %v142
    %v507 = vunpack.c.h.b16 %v142
    %v508 = vunpack.c.l.b16 %v143
    %v509 = vunpack.c.h.b16 %v143
    %v510 = vunpack.c.l.b16 %v144
    %v511 = vunpack.c.h.b16 %v144
    %v512 = vunpack.c.l.b16 %v145
    %v513 = vunpack.c.h.b16 %v145
    %v514 = vunpack.c.l.b16 %v146
    %v515 = vunpack.c.h.b16 %v146
    %v516 = vunpack.c.l.b16 %v147
    %v517 = vunpack.c.h.b16 %v147
    %v518 = vunpack.c.l.b16 %v148
    %v519 = vunpack.c.h.b16 %v148
    %v520 = vunpack.c.l.b16 %v149
    %v521 = vunpack.c.h.b16 %v149
    %v522 = vunpack.c.l.b16 %v150
    %v523 = vunpack.c.h.b16 %v150
    %v524 = vunpack.c.l.b16 %v151
    %v525 = vunpack.c.h.b16 %v151
    %v526 = vunpack.c.l.b16 %v152
    %v527 = vunpack.c.h.b16 %v152
    %v528 = vunpack.c.l.b16 %v153
    %v529 = vunpack.c.h.b16 %v153
    %v530 = vunpack.c.l.b16 %v154
    %v531 = vunpack.c.h.b16 %v154
    %v532 = vunpack.c.l.b16 %v155
    %v533 = vunpack.c.h.b16 %v155
    %v534 = vunpack.c.l.b16 %v156
    %v535 = vunpack.c.h.b16 %v156
    %v536 = vunpack.c.l.b16 %v157
    %v537 = vunpack.c.h.b16 %v157
    %v538 = vunpack.c.l.b16 %v158
    %v539 = vunpack.c.h.b16 %v158
    %v540 = vunpack.c.l.b16 %v159
    %v541 = vunpack.c.h.b16 %v159
    %v542 = vunpack.c.l.b16 %v160
    %v543 = vunpack.c.h.b16 %v160
    %v544 = vunpack.c.l.b16 %v161
    %v545 = vunpack.c.h.b16 %v161
    %v546 = vunpack.c.l.b16 %v162
    %v547 = vunpack.c.h.b16 %v162
    %v548 = vunpack.c.l.b16 %v163
    %v549 = vunpack.c.h.b16 %v163
    %v550 = vunpack.c.l.b16 %v164
    %v551 = vunpack.c.h.b16 %v164
    %v552 = vunpack.c.l.b16 %v165
    %v553 = vunpack.c.h.b16 %v165
    %v554 = vunpack.c.l.b16 %v166
    %v555 = vunpack.c.h.b16 %v166
    %v556 = vunpack.c.l.b16 %v167
    %v557 = vunpack.c.h.b16 %v167
    %v558 = vunpack.c.l.b16 %v168
    %v559 = vunpack.c.h.b16 %v168
    %v560 = vunpack.c.l.b16 %v169
    %v561 = vunpack.c.h.b16 %v169
    %v562 = vunpack.c.l.b16 %v170
    %v563 = vunpack.c.h.b16 %v170
    %v564 = vunpack.c.l.b16 %v171
    %v565 = vunpack.c.h.b16 %v171
    %v566 = vunpack.c.l.b16 %v172
    %v567 = vunpack.c.h.b16 %v172
    %v568 = vunpack.c.l.b16 %v173
    %v569 = vunpack.c.h.b16 %v173
    %v570 = vunpack.c.l.b16 %v174
    %v571 = vunpack.c.h.b16 %v174
    %v572 = vunpack.c.l.b16 %v175
    %v573 = vunpack.c.h.b16 %v175
    %v574 = vunpack.c.l.b16 %v176
    %v575 = vunpack.c.h.b16 %v176
    %v576 = vunpack.c.l.b16 %v177
    %v577 = vunpack.c.h.b16 %v177
    %v578 = vunpack.c.l.b16 %v178
    %v579 = vunpack.c.h.b16 %v178
    %v580 = vunpack.c.l.b16 %v179
    %v581 = vunpack.c.h.b16 %v179
    %v582 = vunpack.c.l.b16 %v180
    %v583 = vunpack.c.h.b16 %v180
    %v584 = vunpack.c.l.b16 %v181
    %v585 = vunpack.c.h.b16 %v181
    %v586 = vunpack.c.l.b16 %v182
    %v587 = vunpack.c.h.b16 %v182
    %v588 = vunpack.c.l.b16 %v183
    %v589 = vunpack.c.h.b16 %v183
    %v590 = vpack.c.b16 %v338, %v334
    %v591 = vpack.c.b16 %v339, %v335
    %v592 = vpack.c.b16 %v340, %v336
    %v593 = vpack.c.b16 %v341, %v337
    %v594 = vpack.c.b16 %v346, %v342
    %v595 = vpack.c.b16 %v347, %v343
    %v596 = vpack.c.b16 %v348, %v344
    %v597 = vpack.c.b16 %v349, %v345
    %v598 = vpack.c.b16 %v354, %v350
    %v599 = vpack.c.b16 %v355, %v351
    %v600 = vpack.c.b16 %v356, %v352
    %v601 = vpack.c.b16 %v357, %v353
    %v602 = vpack.c.b16 %v362, %v358
    %v603 = vpack.c.b16 %v363, %v359
    %v604 = vpack.c.b16 %v364, %v360
    %v605 = vpack.c.b16 %v365, %v361
    %v606 = vpack.c.b16 %v370, %v366
    %v607 = vpack.c.b16 %v371, %v367
    %v608 = vpack.c.b16 %v372, %v368
    %v609 = vpack.c.b16 %v373, %v369
    %v610 = vpack.c.b16 %v378, %v374
    %v611 = vpack.c.b16 %v379, %v375
    %v612 = vpack.c.b16 %v380, %v376
    %v613 = vpack.c.b16 %v381, %v377
    %v614 = vpack.c.b16 %v386, %v382
    %v615 = vpack.c.b16 %v387, %v383
    %v616 = vpack.c.b16 %v388, %v384
    %v617 = vpack.c.b16 %v389, %v385
    %v618 = vpack.c.b16 %v394, %v390
    %v619 = vpack.c.b16 %v395, %v391
    %v620 = vpack.c.b16 %v396, %v392
    %v621 = vpack.c.b16 %v397, %v393
    %v622 = vpack.c.b16 %v402, %v398
    %v623 = vpack.c.b16 %v403, %v399
    %v624 = vpack.c.b16 %v404, %v400
    %v625 = vpack.c.b16 %v405, %v401
    %v626 = vpack.c.b16 %v410, %v406
    %v627 = vpack.c.b16 %v411, %v407
    %v628 = vpack.c.b16 %v412, %v408
    %v629 = vpack.c.b16 %v413, %v409
    %v630 = vpack.c.b16 %v418, %v414
    %v631 = vpack.c.b16 %v419, %v415
    %v632 = vpack.c.b16 %v420, %v416
    %v633 = vpack.c.b16 %v421, %v417
    %v634 = vpack.c.b16 %v426, %v422
    %v635 = vpack.c.b16 %v427, %v423
    %v636 = vpack.c.b16 %v428, %v424
    %v637 = vpack.c.b16 %v429, %v425
    %v638 = vpack.c.b16 %v434, %v430
    %v639 = vpack.c.b16 %v435, %v431
    %v640 = vpack.c.b16 %v436, %v432
    %v641 = vpack.c.b16 %v437, %v433
    %v642 = vpack.c.b16 %v442, %v438
    %v643 = vpack.c.b16 %v443, %v439
    %v644 = vpack.c.b16 %v444, %v440
    %v645 = vpack.c.b16 %v445, %v441
    %v646 = vpack.c.b16 %v450, %v446
    %v647 = vpack.c.b16 %v451, %v447
    %v648 = vpack.c.b16 %v452, %v448
    %v649 = vpack.c.b16 %v453, %v449
    %v650 = vpack.c.b16 %v458, %v454
    %v651 = vpack.c.b16 %v459, %v455
    %v652 = vpack.c.b16 %v460, %v456
    %v653 = vpack.c.b16 %v461, %v457
    %v654 = vpack.c.b16 %v466, %v462
    %v655 = vpack.c.b16 %v467, %v463
    %v656 = vpack.c.b16 %v468, %v464
    %v657 = vpack.c.b16 %v469, %v465
    %v658 = vpack.c.b16 %v474, %v470
    %v659 = vpack.c.b16 %v475, %v471
    %v660 = vpack.c.b16 %v476, %v472
    %v661 = vpack.c.b16 %v477, %v473
    %v662 = vpack.c.b16 %v482, %v478
    %v663 = vpack.c.b16 %v483, %v479
    %v664 = vpack.c.b16 %v484, %v480
    %v665 = vpack.c.b16 %v485, %v481
    %v666 = vpack.c.b16 %v490, %v486
    %v667 = vpack.c.b16 %v491, %v487
    %v668 = vpack.c.b16 %v492, %v488
    %v669 = vpack.c.b16 %v493, %v489
    %v670 = vpack.c.b16 %v498, %v494
    %v671 = vpack.c.b16 %v499, %v495
    %v672 = vpack.c.b16 %v500, %v496
    %v673 = vpack.c.b16 %v501, %v497
    %v674 = vpack.c.b16 %v506, %v502
    %v675 = vpack.c.b16 %v507, %v503
    %v676 = vpack.c.b16 %v508, %v504
    %v677 = vpack.c.b16 %v509, %v505
    %v678 = vpack.c.b16 %v514, %v510
    %v679 = vpack.c.b16 %v515, %v511
    %v680 = vpack.c.b16 %v516, %v512
    %v681 = vpack.c.b16 %v517, %v513
    %v682 = vpack.c.b16 %v522, %v518
    %v683 = vpack.c.b16 %v523, %v519
    %v684 = vpack.c.b16 %v524, %v520
    %v685 = vpack.c.b16 %v525, %v521
    %v686 = vpack.c.b16 %v530, %v526
    %v687 = vpack.c.b16 %v531, %v527
    %v688 = vpack.c.b16 %v532, %v528
    %v689 = vpack.c.b16 %v533, %v529
    %v690 = vpack.c.b16 %v538, %v534
    %v691 = vpack.c.b16 %v539, %v535
    %v692 = vpack.c.b16 %v540, %v536
    %v693 = vpack.c.b16 %v541, %v537
    %v694 = vpack.c.b16 %v546, %v542
    %v695 = vpack.c.b16 %v547, %v543
    %v696 = vpack.c.b16 %v548, %v544
    %v697 = vpack.c.b16 %v549, %v545
    %v698 = vpack.c.b16 %v554, %v550
    %v699 = vpack.c.b16 %v555, %v551
    %v700 = vpack.c.b16 %v556, %v552
    %v701 = vpack.c.b16 %v557, %v553
    %v702 = vpack.c.b16 %v562, %v558
    %v703 = vpack.c.b16 %v563, %v559
    %v704 = vpack.c.b16 %v564, %v560
    %v705 = vpack.c.b16 %v565, %v561
    %v706 = vpack.c.b16 %v570, %v566
    %v707 = vpack.c.b16 %v571, %v567
    %v708 = vpack.c.b16 %v572, %v568
    %v709 = vpack.c.b16 %v573, %v569
    %v710 = vpack.c.b16 %v578, %v574
    %v711 = vpack.c.b16 %v579, %v575
    %v712 = vpack.c.b16 %v580, %v576
    %v713 = vpack.c.b16 %v581, %v577
    %v714 = vpack.c.b16 %v586, %v582
    %v715 = vpack.c.b16 %v587, %v583
    %v716 = vpack.c.b16 %v588, %v584
    %v717 = vpack.c.b16 %v589, %v585
    %846 = vmatprep.subr.bf16.mxu0 %v591
    %847 = vmatpush1.bf16.msra.mxu0 %v590
    %848 = vmatprep.subr.bf16.mxu0 %v595
    %849 = vmatpush1.bf16.msra.mxu0 %v594
    %850 = vmatprep.subr.bf16.mxu0 %v599
    %851 = vmatpush1.bf16.msra.mxu0 %v598
    %852 = vmatprep.subr.bf16.mxu0 %v603
    %853 = vmatpush1.bf16.msra.mxu0 %v602
    %854 = vmatprep.subr.bf16.mxu0 %v607
    %855 = vmatpush1.bf16.msra.mxu0 %v606
    %856 = vmatprep.subr.bf16.mxu0 %v611
    %857 = vmatpush1.bf16.msra.mxu0 %v610
    %858 = vmatprep.subr.bf16.mxu0 %v615
    %859 = vmatpush1.bf16.msra.mxu0 %v614
    %860 = vmatprep.subr.bf16.mxu0 %v619
    %861 = vmatpush1.bf16.msra.mxu0 %v618
    %862 = vmatprep.subr.bf16.mxu0 %v623
    %863 = vmatpush1.bf16.msra.mxu0 %v622
    %864 = vmatprep.subr.bf16.mxu0 %v627
    %865 = vmatpush1.bf16.msra.mxu0 %v626
    %866 = vmatprep.subr.bf16.mxu0 %v631
    %867 = vmatpush1.bf16.msra.mxu0 %v630
    %868 = vmatprep.subr.bf16.mxu0 %v635
    %869 = vmatpush1.bf16.msra.mxu0 %v634
    %870 = vmatprep.subr.bf16.mxu0 %v639
    %871 = vmatpush1.bf16.msra.mxu0 %v638
    %872 = vmatprep.subr.bf16.mxu0 %v643
    %873 = vmatpush1.bf16.msra.mxu0 %v642
    %874 = vmatprep.subr.bf16.mxu0 %v647
    %875 = vmatpush1.bf16.msra.mxu0 %v646
    %876 = vmatprep.subr.bf16.mxu0 %v651
    %877 = vmatpush1.bf16.msra.mxu0 %v650
    %878 = vmatprep.mubr.bf16.mxu0 %v53
    %879 = vmatmul.mubr.bf16.gmra.mrb[0].mxu0 %v52
    %v880 = vpop.f32.mrb[0].mxu0
    %v881 = vadd.f32 %v189, %v880
    %v882 = vpop.f32.mrb[0].mxu0
    %v883 = vadd.f32 %v193, %v882
    %v884 = vpop.f32.mrb[0].mxu0
    %v885 = vpop.f32.mrb[0].mxu0
    %886 = vdwg.mxu0
    %887 = vmatprep.subr.bf16.mxu0 %v655
    %888 = vmatpush1.bf16.msra.mxu0 %v654
    %889 = vmatprep.subr.bf16.mxu0 %v659
    %890 = vmatpush1.bf16.msra.mxu0 %v658
    %891 = vmatprep.subr.bf16.mxu0 %v663
    %892 = vmatpush1.bf16.msra.mxu0 %v662
    %893 = vmatprep.subr.bf16.mxu0 %v667
    %894 = vmatpush1.bf16.msra.mxu0 %v666
    %895 = vmatprep.subr.bf16.mxu0 %v671
    %896 = vmatpush1.bf16.msra.mxu0 %v670
    %897 = vmatprep.subr.bf16.mxu0 %v675
    %898 = vmatpush1.bf16.msra.mxu0 %v674
    %899 = vmatprep.subr.bf16.mxu0 %v679
    %900 = vmatpush1.bf16.msra.mxu0 %v678
    %901 = vmatprep.subr.bf16.mxu0 %v683
    %902 = vmatpush1.bf16.msra.mxu0 %v682
    %903 = vmatprep.subr.bf16.mxu0 %v687
    %904 = vmatpush1.bf16.msra.mxu0 %v686
    %905 = vmatprep.subr.bf16.mxu0 %v691
    %906 = vmatpush1.bf16.msra.mxu0 %v690
    %907 = vmatprep.subr.bf16.mxu0 %v695
    %908 = vmatpush1.bf16.msra.mxu0 %v694
    %909 = vmatprep.subr.bf16.mxu0 %v699
    %910 = vmatpush1.bf16.msra.mxu0 %v698
    %911 = vmatprep.subr.bf16.mxu0 %v703
    %912 = vmatpush1.bf16.msra.mxu0 %v702
    %913 = vmatprep.subr.bf16.mxu0 %v707
    %914 = vmatpush1.bf16.msra.mxu0 %v706
    %915 = vmatprep.subr.bf16.mxu0 %v711
    %916 = vmatpush1.bf16.msra.mxu0 %v710
    %917 = vmatprep.subr.bf16.mxu0 %v715
    %918 = vmatpush1.bf16.msra.mxu0 %v714
    %919 = vmatprep.mubr.bf16.mxu0 %v55
    %920 = vmatmul.mubr.bf16.gmra.mrb[0].mxu0 %v54
    %v921 = vpop.f32.mrb[0].mxu0
    %v922 = vadd.f32 %v881, %v921
    %v923 = vpop.f32.mrb[0].mxu0
    %v924 = vadd.f32 %v883, %v923
    %v925 = vpop.f32.mrb[0].mxu0
    %v926 = vpop.f32.mrb[0].mxu0
    %927 = vdwg.mxu0
    %928 = vmatprep.subr.bf16.mxu0 %v593
    %929 = vmatpush1.bf16.msra.mxu0 %v592
    %930 = vmatprep.subr.bf16.mxu0 %v597
    %931 = vmatpush1.bf16.msra.mxu0 %v596
    %932 = vmatprep.subr.bf16.mxu0 %v601
    %933 = vmatpush1.bf16.msra.mxu0 %v600
    %934 = vmatprep.subr.bf16.mxu0 %v605
    %935 = vmatpush1.bf16.msra.mxu0 %v604
    %936 = vmatprep.subr.bf16.mxu0 %v609
    %937 = vmatpush1.bf16.msra.mxu0 %v608
    %938 = vmatprep.subr.bf16.mxu0 %v613
    %939 = vmatpush1.bf16.msra.mxu0 %v612
    %940 = vmatprep.subr.bf16.mxu0 %v617
    %941 = vmatpush1.bf16.msra.mxu0 %v616
    %942 = vmatprep.subr.bf16.mxu0 %v621
    %943 = vmatpush1.bf16.msra.mxu0 %v620
    %944 = vmatprep.subr.bf16.mxu0 %v625
    %945 = vmatpush1.bf16.msra.mxu0 %v624
    %946 = vmatprep.subr.bf16.mxu0 %v629
    %947 = vmatpush1.bf16.msra.mxu0 %v628
    %948 = vmatprep.subr.bf16.mxu0 %v633
    %949 = vmatpush1.bf16.msra.mxu0 %v632
    %950 = vmatprep.subr.bf16.mxu0 %v637
    %951 = vmatpush1.bf16.msra.mxu0 %v636
    %952 = vmatprep.subr.bf16.mxu0 %v641
    %953 = vmatpush1.bf16.msra.mxu0 %v640
    %954 = vmatprep.subr.bf16.mxu0 %v645
    %955 = vmatpush1.bf16.msra.mxu0 %v644
    %956 = vmatprep.subr.bf16.mxu0 %v649
    %957 = vmatpush1.bf16.msra.mxu0 %v648
    %958 = vmatprep.subr.bf16.mxu0 %v653
    %959 = vmatpush1.bf16.msra.mxu0 %v652
    %960 = vmatprep.mubr.bf16.mxu0 %v53
    %961 = vmatmul.mubr.bf16.gmra.mrb[0].mxu0 %v52
    %v962 = vpop.f32.mrb[0].mxu0
    %v963 = vadd.f32 %v197, %v962
    %v964 = vpop.f32.mrb[0].mxu0
    %v965 = vadd.f32 %v201, %v964
    %v966 = vpop.f32.mrb[0].mxu0
    %v967 = vpop.f32.mrb[0].mxu0
    %968 = vdwg.mxu0
    %969 = vmatprep.subr.bf16.mxu0 %v657
    %970 = vmatpush1.bf16.msra.mxu0 %v656
    %971 = vmatprep.subr.bf16.mxu0 %v661
    %972 = vmatpush1.bf16.msra.mxu0 %v660
    %973 = vmatprep.subr.bf16.mxu0 %v665
    %974 = vmatpush1.bf16.msra.mxu0 %v664
    %975 = vmatprep.subr.bf16.mxu0 %v669
    %976 = vmatpush1.bf16.msra.mxu0 %v668
    %977 = vmatprep.subr.bf16.mxu0 %v673
    %978 = vmatpush1.bf16.msra.mxu0 %v672
    %979 = vmatprep.subr.bf16.mxu0 %v677
    %980 = vmatpush1.bf16.msra.mxu0 %v676
    %981 = vmatprep.subr.bf16.mxu0 %v681
    %982 = vmatpush1.bf16.msra.mxu0 %v680
    %983 = vmatprep.subr.bf16.mxu0 %v685
    %984 = vmatpush1.bf16.msra.mxu0 %v684
    %985 = vmatprep.subr.bf16.mxu0 %v689
    %986 = vmatpush1.bf16.msra.mxu0 %v688
    %987 = vmatprep.subr.bf16.mxu0 %v693
    %988 = vmatpush1.bf16.msra.mxu0 %v692
    %989 = vmatprep.subr.bf16.mxu0 %v697
    %990 = vmatpush1.bf16.msra.mxu0 %v696
    %991 = vmatprep.subr.bf16.mxu0 %v701
    %992 = vmatpush1.bf16.msra.mxu0 %v700
    %993 = vmatprep.subr.bf16.mxu0 %v705
    %994 = vmatpush1.bf16.msra.mxu0 %v704
    %995 = vmatprep.subr.bf16.mxu0 %v709
    %996 = vmatpush1.bf16.msra.mxu0 %v708
    %997 = vmatprep.subr.bf16.mxu0 %v713
    %998 = vmatpush1.bf16.msra.mxu0 %v712
    %999 = vmatprep.subr.bf16.mxu0 %v717
    %1000 = vmatpush1.bf16.msra.mxu0 %v716
    %1001 = vmatprep.mubr.bf16.mxu0 %v55
    %1002 = vmatmul.mubr.bf16.gmra.mrb[0].mxu0 %v54
    %v1003 = vpop.f32.mrb[0].mxu0
    %v1004 = vadd.f32 %v963, %v1003
    %v1005 = vpop.f32.mrb[0].mxu0
    %v1006 = vadd.f32 %v965, %v1005
    %v1007 = vpop.f32.mrb[0].mxu0
    %v1008 = vpop.f32.mrb[0].mxu0
    %1009 = vdwg.mxu0
    %v1010 = vmax.f32 %v922, 0.0
    %v1011 = vmax.f32 %v924, 0.0
    %v1012 = vmax.f32 %v1004, 0.0
    %v1013 = vmax.f32 %v1006, 0.0
    %v1014 = vpack.c.bf16 %v1010, %v1010
    %v1015 = vpack.c.bf16 %v1011, %v1011
    %v1016 = vpack.c.bf16 %v1012, %v1012
    %v1017 = vpack.c.bf16 %v1013, %v1013
    %v1018 = vld [vmem:[%s3] sm:$0xff]
    %v1019 = vld [vmem:[%s3 + $0x8] sm:$0xff]
    %v1020 = vld [vmem:[%s3 + $0x10] sm:$0xff]
    %v1021 = vld [vmem:[%s3 + $0x18] sm:$0xff]
    %v1022 = vld [vmem:[%s3 + $0x20] sm:$0xff]
    %v1023 = vld [vmem:[%s3 + $0x28] sm:$0xff]
    %v1024 = vld [vmem:[%s3 + $0x30] sm:$0xff]
    %v1025 = vld [vmem:[%s3 + $0x38] sm:$0xff]
    %v1026 = vld [vmem:[%s3 + $0x40] sm:$0xff]
    %v1027 = vld [vmem:[%s3 + $0x48] sm:$0xff]
    %v1028 = vld [vmem:[%s3 + $0x50] sm:$0xff]
    %v1029 = vld [vmem:[%s3 + $0x58] sm:$0xff]
    %v1030 = vld [vmem:[%s3 + $0x60] sm:$0xff]
    %v1031 = vld [vmem:[%s3 + $0x68] sm:$0xff]
    %v1032 = vld [vmem:[%s3 + $0x70] sm:$0xff]
    %v1033 = vld [vmem:[%s3 + $0x78] sm:$0xff]
    %v1034 = vld [vmem:[%s3 + $0x80] sm:$0xff]
    %v1035 = vld [vmem:[%s3 + $0x88] sm:$0xff]
    %v1036 = vld [vmem:[%s3 + $0x90] sm:$0xff]
    %v1037 = vld [vmem:[%s3 + $0x98] sm:$0xff]
    %v1038 = vld [vmem:[%s3 + $0xa0] sm:$0xff]
    %v1039 = vld [vmem:[%s3 + $0xa8] sm:$0xff]
    %v1040 = vld [vmem:[%s3 + $0xb0] sm:$0xff]
    %v1041 = vld [vmem:[%s3 + $0xb8] sm:$0xff]
    %v1042 = vld [vmem:[%s3 + $0xc0] sm:$0xff]
    %v1043 = vld [vmem:[%s3 + $0xc8] sm:$0xff]
    %v1044 = vld [vmem:[%s3 + $0xd0] sm:$0xff]
    %v1045 = vld [vmem:[%s3 + $0xd8] sm:$0xff]
    %v1046 = vld [vmem:[%s3 + $0xe0] sm:$0xff]
    %v1047 = vld [vmem:[%s3 + $0xe8] sm:$0xff]
    %v1048 = vld [vmem:[%s3 + $0xf0] sm:$0xff]
    %v1049 = vld [vmem:[%s3 + $0xf8] sm:$0xff]
    %v1050 = vld [vmem:[%s3 + $0x100] sm:$0xff]
    %v1051 = vld [vmem:[%s3 + $0x108] sm:$0xff]
    %v1052 = vld [vmem:[%s3 + $0x110] sm:$0xff]
    %v1053 = vld [vmem:[%s3 + $0x118] sm:$0xff]
    %v1054 = vld [vmem:[%s3 + $0x120] sm:$0xff]
    %v1055 = vld [vmem:[%s3 + $0x128] sm:$0xff]
    %v1056 = vld [vmem:[%s3 + $0x130] sm:$0xff]
    %v1057 = vld [vmem:[%s3 + $0x138] sm:$0xff]
    %v1058 = vld [vmem:[%s3 + $0x140] sm:$0xff]
    %v1059 = vld [vmem:[%s3 + $0x148] sm:$0xff]
    %v1060 = vld [vmem:[%s3 + $0x150] sm:$0xff]
    %v1061 = vld [vmem:[%s3 + $0x158] sm:$0xff]
    %v1062 = vld [vmem:[%s3 + $0x160] sm:$0xff]
    %v1063 = vld [vmem:[%s3 + $0x168] sm:$0xff]
    %v1064 = vld [vmem:[%s3 + $0x170] sm:$0xff]
    %v1065 = vld [vmem:[%s3 + $0x178] sm:$0xff]
    %v1066 = vld [vmem:[%s3 + $0x180] sm:$0xff]
    %v1067 = vld [vmem:[%s3 + $0x188] sm:$0xff]
    %v1068 = vld [vmem:[%s3 + $0x190] sm:$0xff]
    %v1069 = vld [vmem:[%s3 + $0x198] sm:$0xff]
    %v1070 = vld [vmem:[%s3 + $0x1a0] sm:$0xff]
    %v1071 = vld [vmem:[%s3 + $0x1a8] sm:$0xff]
    %v1072 = vld [vmem:[%s3 + $0x1b0] sm:$0xff]
    %v1073 = vld [vmem:[%s3 + $0x1b8] sm:$0xff]
    %v1074 = vld [vmem:[%s3 + $0x1c0] sm:$0xff]
    %v1075 = vld [vmem:[%s3 + $0x1c8] sm:$0xff]
    %v1076 = vld [vmem:[%s3 + $0x1d0] sm:$0xff]
    %v1077 = vld [vmem:[%s3 + $0x1d8] sm:$0xff]
    %v1078 = vld [vmem:[%s3 + $0x1e0] sm:$0xff]
    %v1079 = vld [vmem:[%s3 + $0x1e8] sm:$0xff]
    %v1080 = vld [vmem:[%s3 + $0x1f0] sm:$0xff]
    %v1081 = vld [vmem:[%s3 + $0x1f8] sm:$0xff]
    %v1082 = vld [vmem:[%s4] sm:$0x3]
    %v1084 = vlaneseq
    %v1085 = vshrl.u32 %v1084, 7
    %v1086 = vsub.s32 0, %v1085
    %v1087 = vrot.slane %v1082, %v1086
    %v1088 = vlaneseq
    %v1089 = vshrl.u32 %v1088, 7
    %v1090 = vsub.s32 1, %v1089
    %v1091 = vrot.slane %v1082, %v1090
    %v1158 = vunpack.c.l.b16 %v1018
    %v1159 = vunpack.c.h.b16 %v1018
    %v1160 = vunpack.c.l.b16 %v1019
    %v1161 = vunpack.c.h.b16 %v1019
    %v1162 = vunpack.c.l.b16 %v1020
    %v1163 = vunpack.c.h.b16 %v1020
    %v1164 = vunpack.c.l.b16 %v1021
    %v1165 = vunpack.c.h.b16 %v1021
    %v1166 = vunpack.c.l.b16 %v1022
    %v1167 = vunpack.c.h.b16 %v1022
    %v1168 = vunpack.c.l.b16 %v1023
    %v1169 = vunpack.c.h.b16 %v1023
    %v1170 = vunpack.c.l.b16 %v1024
    %v1171 = vunpack.c.h.b16 %v1024
    %v1172 = vunpack.c.l.b16 %v1025
    %v1173 = vunpack.c.h.b16 %v1025
    %v1174 = vunpack.c.l.b16 %v1026
    %v1175 = vunpack.c.h.b16 %v1026
    %v1176 = vunpack.c.l.b16 %v1027
    %v1177 = vunpack.c.h.b16 %v1027
    %v1178 = vunpack.c.l.b16 %v1028
    %v1179 = vunpack.c.h.b16 %v1028
    %v1180 = vunpack.c.l.b16 %v1029
    %v1181 = vunpack.c.h.b16 %v1029
    %v1182 = vunpack.c.l.b16 %v1030
    %v1183 = vunpack.c.h.b16 %v1030
    %v1184 = vunpack.c.l.b16 %v1031
    %v1185 = vunpack.c.h.b16 %v1031
    %v1186 = vunpack.c.l.b16 %v1032
    %v1187 = vunpack.c.h.b16 %v1032
    %v1188 = vunpack.c.l.b16 %v1033
    %v1189 = vunpack.c.h.b16 %v1033
    %v1190 = vunpack.c.l.b16 %v1034
    %v1191 = vunpack.c.h.b16 %v1034
    %v1192 = vunpack.c.l.b16 %v1035
    %v1193 = vunpack.c.h.b16 %v1035
    %v1194 = vunpack.c.l.b16 %v1036
    %v1195 = vunpack.c.h.b16 %v1036
    %v1196 = vunpack.c.l.b16 %v1037
    %v1197 = vunpack.c.h.b16 %v1037
    %v1198 = vunpack.c.l.b16 %v1038
    %v1199 = vunpack.c.h.b16 %v1038
    %v1200 = vunpack.c.l.b16 %v1039
    %v1201 = vunpack.c.h.b16 %v1039
    %v1202 = vunpack.c.l.b16 %v1040
    %v1203 = vunpack.c.h.b16 %v1040
    %v1204 = vunpack.c.l.b16 %v1041
    %v1205 = vunpack.c.h.b16 %v1041
    %v1206 = vunpack.c.l.b16 %v1042
    %v1207 = vunpack.c.h.b16 %v1042
    %v1208 = vunpack.c.l.b16 %v1043
    %v1209 = vunpack.c.h.b16 %v1043
    %v1210 = vunpack.c.l.b16 %v1044
    %v1211 = vunpack.c.h.b16 %v1044
    %v1212 = vunpack.c.l.b16 %v1045
    %v1213 = vunpack.c.h.b16 %v1045
    %v1214 = vunpack.c.l.b16 %v1046
    %v1215 = vunpack.c.h.b16 %v1046
    %v1216 = vunpack.c.l.b16 %v1047
    %v1217 = vunpack.c.h.b16 %v1047
    %v1218 = vunpack.c.l.b16 %v1048
    %v1219 = vunpack.c.h.b16 %v1048
    %v1220 = vunpack.c.l.b16 %v1049
    %v1221 = vunpack.c.h.b16 %v1049
    %v1222 = vunpack.c.l.b16 %v1050
    %v1223 = vunpack.c.h.b16 %v1050
    %v1224 = vunpack.c.l.b16 %v1051
    %v1225 = vunpack.c.h.b16 %v1051
    %v1226 = vunpack.c.l.b16 %v1052
    %v1227 = vunpack.c.h.b16 %v1052
    %v1228 = vunpack.c.l.b16 %v1053
    %v1229 = vunpack.c.h.b16 %v1053
    %v1230 = vunpack.c.l.b16 %v1054
    %v1231 = vunpack.c.h.b16 %v1054
    %v1232 = vunpack.c.l.b16 %v1055
    %v1233 = vunpack.c.h.b16 %v1055
    %v1234 = vunpack.c.l.b16 %v1056
    %v1235 = vunpack.c.h.b16 %v1056
    %v1236 = vunpack.c.l.b16 %v1057
    %v1237 = vunpack.c.h.b16 %v1057
    %v1238 = vunpack.c.l.b16 %v1058
    %v1239 = vunpack.c.h.b16 %v1058
    %v1240 = vunpack.c.l.b16 %v1059
    %v1241 = vunpack.c.h.b16 %v1059
    %v1242 = vunpack.c.l.b16 %v1060
    %v1243 = vunpack.c.h.b16 %v1060
    %v1244 = vunpack.c.l.b16 %v1061
    %v1245 = vunpack.c.h.b16 %v1061
    %v1246 = vunpack.c.l.b16 %v1062
    %v1247 = vunpack.c.h.b16 %v1062
    %v1248 = vunpack.c.l.b16 %v1063
    %v1249 = vunpack.c.h.b16 %v1063
    %v1250 = vunpack.c.l.b16 %v1064
    %v1251 = vunpack.c.h.b16 %v1064
    %v1252 = vunpack.c.l.b16 %v1065
    %v1253 = vunpack.c.h.b16 %v1065
    %v1254 = vunpack.c.l.b16 %v1066
    %v1255 = vunpack.c.h.b16 %v1066
    %v1256 = vunpack.c.l.b16 %v1067
    %v1257 = vunpack.c.h.b16 %v1067
    %v1258 = vunpack.c.l.b16 %v1068
    %v1259 = vunpack.c.h.b16 %v1068
    %v1260 = vunpack.c.l.b16 %v1069
    %v1261 = vunpack.c.h.b16 %v1069
    %v1262 = vunpack.c.l.b16 %v1070
    %v1263 = vunpack.c.h.b16 %v1070
    %v1264 = vunpack.c.l.b16 %v1071
    %v1265 = vunpack.c.h.b16 %v1071
    %v1266 = vunpack.c.l.b16 %v1072
    %v1267 = vunpack.c.h.b16 %v1072
    %v1268 = vunpack.c.l.b16 %v1073
    %v1269 = vunpack.c.h.b16 %v1073
    %v1270 = vunpack.c.l.b16 %v1074
    %v1271 = vunpack.c.h.b16 %v1074
    %v1272 = vunpack.c.l.b16 %v1075
    %v1273 = vunpack.c.h.b16 %v1075
    %v1274 = vunpack.c.l.b16 %v1076
    %v1275 = vunpack.c.h.b16 %v1076
    %v1276 = vunpack.c.l.b16 %v1077
    %v1277 = vunpack.c.h.b16 %v1077
    %v1278 = vunpack.c.l.b16 %v1078
    %v1279 = vunpack.c.h.b16 %v1078
    %v1280 = vunpack.c.l.b16 %v1079
    %v1281 = vunpack.c.h.b16 %v1079
    %v1282 = vunpack.c.l.b16 %v1080
    %v1283 = vunpack.c.h.b16 %v1080
    %v1284 = vunpack.c.l.b16 %v1081
    %v1285 = vunpack.c.h.b16 %v1081
    %v1286 = vpack.c.b16 %v1160, %v1158
    %v1287 = vpack.c.b16 %v1161, %v1159
    %v1288 = vpack.c.b16 %v1164, %v1162
    %v1289 = vpack.c.b16 %v1165, %v1163
    %v1290 = vpack.c.b16 %v1168, %v1166
    %v1291 = vpack.c.b16 %v1169, %v1167
    %v1292 = vpack.c.b16 %v1172, %v1170
    %v1293 = vpack.c.b16 %v1173, %v1171
    %v1294 = vpack.c.b16 %v1176, %v1174
    %v1295 = vpack.c.b16 %v1177, %v1175
    %v1296 = vpack.c.b16 %v1180, %v1178
    %v1297 = vpack.c.b16 %v1181, %v1179
    %v1298 = vpack.c.b16 %v1184, %v1182
    %v1299 = vpack.c.b16 %v1185, %v1183
    %v1300 = vpack.c.b16 %v1188, %v1186
    %v1301 = vpack.c.b16 %v1189, %v1187
    %v1302 = vpack.c.b16 %v1192, %v1190
    %v1303 = vpack.c.b16 %v1193, %v1191
    %v1304 = vpack.c.b16 %v1196, %v1194
    %v1305 = vpack.c.b16 %v1197, %v1195
    %v1306 = vpack.c.b16 %v1200, %v1198
    %v1307 = vpack.c.b16 %v1201, %v1199
    %v1308 = vpack.c.b16 %v1204, %v1202
    %v1309 = vpack.c.b16 %v1205, %v1203
    %v1310 = vpack.c.b16 %v1208, %v1206
    %v1311 = vpack.c.b16 %v1209, %v1207
    %v1312 = vpack.c.b16 %v1212, %v1210
    %v1313 = vpack.c.b16 %v1213, %v1211
    %v1314 = vpack.c.b16 %v1216, %v1214
    %v1315 = vpack.c.b16 %v1217, %v1215
    %v1316 = vpack.c.b16 %v1220, %v1218
    %v1317 = vpack.c.b16 %v1221, %v1219
    %v1318 = vpack.c.b16 %v1224, %v1222
    %v1319 = vpack.c.b16 %v1225, %v1223
    %v1320 = vpack.c.b16 %v1228, %v1226
    %v1321 = vpack.c.b16 %v1229, %v1227
    %v1322 = vpack.c.b16 %v1232, %v1230
    %v1323 = vpack.c.b16 %v1233, %v1231
    %v1324 = vpack.c.b16 %v1236, %v1234
    %v1325 = vpack.c.b16 %v1237, %v1235
    %v1326 = vpack.c.b16 %v1240, %v1238
    %v1327 = vpack.c.b16 %v1241, %v1239
    %v1328 = vpack.c.b16 %v1244, %v1242
    %v1329 = vpack.c.b16 %v1245, %v1243
    %v1330 = vpack.c.b16 %v1248, %v1246
    %v1331 = vpack.c.b16 %v1249, %v1247
    %v1332 = vpack.c.b16 %v1252, %v1250
    %v1333 = vpack.c.b16 %v1253, %v1251
    %v1334 = vpack.c.b16 %v1256, %v1254
    %v1335 = vpack.c.b16 %v1257, %v1255
    %v1336 = vpack.c.b16 %v1260, %v1258
    %v1337 = vpack.c.b16 %v1261, %v1259
    %v1338 = vpack.c.b16 %v1264, %v1262
    %v1339 = vpack.c.b16 %v1265, %v1263
    %v1340 = vpack.c.b16 %v1268, %v1266
    %v1341 = vpack.c.b16 %v1269, %v1267
    %v1342 = vpack.c.b16 %v1272, %v1270
    %v1343 = vpack.c.b16 %v1273, %v1271
    %v1344 = vpack.c.b16 %v1276, %v1274
    %v1345 = vpack.c.b16 %v1277, %v1275
    %v1346 = vpack.c.b16 %v1280, %v1278
    %v1347 = vpack.c.b16 %v1281, %v1279
    %v1348 = vpack.c.b16 %v1284, %v1282
    %v1349 = vpack.c.b16 %v1285, %v1283
    %1414 = vmatprep.subr.bf16.mxu0 %v1287
    %1415 = vmatpush1.bf16.msra.mxu0 %v1286
    %1416 = vmatprep.subr.bf16.mxu0 %v1289
    %1417 = vmatpush1.bf16.msra.mxu0 %v1288
    %1418 = vmatprep.subr.bf16.mxu0 %v1291
    %1419 = vmatpush1.bf16.msra.mxu0 %v1290
    %1420 = vmatprep.subr.bf16.mxu0 %v1293
    %1421 = vmatpush1.bf16.msra.mxu0 %v1292
    %1422 = vmatprep.subr.bf16.mxu0 %v1295
    %1423 = vmatpush1.bf16.msra.mxu0 %v1294
    %1424 = vmatprep.subr.bf16.mxu0 %v1297
    %1425 = vmatpush1.bf16.msra.mxu0 %v1296
    %1426 = vmatprep.subr.bf16.mxu0 %v1299
    %1427 = vmatpush1.bf16.msra.mxu0 %v1298
    %1428 = vmatprep.subr.bf16.mxu0 %v1301
    %1429 = vmatpush1.bf16.msra.mxu0 %v1300
    %1430 = vmatprep.subr.bf16.mxu0 %v1303
    %1431 = vmatpush1.bf16.msra.mxu0 %v1302
    %1432 = vmatprep.subr.bf16.mxu0 %v1305
    %1433 = vmatpush1.bf16.msra.mxu0 %v1304
    %1434 = vmatprep.subr.bf16.mxu0 %v1307
    %1435 = vmatpush1.bf16.msra.mxu0 %v1306
    %1436 = vmatprep.subr.bf16.mxu0 %v1309
    %1437 = vmatpush1.bf16.msra.mxu0 %v1308
    %1438 = vmatprep.subr.bf16.mxu0 %v1311
    %1439 = vmatpush1.bf16.msra.mxu0 %v1310
    %1440 = vmatprep.subr.bf16.mxu0 %v1313
    %1441 = vmatpush1.bf16.msra.mxu0 %v1312
    %1442 = vmatprep.subr.bf16.mxu0 %v1315
    %1443 = vmatpush1.bf16.msra.mxu0 %v1314
    %1444 = vmatprep.subr.bf16.mxu0 %v1317
    %1445 = vmatpush1.bf16.msra.mxu0 %v1316
    %1446 = vmatprep.mubr.bf16.mxu0 %v1015
    %1447 = vmatmul.mubr.bf16.gmra.mrb[0].mxu0 %v1014
    %v1448 = vpop.f32.mrb[0].mxu0
    %v1449 = vadd.f32 %v1087, %v1448
    %v1450 = vpop.f32.mrb[0].mxu0
    %v1451 = vadd.f32 %v1091, %v1450
    %v1452 = vpop.f32.mrb[0].mxu0
    %v1453 = vpop.f32.mrb[0].mxu0
    %1454 = vdwg.mxu0
    %1455 = vmatprep.subr.bf16.mxu0 %v1319
    %1456 = vmatpush1.bf16.msra.mxu0 %v1318
    %1457 = vmatprep.subr.bf16.mxu0 %v1321
    %1458 = vmatpush1.bf16.msra.mxu0 %v1320
    %1459 = vmatprep.subr.bf16.mxu0 %v1323
    %1460 = vmatpush1.bf16.msra.mxu0 %v1322
    %1461 = vmatprep.subr.bf16.mxu0 %v1325
    %1462 = vmatpush1.bf16.msra.mxu0 %v1324
    %1463 = vmatprep.subr.bf16.mxu0 %v1327
    %1464 = vmatpush1.bf16.msra.mxu0 %v1326
    %1465 = vmatprep.subr.bf16.mxu0 %v1329
    %1466 = vmatpush1.bf16.msra.mxu0 %v1328
    %1467 = vmatprep.subr.bf16.mxu0 %v1331
    %1468 = vmatpush1.bf16.msra.mxu0 %v1330
    %1469 = vmatprep.subr.bf16.mxu0 %v1333
    %1470 = vmatpush1.bf16.msra.mxu0 %v1332
    %1471 = vmatprep.subr.bf16.mxu0 %v1335
    %1472 = vmatpush1.bf16.msra.mxu0 %v1334
    %1473 = vmatprep.subr.bf16.mxu0 %v1337
    %1474 = vmatpush1.bf16.msra.mxu0 %v1336
    %1475 = vmatprep.subr.bf16.mxu0 %v1339
    %1476 = vmatpush1.bf16.msra.mxu0 %v1338
    %1477 = vmatprep.subr.bf16.mxu0 %v1341
    %1478 = vmatpush1.bf16.msra.mxu0 %v1340
    %1479 = vmatprep.subr.bf16.mxu0 %v1343
    %1480 = vmatpush1.bf16.msra.mxu0 %v1342
    %1481 = vmatprep.subr.bf16.mxu0 %v1345
    %1482 = vmatpush1.bf16.msra.mxu0 %v1344
    %1483 = vmatprep.subr.bf16.mxu0 %v1347
    %1484 = vmatpush1.bf16.msra.mxu0 %v1346
    %1485 = vmatprep.subr.bf16.mxu0 %v1349
    %1486 = vmatpush1.bf16.msra.mxu0 %v1348
    %1487 = vmatprep.mubr.bf16.mxu0 %v1017
    %1488 = vmatmul.mubr.bf16.gmra.mrb[0].mxu0 %v1016
    %v1489 = vpop.f32.mrb[0].mxu0
    %v1490 = vadd.f32 %v1449, %v1489
    %v1491 = vpop.f32.mrb[0].mxu0
    %v1492 = vadd.f32 %v1451, %v1491
    %v1493 = vpop.f32.mrb[0].mxu0
    %v1494 = vpop.f32.mrb[0].mxu0
    %1495 = vdwg.mxu0
    %v1496 = vmax.f32 %v1490, 0.0
    %v1497 = vmax.f32 %v1492, 0.0
    %v1498 = vpack.c.bf16 %v1496, %v1496
    %v1499 = vpack.c.bf16 %v1497, %v1497
    %v1500 = vld [vmem:[%s5] sm:$0xf]
    %v1501 = vld [vmem:[%s5 + $0x4] sm:$0xf]
    %v1502 = vld [vmem:[%s5 + $0x8] sm:$0xf]
    %v1503 = vld [vmem:[%s5 + $0xc] sm:$0xf]
    %v1504 = vld [vmem:[%s5 + $0x10] sm:$0xf]
    %v1505 = vld [vmem:[%s5 + $0x14] sm:$0xf]
    %v1506 = vld [vmem:[%s5 + $0x18] sm:$0xf]
    %v1507 = vld [vmem:[%s5 + $0x1c] sm:$0xf]
    %v1508 = vld [vmem:[%s5 + $0x20] sm:$0xf]
    %v1509 = vld [vmem:[%s5 + $0x24] sm:$0xf]
    %v1510 = vld [vmem:[%s5 + $0x28] sm:$0xf]
    %v1511 = vld [vmem:[%s5 + $0x2c] sm:$0xf]
    %v1512 = vld [vmem:[%s5 + $0x30] sm:$0xf]
    %v1513 = vld [vmem:[%s5 + $0x34] sm:$0xf]
    %v1514 = vld [vmem:[%s5 + $0x38] sm:$0xf]
    %v1515 = vld [vmem:[%s5 + $0x3c] sm:$0xf]
    %v1516 = vld [vmem:[%s5 + $0x40] sm:$0xf]
    %v1517 = vld [vmem:[%s5 + $0x44] sm:$0xf]
    %v1518 = vld [vmem:[%s5 + $0x48] sm:$0xf]
    %v1519 = vld [vmem:[%s5 + $0x4c] sm:$0xf]
    %v1520 = vld [vmem:[%s5 + $0x50] sm:$0xf]
    %v1521 = vld [vmem:[%s5 + $0x54] sm:$0xf]
    %v1522 = vld [vmem:[%s5 + $0x58] sm:$0xf]
    %v1523 = vld [vmem:[%s5 + $0x5c] sm:$0xf]
    %v1524 = vld [vmem:[%s5 + $0x60] sm:$0xf]
    %v1525 = vld [vmem:[%s5 + $0x64] sm:$0xf]
    %v1526 = vld [vmem:[%s5 + $0x68] sm:$0xf]
    %v1527 = vld [vmem:[%s5 + $0x6c] sm:$0xf]
    %v1528 = vld [vmem:[%s5 + $0x70] sm:$0xf]
    %v1529 = vld [vmem:[%s5 + $0x74] sm:$0xf]
    %v1530 = vld [vmem:[%s5 + $0x78] sm:$0xf]
    %v1531 = vld [vmem:[%s5 + $0x7c] sm:$0xf]
    %v1532 = vld [vmem:[%s6] sm:$0x1]
    %v1534 = vlaneseq
    %v1535 = vshrl.u32 %v1534, 7
    %v1536 = vsub.s32 0, %v1535
    %v1537 = vrot.slane %v1532, %v1536
    %v1571 = vunpack.c.l.b16 %v1500
    %v1572 = vunpack.c.l.b16 %v1501
    %v1573 = vunpack.c.l.b16 %v1502
    %v1574 = vunpack.c.l.b16 %v1503
    %v1575 = vunpack.c.l.b16 %v1504
    %v1576 = vunpack.c.l.b16 %v1505
    %v1577 = vunpack.c.l.b16 %v1506
    %v1578 = vunpack.c.l.b16 %v1507
    %v1579 = vunpack.c.l.b16 %v1508
    %v1580 = vunpack.c.l.b16 %v1509
    %v1581 = vunpack.c.l.b16 %v1510
    %v1582 = vunpack.c.l.b16 %v1511
    %v1583 = vunpack.c.l.b16 %v1512
    %v1584 = vunpack.c.l.b16 %v1513
    %v1585 = vunpack.c.l.b16 %v1514
    %v1586 = vunpack.c.l.b16 %v1515
    %v1587 = vunpack.c.l.b16 %v1516
    %v1588 = vunpack.c.l.b16 %v1517
    %v1589 = vunpack.c.l.b16 %v1518
    %v1590 = vunpack.c.l.b16 %v1519
    %v1591 = vunpack.c.l.b16 %v1520
    %v1592 = vunpack.c.l.b16 %v1521
    %v1593 = vunpack.c.l.b16 %v1522
    %v1594 = vunpack.c.l.b16 %v1523
    %v1595 = vunpack.c.l.b16 %v1524
    %v1596 = vunpack.c.l.b16 %v1525
    %v1597 = vunpack.c.l.b16 %v1526
    %v1598 = vunpack.c.l.b16 %v1527
    %v1599 = vunpack.c.l.b16 %v1528
    %v1600 = vunpack.c.l.b16 %v1529
    %v1601 = vunpack.c.l.b16 %v1530
    %v1602 = vunpack.c.l.b16 %v1531
    %v1603 = vpack.c.b16 %v1572, %v1571
    %v1604 = vpack.c.b16 %v1574, %v1573
    %v1605 = vpack.c.b16 %v1576, %v1575
    %v1606 = vpack.c.b16 %v1578, %v1577
    %v1607 = vpack.c.b16 %v1580, %v1579
    %v1608 = vpack.c.b16 %v1582, %v1581
    %v1609 = vpack.c.b16 %v1584, %v1583
    %v1610 = vpack.c.b16 %v1586, %v1585
    %v1611 = vpack.c.b16 %v1588, %v1587
    %v1612 = vpack.c.b16 %v1590, %v1589
    %v1613 = vpack.c.b16 %v1592, %v1591
    %v1614 = vpack.c.b16 %v1594, %v1593
    %v1615 = vpack.c.b16 %v1596, %v1595
    %v1616 = vpack.c.b16 %v1598, %v1597
    %v1617 = vpack.c.b16 %v1600, %v1599
    %v1618 = vpack.c.b16 %v1602, %v1601
    %1635 = vmatprep.subr.bf16.mxu0 0
    %1636 = vmatpush1.bf16.msra.mxu0 %v1603
    %1637 = vmatprep.subr.bf16.mxu0 0
    %1638 = vmatpush1.bf16.msra.mxu0 %v1604
    %1639 = vmatprep.subr.bf16.mxu0 0
    %1640 = vmatpush1.bf16.msra.mxu0 %v1605
    %1641 = vmatprep.subr.bf16.mxu0 0
    %1642 = vmatpush1.bf16.msra.mxu0 %v1606
    %1643 = vmatprep.subr.bf16.mxu0 0
    %1644 = vmatpush1.bf16.msra.mxu0 %v1607
    %1645 = vmatprep.subr.bf16.mxu0 0
    %1646 = vmatpush1.bf16.msra.mxu0 %v1608
    %1647 = vmatprep.subr.bf16.mxu0 0
    %1648 = vmatpush1.bf16.msra.mxu0 %v1609
    %1649 = vmatprep.subr.bf16.mxu0 0
    %1650 = vmatpush1.bf16.msra.mxu0 %v1610
    %1651 = vmatprep.subr.bf16.mxu0 0
    %1652 = vmatpush1.bf16.msra.mxu0 %v1611
    %1653 = vmatprep.subr.bf16.mxu0 0
    %1654 = vmatpush1.bf16.msra.mxu0 %v1612
    %1655 = vmatprep.subr.bf16.mxu0 0
    %1656 = vmatpush1.bf16.msra.mxu0 %v1613
    %1657 = vmatprep.subr.bf16.mxu0 0
    %1658 = vmatpush1.bf16.msra.mxu0 %v1614
    %1659 = vmatprep.subr.bf16.mxu0 0
    %1660 = vmatpush1.bf16.msra.mxu0 %v1615
    %1661 = vmatprep.subr.bf16.mxu0 0
    %1662 = vmatpush1.bf16.msra.mxu0 %v1616
    %1663 = vmatprep.subr.bf16.mxu0 0
    %1664 = vmatpush1.bf16.msra.mxu0 %v1617
    %1665 = vmatprep.subr.bf16.mxu0 0
    %1666 = vmatpush1.bf16.msra.mxu0 %v1618
    %1667 = vmatprep.mubr.bf16.mxu0 %v1499
    %1668 = vmatmul.mubr.bf16.gmra.mrb[0].mxu0 %v1498
    %v1669 = vpop.f32.mrb[0].mxu0
    %v1670 = vadd.f32 %v1537, %v1669
    %v1671 = vpop.f32.mrb[0].mxu0
    %v1672 = vpop.f32.mrb[0].mxu0
    %v1673 = vpop.f32.mrb[0].mxu0
    %1674 = vdwg.mxu0
    %v1675 = vsub.f32 0.0, %v1670
    %v1676 = vmul.f32 %v1675, 1.442695
    %v1677 = vpow.pop %v1676
    %v1678 = vadd.f32 %v1677, 1.0
    %v1679 = vrcp.pop %v1678
    %v1680 = vmul.f32 1.0, %v1679
    %1681 = vst [vmem:[#allocation2] sm:$0x3] %v1680
    // Predicated region
    $region30: #{resnet18_with_mlp.29} parent=1 // pred_check
      _
    $region31: #{resnet18_with_mlp.29} parent=1 // pred_check_branch
      %1683 = sbr.rel (0) target = $region33
    $region32: #{resnet18_with_mlp.29} parent=1 // pred_region
      %s1685 = ssub.s32 32, 32
      %1686 = vsyncadd [#allocation3], %s1685
      %s1688 = sshll.u32 [#allocation2], 4
      %s1689 = int_to_ptr.vmem [resolvable:$true] %s1688
      %1691 = dma.vmem_to_hbm [thread:$0]  %s1689, 32, %s7, [#allocation3]
    $region33: #{resnet18_with_mlp.29} parent=1 // pred_fallthru
      _
    // Predicated region
    $region34: #{resnet18_with_mlp.29} parent=1 // pred_check
      _
    $region35: #{resnet18_with_mlp.29} parent=1 // pred_check_branch
      %1693 = sbr.rel (0) target = $region37
    $region36: #{resnet18_with_mlp.29} parent=1 // pred_region
      %1694 = dma.done [#allocation3], 32
    $region37: #{resnet18_with_mlp.29} parent=1 // pred_fallthru
      _
    %1695 = vsyncpa [#allocation3], 1

</llo_original>
